<compile_context>
chip_gen: v6e
topology: v6e:2x2x1
jax: 0.10.0
libtpu: 0.0.40
codegen_flags: <defaults>
</compile_context>

<pallas_src>
import jax
import jax.numpy as jnp
import numpy as np
from jax.experimental import pallas as pl
from jax.experimental.pallas import tpu as pltpu


def _round_up(x, m):
    return ((x + m - 1) // m) * m


def _conv_out(n):
    return (n - 3) // 2 + 1


# ---------------------------------------------------------------------------
# In-kernel building block: 3x3 / stride-2 / valid conv + bias + ReLU
# on a [Hin, NP, Win*Cin] activation, via 3 banded MXU matmuls (one per kh).
# ---------------------------------------------------------------------------
def _conv3x3_s2_relu_band(x3, w_ref, b_ref):
    """x3   : [Hin(even), NP, Win*Cin] f32 value.
       w_ref: [3, Win*Cin, Wout*Cout] bf16 ref (banded weights, see prepare_params).
       b_ref: [1, Wout*Cout] f32 ref (bias tiled over ow).
       Returns [OH, NP, Wout*Cout] f32 (post bias+ReLU)."""
    Hin, NPb, K = x3.shape
    Ncols = w_ref.shape[2]
    OH = _conv_out(Hin)

    # Parity split of the leading (H) dim only; minor (sublane, lane) dims
    # untouched -> layout-trivial.
    xs = x3.reshape(Hin // 2, 2, NPb, K)

    acc = None
    for kh in range(3):
        qh, rh = divmod(kh, 2)
        tap = xs[qh:qh + OH, rh]                     # rows 2*oh+kh -> [OH, NP, K]
        # [OH, NP, K] -> [OH*NP, K]: NP == 8 == f32 sublane tile -> trivial merge.
        lhs = tap.reshape(OH * NPb, K).astype(jnp.bfloat16)
        part = jnp.dot(lhs, w_ref[kh], preferred_element_type=jnp.float32)
        acc = part if acc is None else acc + part
    out = jnp.maximum(acc + b_ref[...], 0.0)         # f32 bias + ReLU epilogue
    return out.reshape(OH, NPb, Ncols)


def _mynet_fused_kernel(x_ref, w1_ref, b1_ref, w2_ref, b2_ref,
                        w3_ref, b3_ref, fcw_ref, fcb_ref, out_ref):
    a1 = _conv3x3_s2_relu_band(x_ref[...], w1_ref, b1_ref)   # [18, NP, 17*32]
    a2 = _conv3x3_s2_relu_band(a1, w2_ref, b2_ref)           # [ 8, NP,  8*64]
    a3 = _conv3x3_s2_relu_band(a2, w3_ref, b3_ref)           # [ 3, NP, 3*128]

    # Global average pool, part 1: sum over oh (leading dim) -> pure VPU adds.
    pooled = jnp.sum(a3, axis=0)                             # [NP, OW3*128]
    # Part 2 (sum over ow) + 1/(OH3*OW3) scale are folded into fcw_ref.
    logits = jnp.dot(pooled.astype(jnp.bfloat16), fcw_ref[...],
                     preferred_element_type=jnp.float32) + fcb_ref[...]
    out_ref[...] = logits.astype(out_ref.dtype)              # [NP, 8]


# ---------------------------------------------------------------------------
# Host-side parameter handling (one-time, OUTSIDE the jitted forward)
# ---------------------------------------------------------------------------
def init_params(key):
    """PyTorch-layout parameters for MyNet."""
    ks = jax.random.split(key, 8)

    def conv_w(k, cout, cin, kh, kw):
        scale = 1.0 / jnp.sqrt(cin * kh * kw)
        return jax.random.uniform(k, (cout, cin, kh, kw), jnp.float32, -scale, scale)

    def lin_w(k, fout, fin):
        scale = 1.0 / jnp.sqrt(fin)
        return jax.random.uniform(k, (fout, fin), jnp.float32, -scale, scale)

    return {
        "conv1_w": conv_w(ks[0], 32, 3, 3, 3),
        "conv1_b": jax.random.uniform(ks[1], (32,), jnp.float32, -0.1, 0.1),
        "conv2_w": conv_w(ks[2], 64, 32, 3, 3),
        "conv2_b": jax.random.uniform(ks[3], (64,), jnp.float32, -0.1, 0.1),
        "conv3_w": conv_w(ks[4], 128, 64, 3, 3),
        "conv3_b": jax.random.uniform(ks[5], (128,), jnp.float32, -0.1, 0.1),
        "fc1_w": lin_w(ks[6], 8, 128),          # PyTorch Linear: [out, in]
        "fc1_b": jax.random.uniform(ks[7], (8,), jnp.float32, -0.1, 0.1),
    }


def prepare_params(params, image_hw):
    """One-time re-layout: PyTorch-layout params -> kernel-ready layout.

    For each conv layer we build, per kh, a banded matrix
        B[kh][(w*Cin + c), (ow*Cout + co)] = W[co, c, kh, w - 2*ow]  (0 <= w-2*ow <= 2)
    so the stride-2 window selection along W happens inside the contraction.
    The FC weight absorbs the avg-pool (sum over ow + 1/(OH3*OW3) scale).
    """
    H, W = image_hw

    def band(w, win):
        w = np.asarray(w, np.float32)
        cout, cin, KH, KW = w.shape
        wout = (win - KW) // 2 + 1
        B = np.zeros((KH, win * cin, wout * cout), np.float32)
        for kh in range(KH):
            for kw in range(KW):
                blk = w[:, :, kh, kw].T                      # [cin, cout]
                for ow in range(wout):
                    wc = 2 * ow + kw
                    B[kh, wc * cin:(wc + 1) * cin, ow * cout:(ow + 1) * cout] = blk
        return jnp.asarray(B, jnp.bfloat16), wout

    def bias(b, wout):
        b = np.asarray(b, np.float32)
        return jnp.asarray(np.tile(b, wout)[None, :], jnp.float32)

    w1, ow1 = band(params["conv1_w"], W)
    w2, ow2 = band(params["conv2_w"], ow1)
    w3, ow3 = band(params["conv3_w"], ow2)

    oh1 = _conv_out(H); oh2 = _conv_out(oh1); oh3 = _conv_out(oh2)
    fcw = np.asarray(params["fc1_w"], np.float32)            # [8, 128]
    fcw_eff = np.tile(fcw.T, (ow3, 1)) / float(oh3 * ow3)    # [ow3*128, 8]

    return {
        "w1": w1, "b1": bias(params["conv1_b"], ow1),
        "w2": w2, "b2": bias(params["conv2_b"], ow2),
        "w3": w3, "b3": bias(params["conv3_b"], ow3),
        "fc_w": jnp.asarray(fcw_eff, jnp.bfloat16),
        "fc_b": jnp.asarray(np.asarray(params["fc1_b"], np.float32)[None, :],
                            jnp.float32),
    }


# ---------------------------------------------------------------------------
# Forward pass: one tiny input re-layout + ONE fused Pallas kernel
# ---------------------------------------------------------------------------
@jax.jit
def mynet_forward(prepared, x_nchw):
    """MyNet forward.  x_nchw: [N, 3, H, W] float32 (PyTorch layout) -> [N, 8]."""
    N, C, H, W = x_nchw.shape
    NP = _round_up(max(N, 1), 8)
    # Pad H so that H and the conv1 output height are even (parity reshapes);
    # the pad rows are never read by any tap that feeds a real output.
    Hp = H + ((2 - H) % 4)

    h1r, h2r, h3r = _conv_out(H), _conv_out(_conv_out(H)), _conv_out(_conv_out(_conv_out(H)))
    h1p = _conv_out(Hp); h2p = _conv_out(h1p); h3p = _conv_out(h2p)
    assert h1p % 2 == 0 and h2p % 2 == 0, "unsupported input height for this kernel"
    assert h2p == h2r and h3p == h3r, "unsupported input height for this kernel"
    assert prepared["w1"].shape[1] == W * C, "prepare_params was built for a different width"

    # Single small re-layout: NCHW -> [H, N, W*C] (lane-dense: 105 real lanes),
    # pad batch -> NP (sublane tile) and height -> Hp.  ~150 KiB, not ~5.3 MiB.
    x = jnp.transpose(x_nchw, (2, 0, 3, 1)).reshape(H, N, W * C)
    x = jnp.pad(x, ((0, Hp - H), (0, NP - N), (0, 0)))

    n_out = prepared["fc_w"].shape[1]
    vmem = lambda: pl.BlockSpec(memory_space=pltpu.MemorySpace.VMEM)
    out = pl.pallas_call(
        _mynet_fused_kernel,
        out_shape=jax.ShapeDtypeStruct((NP, n_out), jnp.float32),
        in_specs=[vmem() for _ in range(9)],
        out_specs=vmem(),
        compiler_params=pltpu.CompilerParams(vmem_limit_bytes=32 * 1024 * 1024),
    )(x, prepared["w1"], prepared["b1"], prepared["w2"], prepared["b2"],
      prepared["w3"], prepared["b3"], prepared["fc_w"], prepared["fc_b"])
    return out[:N]                                            # drop padded batch rows


# ---------------------------------------------------------------------------
# Pure-JAX reference (the PyTorch spec) for a correctness check
# ---------------------------------------------------------------------------
def mynet_reference(params, x):
    def conv(h, w, b):
        y = jax.lax.conv_general_dilated(
            h, w, window_strides=(2, 2), padding="VALID",
            dimension_numbers=("NCHW", "OIHW", "NCHW"))
        return jax.nn.relu(y + b[None, :, None, None])
    h = conv(x, params["conv1_w"], params["conv1_b"])
    h = conv(h, params["conv2_w"], params["conv2_b"])
    h = conv(h, params["conv3_w"], params["conv3_b"])
    pooled = jnp.mean(h, axis=(2, 3))
    return pooled @ params["fc1_w"].T + params["fc1_b"][None, :]


if __name__ == "__main__":
    key = jax.random.PRNGKey(0)
    pkey, xkey = jax.random.split(key)

    params = init_params(pkey)
    H = W = 35                                   # conv chain: 35 -> 17 -> 8 -> 3
    prepared = prepare_params(params, (H, W))    # host-side, runs once

    x = jax.random.normal(xkey, (2, 3, H, W), dtype=jnp.float32)

    out = mynet_forward(prepared, x)
    jax.block_until_ready(out)
    assert out.shape == (2, 8)

    # bf16 MXU inputs with f32 accumulation -> expect ~1e-2-level agreement.
    ref = mynet_reference(params, x)
    max_err = float(jnp.max(jnp.abs(out - ref)))
    assert jnp.allclose(out, ref, rtol=5e-2, atol=2e-2), f"max abs err {max_err}"

    print("KERNEL_OK")
</pallas_src>

<mosaic_0001>
module attributes {stable_mosaic.version = 11 : i64} {
  func.func @_mynet_fused_kernel(%arg0: memref<38x8x105xf32, #tpu.memory_space<vmem>>, %arg1: memref<3x105x544xbf16, #tpu.memory_space<vmem>>, %arg2: memref<1x544xf32, #tpu.memory_space<vmem>>, %arg3: memref<3x544x512xbf16, #tpu.memory_space<vmem>>, %arg4: memref<1x512xf32, #tpu.memory_space<vmem>>, %arg5: memref<3x512x384xbf16, #tpu.memory_space<vmem>>, %arg6: memref<1x384xf32, #tpu.memory_space<vmem>>, %arg7: memref<384x8xbf16, #tpu.memory_space<vmem>>, %arg8: memref<1x8xf32, #tpu.memory_space<vmem>>, %arg9: memref<8x8xf32, #tpu.memory_space<vmem>>) attributes {dimension_semantics = [], scalar_prefetch = 0 : i64, scratch_operands = 0 : i64, tpu.core_type = #tpu.core_type<tc>} {
    %c0 = arith.constant 0 : index
    %c0_0 = arith.constant 0 : index
    %c0_1 = arith.constant 0 : index
    %0 = vector.load %arg0[%c0, %c0_0, %c0_1] : memref<38x8x105xf32, #tpu.memory_space<vmem>>, vector<38x8x105xf32>
    %1 = vector.shape_cast %0 : vector<38x8x105xf32> to vector<19x2x8x105xf32>
    %2 = vector.extract_strided_slice %1 {offsets = [0, 0, 0, 0], sizes = [18, 1, 8, 105], strides = [1, 1, 1, 1]} : vector<19x2x8x105xf32> to vector<18x1x8x105xf32>
    %3 = vector.shape_cast %2 : vector<18x1x8x105xf32> to vector<18x8x105xf32>
    %4 = vector.shape_cast %3 : vector<18x8x105xf32> to vector<144x105xf32>
    %5 = arith.truncf %4 : vector<144x105xf32> to vector<144x105xbf16>
    %c0_2 = arith.constant 0 : index
    %c0_3 = arith.constant 0 : index
    %c0_4 = arith.constant 0 : index
    %6 = vector.load %arg1[%c0_2, %c0_3, %c0_4] : memref<3x105x544xbf16, #tpu.memory_space<vmem>>, vector<1x105x544xbf16>
    %7 = vector.shape_cast %6 : vector<1x105x544xbf16> to vector<105x544xbf16>
    %cst = arith.constant dense<0.000000e+00> : vector<144x544xf32>
    %8 = tpu.matmul %5, %7, %cst {dimension_numbers = #tpu.dot_dimension_numbers<[1], [0], [0], [1], [0, 0, 1, 1], [], []>} : vector<144x105xbf16>, vector<105x544xbf16>, vector<144x544xf32> -> vector<144x544xf32>
    %9 = vector.extract_strided_slice %1 {offsets = [0, 1, 0, 0], sizes = [18, 1, 8, 105], strides = [1, 1, 1, 1]} : vector<19x2x8x105xf32> to vector<18x1x8x105xf32>
    %10 = vector.shape_cast %9 : vector<18x1x8x105xf32> to vector<18x8x105xf32>
    %11 = vector.shape_cast %10 : vector<18x8x105xf32> to vector<144x105xf32>
    %12 = arith.truncf %11 : vector<144x105xf32> to vector<144x105xbf16>
    %c1 = arith.constant 1 : index
    %c0_5 = arith.constant 0 : index
    %c0_6 = arith.constant 0 : index
    %13 = vector.load %arg1[%c1, %c0_5, %c0_6] : memref<3x105x544xbf16, #tpu.memory_space<vmem>>, vector<1x105x544xbf16>
    %14 = vector.shape_cast %13 : vector<1x105x544xbf16> to vector<105x544xbf16>
    %cst_7 = arith.constant dense<0.000000e+00> : vector<144x544xf32>
    %15 = tpu.matmul %12, %14, %cst_7 {dimension_numbers = #tpu.dot_dimension_numbers<[1], [0], [0], [1], [0, 0, 1, 1], [], []>} : vector<144x105xbf16>, vector<105x544xbf16>, vector<144x544xf32> -> vector<144x544xf32>
    %16 = arith.addf %8, %15 : vector<144x544xf32>
    %17 = vector.extract_strided_slice %1 {offsets = [1, 0, 0, 0], sizes = [18, 1, 8, 105], strides = [1, 1, 1, 1]} : vector<19x2x8x105xf32> to vector<18x1x8x105xf32>
    %18 = vector.shape_cast %17 : vector<18x1x8x105xf32> to vector<18x8x105xf32>
    %19 = vector.shape_cast %18 : vector<18x8x105xf32> to vector<144x105xf32>
    %20 = arith.truncf %19 : vector<144x105xf32> to vector<144x105xbf16>
    %c2 = arith.constant 2 : index
    %c0_8 = arith.constant 0 : index
    %c0_9 = arith.constant 0 : index
    %21 = vector.load %arg1[%c2, %c0_8, %c0_9] : memref<3x105x544xbf16, #tpu.memory_space<vmem>>, vector<1x105x544xbf16>
    %22 = vector.shape_cast %21 : vector<1x105x544xbf16> to vector<105x544xbf16>
    %cst_10 = arith.constant dense<0.000000e+00> : vector<144x544xf32>
    %23 = tpu.matmul %20, %22, %cst_10 {dimension_numbers = #tpu.dot_dimension_numbers<[1], [0], [0], [1], [0, 0, 1, 1], [], []>} : vector<144x105xbf16>, vector<105x544xbf16>, vector<144x544xf32> -> vector<144x544xf32>
    %24 = arith.addf %16, %23 : vector<144x544xf32>
    %c0_11 = arith.constant 0 : index
    %c0_12 = arith.constant 0 : index
    %25 = vector.load %arg2[%c0_11, %c0_12] : memref<1x544xf32, #tpu.memory_space<vmem>>, vector<1x544xf32>
    %26 = vector.broadcast %25 : vector<1x544xf32> to vector<144x544xf32>
    %27 = arith.addf %24, %26 : vector<144x544xf32>
    %cst_13 = arith.constant 0.000000e+00 : f32
    %28 = vector.broadcast %cst_13 : f32 to vector<144x544xf32>
    %29 = arith.maximumf %27, %28 : vector<144x544xf32>
    %30 = vector.shape_cast %29 : vector<144x544xf32> to vector<18x8x544xf32>
    %31 = vector.shape_cast %30 : vector<18x8x544xf32> to vector<9x2x8x544xf32>
    %32 = vector.extract_strided_slice %31 {offsets = [0, 0, 0, 0], sizes = [8, 1, 8, 544], strides = [1, 1, 1, 1]} : vector<9x2x8x544xf32> to vector<8x1x8x544xf32>
    %33 = vector.shape_cast %32 : vector<8x1x8x544xf32> to vector<8x8x544xf32>
    %34 = vector.shape_cast %33 : vector<8x8x544xf32> to vector<64x544xf32>
    %35 = arith.truncf %34 : vector<64x544xf32> to vector<64x544xbf16>
    %c0_14 = arith.constant 0 : index
    %c0_15 = arith.constant 0 : index
    %c0_16 = arith.constant 0 : index
    %36 = vector.load %arg3[%c0_14, %c0_15, %c0_16] : memref<3x544x512xbf16, #tpu.memory_space<vmem>>, vector<1x544x512xbf16>
    %37 = vector.shape_cast %36 : vector<1x544x512xbf16> to vector<544x512xbf16>
    %cst_17 = arith.constant dense<0.000000e+00> : vector<64x512xf32>
    %38 = tpu.matmul %35, %37, %cst_17 {dimension_numbers = #tpu.dot_dimension_numbers<[1], [0], [0], [1], [0, 0, 1, 1], [], []>} : vector<64x544xbf16>, vector<544x512xbf16>, vector<64x512xf32> -> vector<64x512xf32>
    %39 = vector.extract_strided_slice %31 {offsets = [0, 1, 0, 0], sizes = [8, 1, 8, 544], strides = [1, 1, 1, 1]} : vector<9x2x8x544xf32> to vector<8x1x8x544xf32>
    %40 = vector.shape_cast %39 : vector<8x1x8x544xf32> to vector<8x8x544xf32>
    %41 = vector.shape_cast %40 : vector<8x8x544xf32> to vector<64x544xf32>
    %42 = arith.truncf %41 : vector<64x544xf32> to vector<64x544xbf16>
    %c1_18 = arith.constant 1 : index
    %c0_19 = arith.constant 0 : index
    %c0_20 = arith.constant 0 : index
    %43 = vector.load %arg3[%c1_18, %c0_19, %c0_20] : memref<3x544x512xbf16, #tpu.memory_space<vmem>>, vector<1x544x512xbf16>
    %44 = vector.shape_cast %43 : vector<1x544x512xbf16> to vector<544x512xbf16>
    %cst_21 = arith.constant dense<0.000000e+00> : vector<64x512xf32>
    %45 = tpu.matmul %42, %44, %cst_21 {dimension_numbers = #tpu.dot_dimension_numbers<[1], [0], [0], [1], [0, 0, 1, 1], [], []>} : vector<64x544xbf16>, vector<544x512xbf16>, vector<64x512xf32> -> vector<64x512xf32>
    %46 = arith.addf %38, %45 : vector<64x512xf32>
    %47 = vector.extract_strided_slice %31 {offsets = [1, 0, 0, 0], sizes = [8, 1, 8, 544], strides = [1, 1, 1, 1]} : vector<9x2x8x544xf32> to vector<8x1x8x544xf32>
    %48 = vector.shape_cast %47 : vector<8x1x8x544xf32> to vector<8x8x544xf32>
    %49 = vector.shape_cast %48 : vector<8x8x544xf32> to vector<64x544xf32>
    %50 = arith.truncf %49 : vector<64x544xf32> to vector<64x544xbf16>
    %c2_22 = arith.constant 2 : index
    %c0_23 = arith.constant 0 : index
    %c0_24 = arith.constant 0 : index
    %51 = vector.load %arg3[%c2_22, %c0_23, %c0_24] : memref<3x544x512xbf16, #tpu.memory_space<vmem>>, vector<1x544x512xbf16>
    %52 = vector.shape_cast %51 : vector<1x544x512xbf16> to vector<544x512xbf16>
    %cst_25 = arith.constant dense<0.000000e+00> : vector<64x512xf32>
    %53 = tpu.matmul %50, %52, %cst_25 {dimension_numbers = #tpu.dot_dimension_numbers<[1], [0], [0], [1], [0, 0, 1, 1], [], []>} : vector<64x544xbf16>, vector<544x512xbf16>, vector<64x512xf32> -> vector<64x512xf32>
    %54 = arith.addf %46, %53 : vector<64x512xf32>
    %c0_26 = arith.constant 0 : index
    %c0_27 = arith.constant 0 : index
    %55 = vector.load %arg4[%c0_26, %c0_27] : memref<1x512xf32, #tpu.memory_space<vmem>>, vector<1x512xf32>
    %56 = vector.broadcast %55 : vector<1x512xf32> to vector<64x512xf32>
    %57 = arith.addf %54, %56 : vector<64x512xf32>
    %cst_28 = arith.constant 0.000000e+00 : f32
    %58 = vector.broadcast %cst_28 : f32 to vector<64x512xf32>
    %59 = arith.maximumf %57, %58 : vector<64x512xf32>
    %60 = vector.shape_cast %59 : vector<64x512xf32> to vector<8x8x512xf32>
    %61 = vector.shape_cast %60 : vector<8x8x512xf32> to vector<4x2x8x512xf32>
    %62 = vector.extract_strided_slice %61 {offsets = [0, 0, 0, 0], sizes = [3, 1, 8, 512], strides = [1, 1, 1, 1]} : vector<4x2x8x512xf32> to vector<3x1x8x512xf32>
    %63 = vector.shape_cast %62 : vector<3x1x8x512xf32> to vector<3x8x512xf32>
    %64 = vector.shape_cast %63 : vector<3x8x512xf32> to vector<24x512xf32>
    %65 = arith.truncf %64 : vector<24x512xf32> to vector<24x512xbf16>
    %c0_29 = arith.constant 0 : index
    %c0_30 = arith.constant 0 : index
    %c0_31 = arith.constant 0 : index
    %66 = vector.load %arg5[%c0_29, %c0_30, %c0_31] : memref<3x512x384xbf16, #tpu.memory_space<vmem>>, vector<1x512x384xbf16>
    %67 = vector.shape_cast %66 : vector<1x512x384xbf16> to vector<512x384xbf16>
    %cst_32 = arith.constant dense<0.000000e+00> : vector<24x384xf32>
    %68 = tpu.matmul %65, %67, %cst_32 {dimension_numbers = #tpu.dot_dimension_numbers<[1], [0], [0], [1], [0, 0, 1, 1], [], []>} : vector<24x512xbf16>, vector<512x384xbf16>, vector<24x384xf32> -> vector<24x384xf32>
    %69 = vector.extract_strided_slice %61 {offsets = [0, 1, 0, 0], sizes = [3, 1, 8, 512], strides = [1, 1, 1, 1]} : vector<4x2x8x512xf32> to vector<3x1x8x512xf32>
    %70 = vector.shape_cast %69 : vector<3x1x8x512xf32> to vector<3x8x512xf32>
    %71 = vector.shape_cast %70 : vector<3x8x512xf32> to vector<24x512xf32>
    %72 = arith.truncf %71 : vector<24x512xf32> to vector<24x512xbf16>
    %c1_33 = arith.constant 1 : index
    %c0_34 = arith.constant 0 : index
    %c0_35 = arith.constant 0 : index
    %73 = vector.load %arg5[%c1_33, %c0_34, %c0_35] : memref<3x512x384xbf16, #tpu.memory_space<vmem>>, vector<1x512x384xbf16>
    %74 = vector.shape_cast %73 : vector<1x512x384xbf16> to vector<512x384xbf16>
    %cst_36 = arith.constant dense<0.000000e+00> : vector<24x384xf32>
    %75 = tpu.matmul %72, %74, %cst_36 {dimension_numbers = #tpu.dot_dimension_numbers<[1], [0], [0], [1], [0, 0, 1, 1], [], []>} : vector<24x512xbf16>, vector<512x384xbf16>, vector<24x384xf32> -> vector<24x384xf32>
    %76 = arith.addf %68, %75 : vector<24x384xf32>
    %77 = vector.extract_strided_slice %61 {offsets = [1, 0, 0, 0], sizes = [3, 1, 8, 512], strides = [1, 1, 1, 1]} : vector<4x2x8x512xf32> to vector<3x1x8x512xf32>
    %78 = vector.shape_cast %77 : vector<3x1x8x512xf32> to vector<3x8x512xf32>
    %79 = vector.shape_cast %78 : vector<3x8x512xf32> to vector<24x512xf32>
    %80 = arith.truncf %79 : vector<24x512xf32> to vector<24x512xbf16>
    %c2_37 = arith.constant 2 : index
    %c0_38 = arith.constant 0 : index
    %c0_39 = arith.constant 0 : index
    %81 = vector.load %arg5[%c2_37, %c0_38, %c0_39] : memref<3x512x384xbf16, #tpu.memory_space<vmem>>, vector<1x512x384xbf16>
    %82 = vector.shape_cast %81 : vector<1x512x384xbf16> to vector<512x384xbf16>
    %cst_40 = arith.constant dense<0.000000e+00> : vector<24x384xf32>
    %83 = tpu.matmul %80, %82, %cst_40 {dimension_numbers = #tpu.dot_dimension_numbers<[1], [0], [0], [1], [0, 0, 1, 1], [], []>} : vector<24x512xbf16>, vector<512x384xbf16>, vector<24x384xf32> -> vector<24x384xf32>
    %84 = arith.addf %76, %83 : vector<24x384xf32>
    %c0_41 = arith.constant 0 : index
    %c0_42 = arith.constant 0 : index
    %85 = vector.load %arg6[%c0_41, %c0_42] : memref<1x384xf32, #tpu.memory_space<vmem>>, vector<1x384xf32>
    %86 = vector.broadcast %85 : vector<1x384xf32> to vector<24x384xf32>
    %87 = arith.addf %84, %86 : vector<24x384xf32>
    %cst_43 = arith.constant 0.000000e+00 : f32
    %88 = vector.broadcast %cst_43 : f32 to vector<24x384xf32>
    %89 = arith.maximumf %87, %88 : vector<24x384xf32>
    %90 = vector.shape_cast %89 : vector<24x384xf32> to vector<3x8x384xf32>
    %cst_44 = arith.constant dense<0.000000e+00> : vector<8x384xf32>
    %91 = vector.multi_reduction <add>, %90, %cst_44 [0] : vector<3x8x384xf32> to vector<8x384xf32>
    %92 = arith.truncf %91 : vector<8x384xf32> to vector<8x384xbf16>
    %c0_45 = arith.constant 0 : index
    %c0_46 = arith.constant 0 : index
    %93 = vector.load %arg7[%c0_45, %c0_46] : memref<384x8xbf16, #tpu.memory_space<vmem>>, vector<384x8xbf16>
    %cst_47 = arith.constant dense<0.000000e+00> : vector<8x8xf32>
    %94 = tpu.matmul %92, %93, %cst_47 {dimension_numbers = #tpu.dot_dimension_numbers<[1], [0], [0], [1], [0, 0, 1, 1], [], []>} : vector<8x384xbf16>, vector<384x8xbf16>, vector<8x8xf32> -> vector<8x8xf32>
    %c0_48 = arith.constant 0 : index
    %c0_49 = arith.constant 0 : index
    %95 = vector.load %arg8[%c0_48, %c0_49] : memref<1x8xf32, #tpu.memory_space<vmem>>, vector<1x8xf32>
    %96 = vector.broadcast %95 : vector<1x8xf32> to vector<8x8xf32>
    %97 = arith.addf %94, %96 : vector<8x8xf32>
    %c0_50 = arith.constant 0 : index
    %c0_51 = arith.constant 0 : index
    %98 = vector.load %arg9[%c0_50, %c0_51] : memref<8x8xf32, #tpu.memory_space<vmem>>, vector<8x8xf32>
    tpu.vector_store %arg9[%c0_50, %c0_51], %97 {strides = array<i32>} : memref<8x8xf32, #tpu.memory_space<vmem>>, vector<8x8xf32>,
    return
  }
}

</mosaic_0001>

<llo_original>
// kernel: mynet_forward.1
$region0: #{mynet_forward.1}
  #allocation0 [shape = 'u32[]', space=smem, size = 0x4, offset = 0x4, fixed_abs, tag = 'smem constant byte address 0x4 - core index']
  #allocation1 [shape = 'u32[144,128]{1,0:T(1,128)}', space=vmem, size = 0x12000, scoped, tag = 'internal scratch']
  %s0 = inlined_call_operand.vmem [shape: f32[38,8,105], index: 0, kind: input, shape index: {}]
  %s1 = inlined_call_operand.vmem [shape: bf16[3,105,544], index: 1, kind: input, shape index: {}]
  %s2 = inlined_call_operand.hbm [shape: f32[1,544], index: 2, kind: input, shape index: {}]
  %s3 = inlined_call_operand.hbm [shape: bf16[3,544,512], index: 3, kind: input, shape index: {}]
  %s4 = inlined_call_operand.hbm [shape: f32[1,512], index: 4, kind: input, shape index: {}]
  %s5 = inlined_call_operand.vmem [shape: bf16[3,512,384], index: 5, kind: input, shape index: {}]
  %s6 = inlined_call_operand.hbm [shape: f32[1,384], index: 6, kind: input, shape index: {}]
  %s7 = inlined_call_operand.vmem [shape: bf16[384,8], index: 7, kind: input, shape index: {}]
  %s8 = inlined_call_operand.hbm [shape: f32[1,8], index: 8, kind: input, shape index: {}]
  %s9 = inlined_call_operand.vmem [shape: f32[8,8], index: 9, kind: output, shape index: {}]
  %s10 = sld [smem:[#allocation0]]
  $region66: #{mynet_forward.1} parent=0
    _
  %s12 = ssub.s32 1, %s10
  %s13 = scalar_select 0, %s12, %s10
  $region1: #{mynet_forward.1} parent=0
    #allocation2 [shape = 'u8[2560]{0}', space=vmem, size = 0xc00, scoped, tag = 'input window, operand 2, single buffered']
    #allocation3 [shape = 's32[1]{0}', space=sflag, size = 0x4, scoped, tag = 'scoped memory for mynet_forward.1']
    #allocation4 [shape = 'u8[1671168]{0}', space=vmem, size = 0x198000, scoped, tag = 'input window, operand 3, single buffered']
    #allocation5 [shape = 's32[1]{0}', space=sflag, size = 0x4, scoped, tag = 'scoped memory for mynet_forward.1']
    #allocation6 [shape = 'u8[2048]{0}', space=vmem, size = 0x800, scoped, tag = 'input window, operand 4, single buffered']
    #allocation7 [shape = 'u8[1536]{0}', space=vmem, size = 0x800, scoped, tag = 'input window, operand 6, single buffered']
    #allocation8 [shape = 's32[1]{0}', space=sflag, size = 0x4, scoped, tag = 'scoped memory for mynet_forward.1']
    #allocation9 [shape = 'u8[512]{0}', space=vmem, size = 0x400, scoped, tag = 'input window, operand 8, single buffered']
    %14 = vsyncpa [#allocation3], 0
    %15 = vsyncpa [#allocation5], 0
    %16 = vsyncpa [#allocation8], 0
    // Predicated region
    $region2: #{mynet_forward.1} parent=1 // pred_check
      _
    $region3: #{mynet_forward.1} parent=1 // pred_check_branch
      %18 = sbr.rel (0) target = $region5
    $region4: #{mynet_forward.1} parent=1 // pred_region
      _
    $region5: #{mynet_forward.1} parent=1 // pred_fallthru
      _
    // Predicated region
    $region6: #{mynet_forward.1} parent=1 // pred_check
      _
    $region7: #{mynet_forward.1} parent=1 // pred_check_branch
      %20 = sbr.rel (0) target = $region9
    $region8: #{mynet_forward.1} parent=1 // pred_region
      _
    $region9: #{mynet_forward.1} parent=1 // pred_fallthru
      _
    // Predicated region
    $region10: #{mynet_forward.1} parent=1 // pred_check
      _
    $region11: #{mynet_forward.1} parent=1 // pred_check_branch
      %22 = sbr.rel (0) target = $region13
    $region12: #{mynet_forward.1} parent=1 // pred_region
      %s24 = ssub.s32 80, 80
      %25 = vsyncadd [#allocation3], %s24
      %s27 = sshll.u32 [#allocation2], 4
      %s28 = int_to_ptr.vmem [resolvable:$true] %s27
      %30 = dma.hbm_to_vmem [thread:$0]  %s2, 80, %s28, [#allocation3]
    $region13: #{mynet_forward.1} parent=1 // pred_fallthru
      _
    // Predicated region
    $region14: #{mynet_forward.1} parent=1 // pred_check
      _
    $region15: #{mynet_forward.1} parent=1 // pred_check_branch
      %32 = sbr.rel (0) target = $region17
    $region16: #{mynet_forward.1} parent=1 // pred_region
      %s34 = ssub.s32 52224, 52224
      %35 = vsyncadd [#allocation5], %s34
      %s36 = sshll.u32 [#allocation4], 4
      %s37 = int_to_ptr.vmem [resolvable:$true] %s36
      %42 = dma.hbm_to_vmem [thread:$0]  %s3, 52224, %s37, [#allocation5], 256, 256, 16
    $region17: #{mynet_forward.1} parent=1 // pred_fallthru
      _
    // Predicated region
    $region18: #{mynet_forward.1} parent=1 // pred_check
      _
    $region19: #{mynet_forward.1} parent=1 // pred_check_branch
      %44 = sbr.rel (0) target = $region21
    $region20: #{mynet_forward.1} parent=1 // pred_region
      %s46 = ssub.s32 64, 64
      %47 = vsyncadd [#allocation5], %s46
      %s49 = sshll.u32 [#allocation6], 4
      %s50 = int_to_ptr.vmem [resolvable:$true] %s49
      %52 = dma.hbm_to_vmem [thread:$0]  %s4, 64, %s50, [#allocation5]
    $region21: #{mynet_forward.1} parent=1 // pred_fallthru
      _
    // Predicated region
    $region22: #{mynet_forward.1} parent=1 // pred_check
      _
    $region23: #{mynet_forward.1} parent=1 // pred_check_branch
      %54 = sbr.rel (0) target = $region25
    $region24: #{mynet_forward.1} parent=1 // pred_region
      _
    $region25: #{mynet_forward.1} parent=1 // pred_fallthru
      _
    // Predicated region
    $region26: #{mynet_forward.1} parent=1 // pred_check
      _
    $region27: #{mynet_forward.1} parent=1 // pred_check_branch
      %56 = sbr.rel (0) target = $region29
    $region28: #{mynet_forward.1} parent=1 // pred_region
      %s58 = ssub.s32 48, 48
      %59 = vsyncadd [#allocation8], %s58
      %s61 = sshll.u32 [#allocation7], 4
      %s62 = int_to_ptr.vmem [resolvable:$true] %s61
      %64 = dma.hbm_to_vmem [thread:$0]  %s6, 48, %s62, [#allocation8]
    $region29: #{mynet_forward.1} parent=1 // pred_fallthru
      _
    // Predicated region
    $region30: #{mynet_forward.1} parent=1 // pred_check
      _
    $region31: #{mynet_forward.1} parent=1 // pred_check_branch
      %66 = sbr.rel (0) target = $region33
    $region32: #{mynet_forward.1} parent=1 // pred_region
      _
    $region33: #{mynet_forward.1} parent=1 // pred_fallthru
      _
    // Predicated region
    $region34: #{mynet_forward.1} parent=1 // pred_check
      _
    $region35: #{mynet_forward.1} parent=1 // pred_check_branch
      %68 = sbr.rel (0) target = $region37
    $region36: #{mynet_forward.1} parent=1 // pred_region
      %s70 = ssub.s32 16, 16
      %71 = vsyncadd [#allocation8], %s70
      %s73 = sshll.u32 [#allocation9], 4
      %s74 = int_to_ptr.vmem [resolvable:$true] %s73
      %76 = dma.hbm_to_vmem [thread:$0]  %s8, 16, %s74, [#allocation8]
    $region37: #{mynet_forward.1} parent=1 // pred_fallthru
      _
    // Predicated region
    $region38: #{mynet_forward.1} parent=1 // pred_check
      _
    $region39: #{mynet_forward.1} parent=1 // pred_check_branch
      %78 = sbr.rel (0) target = $region41
    $region40: #{mynet_forward.1} parent=1 // pred_region
      %79 = dma.done [#allocation3], 80
    $region41: #{mynet_forward.1} parent=1 // pred_fallthru
      _
    // Predicated region
    $region42: #{mynet_forward.1} parent=1 // pred_check
      _
    $region43: #{mynet_forward.1} parent=1 // pred_check_branch
      %81 = sbr.rel (0) target = $region45
    $region44: #{mynet_forward.1} parent=1 // pred_region
      %82 = dma.done [#allocation5], 52224
    $region45: #{mynet_forward.1} parent=1 // pred_fallthru
      _
    // Predicated region
    $region46: #{mynet_forward.1} parent=1 // pred_check
      _
    $region47: #{mynet_forward.1} parent=1 // pred_check_branch
      %84 = sbr.rel (0) target = $region49
    $region48: #{mynet_forward.1} parent=1 // pred_region
      %85 = dma.done [#allocation5], 64
    $region49: #{mynet_forward.1} parent=1 // pred_fallthru
      _
    // Predicated region
    $region50: #{mynet_forward.1} parent=1 // pred_check
      _
    $region51: #{mynet_forward.1} parent=1 // pred_check_branch
      %87 = sbr.rel (0) target = $region53
    $region52: #{mynet_forward.1} parent=1 // pred_region
      %88 = dma.done [#allocation8], 48
    $region53: #{mynet_forward.1} parent=1 // pred_fallthru
      _
    // Predicated region
    $region54: #{mynet_forward.1} parent=1 // pred_check
      _
    $region55: #{mynet_forward.1} parent=1 // pred_check_branch
      %90 = sbr.rel (0) target = $region57
    $region56: #{mynet_forward.1} parent=1 // pred_region
      %91 = dma.done [#allocation8], 16
    $region57: #{mynet_forward.1} parent=1 // pred_fallthru
      _
    %v93 = vld [vmem:[%s0] sm:$0xff]
    %v94 = vld [vmem:[%s0 + $0x8] sm:$0xff]
    %v95 = vld [vmem:[%s0 + $0x10] sm:$0xff]
    %v96 = vld [vmem:[%s0 + $0x18] sm:$0xff]
    %v97 = vld [vmem:[%s0 + $0x20] sm:$0xff]
    %v98 = vld [vmem:[%s0 + $0x28] sm:$0xff]
    %v99 = vld [vmem:[%s0 + $0x30] sm:$0xff]
    %v100 = vld [vmem:[%s0 + $0x38] sm:$0xff]
    %v101 = vld [vmem:[%s0 + $0x40] sm:$0xff]
    %v102 = vld [vmem:[%s0 + $0x48] sm:$0xff]
    %v103 = vld [vmem:[%s0 + $0x50] sm:$0xff]
    %v104 = vld [vmem:[%s0 + $0x58] sm:$0xff]
    %v105 = vld [vmem:[%s0 + $0x60] sm:$0xff]
    %v106 = vld [vmem:[%s0 + $0x68] sm:$0xff]
    %v107 = vld [vmem:[%s0 + $0x70] sm:$0xff]
    %v108 = vld [vmem:[%s0 + $0x78] sm:$0xff]
    %v109 = vld [vmem:[%s0 + $0x80] sm:$0xff]
    %v110 = vld [vmem:[%s0 + $0x88] sm:$0xff]
    %v111 = vld [vmem:[%s0 + $0x90] sm:$0xff]
    %v112 = vld [vmem:[%s0 + $0x98] sm:$0xff]
    %v113 = vld [vmem:[%s0 + $0xa0] sm:$0xff]
    %v114 = vld [vmem:[%s0 + $0xa8] sm:$0xff]
    %v115 = vld [vmem:[%s0 + $0xb0] sm:$0xff]
    %v116 = vld [vmem:[%s0 + $0xb8] sm:$0xff]
    %v117 = vld [vmem:[%s0 + $0xc0] sm:$0xff]
    %v118 = vld [vmem:[%s0 + $0xc8] sm:$0xff]
    %v119 = vld [vmem:[%s0 + $0xd0] sm:$0xff]
    %v120 = vld [vmem:[%s0 + $0xd8] sm:$0xff]
    %v121 = vld [vmem:[%s0 + $0xe0] sm:$0xff]
    %v122 = vld [vmem:[%s0 + $0xe8] sm:$0xff]
    %v123 = vld [vmem:[%s0 + $0xf0] sm:$0xff]
    %v124 = vld [vmem:[%s0 + $0xf8] sm:$0xff]
    %v125 = vld [vmem:[%s0 + $0x100] sm:$0xff]
    %v126 = vld [vmem:[%s0 + $0x108] sm:$0xff]
    %v127 = vld [vmem:[%s0 + $0x110] sm:$0xff]
    %v128 = vld [vmem:[%s0 + $0x118] sm:$0xff]
    %v129 = vld [vmem:[%s0 + $0x120] sm:$0xff]
    %v130 = vpack.c.bf16 %v95, %v93
    %v131 = vpack.c.bf16 %v99, %v97
    %v132 = vpack.c.bf16 %v103, %v101
    %v133 = vpack.c.bf16 %v107, %v105
    %v134 = vpack.c.bf16 %v111, %v109
    %v135 = vpack.c.bf16 %v115, %v113
    %v136 = vpack.c.bf16 %v119, %v117
    %v137 = vpack.c.bf16 %v123, %v121
    %v138 = vpack.c.bf16 %v127, %v125
    %v139 = vld [vmem:[%s1] sm:$0xff]
    %v140 = vld [vmem:[%s1 + $0x8] sm:$0xff]
    %v141 = vld [vmem:[%s1 + $0x10] sm:$0xf]
    %v142 = vld [vmem:[%s1 + $0x14] sm:$0xff]
    %v143 = vld [vmem:[%s1 + $0x1c] sm:$0xff]
    %v144 = vld [vmem:[%s1 + $0x24] sm:$0xf]
    %v145 = vld [vmem:[%s1 + $0x28] sm:$0xff]
    %v146 = vld [vmem:[%s1 + $0x30] sm:$0xff]
    %v147 = vld [vmem:[%s1 + $0x38] sm:$0xf]
    %v148 = vld [vmem:[%s1 + $0x3c] sm:$0xff]
    %v149 = vld [vmem:[%s1 + $0x44] sm:$0xff]
    %v150 = vld [vmem:[%s1 + $0x4c] sm:$0xf]
    %v151 = vld [vmem:[%s1 + $0x50] sm:$0xff]
    %v152 = vld [vmem:[%s1 + $0x58] sm:$0xff]
    %v153 = vld [vmem:[%s1 + $0x60] sm:$0xf]
    %v154 = vld [vmem:[%s1 + $0x64] sm:$0xff]
    %v155 = vld [vmem:[%s1 + $0x6c] sm:$0xff]
    %v156 = vld [vmem:[%s1 + $0x74] sm:$0xf]
    %v157 = vld [vmem:[%s1 + $0x78] sm:$0xff]
    %v158 = vld [vmem:[%s1 + $0x80] sm:$0xff]
    %v159 = vld [vmem:[%s1 + $0x88] sm:$0xf]
    %v160 = vld [vmem:[%s1 + $0x8c] sm:$0xff]
    %v161 = vld [vmem:[%s1 + $0x94] sm:$0xff]
    %v162 = vld [vmem:[%s1 + $0x9c] sm:$0xf]
    %v163 = vld [vmem:[%s1 + $0xa0] sm:$0xff]
    %v164 = vld [vmem:[%s1 + $0xa8] sm:$0xff]
    %v165 = vld [vmem:[%s1 + $0xb0] sm:$0xf]
    %v166 = vld [vmem:[%s1 + $0xb4] sm:$0xff]
    %v167 = vld [vmem:[%s1 + $0xbc] sm:$0xff]
    %v168 = vld [vmem:[%s1 + $0xc4] sm:$0xf]
    %v169 = vld [vmem:[%s1 + $0xc8] sm:$0xff]
    %v170 = vld [vmem:[%s1 + $0xd0] sm:$0xff]
    %v171 = vld [vmem:[%s1 + $0xd8] sm:$0xf]
    %v172 = vld [vmem:[%s1 + $0xdc] sm:$0xff]
    %v173 = vld [vmem:[%s1 + $0xe4] sm:$0xff]
    %v174 = vld [vmem:[%s1 + $0xec] sm:$0xf]
    %v175 = vld [vmem:[%s1 + $0xf0] sm:$0xff]
    %v176 = vld [vmem:[%s1 + $0xf8] sm:$0xff]
    %v177 = vld [vmem:[%s1 + $0x100] sm:$0xf]
    %v178 = vld [vmem:[%s1 + $0x104] sm:$0x11]
    %v179 = vld [vmem:[%s1 + $0x10c] sm:$0x11]
    %v180 = vld [vmem:[%s1 + $0x114] sm:$0x1]
    %v181 = vpack.c.bf16 %v96, %v94
    %v182 = vpack.c.bf16 %v100, %v98
    %v183 = vpack.c.bf16 %v104, %v102
    %v184 = vpack.c.bf16 %v108, %v106
    %v185 = vpack.c.bf16 %v112, %v110
    %v186 = vpack.c.bf16 %v116, %v114
    %v187 = vpack.c.bf16 %v120, %v118
    %v188 = vpack.c.bf16 %v124, %v122
    %v189 = vpack.c.bf16 %v128, %v126
    %s190 = scalar_lea.vmem %s1, 280
    %v191 = vld [vmem:[%s190] sm:$0xff]
    %v192 = vld [vmem:[%s190 + $0x8] sm:$0xff]
    %v193 = vld [vmem:[%s190 + $0x10] sm:$0xf]
    %v194 = vld [vmem:[%s190 + $0x14] sm:$0xff]
    %v195 = vld [vmem:[%s190 + $0x1c] sm:$0xff]
    %v196 = vld [vmem:[%s190 + $0x24] sm:$0xf]
    %v197 = vld [vmem:[%s190 + $0x28] sm:$0xff]
    %v198 = vld [vmem:[%s190 + $0x30] sm:$0xff]
    %v199 = vld [vmem:[%s190 + $0x38] sm:$0xf]
    %v200 = vld [vmem:[%s190 + $0x3c] sm:$0xff]
    %v201 = vld [vmem:[%s190 + $0x44] sm:$0xff]
    %v202 = vld [vmem:[%s190 + $0x4c] sm:$0xf]
    %v203 = vld [vmem:[%s190 + $0x50] sm:$0xff]
    %v204 = vld [vmem:[%s190 + $0x58] sm:$0xff]
    %v205 = vld [vmem:[%s190 + $0x60] sm:$0xf]
    %v206 = vld [vmem:[%s190 + $0x64] sm:$0xff]
    %v207 = vld [vmem:[%s190 + $0x6c] sm:$0xff]
    %v208 = vld [vmem:[%s190 + $0x74] sm:$0xf]
    %v209 = vld [vmem:[%s190 + $0x78] sm:$0xff]
    %v210 = vld [vmem:[%s190 + $0x80] sm:$0xff]
    %v211 = vld [vmem:[%s190 + $0x88] sm:$0xf]
    %v212 = vld [vmem:[%s190 + $0x8c] sm:$0xff]
    %v213 = vld [vmem:[%s190 + $0x94] sm:$0xff]
    %v214 = vld [vmem:[%s190 + $0x9c] sm:$0xf]
    %v215 = vld [vmem:[%s190 + $0xa0] sm:$0xff]
    %v216 = vld [vmem:[%s190 + $0xa8] sm:$0xff]
    %v217 = vld [vmem:[%s190 + $0xb0] sm:$0xf]
    %v218 = vld [vmem:[%s190 + $0xb4] sm:$0xff]
    %v219 = vld [vmem:[%s190 + $0xbc] sm:$0xff]
    %v220 = vld [vmem:[%s190 + $0xc4] sm:$0xf]
    %v221 = vld [vmem:[%s190 + $0xc8] sm:$0xff]
    %v222 = vld [vmem:[%s190 + $0xd0] sm:$0xff]
    %v223 = vld [vmem:[%s190 + $0xd8] sm:$0xf]
    %v224 = vld [vmem:[%s190 + $0xdc] sm:$0xff]
    %v225 = vld [vmem:[%s190 + $0xe4] sm:$0xff]
    %v226 = vld [vmem:[%s190 + $0xec] sm:$0xf]
    %v227 = vld [vmem:[%s190 + $0xf0] sm:$0xff]
    %v228 = vld [vmem:[%s190 + $0xf8] sm:$0xff]
    %v229 = vld [vmem:[%s190 + $0x100] sm:$0xf]
    %v230 = vld [vmem:[%s190 + $0x104] sm:$0x11]
    %v231 = vld [vmem:[%s190 + $0x10c] sm:$0x11]
    %v232 = vld [vmem:[%s190 + $0x114] sm:$0x1]
    %v275 = vunpack.c.l.b16 %v191
    %v276 = vunpack.c.h.b16 %v191
    %v277 = vunpack.c.l.b16 %v192
    %v278 = vunpack.c.h.b16 %v192
    %v279 = vunpack.c.l.b16 %v193
    %v280 = vunpack.c.l.b16 %v194
    %v281 = vunpack.c.h.b16 %v194
    %v282 = vunpack.c.l.b16 %v195
    %v283 = vunpack.c.h.b16 %v195
    %v284 = vunpack.c.l.b16 %v196
    %v285 = vunpack.c.l.b16 %v197
    %v286 = vunpack.c.h.b16 %v197
    %v287 = vunpack.c.l.b16 %v198
    %v288 = vunpack.c.h.b16 %v198
    %v289 = vunpack.c.l.b16 %v199
    %v290 = vunpack.c.l.b16 %v200
    %v291 = vunpack.c.h.b16 %v200
    %v292 = vunpack.c.l.b16 %v201
    %v293 = vunpack.c.h.b16 %v201
    %v294 = vunpack.c.l.b16 %v202
    %v295 = vunpack.c.l.b16 %v203
    %v296 = vunpack.c.h.b16 %v203
    %v297 = vunpack.c.l.b16 %v204
    %v298 = vunpack.c.h.b16 %v204
    %v299 = vunpack.c.l.b16 %v205
    %v300 = vunpack.c.l.b16 %v206
    %v301 = vunpack.c.h.b16 %v206
    %v302 = vunpack.c.l.b16 %v207
    %v303 = vunpack.c.h.b16 %v207
    %v304 = vunpack.c.l.b16 %v208
    %v305 = vunpack.c.l.b16 %v209
    %v306 = vunpack.c.h.b16 %v209
    %v307 = vunpack.c.l.b16 %v210
    %v308 = vunpack.c.h.b16 %v210
    %v309 = vunpack.c.l.b16 %v211
    %v310 = vunpack.c.l.b16 %v212
    %v311 = vunpack.c.h.b16 %v212
    %v312 = vunpack.c.l.b16 %v213
    %v313 = vunpack.c.h.b16 %v213
    %v314 = vunpack.c.l.b16 %v214
    %v315 = vunpack.c.l.b16 %v215
    %v316 = vunpack.c.h.b16 %v215
    %v317 = vunpack.c.l.b16 %v216
    %v318 = vunpack.c.h.b16 %v216
    %v319 = vunpack.c.l.b16 %v217
    %v320 = vunpack.c.l.b16 %v218
    %v321 = vunpack.c.h.b16 %v218
    %v322 = vunpack.c.l.b16 %v219
    %v323 = vunpack.c.h.b16 %v219
    %v324 = vunpack.c.l.b16 %v220
    %v325 = vunpack.c.l.b16 %v221
    %v326 = vunpack.c.h.b16 %v221
    %v327 = vunpack.c.l.b16 %v222
    %v328 = vunpack.c.h.b16 %v222
    %v329 = vunpack.c.l.b16 %v223
    %v330 = vunpack.c.l.b16 %v224
    %v331 = vunpack.c.h.b16 %v224
    %v332 = vunpack.c.l.b16 %v225
    %v333 = vunpack.c.h.b16 %v225
    %v334 = vunpack.c.l.b16 %v226
    %v335 = vunpack.c.l.b16 %v227
    %v336 = vunpack.c.h.b16 %v227
    %v337 = vunpack.c.l.b16 %v228
    %v338 = vunpack.c.h.b16 %v228
    %v339 = vunpack.c.l.b16 %v229
    %v340 = vunpack.c.l.b16 %v230
    %v341 = vunpack.c.h.b16 %v230
    %v342 = vunpack.c.l.b16 %v231
    %v343 = vunpack.c.h.b16 %v231
    %v344 = vunpack.c.l.b16 %v232
    %v345 = vpack.c.b16 %v280, %v275
    %v346 = vpack.c.b16 %v281, %v276
    %v347 = vpack.c.b16 %v282, %v277
    %v348 = vpack.c.b16 %v283, %v278
    %v349 = vpack.c.b16 %v284, %v279
    %v350 = vpack.c.b16 %v290, %v285
    %v351 = vpack.c.b16 %v291, %v286
    %v352 = vpack.c.b16 %v292, %v287
    %v353 = vpack.c.b16 %v293, %v288
    %v354 = vpack.c.b16 %v294, %v289
    %v355 = vpack.c.b16 %v300, %v295
    %v356 = vpack.c.b16 %v301, %v296
    %v357 = vpack.c.b16 %v302, %v297
    %v358 = vpack.c.b16 %v303, %v298
    %v359 = vpack.c.b16 %v304, %v299
    %v360 = vpack.c.b16 %v310, %v305
    %v361 = vpack.c.b16 %v311, %v306
    %v362 = vpack.c.b16 %v312, %v307
    %v363 = vpack.c.b16 %v313, %v308
    %v364 = vpack.c.b16 %v314, %v309
    %v365 = vpack.c.b16 %v320, %v315
    %v366 = vpack.c.b16 %v321, %v316
    %v367 = vpack.c.b16 %v322, %v317
    %v368 = vpack.c.b16 %v323, %v318
    %v369 = vpack.c.b16 %v324, %v319
    %v370 = vpack.c.b16 %v330, %v325
    %v371 = vpack.c.b16 %v331, %v326
    %v372 = vpack.c.b16 %v332, %v327
    %v373 = vpack.c.b16 %v333, %v328
    %v374 = vpack.c.b16 %v334, %v329
    %v375 = vpack.c.b16 %v340, %v335
    %v376 = vpack.c.b16 %v341, %v336
    %v377 = vpack.c.b16 %v342, %v337
    %v378 = vpack.c.b16 %v343, %v338
    %v379 = vpack.c.b16 %v344, %v339
    %vm410 = vcmask 859136
    %v412 = vsel %vm410, %v181, 0
    %v415 = vsel %vm410, %v182, 0
    %v418 = vsel %vm410, %v183, 0
    %v421 = vsel %vm410, %v184, 0
    %v424 = vsel %vm410, %v185, 0
    %v427 = vsel %vm410, %v186, 0
    %v430 = vsel %vm410, %v187, 0
    %v433 = vsel %vm410, %v188, 0
    %v436 = vsel %vm410, %v189, 0
    %vm438 = vcmask 1043456
    %vm439 = vcmask 1044480
    %v440 = vsel %vm438, 4294967295, 65535
    %v441 = vsel %vm439, %v440, 0
    %v443 = vand.u32 %v375, %v441
    %v446 = vand.u32 %v376, %v441
    %v449 = vand.u32 %v377, %v441
    %v452 = vand.u32 %v378, %v441
    %v455 = vand.u32 %v379, %v441
    %457 = vmatprep.subr.bf16.mxu0 0
    %458 = vmatpush1.bf16.msra.mxu0 0
    %459 = vmatprep.subr.bf16.mxu0 %v446
    %460 = vmatpush1.bf16.msra.mxu0 %v443
    %461 = vmatprep.subr.bf16.mxu0 %v371
    %462 = vmatpush1.bf16.msra.mxu0 %v370
    %463 = vmatprep.subr.bf16.mxu0 %v366
    %464 = vmatpush1.bf16.msra.mxu0 %v365
    %465 = vmatprep.subr.bf16.mxu0 %v361
    %466 = vmatpush1.bf16.msra.mxu0 %v360
    %467 = vmatprep.subr.bf16.mxu0 %v356
    %468 = vmatpush1.bf16.msra.mxu0 %v355
    %469 = vmatprep.subr.bf16.mxu0 %v351
    %470 = vmatpush1.bf16.msra.mxu0 %v350
    %471 = vmatprep.subr.bf16.mxu0 %v346
    %472 = vmatpush1.bf16.msra.mxu0 %v345
    %473 = vmatprep.subr.bf16.mxu0 0
    %474 = vmatpush2.bf16.msra.mxu0 0
    %475 = vmatprep.subr.bf16.mxu0 0
    %476 = vmatpush2.bf16.msra.mxu0 0
    %477 = vmatprep.subr.bf16.mxu0 0
    %478 = vmatpush2.bf16.msra.mxu0 0
    %479 = vmatprep.subr.bf16.mxu0 0
    %480 = vmatpush2.bf16.msra.mxu0 0
    %481 = vmatprep.subr.bf16.mxu0 0
    %482 = vmatpush2.bf16.msra.mxu0 0
    %483 = vmatprep.subr.bf16.mxu0 0
    %484 = vmatpush2.bf16.msra.mxu0 0
    %485 = vmatprep.subr.bf16.mxu0 0
    %486 = vmatpush2.bf16.msra.mxu0 0
    %487 = vmatprep.subr.bf16.mxu0 0
    %488 = vmatpush2.bf16.msra.mxu0 0
    %489 = vmatprep.mubr.bf16.mxu0 0
    %490 = vmatmul.mubr.bf16.gmra.mxu0 %v412
    %v491 = vpop.f32.mrf.mxu0
    %v492 = vadd.f32 0.0, %v491
    %v493 = vpop.f32.mrf.mxu0
    %v494 = vadd.f32 0.0, %v493
    %v495 = vpop.f32.mrf.mxu0
    %v496 = vadd.f32 0.0, %v495
    %v497 = vpop.f32.mrf.mxu0
    %v498 = vadd.f32 0.0, %v497
    %499 = vmatprep.mubr.bf16.mxu0 0
    %500 = vmatmul.mubr.bf16.gmra.mxu0 %v415
    %v501 = vpop.f32.mrf.mxu0
    %v502 = vadd.f32 0.0, %v501
    %v503 = vpop.f32.mrf.mxu0
    %v504 = vadd.f32 0.0, %v503
    %v505 = vpop.f32.mrf.mxu0
    %v506 = vadd.f32 0.0, %v505
    %v507 = vpop.f32.mrf.mxu0
    %v508 = vadd.f32 0.0, %v507
    %509 = vmatprep.mubr.bf16.mxu0 0
    %510 = vmatmul.mubr.bf16.gmra.mxu0 %v418
    %v511 = vpop.f32.mrf.mxu0
    %v512 = vadd.f32 0.0, %v511
    %v513 = vpop.f32.mrf.mxu0
    %v514 = vadd.f32 0.0, %v513
    %v515 = vpop.f32.mrf.mxu0
    %v516 = vadd.f32 0.0, %v515
    %v517 = vpop.f32.mrf.mxu0
    %v518 = vadd.f32 0.0, %v517
    %519 = vmatprep.mubr.bf16.mxu0 0
    %520 = vmatmul.mubr.bf16.gmra.mxu0 %v421
    %v521 = vpop.f32.mrf.mxu0
    %v522 = vadd.f32 0.0, %v521
    %v523 = vpop.f32.mrf.mxu0
    %v524 = vadd.f32 0.0, %v523
    %v525 = vpop.f32.mrf.mxu0
    %v526 = vadd.f32 0.0, %v525
    %v527 = vpop.f32.mrf.mxu0
    %v528 = vadd.f32 0.0, %v527
    %529 = vmatprep.mubr.bf16.mxu0 0
    %530 = vmatmul.mubr.bf16.gmra.mxu0 %v424
    %v531 = vpop.f32.mrf.mxu0
    %v532 = vadd.f32 0.0, %v531
    %v533 = vpop.f32.mrf.mxu0
    %v534 = vadd.f32 0.0, %v533
    %v535 = vpop.f32.mrf.mxu0
    %v536 = vadd.f32 0.0, %v535
    %v537 = vpop.f32.mrf.mxu0
    %v538 = vadd.f32 0.0, %v537
    %539 = vmatprep.mubr.bf16.mxu0 0
    %540 = vmatmul.mubr.bf16.gmra.mxu0 %v427
    %v541 = vpop.f32.mrf.mxu0
    %v542 = vadd.f32 0.0, %v541
    %v543 = vpop.f32.mrf.mxu0
    %v544 = vadd.f32 0.0, %v543
    %v545 = vpop.f32.mrf.mxu0
    %v546 = vadd.f32 0.0, %v545
    %v547 = vpop.f32.mrf.mxu0
    %v548 = vadd.f32 0.0, %v547
    %549 = vmatprep.mubr.bf16.mxu0 0
    %550 = vmatmul.mubr.bf16.gmra.mxu0 %v430
    %v551 = vpop.f32.mrf.mxu0
    %v552 = vadd.f32 0.0, %v551
    %v553 = vpop.f32.mrf.mxu0
    %v554 = vadd.f32 0.0, %v553
    %v555 = vpop.f32.mrf.mxu0
    %v556 = vadd.f32 0.0, %v555
    %v557 = vpop.f32.mrf.mxu0
    %v558 = vadd.f32 0.0, %v557
    %559 = vmatprep.mubr.bf16.mxu0 0
    %560 = vmatmul.mubr.bf16.gmra.mxu0 %v433
    %v561 = vpop.f32.mrf.mxu0
    %v562 = vadd.f32 0.0, %v561
    %v563 = vpop.f32.mrf.mxu0
    %v564 = vadd.f32 0.0, %v563
    %v565 = vpop.f32.mrf.mxu0
    %v566 = vadd.f32 0.0, %v565
    %v567 = vpop.f32.mrf.mxu0
    %v568 = vadd.f32 0.0, %v567
    %569 = vmatprep.mubr.bf16.mxu0 0
    %570 = vmatmul.mubr.bf16.gmra.mxu0 %v436
    %v571 = vpop.f32.mrf.mxu0
    %v572 = vadd.f32 0.0, %v571
    %v573 = vpop.f32.mrf.mxu0
    %v574 = vadd.f32 0.0, %v573
    %v575 = vpop.f32.mrf.mxu0
    %v576 = vpop.f32.mrf.mxu0
    %577 = vdwg.mxu0
    %578 = vmatprep.subr.bf16.mxu0 0
    %579 = vmatpush1.bf16.msra.mxu0 0
    %580 = vmatprep.subr.bf16.mxu0 %v452
    %581 = vmatpush1.bf16.msra.mxu0 %v449
    %582 = vmatprep.subr.bf16.mxu0 %v373
    %583 = vmatpush1.bf16.msra.mxu0 %v372
    %584 = vmatprep.subr.bf16.mxu0 %v368
    %585 = vmatpush1.bf16.msra.mxu0 %v367
    %586 = vmatprep.subr.bf16.mxu0 %v363
    %587 = vmatpush1.bf16.msra.mxu0 %v362
    %588 = vmatprep.subr.bf16.mxu0 %v358
    %589 = vmatpush1.bf16.msra.mxu0 %v357
    %590 = vmatprep.subr.bf16.mxu0 %v353
    %591 = vmatpush1.bf16.msra.mxu0 %v352
    %592 = vmatprep.subr.bf16.mxu0 %v348
    %593 = vmatpush1.bf16.msra.mxu0 %v347
    %594 = vmatprep.subr.bf16.mxu0 0
    %595 = vmatpush2.bf16.msra.mxu0 0
    %596 = vmatprep.subr.bf16.mxu0 0
    %597 = vmatpush2.bf16.msra.mxu0 0
    %598 = vmatprep.subr.bf16.mxu0 0
    %599 = vmatpush2.bf16.msra.mxu0 0
    %600 = vmatprep.subr.bf16.mxu0 0
    %601 = vmatpush2.bf16.msra.mxu0 0
    %602 = vmatprep.subr.bf16.mxu0 0
    %603 = vmatpush2.bf16.msra.mxu0 0
    %604 = vmatprep.subr.bf16.mxu0 0
    %605 = vmatpush2.bf16.msra.mxu0 0
    %606 = vmatprep.subr.bf16.mxu0 0
    %607 = vmatpush2.bf16.msra.mxu0 0
    %608 = vmatprep.subr.bf16.mxu0 0
    %609 = vmatpush2.bf16.msra.mxu0 0
    %610 = vmatprep.mubr.bf16.mxu0 0
    %611 = vmatmul.mubr.bf16.gmra.mxu0 %v412
    %v612 = vpop.f32.mrf.mxu0
    %v613 = vadd.f32 0.0, %v612
    %v614 = vpop.f32.mrf.mxu0
    %v615 = vadd.f32 0.0, %v614
    %v616 = vpop.f32.mrf.mxu0
    %v617 = vadd.f32 0.0, %v616
    %v618 = vpop.f32.mrf.mxu0
    %v619 = vadd.f32 0.0, %v618
    %620 = vmatprep.mubr.bf16.mxu0 0
    %621 = vmatmul.mubr.bf16.gmra.mxu0 %v415
    %v622 = vpop.f32.mrf.mxu0
    %v623 = vadd.f32 0.0, %v622
    %v624 = vpop.f32.mrf.mxu0
    %v625 = vadd.f32 0.0, %v624
    %v626 = vpop.f32.mrf.mxu0
    %v627 = vadd.f32 0.0, %v626
    %v628 = vpop.f32.mrf.mxu0
    %v629 = vadd.f32 0.0, %v628
    %630 = vmatprep.mubr.bf16.mxu0 0
    %631 = vmatmul.mubr.bf16.gmra.mxu0 %v418
    %v632 = vpop.f32.mrf.mxu0
    %v633 = vadd.f32 0.0, %v632
    %v634 = vpop.f32.mrf.mxu0
    %v635 = vadd.f32 0.0, %v634
    %v636 = vpop.f32.mrf.mxu0
    %v637 = vadd.f32 0.0, %v636
    %v638 = vpop.f32.mrf.mxu0
    %v639 = vadd.f32 0.0, %v638
    %640 = vmatprep.mubr.bf16.mxu0 0
    %641 = vmatmul.mubr.bf16.gmra.mxu0 %v421
    %v642 = vpop.f32.mrf.mxu0
    %v643 = vadd.f32 0.0, %v642
    %v644 = vpop.f32.mrf.mxu0
    %v645 = vadd.f32 0.0, %v644
    %v646 = vpop.f32.mrf.mxu0
    %v647 = vadd.f32 0.0, %v646
    %v648 = vpop.f32.mrf.mxu0
    %v649 = vadd.f32 0.0, %v648
    %650 = vmatprep.mubr.bf16.mxu0 0
    %651 = vmatmul.mubr.bf16.gmra.mxu0 %v424
    %v652 = vpop.f32.mrf.mxu0
    %v653 = vadd.f32 0.0, %v652
    %v654 = vpop.f32.mrf.mxu0
    %v655 = vadd.f32 0.0, %v654
    %v656 = vpop.f32.mrf.mxu0
    %v657 = vadd.f32 0.0, %v656
    %v658 = vpop.f32.mrf.mxu0
    %v659 = vadd.f32 0.0, %v658
    %660 = vmatprep.mubr.bf16.mxu0 0
    %661 = vmatmul.mubr.bf16.gmra.mxu0 %v427
    %v662 = vpop.f32.mrf.mxu0
    %v663 = vadd.f32 0.0, %v662
    %v664 = vpop.f32.mrf.mxu0
    %v665 = vadd.f32 0.0, %v664
    %v666 = vpop.f32.mrf.mxu0
    %v667 = vadd.f32 0.0, %v666
    %v668 = vpop.f32.mrf.mxu0
    %v669 = vadd.f32 0.0, %v668
    %670 = vmatprep.mubr.bf16.mxu0 0
    %671 = vmatmul.mubr.bf16.gmra.mxu0 %v430
    %v672 = vpop.f32.mrf.mxu0
    %v673 = vadd.f32 0.0, %v672
    %v674 = vpop.f32.mrf.mxu0
    %v675 = vadd.f32 0.0, %v674
    %v676 = vpop.f32.mrf.mxu0
    %v677 = vadd.f32 0.0, %v676
    %v678 = vpop.f32.mrf.mxu0
    %v679 = vadd.f32 0.0, %v678
    %680 = vmatprep.mubr.bf16.mxu0 0
    %681 = vmatmul.mubr.bf16.gmra.mxu0 %v433
    %v682 = vpop.f32.mrf.mxu0
    %v683 = vadd.f32 0.0, %v682
    %v684 = vpop.f32.mrf.mxu0
    %v685 = vadd.f32 0.0, %v684
    %v686 = vpop.f32.mrf.mxu0
    %v687 = vadd.f32 0.0, %v686
    %v688 = vpop.f32.mrf.mxu0
    %v689 = vadd.f32 0.0, %v688
    %690 = vmatprep.mubr.bf16.mxu0 0
    %691 = vmatmul.mubr.bf16.gmra.mxu0 %v436
    %v692 = vpop.f32.mrf.mxu0
    %v693 = vadd.f32 0.0, %v692
    %v694 = vpop.f32.mrf.mxu0
    %v695 = vadd.f32 0.0, %v694
    %v696 = vpop.f32.mrf.mxu0
    %v697 = vpop.f32.mrf.mxu0
    %698 = vdwg.mxu0
    %699 = vmatprep.subr.bf16.mxu0 0
    %700 = vmatpush1.bf16.msra.mxu0 0
    %701 = vmatprep.subr.bf16.mxu0 0
    %702 = vmatpush1.bf16.msra.mxu0 %v455
    %703 = vmatprep.subr.bf16.mxu0 0
    %704 = vmatpush1.bf16.msra.mxu0 %v374
    %705 = vmatprep.subr.bf16.mxu0 0
    %706 = vmatpush1.bf16.msra.mxu0 %v369
    %707 = vmatprep.subr.bf16.mxu0 0
    %708 = vmatpush1.bf16.msra.mxu0 %v364
    %709 = vmatprep.subr.bf16.mxu0 0
    %710 = vmatpush1.bf16.msra.mxu0 %v359
    %711 = vmatprep.subr.bf16.mxu0 0
    %712 = vmatpush1.bf16.msra.mxu0 %v354
    %713 = vmatprep.subr.bf16.mxu0 0
    %714 = vmatpush1.bf16.msra.mxu0 %v349
    %715 = vmatprep.subr.bf16.mxu0 0
    %716 = vmatpush2.bf16.msra.mxu0 0
    %717 = vmatprep.subr.bf16.mxu0 0
    %718 = vmatpush2.bf16.msra.mxu0 0
    %719 = vmatprep.subr.bf16.mxu0 0
    %720 = vmatpush2.bf16.msra.mxu0 0
    %721 = vmatprep.subr.bf16.mxu0 0
    %722 = vmatpush2.bf16.msra.mxu0 0
    %723 = vmatprep.subr.bf16.mxu0 0
    %724 = vmatpush2.bf16.msra.mxu0 0
    %725 = vmatprep.subr.bf16.mxu0 0
    %726 = vmatpush2.bf16.msra.mxu0 0
    %727 = vmatprep.subr.bf16.mxu0 0
    %728 = vmatpush2.bf16.msra.mxu0 0
    %729 = vmatprep.subr.bf16.mxu0 0
    %730 = vmatpush2.bf16.msra.mxu0 0
    %731 = vmatprep.mubr.bf16.mxu0 0
    %732 = vmatmul.mubr.bf16.gmra.mxu0 %v412
    %v733 = vpop.f32.mrf.mxu0
    %v734 = vadd.f32 0.0, %v733
    %v735 = vpop.f32.mrf.mxu0
    %v736 = vpop.f32.mrf.mxu0
    %v737 = vadd.f32 0.0, %v736
    %v738 = vpop.f32.mrf.mxu0
    %739 = vmatprep.mubr.bf16.mxu0 0
    %740 = vmatmul.mubr.bf16.gmra.mxu0 %v415
    %v741 = vpop.f32.mrf.mxu0
    %v742 = vadd.f32 0.0, %v741
    %v743 = vpop.f32.mrf.mxu0
    %v744 = vpop.f32.mrf.mxu0
    %v745 = vadd.f32 0.0, %v744
    %v746 = vpop.f32.mrf.mxu0
    %747 = vmatprep.mubr.bf16.mxu0 0
    %748 = vmatmul.mubr.bf16.gmra.mxu0 %v418
    %v749 = vpop.f32.mrf.mxu0
    %v750 = vadd.f32 0.0, %v749
    %v751 = vpop.f32.mrf.mxu0
    %v752 = vpop.f32.mrf.mxu0
    %v753 = vadd.f32 0.0, %v752
    %v754 = vpop.f32.mrf.mxu0
    %755 = vmatprep.mubr.bf16.mxu0 0
    %756 = vmatmul.mubr.bf16.gmra.mxu0 %v421
    %v757 = vpop.f32.mrf.mxu0
    %v758 = vadd.f32 0.0, %v757
    %v759 = vpop.f32.mrf.mxu0
    %v760 = vpop.f32.mrf.mxu0
    %v761 = vadd.f32 0.0, %v760
    %v762 = vpop.f32.mrf.mxu0
    %763 = vmatprep.mubr.bf16.mxu0 0
    %764 = vmatmul.mubr.bf16.gmra.mxu0 %v424
    %v765 = vpop.f32.mrf.mxu0
    %v766 = vadd.f32 0.0, %v765
    %v767 = vpop.f32.mrf.mxu0
    %v768 = vpop.f32.mrf.mxu0
    %v769 = vadd.f32 0.0, %v768
    %v770 = vpop.f32.mrf.mxu0
    %771 = vmatprep.mubr.bf16.mxu0 0
    %772 = vmatmul.mubr.bf16.gmra.mxu0 %v427
    %v773 = vpop.f32.mrf.mxu0
    %v774 = vadd.f32 0.0, %v773
    %v775 = vpop.f32.mrf.mxu0
    %v776 = vpop.f32.mrf.mxu0
    %v777 = vadd.f32 0.0, %v776
    %v778 = vpop.f32.mrf.mxu0
    %779 = vmatprep.mubr.bf16.mxu0 0
    %780 = vmatmul.mubr.bf16.gmra.mxu0 %v430
    %v781 = vpop.f32.mrf.mxu0
    %v782 = vadd.f32 0.0, %v781
    %v783 = vpop.f32.mrf.mxu0
    %v784 = vpop.f32.mrf.mxu0
    %v785 = vadd.f32 0.0, %v784
    %v786 = vpop.f32.mrf.mxu0
    %787 = vmatprep.mubr.bf16.mxu0 0
    %788 = vmatmul.mubr.bf16.gmra.mxu0 %v433
    %v789 = vpop.f32.mrf.mxu0
    %v790 = vadd.f32 0.0, %v789
    %v791 = vpop.f32.mrf.mxu0
    %v792 = vpop.f32.mrf.mxu0
    %v793 = vadd.f32 0.0, %v792
    %v794 = vpop.f32.mrf.mxu0
    %795 = vmatprep.mubr.bf16.mxu0 0
    %796 = vmatmul.mubr.bf16.gmra.mxu0 %v436
    %v797 = vpop.f32.mrf.mxu0
    %v798 = vadd.f32 0.0, %v797
    %v799 = vpop.f32.mrf.mxu0
    %v800 = vpop.f32.mrf.mxu0
    %v801 = vpop.f32.mrf.mxu0
    %802 = vdwg.mxu0
    %v845 = vunpack.c.l.b16 %v139
    %v846 = vunpack.c.h.b16 %v139
    %v847 = vunpack.c.l.b16 %v140
    %v848 = vunpack.c.h.b16 %v140
    %v849 = vunpack.c.l.b16 %v141
    %v850 = vunpack.c.l.b16 %v142
    %v851 = vunpack.c.h.b16 %v142
    %v852 = vunpack.c.l.b16 %v143
    %v853 = vunpack.c.h.b16 %v143
    %v854 = vunpack.c.l.b16 %v144
    %v855 = vunpack.c.l.b16 %v145
    %v856 = vunpack.c.h.b16 %v145
    %v857 = vunpack.c.l.b16 %v146
    %v858 = vunpack.c.h.b16 %v146
    %v859 = vunpack.c.l.b16 %v147
    %v860 = vunpack.c.l.b16 %v148
    %v861 = vunpack.c.h.b16 %v148
    %v862 = vunpack.c.l.b16 %v149
    %v863 = vunpack.c.h.b16 %v149
    %v864 = vunpack.c.l.b16 %v150
    %v865 = vunpack.c.l.b16 %v151
    %v866 = vunpack.c.h.b16 %v151
    %v867 = vunpack.c.l.b16 %v152
    %v868 = vunpack.c.h.b16 %v152
    %v869 = vunpack.c.l.b16 %v153
    %v870 = vunpack.c.l.b16 %v154
    %v871 = vunpack.c.h.b16 %v154
    %v872 = vunpack.c.l.b16 %v155
    %v873 = vunpack.c.h.b16 %v155
    %v874 = vunpack.c.l.b16 %v156
    %v875 = vunpack.c.l.b16 %v157
    %v876 = vunpack.c.h.b16 %v157
    %v877 = vunpack.c.l.b16 %v158
    %v878 = vunpack.c.h.b16 %v158
    %v879 = vunpack.c.l.b16 %v159
    %v880 = vunpack.c.l.b16 %v160
    %v881 = vunpack.c.h.b16 %v160
    %v882 = vunpack.c.l.b16 %v161
    %v883 = vunpack.c.h.b16 %v161
    %v884 = vunpack.c.l.b16 %v162
    %v885 = vunpack.c.l.b16 %v163
    %v886 = vunpack.c.h.b16 %v163
    %v887 = vunpack.c.l.b16 %v164
    %v888 = vunpack.c.h.b16 %v164
    %v889 = vunpack.c.l.b16 %v165
    %v890 = vunpack.c.l.b16 %v166
    %v891 = vunpack.c.h.b16 %v166
    %v892 = vunpack.c.l.b16 %v167
    %v893 = vunpack.c.h.b16 %v167
    %v894 = vunpack.c.l.b16 %v168
    %v895 = vunpack.c.l.b16 %v169
    %v896 = vunpack.c.h.b16 %v169
    %v897 = vunpack.c.l.b16 %v170
    %v898 = vunpack.c.h.b16 %v170
    %v899 = vunpack.c.l.b16 %v171
    %v900 = vunpack.c.l.b16 %v172
    %v901 = vunpack.c.h.b16 %v172
    %v902 = vunpack.c.l.b16 %v173
    %v903 = vunpack.c.h.b16 %v173
    %v904 = vunpack.c.l.b16 %v174
    %v905 = vunpack.c.l.b16 %v175
    %v906 = vunpack.c.h.b16 %v175
    %v907 = vunpack.c.l.b16 %v176
    %v908 = vunpack.c.h.b16 %v176
    %v909 = vunpack.c.l.b16 %v177
    %v910 = vunpack.c.l.b16 %v178
    %v911 = vunpack.c.h.b16 %v178
    %v912 = vunpack.c.l.b16 %v179
    %v913 = vunpack.c.h.b16 %v179
    %v914 = vunpack.c.l.b16 %v180
    %v915 = vpack.c.b16 %v850, %v845
    %v916 = vpack.c.b16 %v851, %v846
    %v917 = vpack.c.b16 %v852, %v847
    %v918 = vpack.c.b16 %v853, %v848
    %v919 = vpack.c.b16 %v854, %v849
    %v920 = vpack.c.b16 %v860, %v855
    %v921 = vpack.c.b16 %v861, %v856
    %v922 = vpack.c.b16 %v862, %v857
    %v923 = vpack.c.b16 %v863, %v858
    %v924 = vpack.c.b16 %v864, %v859
    %v925 = vpack.c.b16 %v870, %v865
    %v926 = vpack.c.b16 %v871, %v866
    %v927 = vpack.c.b16 %v872, %v867
    %v928 = vpack.c.b16 %v873, %v868
    %v929 = vpack.c.b16 %v874, %v869
    %v930 = vpack.c.b16 %v880, %v875
    %v931 = vpack.c.b16 %v881, %v876
    %v932 = vpack.c.b16 %v882, %v877
    %v933 = vpack.c.b16 %v883, %v878
    %v934 = vpack.c.b16 %v884, %v879
    %v935 = vpack.c.b16 %v890, %v885
    %v936 = vpack.c.b16 %v891, %v886
    %v937 = vpack.c.b16 %v892, %v887
    %v938 = vpack.c.b16 %v893, %v888
    %v939 = vpack.c.b16 %v894, %v889
    %v940 = vpack.c.b16 %v900, %v895
    %v941 = vpack.c.b16 %v901, %v896
    %v942 = vpack.c.b16 %v902, %v897
    %v943 = vpack.c.b16 %v903, %v898
    %v944 = vpack.c.b16 %v904, %v899
    %v945 = vpack.c.b16 %v910, %v905
    %v946 = vpack.c.b16 %v911, %v906
    %v947 = vpack.c.b16 %v912, %v907
    %v948 = vpack.c.b16 %v913, %v908
    %v949 = vpack.c.b16 %v914, %v909
    %v981 = vsel %vm410, %v130, 0
    %v984 = vsel %vm410, %v131, 0
    %v987 = vsel %vm410, %v132, 0
    %v990 = vsel %vm410, %v133, 0
    %v993 = vsel %vm410, %v134, 0
    %v996 = vsel %vm410, %v135, 0
    %v999 = vsel %vm410, %v136, 0
    %v1002 = vsel %vm410, %v137, 0
    %v1005 = vsel %vm410, %v138, 0
    %v1008 = vand.u32 %v945, %v441
    %v1011 = vand.u32 %v946, %v441
    %v1014 = vand.u32 %v947, %v441
    %v1017 = vand.u32 %v948, %v441
    %v1020 = vand.u32 %v949, %v441
    %1022 = vmatprep.subr.bf16.mxu0 0
    %1023 = vmatpush1.bf16.msra.mxu0 0
    %1024 = vmatprep.subr.bf16.mxu0 %v1011
    %1025 = vmatpush1.bf16.msra.mxu0 %v1008
    %1026 = vmatprep.subr.bf16.mxu0 %v941
    %1027 = vmatpush1.bf16.msra.mxu0 %v940
    %1028 = vmatprep.subr.bf16.mxu0 %v936
    %1029 = vmatpush1.bf16.msra.mxu0 %v935
    %1030 = vmatprep.subr.bf16.mxu0 %v931
    %1031 = vmatpush1.bf16.msra.mxu0 %v930
    %1032 = vmatprep.subr.bf16.mxu0 %v926
    %1033 = vmatpush1.bf16.msra.mxu0 %v925
    %1034 = vmatprep.subr.bf16.mxu0 %v921
    %1035 = vmatpush1.bf16.msra.mxu0 %v920
    %1036 = vmatprep.subr.bf16.mxu0 %v916
    %1037 = vmatpush1.bf16.msra.mxu0 %v915
    %1038 = vmatprep.subr.bf16.mxu0 0
    %1039 = vmatpush2.bf16.msra.mxu0 0
    %1040 = vmatprep.subr.bf16.mxu0 0
    %1041 = vmatpush2.bf16.msra.mxu0 0
    %1042 = vmatprep.subr.bf16.mxu0 0
    %1043 = vmatpush2.bf16.msra.mxu0 0
    %1044 = vmatprep.subr.bf16.mxu0 0
    %1045 = vmatpush2.bf16.msra.mxu0 0
    %1046 = vmatprep.subr.bf16.mxu0 0
    %1047 = vmatpush2.bf16.msra.mxu0 0
    %1048 = vmatprep.subr.bf16.mxu0 0
    %1049 = vmatpush2.bf16.msra.mxu0 0
    %1050 = vmatprep.subr.bf16.mxu0 0
    %1051 = vmatpush2.bf16.msra.mxu0 0
    %1052 = vmatprep.subr.bf16.mxu0 0
    %1053 = vmatpush2.bf16.msra.mxu0 0
    %1054 = vmatprep.mubr.bf16.mxu0 0
    %1055 = vmatmul.mubr.bf16.gmra.mxu0 %v981
    %v1056 = vpop.f32.mrf.mxu0
    %v1057 = vadd.f32 %v492, %v1056
    %v1058 = vpop.f32.mrf.mxu0
    %v1059 = vadd.f32 %v494, %v1058
    %v1060 = vpop.f32.mrf.mxu0
    %v1061 = vadd.f32 %v496, %v1060
    %v1062 = vpop.f32.mrf.mxu0
    %v1063 = vadd.f32 %v498, %v1062
    %1064 = vmatprep.mubr.bf16.mxu0 0
    %1065 = vmatmul.mubr.bf16.gmra.mxu0 %v984
    %v1066 = vpop.f32.mrf.mxu0
    %v1067 = vadd.f32 %v502, %v1066
    %v1068 = vpop.f32.mrf.mxu0
    %v1069 = vadd.f32 %v504, %v1068
    %v1070 = vpop.f32.mrf.mxu0
    %v1071 = vadd.f32 %v506, %v1070
    %v1072 = vpop.f32.mrf.mxu0
    %v1073 = vadd.f32 %v508, %v1072
    %1074 = vmatprep.mubr.bf16.mxu0 0
    %1075 = vmatmul.mubr.bf16.gmra.mxu0 %v987
    %v1076 = vpop.f32.mrf.mxu0
    %v1077 = vadd.f32 %v512, %v1076
    %v1078 = vpop.f32.mrf.mxu0
    %v1079 = vadd.f32 %v514, %v1078
    %v1080 = vpop.f32.mrf.mxu0
    %v1081 = vadd.f32 %v516, %v1080
    %v1082 = vpop.f32.mrf.mxu0
    %v1083 = vadd.f32 %v518, %v1082
    %1084 = vmatprep.mubr.bf16.mxu0 0
    %1085 = vmatmul.mubr.bf16.gmra.mxu0 %v990
    %v1086 = vpop.f32.mrf.mxu0
    %v1087 = vadd.f32 %v522, %v1086
    %v1088 = vpop.f32.mrf.mxu0
    %v1089 = vadd.f32 %v524, %v1088
    %v1090 = vpop.f32.mrf.mxu0
    %v1091 = vadd.f32 %v526, %v1090
    %v1092 = vpop.f32.mrf.mxu0
    %v1093 = vadd.f32 %v528, %v1092
    %1094 = vmatprep.mubr.bf16.mxu0 0
    %1095 = vmatmul.mubr.bf16.gmra.mxu0 %v993
    %v1096 = vpop.f32.mrf.mxu0
    %v1097 = vadd.f32 %v532, %v1096
    %v1098 = vpop.f32.mrf.mxu0
    %v1099 = vadd.f32 %v534, %v1098
    %v1100 = vpop.f32.mrf.mxu0
    %v1101 = vadd.f32 %v536, %v1100
    %v1102 = vpop.f32.mrf.mxu0
    %v1103 = vadd.f32 %v538, %v1102
    %1104 = vmatprep.mubr.bf16.mxu0 0
    %1105 = vmatmul.mubr.bf16.gmra.mxu0 %v996
    %v1106 = vpop.f32.mrf.mxu0
    %v1107 = vadd.f32 %v542, %v1106
    %v1108 = vpop.f32.mrf.mxu0
    %v1109 = vadd.f32 %v544, %v1108
    %v1110 = vpop.f32.mrf.mxu0
    %v1111 = vadd.f32 %v546, %v1110
    %v1112 = vpop.f32.mrf.mxu0
    %v1113 = vadd.f32 %v548, %v1112
    %1114 = vmatprep.mubr.bf16.mxu0 0
    %1115 = vmatmul.mubr.bf16.gmra.mxu0 %v999
    %v1116 = vpop.f32.mrf.mxu0
    %v1117 = vadd.f32 %v552, %v1116
    %v1118 = vpop.f32.mrf.mxu0
    %v1119 = vadd.f32 %v554, %v1118
    %v1120 = vpop.f32.mrf.mxu0
    %v1121 = vadd.f32 %v556, %v1120
    %v1122 = vpop.f32.mrf.mxu0
    %v1123 = vadd.f32 %v558, %v1122
    %1124 = vmatprep.mubr.bf16.mxu0 0
    %1125 = vmatmul.mubr.bf16.gmra.mxu0 %v1002
    %v1126 = vpop.f32.mrf.mxu0
    %v1127 = vadd.f32 %v562, %v1126
    %v1128 = vpop.f32.mrf.mxu0
    %v1129 = vadd.f32 %v564, %v1128
    %v1130 = vpop.f32.mrf.mxu0
    %v1131 = vadd.f32 %v566, %v1130
    %v1132 = vpop.f32.mrf.mxu0
    %v1133 = vadd.f32 %v568, %v1132
    %1134 = vmatprep.mubr.bf16.mxu0 0
    %1135 = vmatmul.mubr.bf16.gmra.mxu0 %v1005
    %v1136 = vpop.f32.mrf.mxu0
    %v1137 = vadd.f32 %v572, %v1136
    %v1138 = vpop.f32.mrf.mxu0
    %v1139 = vadd.f32 %v574, %v1138
    %v1140 = vpop.f32.mrf.mxu0
    %v1141 = vpop.f32.mrf.mxu0
    %1142 = vdwg.mxu0
    %1143 = vmatprep.subr.bf16.mxu0 0
    %1144 = vmatpush1.bf16.msra.mxu0 0
    %1145 = vmatprep.subr.bf16.mxu0 %v1017
    %1146 = vmatpush1.bf16.msra.mxu0 %v1014
    %1147 = vmatprep.subr.bf16.mxu0 %v943
    %1148 = vmatpush1.bf16.msra.mxu0 %v942
    %1149 = vmatprep.subr.bf16.mxu0 %v938
    %1150 = vmatpush1.bf16.msra.mxu0 %v937
    %1151 = vmatprep.subr.bf16.mxu0 %v933
    %1152 = vmatpush1.bf16.msra.mxu0 %v932
    %1153 = vmatprep.subr.bf16.mxu0 %v928
    %1154 = vmatpush1.bf16.msra.mxu0 %v927
    %1155 = vmatprep.subr.bf16.mxu0 %v923
    %1156 = vmatpush1.bf16.msra.mxu0 %v922
    %1157 = vmatprep.subr.bf16.mxu0 %v918
    %1158 = vmatpush1.bf16.msra.mxu0 %v917
    %1159 = vmatprep.subr.bf16.mxu0 0
    %1160 = vmatpush2.bf16.msra.mxu0 0
    %1161 = vmatprep.subr.bf16.mxu0 0
    %1162 = vmatpush2.bf16.msra.mxu0 0
    %1163 = vmatprep.subr.bf16.mxu0 0
    %1164 = vmatpush2.bf16.msra.mxu0 0
    %1165 = vmatprep.subr.bf16.mxu0 0
    %1166 = vmatpush2.bf16.msra.mxu0 0
    %1167 = vmatprep.subr.bf16.mxu0 0
    %1168 = vmatpush2.bf16.msra.mxu0 0
    %1169 = vmatprep.subr.bf16.mxu0 0
    %1170 = vmatpush2.bf16.msra.mxu0 0
    %1171 = vmatprep.subr.bf16.mxu0 0
    %1172 = vmatpush2.bf16.msra.mxu0 0
    %1173 = vmatprep.subr.bf16.mxu0 0
    %1174 = vmatpush2.bf16.msra.mxu0 0
    %1175 = vmatprep.mubr.bf16.mxu0 0
    %1176 = vmatmul.mubr.bf16.gmra.mxu0 %v981
    %v1177 = vpop.f32.mrf.mxu0
    %v1178 = vadd.f32 %v613, %v1177
    %v1179 = vpop.f32.mrf.mxu0
    %v1180 = vadd.f32 %v615, %v1179
    %v1181 = vpop.f32.mrf.mxu0
    %v1182 = vadd.f32 %v617, %v1181
    %v1183 = vpop.f32.mrf.mxu0
    %v1184 = vadd.f32 %v619, %v1183
    %1185 = vmatprep.mubr.bf16.mxu0 0
    %1186 = vmatmul.mubr.bf16.gmra.mxu0 %v984
    %v1187 = vpop.f32.mrf.mxu0
    %v1188 = vadd.f32 %v623, %v1187
    %v1189 = vpop.f32.mrf.mxu0
    %v1190 = vadd.f32 %v625, %v1189
    %v1191 = vpop.f32.mrf.mxu0
    %v1192 = vadd.f32 %v627, %v1191
    %v1193 = vpop.f32.mrf.mxu0
    %v1194 = vadd.f32 %v629, %v1193
    %1195 = vmatprep.mubr.bf16.mxu0 0
    %1196 = vmatmul.mubr.bf16.gmra.mxu0 %v987
    %v1197 = vpop.f32.mrf.mxu0
    %v1198 = vadd.f32 %v633, %v1197
    %v1199 = vpop.f32.mrf.mxu0
    %v1200 = vadd.f32 %v635, %v1199
    %v1201 = vpop.f32.mrf.mxu0
    %v1202 = vadd.f32 %v637, %v1201
    %v1203 = vpop.f32.mrf.mxu0
    %v1204 = vadd.f32 %v639, %v1203
    %1205 = vmatprep.mubr.bf16.mxu0 0
    %1206 = vmatmul.mubr.bf16.gmra.mxu0 %v990
    %v1207 = vpop.f32.mrf.mxu0
    %v1208 = vadd.f32 %v643, %v1207
    %v1209 = vpop.f32.mrf.mxu0
    %v1210 = vadd.f32 %v645, %v1209
    %v1211 = vpop.f32.mrf.mxu0
    %v1212 = vadd.f32 %v647, %v1211
    %v1213 = vpop.f32.mrf.mxu0
    %v1214 = vadd.f32 %v649, %v1213
    %1215 = vmatprep.mubr.bf16.mxu0 0
    %1216 = vmatmul.mubr.bf16.gmra.mxu0 %v993
    %v1217 = vpop.f32.mrf.mxu0
    %v1218 = vadd.f32 %v653, %v1217
    %v1219 = vpop.f32.mrf.mxu0
    %v1220 = vadd.f32 %v655, %v1219
    %v1221 = vpop.f32.mrf.mxu0
    %v1222 = vadd.f32 %v657, %v1221
    %v1223 = vpop.f32.mrf.mxu0
    %v1224 = vadd.f32 %v659, %v1223
    %1225 = vmatprep.mubr.bf16.mxu0 0
    %1226 = vmatmul.mubr.bf16.gmra.mxu0 %v996
    %v1227 = vpop.f32.mrf.mxu0
    %v1228 = vadd.f32 %v663, %v1227
    %v1229 = vpop.f32.mrf.mxu0
    %v1230 = vadd.f32 %v665, %v1229
    %v1231 = vpop.f32.mrf.mxu0
    %v1232 = vadd.f32 %v667, %v1231
    %v1233 = vpop.f32.mrf.mxu0
    %v1234 = vadd.f32 %v669, %v1233
    %1235 = vmatprep.mubr.bf16.mxu0 0
    %1236 = vmatmul.mubr.bf16.gmra.mxu0 %v999
    %v1237 = vpop.f32.mrf.mxu0
    %v1238 = vadd.f32 %v673, %v1237
    %v1239 = vpop.f32.mrf.mxu0
    %v1240 = vadd.f32 %v675, %v1239
    %v1241 = vpop.f32.mrf.mxu0
    %v1242 = vadd.f32 %v677, %v1241
    %v1243 = vpop.f32.mrf.mxu0
    %v1244 = vadd.f32 %v679, %v1243
    %1245 = vmatprep.mubr.bf16.mxu0 0
    %1246 = vmatmul.mubr.bf16.gmra.mxu0 %v1002
    %v1247 = vpop.f32.mrf.mxu0
    %v1248 = vadd.f32 %v683, %v1247
    %v1249 = vpop.f32.mrf.mxu0
    %v1250 = vadd.f32 %v685, %v1249
    %v1251 = vpop.f32.mrf.mxu0
    %v1252 = vadd.f32 %v687, %v1251
    %v1253 = vpop.f32.mrf.mxu0
    %v1254 = vadd.f32 %v689, %v1253
    %1255 = vmatprep.mubr.bf16.mxu0 0
    %1256 = vmatmul.mubr.bf16.gmra.mxu0 %v1005
    %v1257 = vpop.f32.mrf.mxu0
    %v1258 = vadd.f32 %v693, %v1257
    %v1259 = vpop.f32.mrf.mxu0
    %v1260 = vadd.f32 %v695, %v1259
    %v1261 = vpop.f32.mrf.mxu0
    %v1262 = vpop.f32.mrf.mxu0
    %1263 = vdwg.mxu0
    %1264 = vmatprep.subr.bf16.mxu0 0
    %1265 = vmatpush1.bf16.msra.mxu0 0
    %1266 = vmatprep.subr.bf16.mxu0 0
    %1267 = vmatpush1.bf16.msra.mxu0 %v1020
    %1268 = vmatprep.subr.bf16.mxu0 0
    %1269 = vmatpush1.bf16.msra.mxu0 %v944
    %1270 = vmatprep.subr.bf16.mxu0 0
    %1271 = vmatpush1.bf16.msra.mxu0 %v939
    %1272 = vmatprep.subr.bf16.mxu0 0
    %1273 = vmatpush1.bf16.msra.mxu0 %v934
    %1274 = vmatprep.subr.bf16.mxu0 0
    %1275 = vmatpush1.bf16.msra.mxu0 %v929
    %1276 = vmatprep.subr.bf16.mxu0 0
    %1277 = vmatpush1.bf16.msra.mxu0 %v924
    %1278 = vmatprep.subr.bf16.mxu0 0
    %1279 = vmatpush1.bf16.msra.mxu0 %v919
    %1280 = vmatprep.subr.bf16.mxu0 0
    %1281 = vmatpush2.bf16.msra.mxu0 0
    %1282 = vmatprep.subr.bf16.mxu0 0
    %1283 = vmatpush2.bf16.msra.mxu0 0
    %1284 = vmatprep.subr.bf16.mxu0 0
    %1285 = vmatpush2.bf16.msra.mxu0 0
    %1286 = vmatprep.subr.bf16.mxu0 0
    %1287 = vmatpush2.bf16.msra.mxu0 0
    %1288 = vmatprep.subr.bf16.mxu0 0
    %1289 = vmatpush2.bf16.msra.mxu0 0
    %1290 = vmatprep.subr.bf16.mxu0 0
    %1291 = vmatpush2.bf16.msra.mxu0 0
    %1292 = vmatprep.subr.bf16.mxu0 0
    %1293 = vmatpush2.bf16.msra.mxu0 0
    %1294 = vmatprep.subr.bf16.mxu0 0
    %1295 = vmatpush2.bf16.msra.mxu0 0
    %1296 = vmatprep.mubr.bf16.mxu0 0
    %1297 = vmatmul.mubr.bf16.gmra.mxu0 %v981
    %v1298 = vpop.f32.mrf.mxu0
    %v1299 = vadd.f32 %v734, %v1298
    %v1300 = vpop.f32.mrf.mxu0
    %v1301 = vpop.f32.mrf.mxu0
    %v1302 = vadd.f32 %v737, %v1301
    %v1303 = vpop.f32.mrf.mxu0
    %1304 = vmatprep.mubr.bf16.mxu0 0
    %1305 = vmatmul.mubr.bf16.gmra.mxu0 %v984
    %v1306 = vpop.f32.mrf.mxu0
    %v1307 = vadd.f32 %v742, %v1306
    %v1308 = vpop.f32.mrf.mxu0
    %v1309 = vpop.f32.mrf.mxu0
    %v1310 = vadd.f32 %v745, %v1309
    %v1311 = vpop.f32.mrf.mxu0
    %1312 = vmatprep.mubr.bf16.mxu0 0
    %1313 = vmatmul.mubr.bf16.gmra.mxu0 %v987
    %v1314 = vpop.f32.mrf.mxu0
    %v1315 = vadd.f32 %v750, %v1314
    %v1316 = vpop.f32.mrf.mxu0
    %v1317 = vpop.f32.mrf.mxu0
    %v1318 = vadd.f32 %v753, %v1317
    %v1319 = vpop.f32.mrf.mxu0
    %1320 = vmatprep.mubr.bf16.mxu0 0
    %1321 = vmatmul.mubr.bf16.gmra.mxu0 %v990
    %v1322 = vpop.f32.mrf.mxu0
    %v1323 = vadd.f32 %v758, %v1322
    %v1324 = vpop.f32.mrf.mxu0
    %v1325 = vpop.f32.mrf.mxu0
    %v1326 = vadd.f32 %v761, %v1325
    %v1327 = vpop.f32.mrf.mxu0
    %1328 = vmatprep.mubr.bf16.mxu0 0
    %1329 = vmatmul.mubr.bf16.gmra.mxu0 %v993
    %v1330 = vpop.f32.mrf.mxu0
    %v1331 = vadd.f32 %v766, %v1330
    %v1332 = vpop.f32.mrf.mxu0
    %v1333 = vpop.f32.mrf.mxu0
    %v1334 = vadd.f32 %v769, %v1333
    %v1335 = vpop.f32.mrf.mxu0
    %1336 = vmatprep.mubr.bf16.mxu0 0
    %1337 = vmatmul.mubr.bf16.gmra.mxu0 %v996
    %v1338 = vpop.f32.mrf.mxu0
    %v1339 = vadd.f32 %v774, %v1338
    %v1340 = vpop.f32.mrf.mxu0
    %v1341 = vpop.f32.mrf.mxu0
    %v1342 = vadd.f32 %v777, %v1341
    %v1343 = vpop.f32.mrf.mxu0
    %1344 = vmatprep.mubr.bf16.mxu0 0
    %1345 = vmatmul.mubr.bf16.gmra.mxu0 %v999
    %v1346 = vpop.f32.mrf.mxu0
    %v1347 = vadd.f32 %v782, %v1346
    %v1348 = vpop.f32.mrf.mxu0
    %v1349 = vpop.f32.mrf.mxu0
    %v1350 = vadd.f32 %v785, %v1349
    %v1351 = vpop.f32.mrf.mxu0
    %1352 = vmatprep.mubr.bf16.mxu0 0
    %1353 = vmatmul.mubr.bf16.gmra.mxu0 %v1002
    %v1354 = vpop.f32.mrf.mxu0
    %v1355 = vadd.f32 %v790, %v1354
    %v1356 = vpop.f32.mrf.mxu0
    %v1357 = vpop.f32.mrf.mxu0
    %v1358 = vadd.f32 %v793, %v1357
    %v1359 = vpop.f32.mrf.mxu0
    %1360 = vmatprep.mubr.bf16.mxu0 0
    %1361 = vmatmul.mubr.bf16.gmra.mxu0 %v1005
    %v1362 = vpop.f32.mrf.mxu0
    %v1363 = vadd.f32 %v798, %v1362
    %v1364 = vpop.f32.mrf.mxu0
    %v1365 = vpop.f32.mrf.mxu0
    %v1366 = vpop.f32.mrf.mxu0
    %1367 = vdwg.mxu0
    %v1368 = vpack.c.bf16 %v97, %v95
    %v1369 = vpack.c.bf16 %v101, %v99
    %v1370 = vpack.c.bf16 %v105, %v103
    %v1371 = vpack.c.bf16 %v109, %v107
    %v1372 = vpack.c.bf16 %v113, %v111
    %v1373 = vpack.c.bf16 %v117, %v115
    %v1374 = vpack.c.bf16 %v121, %v119
    %v1375 = vpack.c.bf16 %v125, %v123
    %v1376 = vpack.c.bf16 %v129, %v127
    %s1377 = scalar_lea.vmem %s1, 560
    %v1378 = vld [vmem:[%s1377] sm:$0xff]
    %v1379 = vld [vmem:[%s1377 + $0x8] sm:$0xff]
    %v1380 = vld [vmem:[%s1377 + $0x10] sm:$0xf]
    %v1381 = vld [vmem:[%s1377 + $0x14] sm:$0xff]
    %v1382 = vld [vmem:[%s1377 + $0x1c] sm:$0xff]
    %v1383 = vld [vmem:[%s1377 + $0x24] sm:$0xf]
    %v1384 = vld [vmem:[%s1377 + $0x28] sm:$0xff]
    %v1385 = vld [vmem:[%s1377 + $0x30] sm:$0xff]
    %v1386 = vld [vmem:[%s1377 + $0x38] sm:$0xf]
    %v1387 = vld [vmem:[%s1377 + $0x3c] sm:$0xff]
    %v1388 = vld [vmem:[%s1377 + $0x44] sm:$0xff]
    %v1389 = vld [vmem:[%s1377 + $0x4c] sm:$0xf]
    %v1390 = vld [vmem:[%s1377 + $0x50] sm:$0xff]
    %v1391 = vld [vmem:[%s1377 + $0x58] sm:$0xff]
    %v1392 = vld [vmem:[%s1377 + $0x60] sm:$0xf]
    %v1393 = vld [vmem:[%s1377 + $0x64] sm:$0xff]
    %v1394 = vld [vmem:[%s1377 + $0x6c] sm:$0xff]
    %v1395 = vld [vmem:[%s1377 + $0x74] sm:$0xf]
    %v1396 = vld [vmem:[%s1377 + $0x78] sm:$0xff]
    %v1397 = vld [vmem:[%s1377 + $0x80] sm:$0xff]
    %v1398 = vld [vmem:[%s1377 + $0x88] sm:$0xf]
    %v1399 = vld [vmem:[%s1377 + $0x8c] sm:$0xff]
    %v1400 = vld [vmem:[%s1377 + $0x94] sm:$0xff]
    %v1401 = vld [vmem:[%s1377 + $0x9c] sm:$0xf]
    %v1402 = vld [vmem:[%s1377 + $0xa0] sm:$0xff]
    %v1403 = vld [vmem:[%s1377 + $0xa8] sm:$0xff]
    %v1404 = vld [vmem:[%s1377 + $0xb0] sm:$0xf]
    %v1405 = vld [vmem:[%s1377 + $0xb4] sm:$0xff]
    %v1406 = vld [vmem:[%s1377 + $0xbc] sm:$0xff]
    %v1407 = vld [vmem:[%s1377 + $0xc4] sm:$0xf]
    %v1408 = vld [vmem:[%s1377 + $0xc8] sm:$0xff]
    %v1409 = vld [vmem:[%s1377 + $0xd0] sm:$0xff]
    %v1410 = vld [vmem:[%s1377 + $0xd8] sm:$0xf]
    %v1411 = vld [vmem:[%s1377 + $0xdc] sm:$0xff]
    %v1412 = vld [vmem:[%s1377 + $0xe4] sm:$0xff]
    %v1413 = vld [vmem:[%s1377 + $0xec] sm:$0xf]
    %v1414 = vld [vmem:[%s1377 + $0xf0] sm:$0xff]
    %v1415 = vld [vmem:[%s1377 + $0xf8] sm:$0xff]
    %v1416 = vld [vmem:[%s1377 + $0x100] sm:$0xf]
    %v1417 = vld [vmem:[%s1377 + $0x104] sm:$0x11]
    %v1418 = vld [vmem:[%s1377 + $0x10c] sm:$0x11]
    %v1419 = vld [vmem:[%s1377 + $0x114] sm:$0x1]
    %v1462 = vunpack.c.l.b16 %v1378
    %v1463 = vunpack.c.h.b16 %v1378
    %v1464 = vunpack.c.l.b16 %v1379
    %v1465 = vunpack.c.h.b16 %v1379
    %v1466 = vunpack.c.l.b16 %v1380
    %v1467 = vunpack.c.l.b16 %v1381
    %v1468 = vunpack.c.h.b16 %v1381
    %v1469 = vunpack.c.l.b16 %v1382
    %v1470 = vunpack.c.h.b16 %v1382
    %v1471 = vunpack.c.l.b16 %v1383
    %v1472 = vunpack.c.l.b16 %v1384
    %v1473 = vunpack.c.h.b16 %v1384
    %v1474 = vunpack.c.l.b16 %v1385
    %v1475 = vunpack.c.h.b16 %v1385
    %v1476 = vunpack.c.l.b16 %v1386
    %v1477 = vunpack.c.l.b16 %v1387
    %v1478 = vunpack.c.h.b16 %v1387
    %v1479 = vunpack.c.l.b16 %v1388
    %v1480 = vunpack.c.h.b16 %v1388
    %v1481 = vunpack.c.l.b16 %v1389
    %v1482 = vunpack.c.l.b16 %v1390
    %v1483 = vunpack.c.h.b16 %v1390
    %v1484 = vunpack.c.l.b16 %v1391
    %v1485 = vunpack.c.h.b16 %v1391
    %v1486 = vunpack.c.l.b16 %v1392
    %v1487 = vunpack.c.l.b16 %v1393
    %v1488 = vunpack.c.h.b16 %v1393
    %v1489 = vunpack.c.l.b16 %v1394
    %v1490 = vunpack.c.h.b16 %v1394
    %v1491 = vunpack.c.l.b16 %v1395
    %v1492 = vunpack.c.l.b16 %v1396
    %v1493 = vunpack.c.h.b16 %v1396
    %v1494 = vunpack.c.l.b16 %v1397
    %v1495 = vunpack.c.h.b16 %v1397
    %v1496 = vunpack.c.l.b16 %v1398
    %v1497 = vunpack.c.l.b16 %v1399
    %v1498 = vunpack.c.h.b16 %v1399
    %v1499 = vunpack.c.l.b16 %v1400
    %v1500 = vunpack.c.h.b16 %v1400
    %v1501 = vunpack.c.l.b16 %v1401
    %v1502 = vunpack.c.l.b16 %v1402
    %v1503 = vunpack.c.h.b16 %v1402
    %v1504 = vunpack.c.l.b16 %v1403
    %v1505 = vunpack.c.h.b16 %v1403
    %v1506 = vunpack.c.l.b16 %v1404
    %v1507 = vunpack.c.l.b16 %v1405
    %v1508 = vunpack.c.h.b16 %v1405
    %v1509 = vunpack.c.l.b16 %v1406
    %v1510 = vunpack.c.h.b16 %v1406
    %v1511 = vunpack.c.l.b16 %v1407
    %v1512 = vunpack.c.l.b16 %v1408
    %v1513 = vunpack.c.h.b16 %v1408
    %v1514 = vunpack.c.l.b16 %v1409
    %v1515 = vunpack.c.h.b16 %v1409
    %v1516 = vunpack.c.l.b16 %v1410
    %v1517 = vunpack.c.l.b16 %v1411
    %v1518 = vunpack.c.h.b16 %v1411
    %v1519 = vunpack.c.l.b16 %v1412
    %v1520 = vunpack.c.h.b16 %v1412
    %v1521 = vunpack.c.l.b16 %v1413
    %v1522 = vunpack.c.l.b16 %v1414
    %v1523 = vunpack.c.h.b16 %v1414
    %v1524 = vunpack.c.l.b16 %v1415
    %v1525 = vunpack.c.h.b16 %v1415
    %v1526 = vunpack.c.l.b16 %v1416
    %v1527 = vunpack.c.l.b16 %v1417
    %v1528 = vunpack.c.h.b16 %v1417
    %v1529 = vunpack.c.l.b16 %v1418
    %v1530 = vunpack.c.h.b16 %v1418
    %v1531 = vunpack.c.l.b16 %v1419
    %v1532 = vpack.c.b16 %v1467, %v1462
    %v1533 = vpack.c.b16 %v1468, %v1463
    %v1534 = vpack.c.b16 %v1469, %v1464
    %v1535 = vpack.c.b16 %v1470, %v1465
    %v1536 = vpack.c.b16 %v1471, %v1466
    %v1537 = vpack.c.b16 %v1477, %v1472
    %v1538 = vpack.c.b16 %v1478, %v1473
    %v1539 = vpack.c.b16 %v1479, %v1474
    %v1540 = vpack.c.b16 %v1480, %v1475
    %v1541 = vpack.c.b16 %v1481, %v1476
    %v1542 = vpack.c.b16 %v1487, %v1482
    %v1543 = vpack.c.b16 %v1488, %v1483
    %v1544 = vpack.c.b16 %v1489, %v1484
    %v1545 = vpack.c.b16 %v1490, %v1485
    %v1546 = vpack.c.b16 %v1491, %v1486
    %v1547 = vpack.c.b16 %v1497, %v1492
    %v1548 = vpack.c.b16 %v1498, %v1493
    %v1549 = vpack.c.b16 %v1499, %v1494
    %v1550 = vpack.c.b16 %v1500, %v1495
    %v1551 = vpack.c.b16 %v1501, %v1496
    %v1552 = vpack.c.b16 %v1507, %v1502
    %v1553 = vpack.c.b16 %v1508, %v1503
    %v1554 = vpack.c.b16 %v1509, %v1504
    %v1555 = vpack.c.b16 %v1510, %v1505
    %v1556 = vpack.c.b16 %v1511, %v1506
    %v1557 = vpack.c.b16 %v1517, %v1512
    %v1558 = vpack.c.b16 %v1518, %v1513
    %v1559 = vpack.c.b16 %v1519, %v1514
    %v1560 = vpack.c.b16 %v1520, %v1515
    %v1561 = vpack.c.b16 %v1521, %v1516
    %v1562 = vpack.c.b16 %v1527, %v1522
    %v1563 = vpack.c.b16 %v1528, %v1523
    %v1564 = vpack.c.b16 %v1529, %v1524
    %v1565 = vpack.c.b16 %v1530, %v1525
    %v1566 = vpack.c.b16 %v1531, %v1526
    %v1598 = vsel %vm410, %v1368, 0
    %v1601 = vsel %vm410, %v1369, 0
    %v1604 = vsel %vm410, %v1370, 0
    %v1607 = vsel %vm410, %v1371, 0
    %v1610 = vsel %vm410, %v1372, 0
    %v1613 = vsel %vm410, %v1373, 0
    %v1616 = vsel %vm410, %v1374, 0
    %v1619 = vsel %vm410, %v1375, 0
    %v1622 = vsel %vm410, %v1376, 0
    %v1625 = vand.u32 %v1562, %v441
    %v1628 = vand.u32 %v1563, %v441
    %v1631 = vand.u32 %v1564, %v441
    %v1634 = vand.u32 %v1565, %v441
    %v1637 = vand.u32 %v1566, %v441
    %1639 = vmatprep.subr.bf16.mxu0 0
    %1640 = vmatpush1.bf16.msra.mxu0 0
    %1641 = vmatprep.subr.bf16.mxu0 %v1628
    %1642 = vmatpush1.bf16.msra.mxu0 %v1625
    %1643 = vmatprep.subr.bf16.mxu0 %v1558
    %1644 = vmatpush1.bf16.msra.mxu0 %v1557
    %1645 = vmatprep.subr.bf16.mxu0 %v1553
    %1646 = vmatpush1.bf16.msra.mxu0 %v1552
    %1647 = vmatprep.subr.bf16.mxu0 %v1548
    %1648 = vmatpush1.bf16.msra.mxu0 %v1547
    %1649 = vmatprep.subr.bf16.mxu0 %v1543
    %1650 = vmatpush1.bf16.msra.mxu0 %v1542
    %1651 = vmatprep.subr.bf16.mxu0 %v1538
    %1652 = vmatpush1.bf16.msra.mxu0 %v1537
    %1653 = vmatprep.subr.bf16.mxu0 %v1533
    %1654 = vmatpush1.bf16.msra.mxu0 %v1532
    %1655 = vmatprep.subr.bf16.mxu0 0
    %1656 = vmatpush2.bf16.msra.mxu0 0
    %1657 = vmatprep.subr.bf16.mxu0 0
    %1658 = vmatpush2.bf16.msra.mxu0 0
    %1659 = vmatprep.subr.bf16.mxu0 0
    %1660 = vmatpush2.bf16.msra.mxu0 0
    %1661 = vmatprep.subr.bf16.mxu0 0
    %1662 = vmatpush2.bf16.msra.mxu0 0
    %1663 = vmatprep.subr.bf16.mxu0 0
    %1664 = vmatpush2.bf16.msra.mxu0 0
    %1665 = vmatprep.subr.bf16.mxu0 0
    %1666 = vmatpush2.bf16.msra.mxu0 0
    %1667 = vmatprep.subr.bf16.mxu0 0
    %1668 = vmatpush2.bf16.msra.mxu0 0
    %1669 = vmatprep.subr.bf16.mxu0 0
    %1670 = vmatpush2.bf16.msra.mxu0 0
    %1671 = vmatprep.mubr.bf16.mxu0 0
    %1672 = vmatmul.mubr.bf16.gmra.mxu0 %v1598
    %v1673 = vpop.f32.mrf.mxu0
    %v1674 = vadd.f32 0.0, %v1673
    %v1675 = vpop.f32.mrf.mxu0
    %v1676 = vadd.f32 0.0, %v1675
    %v1677 = vpop.f32.mrf.mxu0
    %v1678 = vadd.f32 0.0, %v1677
    %v1679 = vpop.f32.mrf.mxu0
    %v1680 = vadd.f32 0.0, %v1679
    %1681 = vmatprep.mubr.bf16.mxu0 0
    %1682 = vmatmul.mubr.bf16.gmra.mxu0 %v1601
    %v1683 = vpop.f32.mrf.mxu0
    %v1684 = vadd.f32 0.0, %v1683
    %v1685 = vpop.f32.mrf.mxu0
    %v1686 = vadd.f32 0.0, %v1685
    %v1687 = vpop.f32.mrf.mxu0
    %v1688 = vadd.f32 0.0, %v1687
    %v1689 = vpop.f32.mrf.mxu0
    %v1690 = vadd.f32 0.0, %v1689
    %1691 = vmatprep.mubr.bf16.mxu0 0
    %1692 = vmatmul.mubr.bf16.gmra.mxu0 %v1604
    %v1693 = vpop.f32.mrf.mxu0
    %v1694 = vadd.f32 0.0, %v1693
    %v1695 = vpop.f32.mrf.mxu0
    %v1696 = vadd.f32 0.0, %v1695
    %v1697 = vpop.f32.mrf.mxu0
    %v1698 = vadd.f32 0.0, %v1697
    %v1699 = vpop.f32.mrf.mxu0
    %v1700 = vadd.f32 0.0, %v1699
    %1701 = vmatprep.mubr.bf16.mxu0 0
    %1702 = vmatmul.mubr.bf16.gmra.mxu0 %v1607
    %v1703 = vpop.f32.mrf.mxu0
    %v1704 = vadd.f32 0.0, %v1703
    %v1705 = vpop.f32.mrf.mxu0
    %v1706 = vadd.f32 0.0, %v1705
    %v1707 = vpop.f32.mrf.mxu0
    %v1708 = vadd.f32 0.0, %v1707
    %v1709 = vpop.f32.mrf.mxu0
    %v1710 = vadd.f32 0.0, %v1709
    %1711 = vmatprep.mubr.bf16.mxu0 0
    %1712 = vmatmul.mubr.bf16.gmra.mxu0 %v1610
    %v1713 = vpop.f32.mrf.mxu0
    %v1714 = vadd.f32 0.0, %v1713
    %v1715 = vpop.f32.mrf.mxu0
    %v1716 = vadd.f32 0.0, %v1715
    %v1717 = vpop.f32.mrf.mxu0
    %v1718 = vadd.f32 0.0, %v1717
    %v1719 = vpop.f32.mrf.mxu0
    %v1720 = vadd.f32 0.0, %v1719
    %1721 = vmatprep.mubr.bf16.mxu0 0
    %1722 = vmatmul.mubr.bf16.gmra.mxu0 %v1613
    %v1723 = vpop.f32.mrf.mxu0
    %v1724 = vadd.f32 0.0, %v1723
    %v1725 = vpop.f32.mrf.mxu0
    %v1726 = vadd.f32 0.0, %v1725
    %v1727 = vpop.f32.mrf.mxu0
    %v1728 = vadd.f32 0.0, %v1727
    %v1729 = vpop.f32.mrf.mxu0
    %v1730 = vadd.f32 0.0, %v1729
    %1731 = vmatprep.mubr.bf16.mxu0 0
    %1732 = vmatmul.mubr.bf16.gmra.mxu0 %v1616
    %v1733 = vpop.f32.mrf.mxu0
    %v1734 = vadd.f32 0.0, %v1733
    %v1735 = vpop.f32.mrf.mxu0
    %v1736 = vadd.f32 0.0, %v1735
    %v1737 = vpop.f32.mrf.mxu0
    %v1738 = vadd.f32 0.0, %v1737
    %v1739 = vpop.f32.mrf.mxu0
    %v1740 = vadd.f32 0.0, %v1739
    %1741 = vmatprep.mubr.bf16.mxu0 0
    %1742 = vmatmul.mubr.bf16.gmra.mxu0 %v1619
    %v1743 = vpop.f32.mrf.mxu0
    %v1744 = vadd.f32 0.0, %v1743
    %v1745 = vpop.f32.mrf.mxu0
    %v1746 = vadd.f32 0.0, %v1745
    %v1747 = vpop.f32.mrf.mxu0
    %v1748 = vadd.f32 0.0, %v1747
    %v1749 = vpop.f32.mrf.mxu0
    %v1750 = vadd.f32 0.0, %v1749
    %1751 = vmatprep.mubr.bf16.mxu0 0
    %1752 = vmatmul.mubr.bf16.gmra.mxu0 %v1622
    %v1753 = vpop.f32.mrf.mxu0
    %v1754 = vadd.f32 0.0, %v1753
    %v1755 = vpop.f32.mrf.mxu0
    %v1756 = vadd.f32 0.0, %v1755
    %v1757 = vpop.f32.mrf.mxu0
    %v1758 = vpop.f32.mrf.mxu0
    %1759 = vdwg.mxu0
    %1760 = vmatprep.subr.bf16.mxu0 0
    %1761 = vmatpush1.bf16.msra.mxu0 0
    %1762 = vmatprep.subr.bf16.mxu0 %v1634
    %1763 = vmatpush1.bf16.msra.mxu0 %v1631
    %1764 = vmatprep.subr.bf16.mxu0 %v1560
    %1765 = vmatpush1.bf16.msra.mxu0 %v1559
    %1766 = vmatprep.subr.bf16.mxu0 %v1555
    %1767 = vmatpush1.bf16.msra.mxu0 %v1554
    %1768 = vmatprep.subr.bf16.mxu0 %v1550
    %1769 = vmatpush1.bf16.msra.mxu0 %v1549
    %1770 = vmatprep.subr.bf16.mxu0 %v1545
    %1771 = vmatpush1.bf16.msra.mxu0 %v1544
    %1772 = vmatprep.subr.bf16.mxu0 %v1540
    %1773 = vmatpush1.bf16.msra.mxu0 %v1539
    %1774 = vmatprep.subr.bf16.mxu0 %v1535
    %1775 = vmatpush1.bf16.msra.mxu0 %v1534
    %1776 = vmatprep.subr.bf16.mxu0 0
    %1777 = vmatpush2.bf16.msra.mxu0 0
    %1778 = vmatprep.subr.bf16.mxu0 0
    %1779 = vmatpush2.bf16.msra.mxu0 0
    %1780 = vmatprep.subr.bf16.mxu0 0
    %1781 = vmatpush2.bf16.msra.mxu0 0
    %1782 = vmatprep.subr.bf16.mxu0 0
    %1783 = vmatpush2.bf16.msra.mxu0 0
    %1784 = vmatprep.subr.bf16.mxu0 0
    %1785 = vmatpush2.bf16.msra.mxu0 0
    %1786 = vmatprep.subr.bf16.mxu0 0
    %1787 = vmatpush2.bf16.msra.mxu0 0
    %1788 = vmatprep.subr.bf16.mxu0 0
    %1789 = vmatpush2.bf16.msra.mxu0 0
    %1790 = vmatprep.subr.bf16.mxu0 0
    %1791 = vmatpush2.bf16.msra.mxu0 0
    %1792 = vmatprep.mubr.bf16.mxu0 0
    %1793 = vmatmul.mubr.bf16.gmra.mxu0 %v1598
    %v1794 = vpop.f32.mrf.mxu0
    %v1795 = vadd.f32 0.0, %v1794
    %v1796 = vpop.f32.mrf.mxu0
    %v1797 = vadd.f32 0.0, %v1796
    %v1798 = vpop.f32.mrf.mxu0
    %v1799 = vadd.f32 0.0, %v1798
    %v1800 = vpop.f32.mrf.mxu0
    %v1801 = vadd.f32 0.0, %v1800
    %1802 = vmatprep.mubr.bf16.mxu0 0
    %1803 = vmatmul.mubr.bf16.gmra.mxu0 %v1601
    %v1804 = vpop.f32.mrf.mxu0
    %v1805 = vadd.f32 0.0, %v1804
    %v1806 = vpop.f32.mrf.mxu0
    %v1807 = vadd.f32 0.0, %v1806
    %v1808 = vpop.f32.mrf.mxu0
    %v1809 = vadd.f32 0.0, %v1808
    %v1810 = vpop.f32.mrf.mxu0
    %v1811 = vadd.f32 0.0, %v1810
    %1812 = vmatprep.mubr.bf16.mxu0 0
    %1813 = vmatmul.mubr.bf16.gmra.mxu0 %v1604
    %v1814 = vpop.f32.mrf.mxu0
    %v1815 = vadd.f32 0.0, %v1814
    %v1816 = vpop.f32.mrf.mxu0
    %v1817 = vadd.f32 0.0, %v1816
    %v1818 = vpop.f32.mrf.mxu0
    %v1819 = vadd.f32 0.0, %v1818
    %v1820 = vpop.f32.mrf.mxu0
    %v1821 = vadd.f32 0.0, %v1820
    %1822 = vmatprep.mubr.bf16.mxu0 0
    %1823 = vmatmul.mubr.bf16.gmra.mxu0 %v1607
    %v1824 = vpop.f32.mrf.mxu0
    %v1825 = vadd.f32 0.0, %v1824
    %v1826 = vpop.f32.mrf.mxu0
    %v1827 = vadd.f32 0.0, %v1826
    %v1828 = vpop.f32.mrf.mxu0
    %v1829 = vadd.f32 0.0, %v1828
    %v1830 = vpop.f32.mrf.mxu0
    %v1831 = vadd.f32 0.0, %v1830
    %1832 = vmatprep.mubr.bf16.mxu0 0
    %1833 = vmatmul.mubr.bf16.gmra.mxu0 %v1610
    %v1834 = vpop.f32.mrf.mxu0
    %v1835 = vadd.f32 0.0, %v1834
    %v1836 = vpop.f32.mrf.mxu0
    %v1837 = vadd.f32 0.0, %v1836
    %v1838 = vpop.f32.mrf.mxu0
    %v1839 = vadd.f32 0.0, %v1838
    %v1840 = vpop.f32.mrf.mxu0
    %v1841 = vadd.f32 0.0, %v1840
    %1842 = vmatprep.mubr.bf16.mxu0 0
    %1843 = vmatmul.mubr.bf16.gmra.mxu0 %v1613
    %v1844 = vpop.f32.mrf.mxu0
    %v1845 = vadd.f32 0.0, %v1844
    %v1846 = vpop.f32.mrf.mxu0
    %v1847 = vadd.f32 0.0, %v1846
    %v1848 = vpop.f32.mrf.mxu0
    %v1849 = vadd.f32 0.0, %v1848
    %v1850 = vpop.f32.mrf.mxu0
    %v1851 = vadd.f32 0.0, %v1850
    %1852 = vmatprep.mubr.bf16.mxu0 0
    %1853 = vmatmul.mubr.bf16.gmra.mxu0 %v1616
    %v1854 = vpop.f32.mrf.mxu0
    %v1855 = vadd.f32 0.0, %v1854
    %v1856 = vpop.f32.mrf.mxu0
    %v1857 = vadd.f32 0.0, %v1856
    %v1858 = vpop.f32.mrf.mxu0
    %v1859 = vadd.f32 0.0, %v1858
    %v1860 = vpop.f32.mrf.mxu0
    %v1861 = vadd.f32 0.0, %v1860
    %1862 = vmatprep.mubr.bf16.mxu0 0
    %1863 = vmatmul.mubr.bf16.gmra.mxu0 %v1619
    %v1864 = vpop.f32.mrf.mxu0
    %v1865 = vadd.f32 0.0, %v1864
    %v1866 = vpop.f32.mrf.mxu0
    %v1867 = vadd.f32 0.0, %v1866
    %v1868 = vpop.f32.mrf.mxu0
    %v1869 = vadd.f32 0.0, %v1868
    %v1870 = vpop.f32.mrf.mxu0
    %v1871 = vadd.f32 0.0, %v1870
    %1872 = vmatprep.mubr.bf16.mxu0 0
    %1873 = vmatmul.mubr.bf16.gmra.mxu0 %v1622
    %v1874 = vpop.f32.mrf.mxu0
    %v1875 = vadd.f32 0.0, %v1874
    %v1876 = vpop.f32.mrf.mxu0
    %v1877 = vadd.f32 0.0, %v1876
    %v1878 = vpop.f32.mrf.mxu0
    %v1879 = vpop.f32.mrf.mxu0
    %1880 = vdwg.mxu0
    %1881 = vmatprep.subr.bf16.mxu0 0
    %1882 = vmatpush1.bf16.msra.mxu0 0
    %1883 = vmatprep.subr.bf16.mxu0 0
    %1884 = vmatpush1.bf16.msra.mxu0 %v1637
    %1885 = vmatprep.subr.bf16.mxu0 0
    %1886 = vmatpush1.bf16.msra.mxu0 %v1561
    %1887 = vmatprep.subr.bf16.mxu0 0
    %1888 = vmatpush1.bf16.msra.mxu0 %v1556
    %1889 = vmatprep.subr.bf16.mxu0 0
    %1890 = vmatpush1.bf16.msra.mxu0 %v1551
    %1891 = vmatprep.subr.bf16.mxu0 0
    %1892 = vmatpush1.bf16.msra.mxu0 %v1546
    %1893 = vmatprep.subr.bf16.mxu0 0
    %1894 = vmatpush1.bf16.msra.mxu0 %v1541
    %1895 = vmatprep.subr.bf16.mxu0 0
    %1896 = vmatpush1.bf16.msra.mxu0 %v1536
    %1897 = vmatprep.subr.bf16.mxu0 0
    %1898 = vmatpush2.bf16.msra.mxu0 0
    %1899 = vmatprep.subr.bf16.mxu0 0
    %1900 = vmatpush2.bf16.msra.mxu0 0
    %1901 = vmatprep.subr.bf16.mxu0 0
    %1902 = vmatpush2.bf16.msra.mxu0 0
    %1903 = vmatprep.subr.bf16.mxu0 0
    %1904 = vmatpush2.bf16.msra.mxu0 0
    %1905 = vmatprep.subr.bf16.mxu0 0
    %1906 = vmatpush2.bf16.msra.mxu0 0
    %1907 = vmatprep.subr.bf16.mxu0 0
    %1908 = vmatpush2.bf16.msra.mxu0 0
    %1909 = vmatprep.subr.bf16.mxu0 0
    %1910 = vmatpush2.bf16.msra.mxu0 0
    %1911 = vmatprep.subr.bf16.mxu0 0
    %1912 = vmatpush2.bf16.msra.mxu0 0
    %1913 = vmatprep.mubr.bf16.mxu0 0
    %1914 = vmatmul.mubr.bf16.gmra.mxu0 %v1598
    %v1915 = vpop.f32.mrf.mxu0
    %v1916 = vadd.f32 0.0, %v1915
    %v1917 = vpop.f32.mrf.mxu0
    %v1918 = vpop.f32.mrf.mxu0
    %v1919 = vadd.f32 0.0, %v1918
    %v1920 = vpop.f32.mrf.mxu0
    %1921 = vmatprep.mubr.bf16.mxu0 0
    %1922 = vmatmul.mubr.bf16.gmra.mxu0 %v1601
    %v1923 = vpop.f32.mrf.mxu0
    %v1924 = vadd.f32 0.0, %v1923
    %v1925 = vpop.f32.mrf.mxu0
    %v1926 = vpop.f32.mrf.mxu0
    %v1927 = vadd.f32 0.0, %v1926
    %v1928 = vpop.f32.mrf.mxu0
    %1929 = vmatprep.mubr.bf16.mxu0 0
    %1930 = vmatmul.mubr.bf16.gmra.mxu0 %v1604
    %v1931 = vpop.f32.mrf.mxu0
    %v1932 = vadd.f32 0.0, %v1931
    %v1933 = vpop.f32.mrf.mxu0
    %v1934 = vpop.f32.mrf.mxu0
    %v1935 = vadd.f32 0.0, %v1934
    %v1936 = vpop.f32.mrf.mxu0
    %1937 = vmatprep.mubr.bf16.mxu0 0
    %1938 = vmatmul.mubr.bf16.gmra.mxu0 %v1607
    %v1939 = vpop.f32.mrf.mxu0
    %v1940 = vadd.f32 0.0, %v1939
    %v1941 = vpop.f32.mrf.mxu0
    %v1942 = vpop.f32.mrf.mxu0
    %v1943 = vadd.f32 0.0, %v1942
    %v1944 = vpop.f32.mrf.mxu0
    %1945 = vmatprep.mubr.bf16.mxu0 0
    %1946 = vmatmul.mubr.bf16.gmra.mxu0 %v1610
    %v1947 = vpop.f32.mrf.mxu0
    %v1948 = vadd.f32 0.0, %v1947
    %v1949 = vpop.f32.mrf.mxu0
    %v1950 = vpop.f32.mrf.mxu0
    %v1951 = vadd.f32 0.0, %v1950
    %v1952 = vpop.f32.mrf.mxu0
    %1953 = vmatprep.mubr.bf16.mxu0 0
    %1954 = vmatmul.mubr.bf16.gmra.mxu0 %v1613
    %v1955 = vpop.f32.mrf.mxu0
    %v1956 = vadd.f32 0.0, %v1955
    %v1957 = vpop.f32.mrf.mxu0
    %v1958 = vpop.f32.mrf.mxu0
    %v1959 = vadd.f32 0.0, %v1958
    %v1960 = vpop.f32.mrf.mxu0
    %1961 = vmatprep.mubr.bf16.mxu0 0
    %1962 = vmatmul.mubr.bf16.gmra.mxu0 %v1616
    %v1963 = vpop.f32.mrf.mxu0
    %v1964 = vadd.f32 0.0, %v1963
    %v1965 = vpop.f32.mrf.mxu0
    %v1966 = vpop.f32.mrf.mxu0
    %v1967 = vadd.f32 0.0, %v1966
    %v1968 = vpop.f32.mrf.mxu0
    %1969 = vmatprep.mubr.bf16.mxu0 0
    %1970 = vmatmul.mubr.bf16.gmra.mxu0 %v1619
    %v1971 = vpop.f32.mrf.mxu0
    %v1972 = vadd.f32 0.0, %v1971
    %v1973 = vpop.f32.mrf.mxu0
    %v1974 = vpop.f32.mrf.mxu0
    %v1975 = vadd.f32 0.0, %v1974
    %v1976 = vpop.f32.mrf.mxu0
    %1977 = vmatprep.mubr.bf16.mxu0 0
    %1978 = vmatmul.mubr.bf16.gmra.mxu0 %v1622
    %v1979 = vpop.f32.mrf.mxu0
    %v1980 = vadd.f32 0.0, %v1979
    %v1981 = vpop.f32.mrf.mxu0
    %v1982 = vpop.f32.mrf.mxu0
    %v1983 = vpop.f32.mrf.mxu0
    %1984 = vdwg.mxu0
    %v1985 = vadd.f32 %v1057, %v1674
    %v1986 = vadd.f32 %v1059, %v1676
    %v1987 = vadd.f32 %v1178, %v1795
    %v1988 = vadd.f32 %v1180, %v1797
    %v1989 = vadd.f32 %v1299, %v1916
    %v1990 = vadd.f32 %v1061, %v1678
    %v1991 = vadd.f32 %v1063, %v1680
    %v1992 = vadd.f32 %v1182, %v1799
    %v1993 = vadd.f32 %v1184, %v1801
    %v1994 = vadd.f32 %v1302, %v1919
    %v1995 = vadd.f32 %v1067, %v1684
    %v1996 = vadd.f32 %v1069, %v1686
    %v1997 = vadd.f32 %v1188, %v1805
    %v1998 = vadd.f32 %v1190, %v1807
    %v1999 = vadd.f32 %v1307, %v1924
    %v2000 = vadd.f32 %v1071, %v1688
    %v2001 = vadd.f32 %v1073, %v1690
    %v2002 = vadd.f32 %v1192, %v1809
    %v2003 = vadd.f32 %v1194, %v1811
    %v2004 = vadd.f32 %v1310, %v1927
    %v2005 = vadd.f32 %v1077, %v1694
    %v2006 = vadd.f32 %v1079, %v1696
    %v2007 = vadd.f32 %v1198, %v1815
    %v2008 = vadd.f32 %v1200, %v1817
    %v2009 = vadd.f32 %v1315, %v1932
    %v2010 = vadd.f32 %v1081, %v1698
    %v2011 = vadd.f32 %v1083, %v1700
    %v2012 = vadd.f32 %v1202, %v1819
    %v2013 = vadd.f32 %v1204, %v1821
    %v2014 = vadd.f32 %v1318, %v1935
    %v2015 = vadd.f32 %v1087, %v1704
    %v2016 = vadd.f32 %v1089, %v1706
    %v2017 = vadd.f32 %v1208, %v1825
    %v2018 = vadd.f32 %v1210, %v1827
    %v2019 = vadd.f32 %v1323, %v1940
    %v2020 = vadd.f32 %v1091, %v1708
    %v2021 = vadd.f32 %v1093, %v1710
    %v2022 = vadd.f32 %v1212, %v1829
    %v2023 = vadd.f32 %v1214, %v1831
    %v2024 = vadd.f32 %v1326, %v1943
    %v2025 = vadd.f32 %v1097, %v1714
    %v2026 = vadd.f32 %v1099, %v1716
    %v2027 = vadd.f32 %v1218, %v1835
    %v2028 = vadd.f32 %v1220, %v1837
    %v2029 = vadd.f32 %v1331, %v1948
    %v2030 = vadd.f32 %v1101, %v1718
    %v2031 = vadd.f32 %v1103, %v1720
    %v2032 = vadd.f32 %v1222, %v1839
    %v2033 = vadd.f32 %v1224, %v1841
    %v2034 = vadd.f32 %v1334, %v1951
    %v2035 = vadd.f32 %v1107, %v1724
    %v2036 = vadd.f32 %v1109, %v1726
    %v2037 = vadd.f32 %v1228, %v1845
    %v2038 = vadd.f32 %v1230, %v1847
    %v2039 = vadd.f32 %v1339, %v1956
    %v2040 = vadd.f32 %v1111, %v1728
    %v2041 = vadd.f32 %v1113, %v1730
    %v2042 = vadd.f32 %v1232, %v1849
    %v2043 = vadd.f32 %v1234, %v1851
    %v2044 = vadd.f32 %v1342, %v1959
    %v2045 = vadd.f32 %v1117, %v1734
    %v2046 = vadd.f32 %v1119, %v1736
    %v2047 = vadd.f32 %v1238, %v1855
    %v2048 = vadd.f32 %v1240, %v1857
    %v2049 = vadd.f32 %v1347, %v1964
    %v2050 = vadd.f32 %v1121, %v1738
    %v2051 = vadd.f32 %v1123, %v1740
    %v2052 = vadd.f32 %v1242, %v1859
    %v2053 = vadd.f32 %v1244, %v1861
    %v2054 = vadd.f32 %v1350, %v1967
    %v2055 = vadd.f32 %v1127, %v1744
    %v2056 = vadd.f32 %v1129, %v1746
    %v2057 = vadd.f32 %v1248, %v1865
    %v2058 = vadd.f32 %v1250, %v1867
    %v2059 = vadd.f32 %v1355, %v1972
    %v2060 = vadd.f32 %v1131, %v1748
    %v2061 = vadd.f32 %v1133, %v1750
    %v2062 = vadd.f32 %v1252, %v1869
    %v2063 = vadd.f32 %v1254, %v1871
    %v2064 = vadd.f32 %v1358, %v1975
    %v2065 = vadd.f32 %v1137, %v1754
    %v2066 = vadd.f32 %v1139, %v1756
    %v2067 = vadd.f32 %v1258, %v1875
    %v2068 = vadd.f32 %v1260, %v1877
    %v2069 = vadd.f32 %v1363, %v1980
    %v2070 = vld [vmem:[#allocation2] sm:$0x1f]
    %v2072 = vlaneseq
    %v2073 = vshrl.u32 %v2072, 7
    %v2074 = vsub.s32 0, %v2073
    %v2075 = vrot.slane %v2070, %v2074
    %v2076 = vlaneseq
    %v2077 = vshrl.u32 %v2076, 7
    %v2078 = vsub.s32 1, %v2077
    %v2079 = vrot.slane %v2070, %v2078
    %v2080 = vlaneseq
    %v2081 = vshrl.u32 %v2080, 7
    %v2082 = vsub.s32 2, %v2081
    %v2083 = vrot.slane %v2070, %v2082
    %v2084 = vlaneseq
    %v2085 = vshrl.u32 %v2084, 7
    %v2086 = vsub.s32 3, %v2085
    %v2087 = vrot.slane %v2070, %v2086
    %v2088 = vlaneseq
    %v2089 = vshrl.u32 %v2088, 7
    %v2090 = vsub.s32 4, %v2089
    %v2091 = vrot.slane %v2070, %v2090
    %v2097 = vadd.f32 %v1985, %v2075
    %v2098 = vadd.f32 %v1986, %v2079
    %v2099 = vadd.f32 %v1987, %v2083
    %v2100 = vadd.f32 %v1988, %v2087
    %v2101 = vadd.f32 %v1989, %v2091
    %v2102 = vadd.f32 %v1990, %v2075
    %v2103 = vadd.f32 %v1991, %v2079
    %v2104 = vadd.f32 %v1992, %v2083
    %v2105 = vadd.f32 %v1993, %v2087
    %v2106 = vadd.f32 %v1994, %v2091
    %v2107 = vadd.f32 %v1995, %v2075
    %v2108 = vadd.f32 %v1996, %v2079
    %v2109 = vadd.f32 %v1997, %v2083
    %v2110 = vadd.f32 %v1998, %v2087
    %v2111 = vadd.f32 %v1999, %v2091
    %v2112 = vadd.f32 %v2000, %v2075
    %v2113 = vadd.f32 %v2001, %v2079
    %v2114 = vadd.f32 %v2002, %v2083
    %v2115 = vadd.f32 %v2003, %v2087
    %v2116 = vadd.f32 %v2004, %v2091
    %v2117 = vadd.f32 %v2005, %v2075
    %v2118 = vadd.f32 %v2006, %v2079
    %v2119 = vadd.f32 %v2007, %v2083
    %v2120 = vadd.f32 %v2008, %v2087
    %v2121 = vadd.f32 %v2009, %v2091
    %v2122 = vadd.f32 %v2010, %v2075
    %v2123 = vadd.f32 %v2011, %v2079
    %v2124 = vadd.f32 %v2012, %v2083
    %v2125 = vadd.f32 %v2013, %v2087
    %v2126 = vadd.f32 %v2014, %v2091
    %v2127 = vadd.f32 %v2015, %v2075
    %v2128 = vadd.f32 %v2016, %v2079
    %v2129 = vadd.f32 %v2017, %v2083
    %v2130 = vadd.f32 %v2018, %v2087
    %v2131 = vadd.f32 %v2019, %v2091
    %v2132 = vadd.f32 %v2020, %v2075
    %v2133 = vadd.f32 %v2021, %v2079
    %v2134 = vadd.f32 %v2022, %v2083
    %v2135 = vadd.f32 %v2023, %v2087
    %v2136 = vadd.f32 %v2024, %v2091
    %v2137 = vadd.f32 %v2025, %v2075
    %v2138 = vadd.f32 %v2026, %v2079
    %v2139 = vadd.f32 %v2027, %v2083
    %v2140 = vadd.f32 %v2028, %v2087
    %v2141 = vadd.f32 %v2029, %v2091
    %v2142 = vadd.f32 %v2030, %v2075
    %v2143 = vadd.f32 %v2031, %v2079
    %v2144 = vadd.f32 %v2032, %v2083
    %v2145 = vadd.f32 %v2033, %v2087
    %v2146 = vadd.f32 %v2034, %v2091
    %v2147 = vadd.f32 %v2035, %v2075
    %v2148 = vadd.f32 %v2036, %v2079
    %v2149 = vadd.f32 %v2037, %v2083
    %v2150 = vadd.f32 %v2038, %v2087
    %v2151 = vadd.f32 %v2039, %v2091
    %v2152 = vadd.f32 %v2040, %v2075
    %v2153 = vadd.f32 %v2041, %v2079
    %v2154 = vadd.f32 %v2042, %v2083
    %v2155 = vadd.f32 %v2043, %v2087
    %v2156 = vadd.f32 %v2044, %v2091
    %v2157 = vadd.f32 %v2045, %v2075
    %v2158 = vadd.f32 %v2046, %v2079
    %v2159 = vadd.f32 %v2047, %v2083
    %v2160 = vadd.f32 %v2048, %v2087
    %v2161 = vadd.f32 %v2049, %v2091
    %v2162 = vadd.f32 %v2050, %v2075
    %v2163 = vadd.f32 %v2051, %v2079
    %v2164 = vadd.f32 %v2052, %v2083
    %v2165 = vadd.f32 %v2053, %v2087
    %v2166 = vadd.f32 %v2054, %v2091
    %v2167 = vadd.f32 %v2055, %v2075
    %v2168 = vadd.f32 %v2056, %v2079
    %v2169 = vadd.f32 %v2057, %v2083
    %v2170 = vadd.f32 %v2058, %v2087
    %v2171 = vadd.f32 %v2059, %v2091
    %v2172 = vadd.f32 %v2060, %v2075
    %v2173 = vadd.f32 %v2061, %v2079
    %v2174 = vadd.f32 %v2062, %v2083
    %v2175 = vadd.f32 %v2063, %v2087
    %v2176 = vadd.f32 %v2064, %v2091
    %v2177 = vadd.f32 %v2065, %v2075
    %v2178 = vadd.f32 %v2066, %v2079
    %v2179 = vadd.f32 %v2067, %v2083
    %v2180 = vadd.f32 %v2068, %v2087
    %v2181 = vadd.f32 %v2069, %v2091
    %v2182 = vmax.f32 %v2097, 0.0
    %v2183 = vmax.f32 %v2098, 0.0
    %v2184 = vmax.f32 %v2099, 0.0
    %v2185 = vmax.f32 %v2100, 0.0
    %v2186 = vmax.f32 %v2101, 0.0
    %v2187 = vmax.f32 %v2102, 0.0
    %v2188 = vmax.f32 %v2103, 0.0
    %v2189 = vmax.f32 %v2104, 0.0
    %v2190 = vmax.f32 %v2105, 0.0
    %v2191 = vmax.f32 %v2106, 0.0
    %v2192 = vmax.f32 %v2107, 0.0
    %v2193 = vmax.f32 %v2108, 0.0
    %v2194 = vmax.f32 %v2109, 0.0
    %v2195 = vmax.f32 %v2110, 0.0
    %v2196 = vmax.f32 %v2111, 0.0
    %v2197 = vmax.f32 %v2112, 0.0
    %v2198 = vmax.f32 %v2113, 0.0
    %v2199 = vmax.f32 %v2114, 0.0
    %v2200 = vmax.f32 %v2115, 0.0
    %v2201 = vmax.f32 %v2116, 0.0
    %v2202 = vmax.f32 %v2117, 0.0
    %v2203 = vmax.f32 %v2118, 0.0
    %v2204 = vmax.f32 %v2119, 0.0
    %v2205 = vmax.f32 %v2120, 0.0
    %v2206 = vmax.f32 %v2121, 0.0
    %v2207 = vmax.f32 %v2122, 0.0
    %v2208 = vmax.f32 %v2123, 0.0
    %v2209 = vmax.f32 %v2124, 0.0
    %v2210 = vmax.f32 %v2125, 0.0
    %v2211 = vmax.f32 %v2126, 0.0
    %v2212 = vmax.f32 %v2127, 0.0
    %v2213 = vmax.f32 %v2128, 0.0
    %v2214 = vmax.f32 %v2129, 0.0
    %v2215 = vmax.f32 %v2130, 0.0
    %v2216 = vmax.f32 %v2131, 0.0
    %v2217 = vmax.f32 %v2132, 0.0
    %v2218 = vmax.f32 %v2133, 0.0
    %v2219 = vmax.f32 %v2134, 0.0
    %v2220 = vmax.f32 %v2135, 0.0
    %v2221 = vmax.f32 %v2136, 0.0
    %v2222 = vmax.f32 %v2137, 0.0
    %v2223 = vmax.f32 %v2138, 0.0
    %v2224 = vmax.f32 %v2139, 0.0
    %v2225 = vmax.f32 %v2140, 0.0
    %v2226 = vmax.f32 %v2141, 0.0
    %v2227 = vmax.f32 %v2142, 0.0
    %v2228 = vmax.f32 %v2143, 0.0
    %v2229 = vmax.f32 %v2144, 0.0
    %v2230 = vmax.f32 %v2145, 0.0
    %v2231 = vmax.f32 %v2146, 0.0
    %v2232 = vmax.f32 %v2147, 0.0
    %v2233 = vmax.f32 %v2148, 0.0
    %v2234 = vmax.f32 %v2149, 0.0
    %v2235 = vmax.f32 %v2150, 0.0
    %v2236 = vmax.f32 %v2151, 0.0
    %v2237 = vmax.f32 %v2152, 0.0
    %v2238 = vmax.f32 %v2153, 0.0
    %v2239 = vmax.f32 %v2154, 0.0
    %v2240 = vmax.f32 %v2155, 0.0
    %v2241 = vmax.f32 %v2156, 0.0
    %v2242 = vmax.f32 %v2157, 0.0
    %v2243 = vmax.f32 %v2158, 0.0
    %v2244 = vmax.f32 %v2159, 0.0
    %v2245 = vmax.f32 %v2160, 0.0
    %v2246 = vmax.f32 %v2161, 0.0
    %v2247 = vmax.f32 %v2162, 0.0
    %v2248 = vmax.f32 %v2163, 0.0
    %v2249 = vmax.f32 %v2164, 0.0
    %v2250 = vmax.f32 %v2165, 0.0
    %v2251 = vmax.f32 %v2166, 0.0
    %v2252 = vmax.f32 %v2167, 0.0
    %v2253 = vmax.f32 %v2168, 0.0
    %v2254 = vmax.f32 %v2169, 0.0
    %v2255 = vmax.f32 %v2170, 0.0
    %v2256 = vmax.f32 %v2171, 0.0
    %v2257 = vmax.f32 %v2172, 0.0
    %v2258 = vmax.f32 %v2173, 0.0
    %v2259 = vmax.f32 %v2174, 0.0
    %v2260 = vmax.f32 %v2175, 0.0
    %v2261 = vmax.f32 %v2176, 0.0
    %v2262 = vmax.f32 %v2177, 0.0
    %v2263 = vmax.f32 %v2178, 0.0
    %v2264 = vmax.f32 %v2179, 0.0
    %v2265 = vmax.f32 %v2180, 0.0
    %v2266 = vmax.f32 %v2181, 0.0
    %v2267 = vpack.c.bf16 %v2192, %v2182
    %v2268 = vpack.c.bf16 %v2193, %v2183
    %v2269 = vpack.c.bf16 %v2194, %v2184
    %v2270 = vpack.c.bf16 %v2195, %v2185
    %v2271 = vpack.c.bf16 %v2196, %v2186
    %v2272 = vpack.c.bf16 %v2212, %v2202
    %v2273 = vpack.c.bf16 %v2213, %v2203
    %v2274 = vpack.c.bf16 %v2214, %v2204
    %v2275 = vpack.c.bf16 %v2215, %v2205
    %v2276 = vpack.c.bf16 %v2216, %v2206
    %v2277 = vpack.c.bf16 %v2232, %v2222
    %v2278 = vpack.c.bf16 %v2233, %v2223
    %v2279 = vpack.c.bf16 %v2234, %v2224
    %v2280 = vpack.c.bf16 %v2235, %v2225
    %v2281 = vpack.c.bf16 %v2236, %v2226
    %v2282 = vpack.c.bf16 %v2252, %v2242
    %v2283 = vpack.c.bf16 %v2253, %v2243
    %v2284 = vpack.c.bf16 %v2254, %v2244
    %v2285 = vpack.c.bf16 %v2255, %v2245
    %v2286 = vpack.c.bf16 %v2256, %v2246
    %v2287 = vld [vmem:[#allocation4] sm:$0xff]
    %v2288 = vld [vmem:[#allocation4 + $0x8] sm:$0xff]
    %v2289 = vld [vmem:[#allocation4 + $0x10] sm:$0xff]
    %v2290 = vld [vmem:[#allocation4 + $0x18] sm:$0xff]
    %v2291 = vld [vmem:[#allocation4 + $0x20] sm:$0xff]
    %v2292 = vld [vmem:[#allocation4 + $0x28] sm:$0xff]
    %v2293 = vld [vmem:[#allocation4 + $0x30] sm:$0xff]
    %v2294 = vld [vmem:[#allocation4 + $0x38] sm:$0xff]
    %v2295 = vld [vmem:[#allocation4 + $0x40] sm:$0xff]
    %v2296 = vld [vmem:[#allocation4 + $0x48] sm:$0xff]
    %v2297 = vld [vmem:[#allocation4 + $0x50] sm:$0xff]
    %v2298 = vld [vmem:[#allocation4 + $0x58] sm:$0xff]
    %v2299 = vld [vmem:[#allocation4 + $0x60] sm:$0xff]
    %v2300 = vld [vmem:[#allocation4 + $0x68] sm:$0xff]
    %v2301 = vld [vmem:[#allocation4 + $0x70] sm:$0xff]
    %v2302 = vld [vmem:[#allocation4 + $0x78] sm:$0xff]
    %v2303 = vld [vmem:[#allocation4 + $0x80] sm:$0xff]
    %v2304 = vld [vmem:[#allocation4 + $0x88] sm:$0xff]
    %v2305 = vld [vmem:[#allocation4 + $0x90] sm:$0xff]
    %v2306 = vld [vmem:[#allocation4 + $0x98] sm:$0xff]
    %v2307 = vld [vmem:[#allocation4 + $0xa0] sm:$0xff]
    %v2308 = vld [vmem:[#allocation4 + $0xa8] sm:$0xff]
    %v2309 = vld [vmem:[#allocation4 + $0xb0] sm:$0xff]
    %v2310 = vld [vmem:[#allocation4 + $0xb8] sm:$0xff]
    %v2311 = vld [vmem:[#allocation4 + $0xc0] sm:$0xff]
    %v2312 = vld [vmem:[#allocation4 + $0xc8] sm:$0xff]
    %v2313 = vld [vmem:[#allocation4 + $0xd0] sm:$0xff]
    %v2314 = vld [vmem:[#allocation4 + $0xd8] sm:$0xff]
    %v2315 = vld [vmem:[#allocation4 + $0xe0] sm:$0xff]
    %v2316 = vld [vmem:[#allocation4 + $0xe8] sm:$0xff]
    %v2317 = vld [vmem:[#allocation4 + $0xf0] sm:$0xff]
    %v2318 = vld [vmem:[#allocation4 + $0xf8] sm:$0xff]
    %v2319 = vld [vmem:[#allocation4 + $0x100] sm:$0xff]
    %v2320 = vld [vmem:[#allocation4 + $0x108] sm:$0xff]
    %v2321 = vld [vmem:[#allocation4 + $0x110] sm:$0xff]
    %v2322 = vld [vmem:[#allocation4 + $0x118] sm:$0xff]
    %v2323 = vld [vmem:[#allocation4 + $0x120] sm:$0xff]
    %v2324 = vld [vmem:[#allocation4 + $0x128] sm:$0xff]
    %v2325 = vld [vmem:[#allocation4 + $0x130] sm:$0xff]
    %v2326 = vld [vmem:[#allocation4 + $0x138] sm:$0xff]
    %v2327 = vld [vmem:[#allocation4 + $0x140] sm:$0xff]
    %v2328 = vld [vmem:[#allocation4 + $0x148] sm:$0xff]
    %v2329 = vld [vmem:[#allocation4 + $0x150] sm:$0xff]
    %v2330 = vld [vmem:[#allocation4 + $0x158] sm:$0xff]
    %v2331 = vld [vmem:[#allocation4 + $0x160] sm:$0xff]
    %v2332 = vld [vmem:[#allocation4 + $0x168] sm:$0xff]
    %v2333 = vld [vmem:[#allocation4 + $0x170] sm:$0xff]
    %v2334 = vld [vmem:[#allocation4 + $0x178] sm:$0xff]
    %v2335 = vld [vmem:[#allocation4 + $0x180] sm:$0xff]
    %v2336 = vld [vmem:[#allocation4 + $0x188] sm:$0xff]
    %v2337 = vld [vmem:[#allocation4 + $0x190] sm:$0xff]
    %v2338 = vld [vmem:[#allocation4 + $0x198] sm:$0xff]
    %v2339 = vld [vmem:[#allocation4 + $0x1a0] sm:$0xff]
    %v2340 = vld [vmem:[#allocation4 + $0x1a8] sm:$0xff]
    %v2341 = vld [vmem:[#allocation4 + $0x1b0] sm:$0xff]
    %v2342 = vld [vmem:[#allocation4 + $0x1b8] sm:$0xff]
    %v2343 = vld [vmem:[#allocation4 + $0x1c0] sm:$0xff]
    %v2344 = vld [vmem:[#allocation4 + $0x1c8] sm:$0xff]
    %v2345 = vld [vmem:[#allocation4 + $0x1d0] sm:$0xff]
    %v2346 = vld [vmem:[#allocation4 + $0x1d8] sm:$0xff]
    %v2347 = vld [vmem:[#allocation4 + $0x1e0] sm:$0xff]
    %v2348 = vld [vmem:[#allocation4 + $0x1e8] sm:$0xff]
    %v2349 = vld [vmem:[#allocation4 + $0x1f0] sm:$0xff]
    %v2350 = vld [vmem:[#allocation4 + $0x1f8] sm:$0xff]
    %v2351 = vld [vmem:[#allocation4 + $0x200] sm:$0xff]
    %v2352 = vld [vmem:[#allocation4 + $0x208] sm:$0xff]
    %v2353 = vld [vmem:[#allocation4 + $0x210] sm:$0xff]
    %v2354 = vld [vmem:[#allocation4 + $0x218] sm:$0xff]
    %v2355 = vld [vmem:[#allocation4 + $0x220] sm:$0xff]
    %v2356 = vld [vmem:[#allocation4 + $0x228] sm:$0xff]
    %v2357 = vld [vmem:[#allocation4 + $0x230] sm:$0xff]
    %v2358 = vld [vmem:[#allocation4 + $0x238] sm:$0xff]
    %v2359 = vld [vmem:[#allocation4 + $0x240] sm:$0xff]
    %v2360 = vld [vmem:[#allocation4 + $0x248] sm:$0xff]
    %v2361 = vld [vmem:[#allocation4 + $0x250] sm:$0xff]
    %v2362 = vld [vmem:[#allocation4 + $0x258] sm:$0xff]
    %v2363 = vld [vmem:[#allocation4 + $0x260] sm:$0xff]
    %v2364 = vld [vmem:[#allocation4 + $0x268] sm:$0xff]
    %v2365 = vld [vmem:[#allocation4 + $0x270] sm:$0xff]
    %v2366 = vld [vmem:[#allocation4 + $0x278] sm:$0xff]
    %v2367 = vld [vmem:[#allocation4 + $0x280] sm:$0xff]
    %v2368 = vld [vmem:[#allocation4 + $0x288] sm:$0xff]
    %v2369 = vld [vmem:[#allocation4 + $0x290] sm:$0xff]
    %v2370 = vld [vmem:[#allocation4 + $0x298] sm:$0xff]
    %v2371 = vld [vmem:[#allocation4 + $0x2a0] sm:$0xff]
    %v2372 = vld [vmem:[#allocation4 + $0x2a8] sm:$0xff]
    %v2373 = vld [vmem:[#allocation4 + $0x2b0] sm:$0xff]
    %v2374 = vld [vmem:[#allocation4 + $0x2b8] sm:$0xff]
    %v2375 = vld [vmem:[#allocation4 + $0x2c0] sm:$0xff]
    %v2376 = vld [vmem:[#allocation4 + $0x2c8] sm:$0xff]
    %v2377 = vld [vmem:[#allocation4 + $0x2d0] sm:$0xff]
    %v2378 = vld [vmem:[#allocation4 + $0x2d8] sm:$0xff]
    %v2379 = vld [vmem:[#allocation4 + $0x2e0] sm:$0xff]
    %v2380 = vld [vmem:[#allocation4 + $0x2e8] sm:$0xff]
    %v2381 = vld [vmem:[#allocation4 + $0x2f0] sm:$0xff]
    %v2382 = vld [vmem:[#allocation4 + $0x2f8] sm:$0xff]
    %v2383 = vld [vmem:[#allocation4 + $0x300] sm:$0xff]
    %v2384 = vld [vmem:[#allocation4 + $0x308] sm:$0xff]
    %v2385 = vld [vmem:[#allocation4 + $0x310] sm:$0xff]
    %v2386 = vld [vmem:[#allocation4 + $0x318] sm:$0xff]
    %v2387 = vld [vmem:[#allocation4 + $0x320] sm:$0xff]
    %v2388 = vld [vmem:[#allocation4 + $0x328] sm:$0xff]
    %v2389 = vld [vmem:[#allocation4 + $0x330] sm:$0xff]
    %v2390 = vld [vmem:[#allocation4 + $0x338] sm:$0xff]
    %v2391 = vld [vmem:[#allocation4 + $0x340] sm:$0xff]
    %v2392 = vld [vmem:[#allocation4 + $0x348] sm:$0xff]
    %v2393 = vld [vmem:[#allocation4 + $0x350] sm:$0xff]
    %v2394 = vld [vmem:[#allocation4 + $0x358] sm:$0xff]
    %v2395 = vld [vmem:[#allocation4 + $0x360] sm:$0xff]
    %v2396 = vld [vmem:[#allocation4 + $0x368] sm:$0xff]
    %v2397 = vld [vmem:[#allocation4 + $0x370] sm:$0xff]
    %v2398 = vld [vmem:[#allocation4 + $0x378] sm:$0xff]
    %v2399 = vld [vmem:[#allocation4 + $0x380] sm:$0xff]
    %v2400 = vld [vmem:[#allocation4 + $0x388] sm:$0xff]
    %v2401 = vld [vmem:[#allocation4 + $0x390] sm:$0xff]
    %v2402 = vld [vmem:[#allocation4 + $0x398] sm:$0xff]
    %v2403 = vld [vmem:[#allocation4 + $0x3a0] sm:$0xff]
    %v2404 = vld [vmem:[#allocation4 + $0x3a8] sm:$0xff]
    %v2405 = vld [vmem:[#allocation4 + $0x3b0] sm:$0xff]
    %v2406 = vld [vmem:[#allocation4 + $0x3b8] sm:$0xff]
    %v2407 = vld [vmem:[#allocation4 + $0x3c0] sm:$0xff]
    %v2408 = vld [vmem:[#allocation4 + $0x3c8] sm:$0xff]
    %v2409 = vld [vmem:[#allocation4 + $0x3d0] sm:$0xff]
    %v2410 = vld [vmem:[#allocation4 + $0x3d8] sm:$0xff]
    %v2411 = vld [vmem:[#allocation4 + $0x3e0] sm:$0xff]
    %v2412 = vld [vmem:[#allocation4 + $0x3e8] sm:$0xff]
    %v2413 = vld [vmem:[#allocation4 + $0x3f0] sm:$0xff]
    %v2414 = vld [vmem:[#allocation4 + $0x3f8] sm:$0xff]
    %v2415 = vld [vmem:[#allocation4 + $0x400] sm:$0xff]
    %v2416 = vld [vmem:[#allocation4 + $0x408] sm:$0xff]
    %v2417 = vld [vmem:[#allocation4 + $0x410] sm:$0xff]
    %v2418 = vld [vmem:[#allocation4 + $0x418] sm:$0xff]
    %v2419 = vld [vmem:[#allocation4 + $0x420] sm:$0xff]
    %v2420 = vld [vmem:[#allocation4 + $0x428] sm:$0xff]
    %v2421 = vld [vmem:[#allocation4 + $0x430] sm:$0xff]
    %v2422 = vld [vmem:[#allocation4 + $0x438] sm:$0xff]
    %v2423 = vpack.c.bf16 %v2197, %v2187
    %v2424 = vpack.c.bf16 %v2198, %v2188
    %v2425 = vpack.c.bf16 %v2199, %v2189
    %v2426 = vpack.c.bf16 %v2200, %v2190
    %v2427 = vpack.c.bf16 %v2201, %v2191
    %v2428 = vpack.c.bf16 %v2217, %v2207
    %v2429 = vpack.c.bf16 %v2218, %v2208
    %v2430 = vpack.c.bf16 %v2219, %v2209
    %v2431 = vpack.c.bf16 %v2220, %v2210
    %v2432 = vpack.c.bf16 %v2221, %v2211
    %v2433 = vpack.c.bf16 %v2237, %v2227
    %v2434 = vpack.c.bf16 %v2238, %v2228
    %v2435 = vpack.c.bf16 %v2239, %v2229
    %v2436 = vpack.c.bf16 %v2240, %v2230
    %v2437 = vpack.c.bf16 %v2241, %v2231
    %v2438 = vpack.c.bf16 %v2257, %v2247
    %v2439 = vpack.c.bf16 %v2258, %v2248
    %v2440 = vpack.c.bf16 %v2259, %v2249
    %v2441 = vpack.c.bf16 %v2260, %v2250
    %v2442 = vpack.c.bf16 %v2261, %v2251
    %s2443 = scalar_lea.vmem [#allocation4], 1088
    %v2444 = vld [vmem:[%s2443] sm:$0xff]
    %v2445 = vld [vmem:[%s2443 + $0x8] sm:$0xff]
    %v2446 = vld [vmem:[%s2443 + $0x10] sm:$0xff]
    %v2447 = vld [vmem:[%s2443 + $0x18] sm:$0xff]
    %v2448 = vld [vmem:[%s2443 + $0x20] sm:$0xff]
    %v2449 = vld [vmem:[%s2443 + $0x28] sm:$0xff]
    %v2450 = vld [vmem:[%s2443 + $0x30] sm:$0xff]
    %v2451 = vld [vmem:[%s2443 + $0x38] sm:$0xff]
    %v2452 = vld [vmem:[%s2443 + $0x40] sm:$0xff]
    %v2453 = vld [vmem:[%s2443 + $0x48] sm:$0xff]
    %v2454 = vld [vmem:[%s2443 + $0x50] sm:$0xff]
    %v2455 = vld [vmem:[%s2443 + $0x58] sm:$0xff]
    %v2456 = vld [vmem:[%s2443 + $0x60] sm:$0xff]
    %v2457 = vld [vmem:[%s2443 + $0x68] sm:$0xff]
    %v2458 = vld [vmem:[%s2443 + $0x70] sm:$0xff]
    %v2459 = vld [vmem:[%s2443 + $0x78] sm:$0xff]
    %v2460 = vld [vmem:[%s2443 + $0x80] sm:$0xff]
    %v2461 = vld [vmem:[%s2443 + $0x88] sm:$0xff]
    %v2462 = vld [vmem:[%s2443 + $0x90] sm:$0xff]
    %v2463 = vld [vmem:[%s2443 + $0x98] sm:$0xff]
    %v2464 = vld [vmem:[%s2443 + $0xa0] sm:$0xff]
    %v2465 = vld [vmem:[%s2443 + $0xa8] sm:$0xff]
    %v2466 = vld [vmem:[%s2443 + $0xb0] sm:$0xff]
    %v2467 = vld [vmem:[%s2443 + $0xb8] sm:$0xff]
    %v2468 = vld [vmem:[%s2443 + $0xc0] sm:$0xff]
    %v2469 = vld [vmem:[%s2443 + $0xc8] sm:$0xff]
    %v2470 = vld [vmem:[%s2443 + $0xd0] sm:$0xff]
    %v2471 = vld [vmem:[%s2443 + $0xd8] sm:$0xff]
    %v2472 = vld [vmem:[%s2443 + $0xe0] sm:$0xff]
    %v2473 = vld [vmem:[%s2443 + $0xe8] sm:$0xff]
    %v2474 = vld [vmem:[%s2443 + $0xf0] sm:$0xff]
    %v2475 = vld [vmem:[%s2443 + $0xf8] sm:$0xff]
    %v2476 = vld [vmem:[%s2443 + $0x100] sm:$0xff]
    %v2477 = vld [vmem:[%s2443 + $0x108] sm:$0xff]
    %v2478 = vld [vmem:[%s2443 + $0x110] sm:$0xff]
    %v2479 = vld [vmem:[%s2443 + $0x118] sm:$0xff]
    %v2480 = vld [vmem:[%s2443 + $0x120] sm:$0xff]
    %v2481 = vld [vmem:[%s2443 + $0x128] sm:$0xff]
    %v2482 = vld [vmem:[%s2443 + $0x130] sm:$0xff]
    %v2483 = vld [vmem:[%s2443 + $0x138] sm:$0xff]
    %v2484 = vld [vmem:[%s2443 + $0x140] sm:$0xff]
    %v2485 = vld [vmem:[%s2443 + $0x148] sm:$0xff]
    %v2486 = vld [vmem:[%s2443 + $0x150] sm:$0xff]
    %v2487 = vld [vmem:[%s2443 + $0x158] sm:$0xff]
    %v2488 = vld [vmem:[%s2443 + $0x160] sm:$0xff]
    %v2489 = vld [vmem:[%s2443 + $0x168] sm:$0xff]
    %v2490 = vld [vmem:[%s2443 + $0x170] sm:$0xff]
    %v2491 = vld [vmem:[%s2443 + $0x178] sm:$0xff]
    %v2492 = vld [vmem:[%s2443 + $0x180] sm:$0xff]
    %v2493 = vld [vmem:[%s2443 + $0x188] sm:$0xff]
    %v2494 = vld [vmem:[%s2443 + $0x190] sm:$0xff]
    %v2495 = vld [vmem:[%s2443 + $0x198] sm:$0xff]
    %v2496 = vld [vmem:[%s2443 + $0x1a0] sm:$0xff]
    %v2497 = vld [vmem:[%s2443 + $0x1a8] sm:$0xff]
    %v2498 = vld [vmem:[%s2443 + $0x1b0] sm:$0xff]
    %v2499 = vld [vmem:[%s2443 + $0x1b8] sm:$0xff]
    %v2500 = vld [vmem:[%s2443 + $0x1c0] sm:$0xff]
    %v2501 = vld [vmem:[%s2443 + $0x1c8] sm:$0xff]
    %v2502 = vld [vmem:[%s2443 + $0x1d0] sm:$0xff]
    %v2503 = vld [vmem:[%s2443 + $0x1d8] sm:$0xff]
    %v2504 = vld [vmem:[%s2443 + $0x1e0] sm:$0xff]
    %v2505 = vld [vmem:[%s2443 + $0x1e8] sm:$0xff]
    %v2506 = vld [vmem:[%s2443 + $0x1f0] sm:$0xff]
    %v2507 = vld [vmem:[%s2443 + $0x1f8] sm:$0xff]
    %v2508 = vld [vmem:[%s2443 + $0x200] sm:$0xff]
    %v2509 = vld [vmem:[%s2443 + $0x208] sm:$0xff]
    %v2510 = vld [vmem:[%s2443 + $0x210] sm:$0xff]
    %v2511 = vld [vmem:[%s2443 + $0x218] sm:$0xff]
    %v2512 = vld [vmem:[%s2443 + $0x220] sm:$0xff]
    %v2513 = vld [vmem:[%s2443 + $0x228] sm:$0xff]
    %v2514 = vld [vmem:[%s2443 + $0x230] sm:$0xff]
    %v2515 = vld [vmem:[%s2443 + $0x238] sm:$0xff]
    %v2516 = vld [vmem:[%s2443 + $0x240] sm:$0xff]
    %v2517 = vld [vmem:[%s2443 + $0x248] sm:$0xff]
    %v2518 = vld [vmem:[%s2443 + $0x250] sm:$0xff]
    %v2519 = vld [vmem:[%s2443 + $0x258] sm:$0xff]
    %v2520 = vld [vmem:[%s2443 + $0x260] sm:$0xff]
    %v2521 = vld [vmem:[%s2443 + $0x268] sm:$0xff]
    %v2522 = vld [vmem:[%s2443 + $0x270] sm:$0xff]
    %v2523 = vld [vmem:[%s2443 + $0x278] sm:$0xff]
    %v2524 = vld [vmem:[%s2443 + $0x280] sm:$0xff]
    %v2525 = vld [vmem:[%s2443 + $0x288] sm:$0xff]
    %v2526 = vld [vmem:[%s2443 + $0x290] sm:$0xff]
    %v2527 = vld [vmem:[%s2443 + $0x298] sm:$0xff]
    %v2528 = vld [vmem:[%s2443 + $0x2a0] sm:$0xff]
    %v2529 = vld [vmem:[%s2443 + $0x2a8] sm:$0xff]
    %v2530 = vld [vmem:[%s2443 + $0x2b0] sm:$0xff]
    %v2531 = vld [vmem:[%s2443 + $0x2b8] sm:$0xff]
    %v2532 = vld [vmem:[%s2443 + $0x2c0] sm:$0xff]
    %v2533 = vld [vmem:[%s2443 + $0x2c8] sm:$0xff]
    %v2534 = vld [vmem:[%s2443 + $0x2d0] sm:$0xff]
    %v2535 = vld [vmem:[%s2443 + $0x2d8] sm:$0xff]
    %v2536 = vld [vmem:[%s2443 + $0x2e0] sm:$0xff]
    %v2537 = vld [vmem:[%s2443 + $0x2e8] sm:$0xff]
    %v2538 = vld [vmem:[%s2443 + $0x2f0] sm:$0xff]
    %v2539 = vld [vmem:[%s2443 + $0x2f8] sm:$0xff]
    %v2540 = vld [vmem:[%s2443 + $0x300] sm:$0xff]
    %v2541 = vld [vmem:[%s2443 + $0x308] sm:$0xff]
    %v2542 = vld [vmem:[%s2443 + $0x310] sm:$0xff]
    %v2543 = vld [vmem:[%s2443 + $0x318] sm:$0xff]
    %v2544 = vld [vmem:[%s2443 + $0x320] sm:$0xff]
    %v2545 = vld [vmem:[%s2443 + $0x328] sm:$0xff]
    %v2546 = vld [vmem:[%s2443 + $0x330] sm:$0xff]
    %v2547 = vld [vmem:[%s2443 + $0x338] sm:$0xff]
    %v2548 = vld [vmem:[%s2443 + $0x340] sm:$0xff]
    %v2549 = vld [vmem:[%s2443 + $0x348] sm:$0xff]
    %v2550 = vld [vmem:[%s2443 + $0x350] sm:$0xff]
    %v2551 = vld [vmem:[%s2443 + $0x358] sm:$0xff]
    %v2552 = vld [vmem:[%s2443 + $0x360] sm:$0xff]
    %v2553 = vld [vmem:[%s2443 + $0x368] sm:$0xff]
    %v2554 = vld [vmem:[%s2443 + $0x370] sm:$0xff]
    %v2555 = vld [vmem:[%s2443 + $0x378] sm:$0xff]
    %v2556 = vld [vmem:[%s2443 + $0x380] sm:$0xff]
    %v2557 = vld [vmem:[%s2443 + $0x388] sm:$0xff]
    %v2558 = vld [vmem:[%s2443 + $0x390] sm:$0xff]
    %v2559 = vld [vmem:[%s2443 + $0x398] sm:$0xff]
    %v2560 = vld [vmem:[%s2443 + $0x3a0] sm:$0xff]
    %v2561 = vld [vmem:[%s2443 + $0x3a8] sm:$0xff]
    %v2562 = vld [vmem:[%s2443 + $0x3b0] sm:$0xff]
    %v2563 = vld [vmem:[%s2443 + $0x3b8] sm:$0xff]
    %v2564 = vld [vmem:[%s2443 + $0x3c0] sm:$0xff]
    %v2565 = vld [vmem:[%s2443 + $0x3c8] sm:$0xff]
    %v2566 = vld [vmem:[%s2443 + $0x3d0] sm:$0xff]
    %v2567 = vld [vmem:[%s2443 + $0x3d8] sm:$0xff]
    %v2568 = vld [vmem:[%s2443 + $0x3e0] sm:$0xff]
    %v2569 = vld [vmem:[%s2443 + $0x3e8] sm:$0xff]
    %v2570 = vld [vmem:[%s2443 + $0x3f0] sm:$0xff]
    %v2571 = vld [vmem:[%s2443 + $0x3f8] sm:$0xff]
    %v2572 = vld [vmem:[%s2443 + $0x400] sm:$0xff]
    %v2573 = vld [vmem:[%s2443 + $0x408] sm:$0xff]
    %v2574 = vld [vmem:[%s2443 + $0x410] sm:$0xff]
    %v2575 = vld [vmem:[%s2443 + $0x418] sm:$0xff]
    %v2576 = vld [vmem:[%s2443 + $0x420] sm:$0xff]
    %v2577 = vld [vmem:[%s2443 + $0x428] sm:$0xff]
    %v2578 = vld [vmem:[%s2443 + $0x430] sm:$0xff]
    %v2579 = vld [vmem:[%s2443 + $0x438] sm:$0xff]
    %v2716 = vunpack.c.l.b16 %v2444
    %v2717 = vunpack.c.h.b16 %v2444
    %v2718 = vunpack.c.l.b16 %v2445
    %v2719 = vunpack.c.h.b16 %v2445
    %v2720 = vunpack.c.l.b16 %v2446
    %v2721 = vunpack.c.h.b16 %v2446
    %v2722 = vunpack.c.l.b16 %v2447
    %v2723 = vunpack.c.h.b16 %v2447
    %v2724 = vunpack.c.l.b16 %v2448
    %v2725 = vunpack.c.h.b16 %v2448
    %v2726 = vunpack.c.l.b16 %v2449
    %v2727 = vunpack.c.h.b16 %v2449
    %v2728 = vunpack.c.l.b16 %v2450
    %v2729 = vunpack.c.h.b16 %v2450
    %v2730 = vunpack.c.l.b16 %v2451
    %v2731 = vunpack.c.h.b16 %v2451
    %v2732 = vunpack.c.l.b16 %v2452
    %v2733 = vunpack.c.h.b16 %v2452
    %v2734 = vunpack.c.l.b16 %v2453
    %v2735 = vunpack.c.h.b16 %v2453
    %v2736 = vunpack.c.l.b16 %v2454
    %v2737 = vunpack.c.h.b16 %v2454
    %v2738 = vunpack.c.l.b16 %v2455
    %v2739 = vunpack.c.h.b16 %v2455
    %v2740 = vunpack.c.l.b16 %v2456
    %v2741 = vunpack.c.h.b16 %v2456
    %v2742 = vunpack.c.l.b16 %v2457
    %v2743 = vunpack.c.h.b16 %v2457
    %v2744 = vunpack.c.l.b16 %v2458
    %v2745 = vunpack.c.h.b16 %v2458
    %v2746 = vunpack.c.l.b16 %v2459
    %v2747 = vunpack.c.h.b16 %v2459
    %v2748 = vunpack.c.l.b16 %v2460
    %v2749 = vunpack.c.h.b16 %v2460
    %v2750 = vunpack.c.l.b16 %v2461
    %v2751 = vunpack.c.h.b16 %v2461
    %v2752 = vunpack.c.l.b16 %v2462
    %v2753 = vunpack.c.h.b16 %v2462
    %v2754 = vunpack.c.l.b16 %v2463
    %v2755 = vunpack.c.h.b16 %v2463
    %v2756 = vunpack.c.l.b16 %v2464
    %v2757 = vunpack.c.h.b16 %v2464
    %v2758 = vunpack.c.l.b16 %v2465
    %v2759 = vunpack.c.h.b16 %v2465
    %v2760 = vunpack.c.l.b16 %v2466
    %v2761 = vunpack.c.h.b16 %v2466
    %v2762 = vunpack.c.l.b16 %v2467
    %v2763 = vunpack.c.h.b16 %v2467
    %v2764 = vunpack.c.l.b16 %v2468
    %v2765 = vunpack.c.h.b16 %v2468
    %v2766 = vunpack.c.l.b16 %v2469
    %v2767 = vunpack.c.h.b16 %v2469
    %v2768 = vunpack.c.l.b16 %v2470
    %v2769 = vunpack.c.h.b16 %v2470
    %v2770 = vunpack.c.l.b16 %v2471
    %v2771 = vunpack.c.h.b16 %v2471
    %v2772 = vunpack.c.l.b16 %v2472
    %v2773 = vunpack.c.h.b16 %v2472
    %v2774 = vunpack.c.l.b16 %v2473
    %v2775 = vunpack.c.h.b16 %v2473
    %v2776 = vunpack.c.l.b16 %v2474
    %v2777 = vunpack.c.h.b16 %v2474
    %v2778 = vunpack.c.l.b16 %v2475
    %v2779 = vunpack.c.h.b16 %v2475
    %v2780 = vunpack.c.l.b16 %v2476
    %v2781 = vunpack.c.h.b16 %v2476
    %v2782 = vunpack.c.l.b16 %v2477
    %v2783 = vunpack.c.h.b16 %v2477
    %v2784 = vunpack.c.l.b16 %v2478
    %v2785 = vunpack.c.h.b16 %v2478
    %v2786 = vunpack.c.l.b16 %v2479
    %v2787 = vunpack.c.h.b16 %v2479
    %v2788 = vunpack.c.l.b16 %v2480
    %v2789 = vunpack.c.h.b16 %v2480
    %v2790 = vunpack.c.l.b16 %v2481
    %v2791 = vunpack.c.h.b16 %v2481
    %v2792 = vunpack.c.l.b16 %v2482
    %v2793 = vunpack.c.h.b16 %v2482
    %v2794 = vunpack.c.l.b16 %v2483
    %v2795 = vunpack.c.h.b16 %v2483
    %v2796 = vunpack.c.l.b16 %v2484
    %v2797 = vunpack.c.h.b16 %v2484
    %v2798 = vunpack.c.l.b16 %v2485
    %v2799 = vunpack.c.h.b16 %v2485
    %v2800 = vunpack.c.l.b16 %v2486
    %v2801 = vunpack.c.h.b16 %v2486
    %v2802 = vunpack.c.l.b16 %v2487
    %v2803 = vunpack.c.h.b16 %v2487
    %v2804 = vunpack.c.l.b16 %v2488
    %v2805 = vunpack.c.h.b16 %v2488
    %v2806 = vunpack.c.l.b16 %v2489
    %v2807 = vunpack.c.h.b16 %v2489
    %v2808 = vunpack.c.l.b16 %v2490
    %v2809 = vunpack.c.h.b16 %v2490
    %v2810 = vunpack.c.l.b16 %v2491
    %v2811 = vunpack.c.h.b16 %v2491
    %v2812 = vunpack.c.l.b16 %v2492
    %v2813 = vunpack.c.h.b16 %v2492
    %v2814 = vunpack.c.l.b16 %v2493
    %v2815 = vunpack.c.h.b16 %v2493
    %v2816 = vunpack.c.l.b16 %v2494
    %v2817 = vunpack.c.h.b16 %v2494
    %v2818 = vunpack.c.l.b16 %v2495
    %v2819 = vunpack.c.h.b16 %v2495
    %v2820 = vunpack.c.l.b16 %v2496
    %v2821 = vunpack.c.h.b16 %v2496
    %v2822 = vunpack.c.l.b16 %v2497
    %v2823 = vunpack.c.h.b16 %v2497
    %v2824 = vunpack.c.l.b16 %v2498
    %v2825 = vunpack.c.h.b16 %v2498
    %v2826 = vunpack.c.l.b16 %v2499
    %v2827 = vunpack.c.h.b16 %v2499
    %v2828 = vunpack.c.l.b16 %v2500
    %v2829 = vunpack.c.h.b16 %v2500
    %v2830 = vunpack.c.l.b16 %v2501
    %v2831 = vunpack.c.h.b16 %v2501
    %v2832 = vunpack.c.l.b16 %v2502
    %v2833 = vunpack.c.h.b16 %v2502
    %v2834 = vunpack.c.l.b16 %v2503
    %v2835 = vunpack.c.h.b16 %v2503
    %v2836 = vunpack.c.l.b16 %v2504
    %v2837 = vunpack.c.h.b16 %v2504
    %v2838 = vunpack.c.l.b16 %v2505
    %v2839 = vunpack.c.h.b16 %v2505
    %v2840 = vunpack.c.l.b16 %v2506
    %v2841 = vunpack.c.h.b16 %v2506
    %v2842 = vunpack.c.l.b16 %v2507
    %v2843 = vunpack.c.h.b16 %v2507
    %v2844 = vunpack.c.l.b16 %v2508
    %v2845 = vunpack.c.h.b16 %v2508
    %v2846 = vunpack.c.l.b16 %v2509
    %v2847 = vunpack.c.h.b16 %v2509
    %v2848 = vunpack.c.l.b16 %v2510
    %v2849 = vunpack.c.h.b16 %v2510
    %v2850 = vunpack.c.l.b16 %v2511
    %v2851 = vunpack.c.h.b16 %v2511
    %v2852 = vunpack.c.l.b16 %v2512
    %v2853 = vunpack.c.h.b16 %v2512
    %v2854 = vunpack.c.l.b16 %v2513
    %v2855 = vunpack.c.h.b16 %v2513
    %v2856 = vunpack.c.l.b16 %v2514
    %v2857 = vunpack.c.h.b16 %v2514
    %v2858 = vunpack.c.l.b16 %v2515
    %v2859 = vunpack.c.h.b16 %v2515
    %v2860 = vunpack.c.l.b16 %v2516
    %v2861 = vunpack.c.h.b16 %v2516
    %v2862 = vunpack.c.l.b16 %v2517
    %v2863 = vunpack.c.h.b16 %v2517
    %v2864 = vunpack.c.l.b16 %v2518
    %v2865 = vunpack.c.h.b16 %v2518
    %v2866 = vunpack.c.l.b16 %v2519
    %v2867 = vunpack.c.h.b16 %v2519
    %v2868 = vunpack.c.l.b16 %v2520
    %v2869 = vunpack.c.h.b16 %v2520
    %v2870 = vunpack.c.l.b16 %v2521
    %v2871 = vunpack.c.h.b16 %v2521
    %v2872 = vunpack.c.l.b16 %v2522
    %v2873 = vunpack.c.h.b16 %v2522
    %v2874 = vunpack.c.l.b16 %v2523
    %v2875 = vunpack.c.h.b16 %v2523
    %v2876 = vunpack.c.l.b16 %v2524
    %v2877 = vunpack.c.h.b16 %v2524
    %v2878 = vunpack.c.l.b16 %v2525
    %v2879 = vunpack.c.h.b16 %v2525
    %v2880 = vunpack.c.l.b16 %v2526
    %v2881 = vunpack.c.h.b16 %v2526
    %v2882 = vunpack.c.l.b16 %v2527
    %v2883 = vunpack.c.h.b16 %v2527
    %v2884 = vunpack.c.l.b16 %v2528
    %v2885 = vunpack.c.h.b16 %v2528
    %v2886 = vunpack.c.l.b16 %v2529
    %v2887 = vunpack.c.h.b16 %v2529
    %v2888 = vunpack.c.l.b16 %v2530
    %v2889 = vunpack.c.h.b16 %v2530
    %v2890 = vunpack.c.l.b16 %v2531
    %v2891 = vunpack.c.h.b16 %v2531
    %v2892 = vunpack.c.l.b16 %v2532
    %v2893 = vunpack.c.h.b16 %v2532
    %v2894 = vunpack.c.l.b16 %v2533
    %v2895 = vunpack.c.h.b16 %v2533
    %v2896 = vunpack.c.l.b16 %v2534
    %v2897 = vunpack.c.h.b16 %v2534
    %v2898 = vunpack.c.l.b16 %v2535
    %v2899 = vunpack.c.h.b16 %v2535
    %v2900 = vunpack.c.l.b16 %v2536
    %v2901 = vunpack.c.h.b16 %v2536
    %v2902 = vunpack.c.l.b16 %v2537
    %v2903 = vunpack.c.h.b16 %v2537
    %v2904 = vunpack.c.l.b16 %v2538
    %v2905 = vunpack.c.h.b16 %v2538
    %v2906 = vunpack.c.l.b16 %v2539
    %v2907 = vunpack.c.h.b16 %v2539
    %v2908 = vunpack.c.l.b16 %v2540
    %v2909 = vunpack.c.h.b16 %v2540
    %v2910 = vunpack.c.l.b16 %v2541
    %v2911 = vunpack.c.h.b16 %v2541
    %v2912 = vunpack.c.l.b16 %v2542
    %v2913 = vunpack.c.h.b16 %v2542
    %v2914 = vunpack.c.l.b16 %v2543
    %v2915 = vunpack.c.h.b16 %v2543
    %v2916 = vunpack.c.l.b16 %v2544
    %v2917 = vunpack.c.h.b16 %v2544
    %v2918 = vunpack.c.l.b16 %v2545
    %v2919 = vunpack.c.h.b16 %v2545
    %v2920 = vunpack.c.l.b16 %v2546
    %v2921 = vunpack.c.h.b16 %v2546
    %v2922 = vunpack.c.l.b16 %v2547
    %v2923 = vunpack.c.h.b16 %v2547
    %v2924 = vunpack.c.l.b16 %v2548
    %v2925 = vunpack.c.h.b16 %v2548
    %v2926 = vunpack.c.l.b16 %v2549
    %v2927 = vunpack.c.h.b16 %v2549
    %v2928 = vunpack.c.l.b16 %v2550
    %v2929 = vunpack.c.h.b16 %v2550
    %v2930 = vunpack.c.l.b16 %v2551
    %v2931 = vunpack.c.h.b16 %v2551
    %v2932 = vunpack.c.l.b16 %v2552
    %v2933 = vunpack.c.h.b16 %v2552
    %v2934 = vunpack.c.l.b16 %v2553
    %v2935 = vunpack.c.h.b16 %v2553
    %v2936 = vunpack.c.l.b16 %v2554
    %v2937 = vunpack.c.h.b16 %v2554
    %v2938 = vunpack.c.l.b16 %v2555
    %v2939 = vunpack.c.h.b16 %v2555
    %v2940 = vunpack.c.l.b16 %v2556
    %v2941 = vunpack.c.h.b16 %v2556
    %v2942 = vunpack.c.l.b16 %v2557
    %v2943 = vunpack.c.h.b16 %v2557
    %v2944 = vunpack.c.l.b16 %v2558
    %v2945 = vunpack.c.h.b16 %v2558
    %v2946 = vunpack.c.l.b16 %v2559
    %v2947 = vunpack.c.h.b16 %v2559
    %v2948 = vunpack.c.l.b16 %v2560
    %v2949 = vunpack.c.h.b16 %v2560
    %v2950 = vunpack.c.l.b16 %v2561
    %v2951 = vunpack.c.h.b16 %v2561
    %v2952 = vunpack.c.l.b16 %v2562
    %v2953 = vunpack.c.h.b16 %v2562
    %v2954 = vunpack.c.l.b16 %v2563
    %v2955 = vunpack.c.h.b16 %v2563
    %v2956 = vunpack.c.l.b16 %v2564
    %v2957 = vunpack.c.h.b16 %v2564
    %v2958 = vunpack.c.l.b16 %v2565
    %v2959 = vunpack.c.h.b16 %v2565
    %v2960 = vunpack.c.l.b16 %v2566
    %v2961 = vunpack.c.h.b16 %v2566
    %v2962 = vunpack.c.l.b16 %v2567
    %v2963 = vunpack.c.h.b16 %v2567
    %v2964 = vunpack.c.l.b16 %v2568
    %v2965 = vunpack.c.h.b16 %v2568
    %v2966 = vunpack.c.l.b16 %v2569
    %v2967 = vunpack.c.h.b16 %v2569
    %v2968 = vunpack.c.l.b16 %v2570
    %v2969 = vunpack.c.h.b16 %v2570
    %v2970 = vunpack.c.l.b16 %v2571
    %v2971 = vunpack.c.h.b16 %v2571
    %v2972 = vunpack.c.l.b16 %v2572
    %v2973 = vunpack.c.h.b16 %v2572
    %v2974 = vunpack.c.l.b16 %v2573
    %v2975 = vunpack.c.h.b16 %v2573
    %v2976 = vunpack.c.l.b16 %v2574
    %v2977 = vunpack.c.h.b16 %v2574
    %v2978 = vunpack.c.l.b16 %v2575
    %v2979 = vunpack.c.h.b16 %v2575
    %v2980 = vunpack.c.l.b16 %v2576
    %v2981 = vunpack.c.h.b16 %v2576
    %v2982 = vunpack.c.l.b16 %v2577
    %v2983 = vunpack.c.h.b16 %v2577
    %v2984 = vunpack.c.l.b16 %v2578
    %v2985 = vunpack.c.h.b16 %v2578
    %v2986 = vunpack.c.l.b16 %v2579
    %v2987 = vunpack.c.h.b16 %v2579
    %v2988 = vpack.c.b16 %v2720, %v2716
    %v2989 = vpack.c.b16 %v2721, %v2717
    %v2990 = vpack.c.b16 %v2722, %v2718
    %v2991 = vpack.c.b16 %v2723, %v2719
    %v2992 = vpack.c.b16 %v2728, %v2724
    %v2993 = vpack.c.b16 %v2729, %v2725
    %v2994 = vpack.c.b16 %v2730, %v2726
    %v2995 = vpack.c.b16 %v2731, %v2727
    %v2996 = vpack.c.b16 %v2736, %v2732
    %v2997 = vpack.c.b16 %v2737, %v2733
    %v2998 = vpack.c.b16 %v2738, %v2734
    %v2999 = vpack.c.b16 %v2739, %v2735
    %v3000 = vpack.c.b16 %v2744, %v2740
    %v3001 = vpack.c.b16 %v2745, %v2741
    %v3002 = vpack.c.b16 %v2746, %v2742
    %v3003 = vpack.c.b16 %v2747, %v2743
    %v3004 = vpack.c.b16 %v2752, %v2748
    %v3005 = vpack.c.b16 %v2753, %v2749
    %v3006 = vpack.c.b16 %v2754, %v2750
    %v3007 = vpack.c.b16 %v2755, %v2751
    %v3008 = vpack.c.b16 %v2760, %v2756
    %v3009 = vpack.c.b16 %v2761, %v2757
    %v3010 = vpack.c.b16 %v2762, %v2758
    %v3011 = vpack.c.b16 %v2763, %v2759
    %v3012 = vpack.c.b16 %v2768, %v2764
    %v3013 = vpack.c.b16 %v2769, %v2765
    %v3014 = vpack.c.b16 %v2770, %v2766
    %v3015 = vpack.c.b16 %v2771, %v2767
    %v3016 = vpack.c.b16 %v2776, %v2772
    %v3017 = vpack.c.b16 %v2777, %v2773
    %v3018 = vpack.c.b16 %v2778, %v2774
    %v3019 = vpack.c.b16 %v2779, %v2775
    %v3020 = vpack.c.b16 %v2784, %v2780
    %v3021 = vpack.c.b16 %v2785, %v2781
    %v3022 = vpack.c.b16 %v2786, %v2782
    %v3023 = vpack.c.b16 %v2787, %v2783
    %v3024 = vpack.c.b16 %v2792, %v2788
    %v3025 = vpack.c.b16 %v2793, %v2789
    %v3026 = vpack.c.b16 %v2794, %v2790
    %v3027 = vpack.c.b16 %v2795, %v2791
    %v3028 = vpack.c.b16 %v2800, %v2796
    %v3029 = vpack.c.b16 %v2801, %v2797
    %v3030 = vpack.c.b16 %v2802, %v2798
    %v3031 = vpack.c.b16 %v2803, %v2799
    %v3032 = vpack.c.b16 %v2808, %v2804
    %v3033 = vpack.c.b16 %v2809, %v2805
    %v3034 = vpack.c.b16 %v2810, %v2806
    %v3035 = vpack.c.b16 %v2811, %v2807
    %v3036 = vpack.c.b16 %v2816, %v2812
    %v3037 = vpack.c.b16 %v2817, %v2813
    %v3038 = vpack.c.b16 %v2818, %v2814
    %v3039 = vpack.c.b16 %v2819, %v2815
    %v3040 = vpack.c.b16 %v2824, %v2820
    %v3041 = vpack.c.b16 %v2825, %v2821
    %v3042 = vpack.c.b16 %v2826, %v2822
    %v3043 = vpack.c.b16 %v2827, %v2823
    %v3044 = vpack.c.b16 %v2832, %v2828
    %v3045 = vpack.c.b16 %v2833, %v2829
    %v3046 = vpack.c.b16 %v2834, %v2830
    %v3047 = vpack.c.b16 %v2835, %v2831
    %v3048 = vpack.c.b16 %v2840, %v2836
    %v3049 = vpack.c.b16 %v2841, %v2837
    %v3050 = vpack.c.b16 %v2842, %v2838
    %v3051 = vpack.c.b16 %v2843, %v2839
    %v3052 = vpack.c.b16 %v2848, %v2844
    %v3053 = vpack.c.b16 %v2849, %v2845
    %v3054 = vpack.c.b16 %v2850, %v2846
    %v3055 = vpack.c.b16 %v2851, %v2847
    %v3056 = vpack.c.b16 %v2856, %v2852
    %v3057 = vpack.c.b16 %v2857, %v2853
    %v3058 = vpack.c.b16 %v2858, %v2854
    %v3059 = vpack.c.b16 %v2859, %v2855
    %v3060 = vpack.c.b16 %v2864, %v2860
    %v3061 = vpack.c.b16 %v2865, %v2861
    %v3062 = vpack.c.b16 %v2866, %v2862
    %v3063 = vpack.c.b16 %v2867, %v2863
    %v3064 = vpack.c.b16 %v2872, %v2868
    %v3065 = vpack.c.b16 %v2873, %v2869
    %v3066 = vpack.c.b16 %v2874, %v2870
    %v3067 = vpack.c.b16 %v2875, %v2871
    %v3068 = vpack.c.b16 %v2880, %v2876
    %v3069 = vpack.c.b16 %v2881, %v2877
    %v3070 = vpack.c.b16 %v2882, %v2878
    %v3071 = vpack.c.b16 %v2883, %v2879
    %v3072 = vpack.c.b16 %v2888, %v2884
    %v3073 = vpack.c.b16 %v2889, %v2885
    %v3074 = vpack.c.b16 %v2890, %v2886
    %v3075 = vpack.c.b16 %v2891, %v2887
    %v3076 = vpack.c.b16 %v2896, %v2892
    %v3077 = vpack.c.b16 %v2897, %v2893
    %v3078 = vpack.c.b16 %v2898, %v2894
    %v3079 = vpack.c.b16 %v2899, %v2895
    %v3080 = vpack.c.b16 %v2904, %v2900
    %v3081 = vpack.c.b16 %v2905, %v2901
    %v3082 = vpack.c.b16 %v2906, %v2902
    %v3083 = vpack.c.b16 %v2907, %v2903
    %v3084 = vpack.c.b16 %v2912, %v2908
    %v3085 = vpack.c.b16 %v2913, %v2909
    %v3086 = vpack.c.b16 %v2914, %v2910
    %v3087 = vpack.c.b16 %v2915, %v2911
    %v3088 = vpack.c.b16 %v2920, %v2916
    %v3089 = vpack.c.b16 %v2921, %v2917
    %v3090 = vpack.c.b16 %v2922, %v2918
    %v3091 = vpack.c.b16 %v2923, %v2919
    %v3092 = vpack.c.b16 %v2928, %v2924
    %v3093 = vpack.c.b16 %v2929, %v2925
    %v3094 = vpack.c.b16 %v2930, %v2926
    %v3095 = vpack.c.b16 %v2931, %v2927
    %v3096 = vpack.c.b16 %v2936, %v2932
    %v3097 = vpack.c.b16 %v2937, %v2933
    %v3098 = vpack.c.b16 %v2938, %v2934
    %v3099 = vpack.c.b16 %v2939, %v2935
    %v3100 = vpack.c.b16 %v2944, %v2940
    %v3101 = vpack.c.b16 %v2945, %v2941
    %v3102 = vpack.c.b16 %v2946, %v2942
    %v3103 = vpack.c.b16 %v2947, %v2943
    %v3104 = vpack.c.b16 %v2952, %v2948
    %v3105 = vpack.c.b16 %v2953, %v2949
    %v3106 = vpack.c.b16 %v2954, %v2950
    %v3107 = vpack.c.b16 %v2955, %v2951
    %v3108 = vpack.c.b16 %v2960, %v2956
    %v3109 = vpack.c.b16 %v2961, %v2957
    %v3110 = vpack.c.b16 %v2962, %v2958
    %v3111 = vpack.c.b16 %v2963, %v2959
    %v3112 = vpack.c.b16 %v2968, %v2964
    %v3113 = vpack.c.b16 %v2969, %v2965
    %v3114 = vpack.c.b16 %v2970, %v2966
    %v3115 = vpack.c.b16 %v2971, %v2967
    %v3116 = vpack.c.b16 %v2976, %v2972
    %v3117 = vpack.c.b16 %v2977, %v2973
    %v3118 = vpack.c.b16 %v2978, %v2974
    %v3119 = vpack.c.b16 %v2979, %v2975
    %v3120 = vpack.c.b16 %v2984, %v2980
    %v3121 = vpack.c.b16 %v2985, %v2981
    %v3122 = vpack.c.b16 %v2986, %v2982
    %v3123 = vpack.c.b16 %v2987, %v2983
    %vm3260 = vcmask 261120
    %v3262 = vsel %vm3260, %v2427, 0
    %v3265 = vsel %vm3260, %v2432, 0
    %v3268 = vsel %vm3260, %v2437, 0
    %v3271 = vsel %vm3260, %v2442, 0
    %3273 = vmatprep.subr.bf16.mxu0 %v3017
    %3274 = vmatpush1.bf16.msra.mxu0 %v3016
    %3275 = vmatprep.subr.bf16.mxu0 %v3013
    %3276 = vmatpush1.bf16.msra.mxu0 %v3012
    %3277 = vmatprep.subr.bf16.mxu0 %v3009
    %3278 = vmatpush1.bf16.msra.mxu0 %v3008
    %3279 = vmatprep.subr.bf16.mxu0 %v3005
    %3280 = vmatpush1.bf16.msra.mxu0 %v3004
    %3281 = vmatprep.subr.bf16.mxu0 %v3001
    %3282 = vmatpush1.bf16.msra.mxu0 %v3000
    %3283 = vmatprep.subr.bf16.mxu0 %v2997
    %3284 = vmatpush1.bf16.msra.mxu0 %v2996
    %3285 = vmatprep.subr.bf16.mxu0 %v2993
    %3286 = vmatpush1.bf16.msra.mxu0 %v2992
    %3287 = vmatprep.subr.bf16.mxu0 %v2989
    %3288 = vmatpush1.bf16.msra.mxu0 %v2988
    %3289 = vmatprep.subr.bf16.mxu0 %v3049
    %3290 = vmatpush2.bf16.msra.mxu0 %v3048
    %3291 = vmatprep.subr.bf16.mxu0 %v3045
    %3292 = vmatpush2.bf16.msra.mxu0 %v3044
    %3293 = vmatprep.subr.bf16.mxu0 %v3041
    %3294 = vmatpush2.bf16.msra.mxu0 %v3040
    %3295 = vmatprep.subr.bf16.mxu0 %v3037
    %3296 = vmatpush2.bf16.msra.mxu0 %v3036
    %3297 = vmatprep.subr.bf16.mxu0 %v3033
    %3298 = vmatpush2.bf16.msra.mxu0 %v3032
    %3299 = vmatprep.subr.bf16.mxu0 %v3029
    %3300 = vmatpush2.bf16.msra.mxu0 %v3028
    %3301 = vmatprep.subr.bf16.mxu0 %v3025
    %3302 = vmatpush2.bf16.msra.mxu0 %v3024
    %3303 = vmatprep.subr.bf16.mxu0 %v3021
    %3304 = vmatpush2.bf16.msra.mxu0 %v3020
    %3305 = vmatprep.mubr.bf16.mxu0 %v2424
    %3306 = vmatmul.mubr.bf16.gmra.mxu0 %v2423
    %v3307 = vpop.f32.mrf.mxu0
    %v3308 = vadd.f32 0.0, %v3307
    %v3309 = vpop.f32.mrf.mxu0
    %v3310 = vadd.f32 0.0, %v3309
    %v3311 = vpop.f32.mrf.mxu0
    %v3312 = vadd.f32 0.0, %v3311
    %v3313 = vpop.f32.mrf.mxu0
    %v3314 = vadd.f32 0.0, %v3313
    %3315 = vmatprep.mubr.bf16.mxu0 %v2429
    %3316 = vmatmul.mubr.bf16.gmra.mxu0 %v2428
    %v3317 = vpop.f32.mrf.mxu0
    %v3318 = vadd.f32 0.0, %v3317
    %v3319 = vpop.f32.mrf.mxu0
    %v3320 = vadd.f32 0.0, %v3319
    %v3321 = vpop.f32.mrf.mxu0
    %v3322 = vadd.f32 0.0, %v3321
    %v3323 = vpop.f32.mrf.mxu0
    %v3324 = vadd.f32 0.0, %v3323
    %3325 = vmatprep.mubr.bf16.mxu0 %v2434
    %3326 = vmatmul.mubr.bf16.gmra.mxu0 %v2433
    %v3327 = vpop.f32.mrf.mxu0
    %v3328 = vadd.f32 0.0, %v3327
    %v3329 = vpop.f32.mrf.mxu0
    %v3330 = vadd.f32 0.0, %v3329
    %v3331 = vpop.f32.mrf.mxu0
    %v3332 = vadd.f32 0.0, %v3331
    %v3333 = vpop.f32.mrf.mxu0
    %v3334 = vadd.f32 0.0, %v3333
    %3335 = vmatprep.mubr.bf16.mxu0 %v2439
    %3336 = vmatmul.mubr.bf16.gmra.mxu0 %v2438
    %v3337 = vpop.f32.mrf.mxu0
    %v3338 = vadd.f32 0.0, %v3337
    %v3339 = vpop.f32.mrf.mxu0
    %v3340 = vadd.f32 0.0, %v3339
    %v3341 = vpop.f32.mrf.mxu0
    %v3342 = vpop.f32.mrf.mxu0
    %3343 = vdwg.mxu0
    %3344 = vmatprep.subr.bf16.mxu0 %v3081
    %3345 = vmatpush1.bf16.msra.mxu0 %v3080
    %3346 = vmatprep.subr.bf16.mxu0 %v3077
    %3347 = vmatpush1.bf16.msra.mxu0 %v3076
    %3348 = vmatprep.subr.bf16.mxu0 %v3073
    %3349 = vmatpush1.bf16.msra.mxu0 %v3072
    %3350 = vmatprep.subr.bf16.mxu0 %v3069
    %3351 = vmatpush1.bf16.msra.mxu0 %v3068
    %3352 = vmatprep.subr.bf16.mxu0 %v3065
    %3353 = vmatpush1.bf16.msra.mxu0 %v3064
    %3354 = vmatprep.subr.bf16.mxu0 %v3061
    %3355 = vmatpush1.bf16.msra.mxu0 %v3060
    %3356 = vmatprep.subr.bf16.mxu0 %v3057
    %3357 = vmatpush1.bf16.msra.mxu0 %v3056
    %3358 = vmatprep.subr.bf16.mxu0 %v3053
    %3359 = vmatpush1.bf16.msra.mxu0 %v3052
    %3360 = vmatprep.subr.bf16.mxu0 %v3113
    %3361 = vmatpush2.bf16.msra.mxu0 %v3112
    %3362 = vmatprep.subr.bf16.mxu0 %v3109
    %3363 = vmatpush2.bf16.msra.mxu0 %v3108
    %3364 = vmatprep.subr.bf16.mxu0 %v3105
    %3365 = vmatpush2.bf16.msra.mxu0 %v3104
    %3366 = vmatprep.subr.bf16.mxu0 %v3101
    %3367 = vmatpush2.bf16.msra.mxu0 %v3100
    %3368 = vmatprep.subr.bf16.mxu0 %v3097
    %3369 = vmatpush2.bf16.msra.mxu0 %v3096
    %3370 = vmatprep.subr.bf16.mxu0 %v3093
    %3371 = vmatpush2.bf16.msra.mxu0 %v3092
    %3372 = vmatprep.subr.bf16.mxu0 %v3089
    %3373 = vmatpush2.bf16.msra.mxu0 %v3088
    %3374 = vmatprep.subr.bf16.mxu0 %v3085
    %3375 = vmatpush2.bf16.msra.mxu0 %v3084
    %3376 = vmatprep.mubr.bf16.mxu0 %v2426
    %3377 = vmatmul.mubr.bf16.gmra.mxu0 %v2425
    %v3378 = vpop.f32.mrf.mxu0
    %v3379 = vadd.f32 %v3308, %v3378
    %v3380 = vpop.f32.mrf.mxu0
    %v3381 = vadd.f32 %v3310, %v3380
    %v3382 = vpop.f32.mrf.mxu0
    %v3383 = vadd.f32 %v3312, %v3382
    %v3384 = vpop.f32.mrf.mxu0
    %v3385 = vadd.f32 %v3314, %v3384
    %3386 = vmatprep.mubr.bf16.mxu0 %v2431
    %3387 = vmatmul.mubr.bf16.gmra.mxu0 %v2430
    %v3388 = vpop.f32.mrf.mxu0
    %v3389 = vadd.f32 %v3318, %v3388
    %v3390 = vpop.f32.mrf.mxu0
    %v3391 = vadd.f32 %v3320, %v3390
    %v3392 = vpop.f32.mrf.mxu0
    %v3393 = vadd.f32 %v3322, %v3392
    %v3394 = vpop.f32.mrf.mxu0
    %v3395 = vadd.f32 %v3324, %v3394
    %3396 = vmatprep.mubr.bf16.mxu0 %v2436
    %3397 = vmatmul.mubr.bf16.gmra.mxu0 %v2435
    %v3398 = vpop.f32.mrf.mxu0
    %v3399 = vadd.f32 %v3328, %v3398
    %v3400 = vpop.f32.mrf.mxu0
    %v3401 = vadd.f32 %v3330, %v3400
    %v3402 = vpop.f32.mrf.mxu0
    %v3403 = vadd.f32 %v3332, %v3402
    %v3404 = vpop.f32.mrf.mxu0
    %v3405 = vadd.f32 %v3334, %v3404
    %3406 = vmatprep.mubr.bf16.mxu0 %v2441
    %3407 = vmatmul.mubr.bf16.gmra.mxu0 %v2440
    %v3408 = vpop.f32.mrf.mxu0
    %v3409 = vadd.f32 %v3338, %v3408
    %v3410 = vpop.f32.mrf.mxu0
    %v3411 = vadd.f32 %v3340, %v3410
    %v3412 = vpop.f32.mrf.mxu0
    %v3413 = vpop.f32.mrf.mxu0
    %3414 = vdwg.mxu0
    %3415 = vmatprep.subr.bf16.mxu0 0
    %3416 = vmatpush1.bf16.msra.mxu0 0
    %3417 = vmatprep.subr.bf16.mxu0 0
    %3418 = vmatpush1.bf16.msra.mxu0 0
    %3419 = vmatprep.subr.bf16.mxu0 0
    %3420 = vmatpush1.bf16.msra.mxu0 0
    %3421 = vmatprep.subr.bf16.mxu0 0
    %3422 = vmatpush1.bf16.msra.mxu0 0
    %3423 = vmatprep.subr.bf16.mxu0 0
    %3424 = vmatpush1.bf16.msra.mxu0 0
    %3425 = vmatprep.subr.bf16.mxu0 0
    %3426 = vmatpush1.bf16.msra.mxu0 0
    %3427 = vmatprep.subr.bf16.mxu0 %v3121
    %3428 = vmatpush1.bf16.msra.mxu0 %v3120
    %3429 = vmatprep.subr.bf16.mxu0 %v3117
    %3430 = vmatpush1.bf16.msra.mxu0 %v3116
    %3431 = vmatprep.subr.bf16.mxu0 0
    %3432 = vmatpush2.bf16.msra.mxu0 0
    %3433 = vmatprep.subr.bf16.mxu0 0
    %3434 = vmatpush2.bf16.msra.mxu0 0
    %3435 = vmatprep.subr.bf16.mxu0 0
    %3436 = vmatpush2.bf16.msra.mxu0 0
    %3437 = vmatprep.subr.bf16.mxu0 0
    %3438 = vmatpush2.bf16.msra.mxu0 0
    %3439 = vmatprep.subr.bf16.mxu0 0
    %3440 = vmatpush2.bf16.msra.mxu0 0
    %3441 = vmatprep.subr.bf16.mxu0 0
    %3442 = vmatpush2.bf16.msra.mxu0 0
    %3443 = vmatprep.subr.bf16.mxu0 0
    %3444 = vmatpush2.bf16.msra.mxu0 0
    %3445 = vmatprep.subr.bf16.mxu0 0
    %3446 = vmatpush2.bf16.msra.mxu0 0
    %3447 = vmatprep.mubr.bf16.mxu0 0
    %3448 = vmatmul.mubr.bf16.gmra.mxu0 %v3262
    %v3449 = vpop.f32.mrf.mxu0
    %v3450 = vadd.f32 %v3379, %v3449
    %v3451 = vpop.f32.mrf.mxu0
    %v3452 = vadd.f32 %v3381, %v3451
    %v3453 = vpop.f32.mrf.mxu0
    %v3454 = vadd.f32 %v3383, %v3453
    %v3455 = vpop.f32.mrf.mxu0
    %v3456 = vadd.f32 %v3385, %v3455
    %3457 = vmatprep.mubr.bf16.mxu0 0
    %3458 = vmatmul.mubr.bf16.gmra.mxu0 %v3265
    %v3459 = vpop.f32.mrf.mxu0
    %v3460 = vadd.f32 %v3389, %v3459
    %v3461 = vpop.f32.mrf.mxu0
    %v3462 = vadd.f32 %v3391, %v3461
    %v3463 = vpop.f32.mrf.mxu0
    %v3464 = vadd.f32 %v3393, %v3463
    %v3465 = vpop.f32.mrf.mxu0
    %v3466 = vadd.f32 %v3395, %v3465
    %3467 = vmatprep.mubr.bf16.mxu0 0
    %3468 = vmatmul.mubr.bf16.gmra.mxu0 %v3268
    %v3469 = vpop.f32.mrf.mxu0
    %v3470 = vadd.f32 %v3399, %v3469
    %v3471 = vpop.f32.mrf.mxu0
    %v3472 = vadd.f32 %v3401, %v3471
    %v3473 = vpop.f32.mrf.mxu0
    %v3474 = vadd.f32 %v3403, %v3473
    %v3475 = vpop.f32.mrf.mxu0
    %v3476 = vadd.f32 %v3405, %v3475
    %3477 = vmatprep.mubr.bf16.mxu0 0
    %3478 = vmatmul.mubr.bf16.gmra.mxu0 %v3271
    %v3479 = vpop.f32.mrf.mxu0
    %v3480 = vadd.f32 %v3409, %v3479
    %v3481 = vpop.f32.mrf.mxu0
    %v3482 = vadd.f32 %v3411, %v3481
    %v3483 = vpop.f32.mrf.mxu0
    %v3484 = vpop.f32.mrf.mxu0
    %3485 = vdwg.mxu0
    %3486 = vmatprep.subr.bf16.mxu0 %v3019
    %3487 = vmatpush1.bf16.msra.mxu0 %v3018
    %3488 = vmatprep.subr.bf16.mxu0 %v3015
    %3489 = vmatpush1.bf16.msra.mxu0 %v3014
    %3490 = vmatprep.subr.bf16.mxu0 %v3011
    %3491 = vmatpush1.bf16.msra.mxu0 %v3010
    %3492 = vmatprep.subr.bf16.mxu0 %v3007
    %3493 = vmatpush1.bf16.msra.mxu0 %v3006
    %3494 = vmatprep.subr.bf16.mxu0 %v3003
    %3495 = vmatpush1.bf16.msra.mxu0 %v3002
    %3496 = vmatprep.subr.bf16.mxu0 %v2999
    %3497 = vmatpush1.bf16.msra.mxu0 %v2998
    %3498 = vmatprep.subr.bf16.mxu0 %v2995
    %3499 = vmatpush1.bf16.msra.mxu0 %v2994
    %3500 = vmatprep.subr.bf16.mxu0 %v2991
    %3501 = vmatpush1.bf16.msra.mxu0 %v2990
    %3502 = vmatprep.subr.bf16.mxu0 %v3051
    %3503 = vmatpush2.bf16.msra.mxu0 %v3050
    %3504 = vmatprep.subr.bf16.mxu0 %v3047
    %3505 = vmatpush2.bf16.msra.mxu0 %v3046
    %3506 = vmatprep.subr.bf16.mxu0 %v3043
    %3507 = vmatpush2.bf16.msra.mxu0 %v3042
    %3508 = vmatprep.subr.bf16.mxu0 %v3039
    %3509 = vmatpush2.bf16.msra.mxu0 %v3038
    %3510 = vmatprep.subr.bf16.mxu0 %v3035
    %3511 = vmatpush2.bf16.msra.mxu0 %v3034
    %3512 = vmatprep.subr.bf16.mxu0 %v3031
    %3513 = vmatpush2.bf16.msra.mxu0 %v3030
    %3514 = vmatprep.subr.bf16.mxu0 %v3027
    %3515 = vmatpush2.bf16.msra.mxu0 %v3026
    %3516 = vmatprep.subr.bf16.mxu0 %v3023
    %3517 = vmatpush2.bf16.msra.mxu0 %v3022
    %3518 = vmatprep.mubr.bf16.mxu0 %v2424
    %3519 = vmatmul.mubr.bf16.gmra.mxu0 %v2423
    %v3520 = vpop.f32.mrf.mxu0
    %v3521 = vadd.f32 0.0, %v3520
    %v3522 = vpop.f32.mrf.mxu0
    %v3523 = vadd.f32 0.0, %v3522
    %v3524 = vpop.f32.mrf.mxu0
    %v3525 = vadd.f32 0.0, %v3524
    %v3526 = vpop.f32.mrf.mxu0
    %v3527 = vadd.f32 0.0, %v3526
    %3528 = vmatprep.mubr.bf16.mxu0 %v2429
    %3529 = vmatmul.mubr.bf16.gmra.mxu0 %v2428
    %v3530 = vpop.f32.mrf.mxu0
    %v3531 = vadd.f32 0.0, %v3530
    %v3532 = vpop.f32.mrf.mxu0
    %v3533 = vadd.f32 0.0, %v3532
    %v3534 = vpop.f32.mrf.mxu0
    %v3535 = vadd.f32 0.0, %v3534
    %v3536 = vpop.f32.mrf.mxu0
    %v3537 = vadd.f32 0.0, %v3536
    %3538 = vmatprep.mubr.bf16.mxu0 %v2434
    %3539 = vmatmul.mubr.bf16.gmra.mxu0 %v2433
    %v3540 = vpop.f32.mrf.mxu0
    %v3541 = vadd.f32 0.0, %v3540
    %v3542 = vpop.f32.mrf.mxu0
    %v3543 = vadd.f32 0.0, %v3542
    %v3544 = vpop.f32.mrf.mxu0
    %v3545 = vadd.f32 0.0, %v3544
    %v3546 = vpop.f32.mrf.mxu0
    %v3547 = vadd.f32 0.0, %v3546
    %3548 = vmatprep.mubr.bf16.mxu0 %v2439
    %3549 = vmatmul.mubr.bf16.gmra.mxu0 %v2438
    %v3550 = vpop.f32.mrf.mxu0
    %v3551 = vadd.f32 0.0, %v3550
    %v3552 = vpop.f32.mrf.mxu0
    %v3553 = vadd.f32 0.0, %v3552
    %v3554 = vpop.f32.mrf.mxu0
    %v3555 = vpop.f32.mrf.mxu0
    %3556 = vdwg.mxu0
    %3557 = vmatprep.subr.bf16.mxu0 %v3083
    %3558 = vmatpush1.bf16.msra.mxu0 %v3082
    %3559 = vmatprep.subr.bf16.mxu0 %v3079
    %3560 = vmatpush1.bf16.msra.mxu0 %v3078
    %3561 = vmatprep.subr.bf16.mxu0 %v3075
    %3562 = vmatpush1.bf16.msra.mxu0 %v3074
    %3563 = vmatprep.subr.bf16.mxu0 %v3071
    %3564 = vmatpush1.bf16.msra.mxu0 %v3070
    %3565 = vmatprep.subr.bf16.mxu0 %v3067
    %3566 = vmatpush1.bf16.msra.mxu0 %v3066
    %3567 = vmatprep.subr.bf16.mxu0 %v3063
    %3568 = vmatpush1.bf16.msra.mxu0 %v3062
    %3569 = vmatprep.subr.bf16.mxu0 %v3059
    %3570 = vmatpush1.bf16.msra.mxu0 %v3058
    %3571 = vmatprep.subr.bf16.mxu0 %v3055
    %3572 = vmatpush1.bf16.msra.mxu0 %v3054
    %3573 = vmatprep.subr.bf16.mxu0 %v3115
    %3574 = vmatpush2.bf16.msra.mxu0 %v3114
    %3575 = vmatprep.subr.bf16.mxu0 %v3111
    %3576 = vmatpush2.bf16.msra.mxu0 %v3110
    %3577 = vmatprep.subr.bf16.mxu0 %v3107
    %3578 = vmatpush2.bf16.msra.mxu0 %v3106
    %3579 = vmatprep.subr.bf16.mxu0 %v3103
    %3580 = vmatpush2.bf16.msra.mxu0 %v3102
    %3581 = vmatprep.subr.bf16.mxu0 %v3099
    %3582 = vmatpush2.bf16.msra.mxu0 %v3098
    %3583 = vmatprep.subr.bf16.mxu0 %v3095
    %3584 = vmatpush2.bf16.msra.mxu0 %v3094
    %3585 = vmatprep.subr.bf16.mxu0 %v3091
    %3586 = vmatpush2.bf16.msra.mxu0 %v3090
    %3587 = vmatprep.subr.bf16.mxu0 %v3087
    %3588 = vmatpush2.bf16.msra.mxu0 %v3086
    %3589 = vmatprep.mubr.bf16.mxu0 %v2426
    %3590 = vmatmul.mubr.bf16.gmra.mxu0 %v2425
    %v3591 = vpop.f32.mrf.mxu0
    %v3592 = vadd.f32 %v3521, %v3591
    %v3593 = vpop.f32.mrf.mxu0
    %v3594 = vadd.f32 %v3523, %v3593
    %v3595 = vpop.f32.mrf.mxu0
    %v3596 = vadd.f32 %v3525, %v3595
    %v3597 = vpop.f32.mrf.mxu0
    %v3598 = vadd.f32 %v3527, %v3597
    %3599 = vmatprep.mubr.bf16.mxu0 %v2431
    %3600 = vmatmul.mubr.bf16.gmra.mxu0 %v2430
    %v3601 = vpop.f32.mrf.mxu0
    %v3602 = vadd.f32 %v3531, %v3601
    %v3603 = vpop.f32.mrf.mxu0
    %v3604 = vadd.f32 %v3533, %v3603
    %v3605 = vpop.f32.mrf.mxu0
    %v3606 = vadd.f32 %v3535, %v3605
    %v3607 = vpop.f32.mrf.mxu0
    %v3608 = vadd.f32 %v3537, %v3607
    %3609 = vmatprep.mubr.bf16.mxu0 %v2436
    %3610 = vmatmul.mubr.bf16.gmra.mxu0 %v2435
    %v3611 = vpop.f32.mrf.mxu0
    %v3612 = vadd.f32 %v3541, %v3611
    %v3613 = vpop.f32.mrf.mxu0
    %v3614 = vadd.f32 %v3543, %v3613
    %v3615 = vpop.f32.mrf.mxu0
    %v3616 = vadd.f32 %v3545, %v3615
    %v3617 = vpop.f32.mrf.mxu0
    %v3618 = vadd.f32 %v3547, %v3617
    %3619 = vmatprep.mubr.bf16.mxu0 %v2441
    %3620 = vmatmul.mubr.bf16.gmra.mxu0 %v2440
    %v3621 = vpop.f32.mrf.mxu0
    %v3622 = vadd.f32 %v3551, %v3621
    %v3623 = vpop.f32.mrf.mxu0
    %v3624 = vadd.f32 %v3553, %v3623
    %v3625 = vpop.f32.mrf.mxu0
    %v3626 = vpop.f32.mrf.mxu0
    %3627 = vdwg.mxu0
    %3628 = vmatprep.subr.bf16.mxu0 0
    %3629 = vmatpush1.bf16.msra.mxu0 0
    %3630 = vmatprep.subr.bf16.mxu0 0
    %3631 = vmatpush1.bf16.msra.mxu0 0
    %3632 = vmatprep.subr.bf16.mxu0 0
    %3633 = vmatpush1.bf16.msra.mxu0 0
    %3634 = vmatprep.subr.bf16.mxu0 0
    %3635 = vmatpush1.bf16.msra.mxu0 0
    %3636 = vmatprep.subr.bf16.mxu0 0
    %3637 = vmatpush1.bf16.msra.mxu0 0
    %3638 = vmatprep.subr.bf16.mxu0 0
    %3639 = vmatpush1.bf16.msra.mxu0 0
    %3640 = vmatprep.subr.bf16.mxu0 %v3123
    %3641 = vmatpush1.bf16.msra.mxu0 %v3122
    %3642 = vmatprep.subr.bf16.mxu0 %v3119
    %3643 = vmatpush1.bf16.msra.mxu0 %v3118
    %3644 = vmatprep.subr.bf16.mxu0 0
    %3645 = vmatpush2.bf16.msra.mxu0 0
    %3646 = vmatprep.subr.bf16.mxu0 0
    %3647 = vmatpush2.bf16.msra.mxu0 0
    %3648 = vmatprep.subr.bf16.mxu0 0
    %3649 = vmatpush2.bf16.msra.mxu0 0
    %3650 = vmatprep.subr.bf16.mxu0 0
    %3651 = vmatpush2.bf16.msra.mxu0 0
    %3652 = vmatprep.subr.bf16.mxu0 0
    %3653 = vmatpush2.bf16.msra.mxu0 0
    %3654 = vmatprep.subr.bf16.mxu0 0
    %3655 = vmatpush2.bf16.msra.mxu0 0
    %3656 = vmatprep.subr.bf16.mxu0 0
    %3657 = vmatpush2.bf16.msra.mxu0 0
    %3658 = vmatprep.subr.bf16.mxu0 0
    %3659 = vmatpush2.bf16.msra.mxu0 0
    %3660 = vmatprep.mubr.bf16.mxu0 0
    %3661 = vmatmul.mubr.bf16.gmra.mxu0 %v3262
    %v3662 = vpop.f32.mrf.mxu0
    %v3663 = vadd.f32 %v3592, %v3662
    %v3664 = vpop.f32.mrf.mxu0
    %v3665 = vadd.f32 %v3594, %v3664
    %v3666 = vpop.f32.mrf.mxu0
    %v3667 = vadd.f32 %v3596, %v3666
    %v3668 = vpop.f32.mrf.mxu0
    %v3669 = vadd.f32 %v3598, %v3668
    %3670 = vmatprep.mubr.bf16.mxu0 0
    %3671 = vmatmul.mubr.bf16.gmra.mxu0 %v3265
    %v3672 = vpop.f32.mrf.mxu0
    %v3673 = vadd.f32 %v3602, %v3672
    %v3674 = vpop.f32.mrf.mxu0
    %v3675 = vadd.f32 %v3604, %v3674
    %v3676 = vpop.f32.mrf.mxu0
    %v3677 = vadd.f32 %v3606, %v3676
    %v3678 = vpop.f32.mrf.mxu0
    %v3679 = vadd.f32 %v3608, %v3678
    %3680 = vmatprep.mubr.bf16.mxu0 0
    %3681 = vmatmul.mubr.bf16.gmra.mxu0 %v3268
    %v3682 = vpop.f32.mrf.mxu0
    %v3683 = vadd.f32 %v3612, %v3682
    %v3684 = vpop.f32.mrf.mxu0
    %v3685 = vadd.f32 %v3614, %v3684
    %v3686 = vpop.f32.mrf.mxu0
    %v3687 = vadd.f32 %v3616, %v3686
    %v3688 = vpop.f32.mrf.mxu0
    %v3689 = vadd.f32 %v3618, %v3688
    %3690 = vmatprep.mubr.bf16.mxu0 0
    %3691 = vmatmul.mubr.bf16.gmra.mxu0 %v3271
    %v3692 = vpop.f32.mrf.mxu0
    %v3693 = vadd.f32 %v3622, %v3692
    %v3694 = vpop.f32.mrf.mxu0
    %v3695 = vadd.f32 %v3624, %v3694
    %v3696 = vpop.f32.mrf.mxu0
    %v3697 = vpop.f32.mrf.mxu0
    %3698 = vdwg.mxu0
    %v3835 = vunpack.c.l.b16 %v2287
    %v3836 = vunpack.c.h.b16 %v2287
    %v3837 = vunpack.c.l.b16 %v2288
    %v3838 = vunpack.c.h.b16 %v2288
    %v3839 = vunpack.c.l.b16 %v2289
    %v3840 = vunpack.c.h.b16 %v2289
    %v3841 = vunpack.c.l.b16 %v2290
    %v3842 = vunpack.c.h.b16 %v2290
    %v3843 = vunpack.c.l.b16 %v2291
    %v3844 = vunpack.c.h.b16 %v2291
    %v3845 = vunpack.c.l.b16 %v2292
    %v3846 = vunpack.c.h.b16 %v2292
    %v3847 = vunpack.c.l.b16 %v2293
    %v3848 = vunpack.c.h.b16 %v2293
    %v3849 = vunpack.c.l.b16 %v2294
    %v3850 = vunpack.c.h.b16 %v2294
    %v3851 = vunpack.c.l.b16 %v2295
    %v3852 = vunpack.c.h.b16 %v2295
    %v3853 = vunpack.c.l.b16 %v2296
    %v3854 = vunpack.c.h.b16 %v2296
    %v3855 = vunpack.c.l.b16 %v2297
    %v3856 = vunpack.c.h.b16 %v2297
    %v3857 = vunpack.c.l.b16 %v2298
    %v3858 = vunpack.c.h.b16 %v2298
    %v3859 = vunpack.c.l.b16 %v2299
    %v3860 = vunpack.c.h.b16 %v2299
    %v3861 = vunpack.c.l.b16 %v2300
    %v3862 = vunpack.c.h.b16 %v2300
    %v3863 = vunpack.c.l.b16 %v2301
    %v3864 = vunpack.c.h.b16 %v2301
    %v3865 = vunpack.c.l.b16 %v2302
    %v3866 = vunpack.c.h.b16 %v2302
    %v3867 = vunpack.c.l.b16 %v2303
    %v3868 = vunpack.c.h.b16 %v2303
    %v3869 = vunpack.c.l.b16 %v2304
    %v3870 = vunpack.c.h.b16 %v2304
    %v3871 = vunpack.c.l.b16 %v2305
    %v3872 = vunpack.c.h.b16 %v2305
    %v3873 = vunpack.c.l.b16 %v2306
    %v3874 = vunpack.c.h.b16 %v2306
    %v3875 = vunpack.c.l.b16 %v2307
    %v3876 = vunpack.c.h.b16 %v2307
    %v3877 = vunpack.c.l.b16 %v2308
    %v3878 = vunpack.c.h.b16 %v2308
    %v3879 = vunpack.c.l.b16 %v2309
    %v3880 = vunpack.c.h.b16 %v2309
    %v3881 = vunpack.c.l.b16 %v2310
    %v3882 = vunpack.c.h.b16 %v2310
    %v3883 = vunpack.c.l.b16 %v2311
    %v3884 = vunpack.c.h.b16 %v2311
    %v3885 = vunpack.c.l.b16 %v2312
    %v3886 = vunpack.c.h.b16 %v2312
    %v3887 = vunpack.c.l.b16 %v2313
    %v3888 = vunpack.c.h.b16 %v2313
    %v3889 = vunpack.c.l.b16 %v2314
    %v3890 = vunpack.c.h.b16 %v2314
    %v3891 = vunpack.c.l.b16 %v2315
    %v3892 = vunpack.c.h.b16 %v2315
    %v3893 = vunpack.c.l.b16 %v2316
    %v3894 = vunpack.c.h.b16 %v2316
    %v3895 = vunpack.c.l.b16 %v2317
    %v3896 = vunpack.c.h.b16 %v2317
    %v3897 = vunpack.c.l.b16 %v2318
    %v3898 = vunpack.c.h.b16 %v2318
    %v3899 = vunpack.c.l.b16 %v2319
    %v3900 = vunpack.c.h.b16 %v2319
    %v3901 = vunpack.c.l.b16 %v2320
    %v3902 = vunpack.c.h.b16 %v2320
    %v3903 = vunpack.c.l.b16 %v2321
    %v3904 = vunpack.c.h.b16 %v2321
    %v3905 = vunpack.c.l.b16 %v2322
    %v3906 = vunpack.c.h.b16 %v2322
    %v3907 = vunpack.c.l.b16 %v2323
    %v3908 = vunpack.c.h.b16 %v2323
    %v3909 = vunpack.c.l.b16 %v2324
    %v3910 = vunpack.c.h.b16 %v2324
    %v3911 = vunpack.c.l.b16 %v2325
    %v3912 = vunpack.c.h.b16 %v2325
    %v3913 = vunpack.c.l.b16 %v2326
    %v3914 = vunpack.c.h.b16 %v2326
    %v3915 = vunpack.c.l.b16 %v2327
    %v3916 = vunpack.c.h.b16 %v2327
    %v3917 = vunpack.c.l.b16 %v2328
    %v3918 = vunpack.c.h.b16 %v2328
    %v3919 = vunpack.c.l.b16 %v2329
    %v3920 = vunpack.c.h.b16 %v2329
    %v3921 = vunpack.c.l.b16 %v2330
    %v3922 = vunpack.c.h.b16 %v2330
    %v3923 = vunpack.c.l.b16 %v2331
    %v3924 = vunpack.c.h.b16 %v2331
    %v3925 = vunpack.c.l.b16 %v2332
    %v3926 = vunpack.c.h.b16 %v2332
    %v3927 = vunpack.c.l.b16 %v2333
    %v3928 = vunpack.c.h.b16 %v2333
    %v3929 = vunpack.c.l.b16 %v2334
    %v3930 = vunpack.c.h.b16 %v2334
    %v3931 = vunpack.c.l.b16 %v2335
    %v3932 = vunpack.c.h.b16 %v2335
    %v3933 = vunpack.c.l.b16 %v2336
    %v3934 = vunpack.c.h.b16 %v2336
    %v3935 = vunpack.c.l.b16 %v2337
    %v3936 = vunpack.c.h.b16 %v2337
    %v3937 = vunpack.c.l.b16 %v2338
    %v3938 = vunpack.c.h.b16 %v2338
    %v3939 = vunpack.c.l.b16 %v2339
    %v3940 = vunpack.c.h.b16 %v2339
    %v3941 = vunpack.c.l.b16 %v2340
    %v3942 = vunpack.c.h.b16 %v2340
    %v3943 = vunpack.c.l.b16 %v2341
    %v3944 = vunpack.c.h.b16 %v2341
    %v3945 = vunpack.c.l.b16 %v2342
    %v3946 = vunpack.c.h.b16 %v2342
    %v3947 = vunpack.c.l.b16 %v2343
    %v3948 = vunpack.c.h.b16 %v2343
    %v3949 = vunpack.c.l.b16 %v2344
    %v3950 = vunpack.c.h.b16 %v2344
    %v3951 = vunpack.c.l.b16 %v2345
    %v3952 = vunpack.c.h.b16 %v2345
    %v3953 = vunpack.c.l.b16 %v2346
    %v3954 = vunpack.c.h.b16 %v2346
    %v3955 = vunpack.c.l.b16 %v2347
    %v3956 = vunpack.c.h.b16 %v2347
    %v3957 = vunpack.c.l.b16 %v2348
    %v3958 = vunpack.c.h.b16 %v2348
    %v3959 = vunpack.c.l.b16 %v2349
    %v3960 = vunpack.c.h.b16 %v2349
    %v3961 = vunpack.c.l.b16 %v2350
    %v3962 = vunpack.c.h.b16 %v2350
    %v3963 = vunpack.c.l.b16 %v2351
    %v3964 = vunpack.c.h.b16 %v2351
    %v3965 = vunpack.c.l.b16 %v2352
    %v3966 = vunpack.c.h.b16 %v2352
    %v3967 = vunpack.c.l.b16 %v2353
    %v3968 = vunpack.c.h.b16 %v2353
    %v3969 = vunpack.c.l.b16 %v2354
    %v3970 = vunpack.c.h.b16 %v2354
    %v3971 = vunpack.c.l.b16 %v2355
    %v3972 = vunpack.c.h.b16 %v2355
    %v3973 = vunpack.c.l.b16 %v2356
    %v3974 = vunpack.c.h.b16 %v2356
    %v3975 = vunpack.c.l.b16 %v2357
    %v3976 = vunpack.c.h.b16 %v2357
    %v3977 = vunpack.c.l.b16 %v2358
    %v3978 = vunpack.c.h.b16 %v2358
    %v3979 = vunpack.c.l.b16 %v2359
    %v3980 = vunpack.c.h.b16 %v2359
    %v3981 = vunpack.c.l.b16 %v2360
    %v3982 = vunpack.c.h.b16 %v2360
    %v3983 = vunpack.c.l.b16 %v2361
    %v3984 = vunpack.c.h.b16 %v2361
    %v3985 = vunpack.c.l.b16 %v2362
    %v3986 = vunpack.c.h.b16 %v2362
    %v3987 = vunpack.c.l.b16 %v2363
    %v3988 = vunpack.c.h.b16 %v2363
    %v3989 = vunpack.c.l.b16 %v2364
    %v3990 = vunpack.c.h.b16 %v2364
    %v3991 = vunpack.c.l.b16 %v2365
    %v3992 = vunpack.c.h.b16 %v2365
    %v3993 = vunpack.c.l.b16 %v2366
    %v3994 = vunpack.c.h.b16 %v2366
    %v3995 = vunpack.c.l.b16 %v2367
    %v3996 = vunpack.c.h.b16 %v2367
    %v3997 = vunpack.c.l.b16 %v2368
    %v3998 = vunpack.c.h.b16 %v2368
    %v3999 = vunpack.c.l.b16 %v2369
    %v4000 = vunpack.c.h.b16 %v2369
    %v4001 = vunpack.c.l.b16 %v2370
    %v4002 = vunpack.c.h.b16 %v2370
    %v4003 = vunpack.c.l.b16 %v2371
    %v4004 = vunpack.c.h.b16 %v2371
    %v4005 = vunpack.c.l.b16 %v2372
    %v4006 = vunpack.c.h.b16 %v2372
    %v4007 = vunpack.c.l.b16 %v2373
    %v4008 = vunpack.c.h.b16 %v2373
    %v4009 = vunpack.c.l.b16 %v2374
    %v4010 = vunpack.c.h.b16 %v2374
    %v4011 = vunpack.c.l.b16 %v2375
    %v4012 = vunpack.c.h.b16 %v2375
    %v4013 = vunpack.c.l.b16 %v2376
    %v4014 = vunpack.c.h.b16 %v2376
    %v4015 = vunpack.c.l.b16 %v2377
    %v4016 = vunpack.c.h.b16 %v2377
    %v4017 = vunpack.c.l.b16 %v2378
    %v4018 = vunpack.c.h.b16 %v2378
    %v4019 = vunpack.c.l.b16 %v2379
    %v4020 = vunpack.c.h.b16 %v2379
    %v4021 = vunpack.c.l.b16 %v2380
    %v4022 = vunpack.c.h.b16 %v2380
    %v4023 = vunpack.c.l.b16 %v2381
    %v4024 = vunpack.c.h.b16 %v2381
    %v4025 = vunpack.c.l.b16 %v2382
    %v4026 = vunpack.c.h.b16 %v2382
    %v4027 = vunpack.c.l.b16 %v2383
    %v4028 = vunpack.c.h.b16 %v2383
    %v4029 = vunpack.c.l.b16 %v2384
    %v4030 = vunpack.c.h.b16 %v2384
    %v4031 = vunpack.c.l.b16 %v2385
    %v4032 = vunpack.c.h.b16 %v2385
    %v4033 = vunpack.c.l.b16 %v2386
    %v4034 = vunpack.c.h.b16 %v2386
    %v4035 = vunpack.c.l.b16 %v2387
    %v4036 = vunpack.c.h.b16 %v2387
    %v4037 = vunpack.c.l.b16 %v2388
    %v4038 = vunpack.c.h.b16 %v2388
    %v4039 = vunpack.c.l.b16 %v2389
    %v4040 = vunpack.c.h.b16 %v2389
    %v4041 = vunpack.c.l.b16 %v2390
    %v4042 = vunpack.c.h.b16 %v2390
    %v4043 = vunpack.c.l.b16 %v2391
    %v4044 = vunpack.c.h.b16 %v2391
    %v4045 = vunpack.c.l.b16 %v2392
    %v4046 = vunpack.c.h.b16 %v2392
    %v4047 = vunpack.c.l.b16 %v2393
    %v4048 = vunpack.c.h.b16 %v2393
    %v4049 = vunpack.c.l.b16 %v2394
    %v4050 = vunpack.c.h.b16 %v2394
    %v4051 = vunpack.c.l.b16 %v2395
    %v4052 = vunpack.c.h.b16 %v2395
    %v4053 = vunpack.c.l.b16 %v2396
    %v4054 = vunpack.c.h.b16 %v2396
    %v4055 = vunpack.c.l.b16 %v2397
    %v4056 = vunpack.c.h.b16 %v2397
    %v4057 = vunpack.c.l.b16 %v2398
    %v4058 = vunpack.c.h.b16 %v2398
    %v4059 = vunpack.c.l.b16 %v2399
    %v4060 = vunpack.c.h.b16 %v2399
    %v4061 = vunpack.c.l.b16 %v2400
    %v4062 = vunpack.c.h.b16 %v2400
    %v4063 = vunpack.c.l.b16 %v2401
    %v4064 = vunpack.c.h.b16 %v2401
    %v4065 = vunpack.c.l.b16 %v2402
    %v4066 = vunpack.c.h.b16 %v2402
    %v4067 = vunpack.c.l.b16 %v2403
    %v4068 = vunpack.c.h.b16 %v2403
    %v4069 = vunpack.c.l.b16 %v2404
    %v4070 = vunpack.c.h.b16 %v2404
    %v4071 = vunpack.c.l.b16 %v2405
    %v4072 = vunpack.c.h.b16 %v2405
    %v4073 = vunpack.c.l.b16 %v2406
    %v4074 = vunpack.c.h.b16 %v2406
    %v4075 = vunpack.c.l.b16 %v2407
    %v4076 = vunpack.c.h.b16 %v2407
    %v4077 = vunpack.c.l.b16 %v2408
    %v4078 = vunpack.c.h.b16 %v2408
    %v4079 = vunpack.c.l.b16 %v2409
    %v4080 = vunpack.c.h.b16 %v2409
    %v4081 = vunpack.c.l.b16 %v2410
    %v4082 = vunpack.c.h.b16 %v2410
    %v4083 = vunpack.c.l.b16 %v2411
    %v4084 = vunpack.c.h.b16 %v2411
    %v4085 = vunpack.c.l.b16 %v2412
    %v4086 = vunpack.c.h.b16 %v2412
    %v4087 = vunpack.c.l.b16 %v2413
    %v4088 = vunpack.c.h.b16 %v2413
    %v4089 = vunpack.c.l.b16 %v2414
    %v4090 = vunpack.c.h.b16 %v2414
    %v4091 = vunpack.c.l.b16 %v2415
    %v4092 = vunpack.c.h.b16 %v2415
    %v4093 = vunpack.c.l.b16 %v2416
    %v4094 = vunpack.c.h.b16 %v2416
    %v4095 = vunpack.c.l.b16 %v2417
    %v4096 = vunpack.c.h.b16 %v2417
    %v4097 = vunpack.c.l.b16 %v2418
    %v4098 = vunpack.c.h.b16 %v2418
    %v4099 = vunpack.c.l.b16 %v2419
    %v4100 = vunpack.c.h.b16 %v2419
    %v4101 = vunpack.c.l.b16 %v2420
    %v4102 = vunpack.c.h.b16 %v2420
    %v4103 = vunpack.c.l.b16 %v2421
    %v4104 = vunpack.c.h.b16 %v2421
    %v4105 = vunpack.c.l.b16 %v2422
    %v4106 = vunpack.c.h.b16 %v2422
    %v4107 = vpack.c.b16 %v3839, %v3835
    %v4108 = vpack.c.b16 %v3840, %v3836
    %v4109 = vpack.c.b16 %v3841, %v3837
    %v4110 = vpack.c.b16 %v3842, %v3838
    %v4111 = vpack.c.b16 %v3847, %v3843
    %v4112 = vpack.c.b16 %v3848, %v3844
    %v4113 = vpack.c.b16 %v3849, %v3845
    %v4114 = vpack.c.b16 %v3850, %v3846
    %v4115 = vpack.c.b16 %v3855, %v3851
    %v4116 = vpack.c.b16 %v3856, %v3852
    %v4117 = vpack.c.b16 %v3857, %v3853
    %v4118 = vpack.c.b16 %v3858, %v3854
    %v4119 = vpack.c.b16 %v3863, %v3859
    %v4120 = vpack.c.b16 %v3864, %v3860
    %v4121 = vpack.c.b16 %v3865, %v3861
    %v4122 = vpack.c.b16 %v3866, %v3862
    %v4123 = vpack.c.b16 %v3871, %v3867
    %v4124 = vpack.c.b16 %v3872, %v3868
    %v4125 = vpack.c.b16 %v3873, %v3869
    %v4126 = vpack.c.b16 %v3874, %v3870
    %v4127 = vpack.c.b16 %v3879, %v3875
    %v4128 = vpack.c.b16 %v3880, %v3876
    %v4129 = vpack.c.b16 %v3881, %v3877
    %v4130 = vpack.c.b16 %v3882, %v3878
    %v4131 = vpack.c.b16 %v3887, %v3883
    %v4132 = vpack.c.b16 %v3888, %v3884
    %v4133 = vpack.c.b16 %v3889, %v3885
    %v4134 = vpack.c.b16 %v3890, %v3886
    %v4135 = vpack.c.b16 %v3895, %v3891
    %v4136 = vpack.c.b16 %v3896, %v3892
    %v4137 = vpack.c.b16 %v3897, %v3893
    %v4138 = vpack.c.b16 %v3898, %v3894
    %v4139 = vpack.c.b16 %v3903, %v3899
    %v4140 = vpack.c.b16 %v3904, %v3900
    %v4141 = vpack.c.b16 %v3905, %v3901
    %v4142 = vpack.c.b16 %v3906, %v3902
    %v4143 = vpack.c.b16 %v3911, %v3907
    %v4144 = vpack.c.b16 %v3912, %v3908
    %v4145 = vpack.c.b16 %v3913, %v3909
    %v4146 = vpack.c.b16 %v3914, %v3910
    %v4147 = vpack.c.b16 %v3919, %v3915
    %v4148 = vpack.c.b16 %v3920, %v3916
    %v4149 = vpack.c.b16 %v3921, %v3917
    %v4150 = vpack.c.b16 %v3922, %v3918
    %v4151 = vpack.c.b16 %v3927, %v3923
    %v4152 = vpack.c.b16 %v3928, %v3924
    %v4153 = vpack.c.b16 %v3929, %v3925
    %v4154 = vpack.c.b16 %v3930, %v3926
    %v4155 = vpack.c.b16 %v3935, %v3931
    %v4156 = vpack.c.b16 %v3936, %v3932
    %v4157 = vpack.c.b16 %v3937, %v3933
    %v4158 = vpack.c.b16 %v3938, %v3934
    %v4159 = vpack.c.b16 %v3943, %v3939
    %v4160 = vpack.c.b16 %v3944, %v3940
    %v4161 = vpack.c.b16 %v3945, %v3941
    %v4162 = vpack.c.b16 %v3946, %v3942
    %v4163 = vpack.c.b16 %v3951, %v3947
    %v4164 = vpack.c.b16 %v3952, %v3948
    %v4165 = vpack.c.b16 %v3953, %v3949
    %v4166 = vpack.c.b16 %v3954, %v3950
    %v4167 = vpack.c.b16 %v3959, %v3955
    %v4168 = vpack.c.b16 %v3960, %v3956
    %v4169 = vpack.c.b16 %v3961, %v3957
    %v4170 = vpack.c.b16 %v3962, %v3958
    %v4171 = vpack.c.b16 %v3967, %v3963
    %v4172 = vpack.c.b16 %v3968, %v3964
    %v4173 = vpack.c.b16 %v3969, %v3965
    %v4174 = vpack.c.b16 %v3970, %v3966
    %v4175 = vpack.c.b16 %v3975, %v3971
    %v4176 = vpack.c.b16 %v3976, %v3972
    %v4177 = vpack.c.b16 %v3977, %v3973
    %v4178 = vpack.c.b16 %v3978, %v3974
    %v4179 = vpack.c.b16 %v3983, %v3979
    %v4180 = vpack.c.b16 %v3984, %v3980
    %v4181 = vpack.c.b16 %v3985, %v3981
    %v4182 = vpack.c.b16 %v3986, %v3982
    %v4183 = vpack.c.b16 %v3991, %v3987
    %v4184 = vpack.c.b16 %v3992, %v3988
    %v4185 = vpack.c.b16 %v3993, %v3989
    %v4186 = vpack.c.b16 %v3994, %v3990
    %v4187 = vpack.c.b16 %v3999, %v3995
    %v4188 = vpack.c.b16 %v4000, %v3996
    %v4189 = vpack.c.b16 %v4001, %v3997
    %v4190 = vpack.c.b16 %v4002, %v3998
    %v4191 = vpack.c.b16 %v4007, %v4003
    %v4192 = vpack.c.b16 %v4008, %v4004
    %v4193 = vpack.c.b16 %v4009, %v4005
    %v4194 = vpack.c.b16 %v4010, %v4006
    %v4195 = vpack.c.b16 %v4015, %v4011
    %v4196 = vpack.c.b16 %v4016, %v4012
    %v4197 = vpack.c.b16 %v4017, %v4013
    %v4198 = vpack.c.b16 %v4018, %v4014
    %v4199 = vpack.c.b16 %v4023, %v4019
    %v4200 = vpack.c.b16 %v4024, %v4020
    %v4201 = vpack.c.b16 %v4025, %v4021
    %v4202 = vpack.c.b16 %v4026, %v4022
    %v4203 = vpack.c.b16 %v4031, %v4027
    %v4204 = vpack.c.b16 %v4032, %v4028
    %v4205 = vpack.c.b16 %v4033, %v4029
    %v4206 = vpack.c.b16 %v4034, %v4030
    %v4207 = vpack.c.b16 %v4039, %v4035
    %v4208 = vpack.c.b16 %v4040, %v4036
    %v4209 = vpack.c.b16 %v4041, %v4037
    %v4210 = vpack.c.b16 %v4042, %v4038
    %v4211 = vpack.c.b16 %v4047, %v4043
    %v4212 = vpack.c.b16 %v4048, %v4044
    %v4213 = vpack.c.b16 %v4049, %v4045
    %v4214 = vpack.c.b16 %v4050, %v4046
    %v4215 = vpack.c.b16 %v4055, %v4051
    %v4216 = vpack.c.b16 %v4056, %v4052
    %v4217 = vpack.c.b16 %v4057, %v4053
    %v4218 = vpack.c.b16 %v4058, %v4054
    %v4219 = vpack.c.b16 %v4063, %v4059
    %v4220 = vpack.c.b16 %v4064, %v4060
    %v4221 = vpack.c.b16 %v4065, %v4061
    %v4222 = vpack.c.b16 %v4066, %v4062
    %v4223 = vpack.c.b16 %v4071, %v4067
    %v4224 = vpack.c.b16 %v4072, %v4068
    %v4225 = vpack.c.b16 %v4073, %v4069
    %v4226 = vpack.c.b16 %v4074, %v4070
    %v4227 = vpack.c.b16 %v4079, %v4075
    %v4228 = vpack.c.b16 %v4080, %v4076
    %v4229 = vpack.c.b16 %v4081, %v4077
    %v4230 = vpack.c.b16 %v4082, %v4078
    %v4231 = vpack.c.b16 %v4087, %v4083
    %v4232 = vpack.c.b16 %v4088, %v4084
    %v4233 = vpack.c.b16 %v4089, %v4085
    %v4234 = vpack.c.b16 %v4090, %v4086
    %v4235 = vpack.c.b16 %v4095, %v4091
    %v4236 = vpack.c.b16 %v4096, %v4092
    %v4237 = vpack.c.b16 %v4097, %v4093
    %v4238 = vpack.c.b16 %v4098, %v4094
    %v4239 = vpack.c.b16 %v4103, %v4099
    %v4240 = vpack.c.b16 %v4104, %v4100
    %v4241 = vpack.c.b16 %v4105, %v4101
    %v4242 = vpack.c.b16 %v4106, %v4102
    %v4380 = vsel %vm3260, %v2271, 0
    %v4383 = vsel %vm3260, %v2276, 0
    %v4386 = vsel %vm3260, %v2281, 0
    %v4389 = vsel %vm3260, %v2286, 0
    %4391 = vmatprep.subr.bf16.mxu0 %v4136
    %4392 = vmatpush1.bf16.msra.mxu0 %v4135
    %4393 = vmatprep.subr.bf16.mxu0 %v4132
    %4394 = vmatpush1.bf16.msra.mxu0 %v4131
    %4395 = vmatprep.subr.bf16.mxu0 %v4128
    %4396 = vmatpush1.bf16.msra.mxu0 %v4127
    %4397 = vmatprep.subr.bf16.mxu0 %v4124
    %4398 = vmatpush1.bf16.msra.mxu0 %v4123
    %4399 = vmatprep.subr.bf16.mxu0 %v4120
    %4400 = vmatpush1.bf16.msra.mxu0 %v4119
    %4401 = vmatprep.subr.bf16.mxu0 %v4116
    %4402 = vmatpush1.bf16.msra.mxu0 %v4115
    %4403 = vmatprep.subr.bf16.mxu0 %v4112
    %4404 = vmatpush1.bf16.msra.mxu0 %v4111
    %4405 = vmatprep.subr.bf16.mxu0 %v4108
    %4406 = vmatpush1.bf16.msra.mxu0 %v4107
    %4407 = vmatprep.subr.bf16.mxu0 %v4168
    %4408 = vmatpush2.bf16.msra.mxu0 %v4167
    %4409 = vmatprep.subr.bf16.mxu0 %v4164
    %4410 = vmatpush2.bf16.msra.mxu0 %v4163
    %4411 = vmatprep.subr.bf16.mxu0 %v4160
    %4412 = vmatpush2.bf16.msra.mxu0 %v4159
    %4413 = vmatprep.subr.bf16.mxu0 %v4156
    %4414 = vmatpush2.bf16.msra.mxu0 %v4155
    %4415 = vmatprep.subr.bf16.mxu0 %v4152
    %4416 = vmatpush2.bf16.msra.mxu0 %v4151
    %4417 = vmatprep.subr.bf16.mxu0 %v4148
    %4418 = vmatpush2.bf16.msra.mxu0 %v4147
    %4419 = vmatprep.subr.bf16.mxu0 %v4144
    %4420 = vmatpush2.bf16.msra.mxu0 %v4143
    %4421 = vmatprep.subr.bf16.mxu0 %v4140
    %4422 = vmatpush2.bf16.msra.mxu0 %v4139
    %4423 = vmatprep.mubr.bf16.mxu0 %v2268
    %4424 = vmatmul.mubr.bf16.gmra.mxu0 %v2267
    %v4425 = vpop.f32.mrf.mxu0
    %v4426 = vadd.f32 %v3450, %v4425
    %v4427 = vpop.f32.mrf.mxu0
    %v4428 = vadd.f32 %v3452, %v4427
    %v4429 = vpop.f32.mrf.mxu0
    %v4430 = vadd.f32 %v3454, %v4429
    %v4431 = vpop.f32.mrf.mxu0
    %v4432 = vadd.f32 %v3456, %v4431
    %4433 = vmatprep.mubr.bf16.mxu0 %v2273
    %4434 = vmatmul.mubr.bf16.gmra.mxu0 %v2272
    %v4435 = vpop.f32.mrf.mxu0
    %v4436 = vadd.f32 %v3460, %v4435
    %v4437 = vpop.f32.mrf.mxu0
    %v4438 = vadd.f32 %v3462, %v4437
    %v4439 = vpop.f32.mrf.mxu0
    %v4440 = vadd.f32 %v3464, %v4439
    %v4441 = vpop.f32.mrf.mxu0
    %v4442 = vadd.f32 %v3466, %v4441
    %4443 = vmatprep.mubr.bf16.mxu0 %v2278
    %4444 = vmatmul.mubr.bf16.gmra.mxu0 %v2277
    %v4445 = vpop.f32.mrf.mxu0
    %v4446 = vadd.f32 %v3470, %v4445
    %v4447 = vpop.f32.mrf.mxu0
    %v4448 = vadd.f32 %v3472, %v4447
    %v4449 = vpop.f32.mrf.mxu0
    %v4450 = vadd.f32 %v3474, %v4449
    %v4451 = vpop.f32.mrf.mxu0
    %v4452 = vadd.f32 %v3476, %v4451
    %4453 = vmatprep.mubr.bf16.mxu0 %v2283
    %4454 = vmatmul.mubr.bf16.gmra.mxu0 %v2282
    %v4455 = vpop.f32.mrf.mxu0
    %v4456 = vadd.f32 %v3480, %v4455
    %v4457 = vpop.f32.mrf.mxu0
    %v4458 = vadd.f32 %v3482, %v4457
    %v4459 = vpop.f32.mrf.mxu0
    %v4460 = vpop.f32.mrf.mxu0
    %4461 = vdwg.mxu0
    %4462 = vmatprep.subr.bf16.mxu0 %v4200
    %4463 = vmatpush1.bf16.msra.mxu0 %v4199
    %4464 = vmatprep.subr.bf16.mxu0 %v4196
    %4465 = vmatpush1.bf16.msra.mxu0 %v4195
    %4466 = vmatprep.subr.bf16.mxu0 %v4192
    %4467 = vmatpush1.bf16.msra.mxu0 %v4191
    %4468 = vmatprep.subr.bf16.mxu0 %v4188
    %4469 = vmatpush1.bf16.msra.mxu0 %v4187
    %4470 = vmatprep.subr.bf16.mxu0 %v4184
    %4471 = vmatpush1.bf16.msra.mxu0 %v4183
    %4472 = vmatprep.subr.bf16.mxu0 %v4180
    %4473 = vmatpush1.bf16.msra.mxu0 %v4179
    %4474 = vmatprep.subr.bf16.mxu0 %v4176
    %4475 = vmatpush1.bf16.msra.mxu0 %v4175
    %4476 = vmatprep.subr.bf16.mxu0 %v4172
    %4477 = vmatpush1.bf16.msra.mxu0 %v4171
    %4478 = vmatprep.subr.bf16.mxu0 %v4232
    %4479 = vmatpush2.bf16.msra.mxu0 %v4231
    %4480 = vmatprep.subr.bf16.mxu0 %v4228
    %4481 = vmatpush2.bf16.msra.mxu0 %v4227
    %4482 = vmatprep.subr.bf16.mxu0 %v4224
    %4483 = vmatpush2.bf16.msra.mxu0 %v4223
    %4484 = vmatprep.subr.bf16.mxu0 %v4220
    %4485 = vmatpush2.bf16.msra.mxu0 %v4219
    %4486 = vmatprep.subr.bf16.mxu0 %v4216
    %4487 = vmatpush2.bf16.msra.mxu0 %v4215
    %4488 = vmatprep.subr.bf16.mxu0 %v4212
    %4489 = vmatpush2.bf16.msra.mxu0 %v4211
    %4490 = vmatprep.subr.bf16.mxu0 %v4208
    %4491 = vmatpush2.bf16.msra.mxu0 %v4207
    %4492 = vmatprep.subr.bf16.mxu0 %v4204
    %4493 = vmatpush2.bf16.msra.mxu0 %v4203
    %4494 = vmatprep.mubr.bf16.mxu0 %v2270
    %4495 = vmatmul.mubr.bf16.gmra.mxu0 %v2269
    %v4496 = vpop.f32.mrf.mxu0
    %v4497 = vadd.f32 %v4426, %v4496
    %v4498 = vpop.f32.mrf.mxu0
    %v4499 = vadd.f32 %v4428, %v4498
    %v4500 = vpop.f32.mrf.mxu0
    %v4501 = vadd.f32 %v4430, %v4500
    %v4502 = vpop.f32.mrf.mxu0
    %v4503 = vadd.f32 %v4432, %v4502
    %4504 = vmatprep.mubr.bf16.mxu0 %v2275
    %4505 = vmatmul.mubr.bf16.gmra.mxu0 %v2274
    %v4506 = vpop.f32.mrf.mxu0
    %v4507 = vadd.f32 %v4436, %v4506
    %v4508 = vpop.f32.mrf.mxu0
    %v4509 = vadd.f32 %v4438, %v4508
    %v4510 = vpop.f32.mrf.mxu0
    %v4511 = vadd.f32 %v4440, %v4510
    %v4512 = vpop.f32.mrf.mxu0
    %v4513 = vadd.f32 %v4442, %v4512
    %4514 = vmatprep.mubr.bf16.mxu0 %v2280
    %4515 = vmatmul.mubr.bf16.gmra.mxu0 %v2279
    %v4516 = vpop.f32.mrf.mxu0
    %v4517 = vadd.f32 %v4446, %v4516
    %v4518 = vpop.f32.mrf.mxu0
    %v4519 = vadd.f32 %v4448, %v4518
    %v4520 = vpop.f32.mrf.mxu0
    %v4521 = vadd.f32 %v4450, %v4520
    %v4522 = vpop.f32.mrf.mxu0
    %v4523 = vadd.f32 %v4452, %v4522
    %4524 = vmatprep.mubr.bf16.mxu0 %v2285
    %4525 = vmatmul.mubr.bf16.gmra.mxu0 %v2284
    %v4526 = vpop.f32.mrf.mxu0
    %v4527 = vadd.f32 %v4456, %v4526
    %v4528 = vpop.f32.mrf.mxu0
    %v4529 = vadd.f32 %v4458, %v4528
    %v4530 = vpop.f32.mrf.mxu0
    %v4531 = vpop.f32.mrf.mxu0
    %4532 = vdwg.mxu0
    %4533 = vmatprep.subr.bf16.mxu0 0
    %4534 = vmatpush1.bf16.msra.mxu0 0
    %4535 = vmatprep.subr.bf16.mxu0 0
    %4536 = vmatpush1.bf16.msra.mxu0 0
    %4537 = vmatprep.subr.bf16.mxu0 0
    %4538 = vmatpush1.bf16.msra.mxu0 0
    %4539 = vmatprep.subr.bf16.mxu0 0
    %4540 = vmatpush1.bf16.msra.mxu0 0
    %4541 = vmatprep.subr.bf16.mxu0 0
    %4542 = vmatpush1.bf16.msra.mxu0 0
    %4543 = vmatprep.subr.bf16.mxu0 0
    %4544 = vmatpush1.bf16.msra.mxu0 0
    %4545 = vmatprep.subr.bf16.mxu0 %v4240
    %4546 = vmatpush1.bf16.msra.mxu0 %v4239
    %4547 = vmatprep.subr.bf16.mxu0 %v4236
    %4548 = vmatpush1.bf16.msra.mxu0 %v4235
    %4549 = vmatprep.subr.bf16.mxu0 0
    %4550 = vmatpush2.bf16.msra.mxu0 0
    %4551 = vmatprep.subr.bf16.mxu0 0
    %4552 = vmatpush2.bf16.msra.mxu0 0
    %4553 = vmatprep.subr.bf16.mxu0 0
    %4554 = vmatpush2.bf16.msra.mxu0 0
    %4555 = vmatprep.subr.bf16.mxu0 0
    %4556 = vmatpush2.bf16.msra.mxu0 0
    %4557 = vmatprep.subr.bf16.mxu0 0
    %4558 = vmatpush2.bf16.msra.mxu0 0
    %4559 = vmatprep.subr.bf16.mxu0 0
    %4560 = vmatpush2.bf16.msra.mxu0 0
    %4561 = vmatprep.subr.bf16.mxu0 0
    %4562 = vmatpush2.bf16.msra.mxu0 0
    %4563 = vmatprep.subr.bf16.mxu0 0
    %4564 = vmatpush2.bf16.msra.mxu0 0
    %4565 = vmatprep.mubr.bf16.mxu0 0
    %4566 = vmatmul.mubr.bf16.gmra.mxu0 %v4380
    %v4567 = vpop.f32.mrf.mxu0
    %v4568 = vadd.f32 %v4497, %v4567
    %v4569 = vpop.f32.mrf.mxu0
    %v4570 = vadd.f32 %v4499, %v4569
    %v4571 = vpop.f32.mrf.mxu0
    %v4572 = vadd.f32 %v4501, %v4571
    %v4573 = vpop.f32.mrf.mxu0
    %v4574 = vadd.f32 %v4503, %v4573
    %4575 = vmatprep.mubr.bf16.mxu0 0
    %4576 = vmatmul.mubr.bf16.gmra.mxu0 %v4383
    %v4577 = vpop.f32.mrf.mxu0
    %v4578 = vadd.f32 %v4507, %v4577
    %v4579 = vpop.f32.mrf.mxu0
    %v4580 = vadd.f32 %v4509, %v4579
    %v4581 = vpop.f32.mrf.mxu0
    %v4582 = vadd.f32 %v4511, %v4581
    %v4583 = vpop.f32.mrf.mxu0
    %v4584 = vadd.f32 %v4513, %v4583
    %4585 = vmatprep.mubr.bf16.mxu0 0
    %4586 = vmatmul.mubr.bf16.gmra.mxu0 %v4386
    %v4587 = vpop.f32.mrf.mxu0
    %v4588 = vadd.f32 %v4517, %v4587
    %v4589 = vpop.f32.mrf.mxu0
    %v4590 = vadd.f32 %v4519, %v4589
    %v4591 = vpop.f32.mrf.mxu0
    %v4592 = vadd.f32 %v4521, %v4591
    %v4593 = vpop.f32.mrf.mxu0
    %v4594 = vadd.f32 %v4523, %v4593
    %4595 = vmatprep.mubr.bf16.mxu0 0
    %4596 = vmatmul.mubr.bf16.gmra.mxu0 %v4389
    %v4597 = vpop.f32.mrf.mxu0
    %v4598 = vadd.f32 %v4527, %v4597
    %v4599 = vpop.f32.mrf.mxu0
    %v4600 = vadd.f32 %v4529, %v4599
    %v4601 = vpop.f32.mrf.mxu0
    %v4602 = vpop.f32.mrf.mxu0
    %4603 = vdwg.mxu0
    %4604 = vmatprep.subr.bf16.mxu0 %v4138
    %4605 = vmatpush1.bf16.msra.mxu0 %v4137
    %4606 = vmatprep.subr.bf16.mxu0 %v4134
    %4607 = vmatpush1.bf16.msra.mxu0 %v4133
    %4608 = vmatprep.subr.bf16.mxu0 %v4130
    %4609 = vmatpush1.bf16.msra.mxu0 %v4129
    %4610 = vmatprep.subr.bf16.mxu0 %v4126
    %4611 = vmatpush1.bf16.msra.mxu0 %v4125
    %4612 = vmatprep.subr.bf16.mxu0 %v4122
    %4613 = vmatpush1.bf16.msra.mxu0 %v4121
    %4614 = vmatprep.subr.bf16.mxu0 %v4118
    %4615 = vmatpush1.bf16.msra.mxu0 %v4117
    %4616 = vmatprep.subr.bf16.mxu0 %v4114
    %4617 = vmatpush1.bf16.msra.mxu0 %v4113
    %4618 = vmatprep.subr.bf16.mxu0 %v4110
    %4619 = vmatpush1.bf16.msra.mxu0 %v4109
    %4620 = vmatprep.subr.bf16.mxu0 %v4170
    %4621 = vmatpush2.bf16.msra.mxu0 %v4169
    %4622 = vmatprep.subr.bf16.mxu0 %v4166
    %4623 = vmatpush2.bf16.msra.mxu0 %v4165
    %4624 = vmatprep.subr.bf16.mxu0 %v4162
    %4625 = vmatpush2.bf16.msra.mxu0 %v4161
    %4626 = vmatprep.subr.bf16.mxu0 %v4158
    %4627 = vmatpush2.bf16.msra.mxu0 %v4157
    %4628 = vmatprep.subr.bf16.mxu0 %v4154
    %4629 = vmatpush2.bf16.msra.mxu0 %v4153
    %4630 = vmatprep.subr.bf16.mxu0 %v4150
    %4631 = vmatpush2.bf16.msra.mxu0 %v4149
    %4632 = vmatprep.subr.bf16.mxu0 %v4146
    %4633 = vmatpush2.bf16.msra.mxu0 %v4145
    %4634 = vmatprep.subr.bf16.mxu0 %v4142
    %4635 = vmatpush2.bf16.msra.mxu0 %v4141
    %4636 = vmatprep.mubr.bf16.mxu0 %v2268
    %4637 = vmatmul.mubr.bf16.gmra.mxu0 %v2267
    %v4638 = vpop.f32.mrf.mxu0
    %v4639 = vadd.f32 %v3663, %v4638
    %v4640 = vpop.f32.mrf.mxu0
    %v4641 = vadd.f32 %v3665, %v4640
    %v4642 = vpop.f32.mrf.mxu0
    %v4643 = vadd.f32 %v3667, %v4642
    %v4644 = vpop.f32.mrf.mxu0
    %v4645 = vadd.f32 %v3669, %v4644
    %4646 = vmatprep.mubr.bf16.mxu0 %v2273
    %4647 = vmatmul.mubr.bf16.gmra.mxu0 %v2272
    %v4648 = vpop.f32.mrf.mxu0
    %v4649 = vadd.f32 %v3673, %v4648
    %v4650 = vpop.f32.mrf.mxu0
    %v4651 = vadd.f32 %v3675, %v4650
    %v4652 = vpop.f32.mrf.mxu0
    %v4653 = vadd.f32 %v3677, %v4652
    %v4654 = vpop.f32.mrf.mxu0
    %v4655 = vadd.f32 %v3679, %v4654
    %4656 = vmatprep.mubr.bf16.mxu0 %v2278
    %4657 = vmatmul.mubr.bf16.gmra.mxu0 %v2277
    %v4658 = vpop.f32.mrf.mxu0
    %v4659 = vadd.f32 %v3683, %v4658
    %v4660 = vpop.f32.mrf.mxu0
    %v4661 = vadd.f32 %v3685, %v4660
    %v4662 = vpop.f32.mrf.mxu0
    %v4663 = vadd.f32 %v3687, %v4662
    %v4664 = vpop.f32.mrf.mxu0
    %v4665 = vadd.f32 %v3689, %v4664
    %4666 = vmatprep.mubr.bf16.mxu0 %v2283
    %4667 = vmatmul.mubr.bf16.gmra.mxu0 %v2282
    %v4668 = vpop.f32.mrf.mxu0
    %v4669 = vadd.f32 %v3693, %v4668
    %v4670 = vpop.f32.mrf.mxu0
    %v4671 = vadd.f32 %v3695, %v4670
    %v4672 = vpop.f32.mrf.mxu0
    %v4673 = vpop.f32.mrf.mxu0
    %4674 = vdwg.mxu0
    %4675 = vmatprep.subr.bf16.mxu0 %v4202
    %4676 = vmatpush1.bf16.msra.mxu0 %v4201
    %4677 = vmatprep.subr.bf16.mxu0 %v4198
    %4678 = vmatpush1.bf16.msra.mxu0 %v4197
    %4679 = vmatprep.subr.bf16.mxu0 %v4194
    %4680 = vmatpush1.bf16.msra.mxu0 %v4193
    %4681 = vmatprep.subr.bf16.mxu0 %v4190
    %4682 = vmatpush1.bf16.msra.mxu0 %v4189
    %4683 = vmatprep.subr.bf16.mxu0 %v4186
    %4684 = vmatpush1.bf16.msra.mxu0 %v4185
    %4685 = vmatprep.subr.bf16.mxu0 %v4182
    %4686 = vmatpush1.bf16.msra.mxu0 %v4181
    %4687 = vmatprep.subr.bf16.mxu0 %v4178
    %4688 = vmatpush1.bf16.msra.mxu0 %v4177
    %4689 = vmatprep.subr.bf16.mxu0 %v4174
    %4690 = vmatpush1.bf16.msra.mxu0 %v4173
    %4691 = vmatprep.subr.bf16.mxu0 %v4234
    %4692 = vmatpush2.bf16.msra.mxu0 %v4233
    %4693 = vmatprep.subr.bf16.mxu0 %v4230
    %4694 = vmatpush2.bf16.msra.mxu0 %v4229
    %4695 = vmatprep.subr.bf16.mxu0 %v4226
    %4696 = vmatpush2.bf16.msra.mxu0 %v4225
    %4697 = vmatprep.subr.bf16.mxu0 %v4222
    %4698 = vmatpush2.bf16.msra.mxu0 %v4221
    %4699 = vmatprep.subr.bf16.mxu0 %v4218
    %4700 = vmatpush2.bf16.msra.mxu0 %v4217
    %4701 = vmatprep.subr.bf16.mxu0 %v4214
    %4702 = vmatpush2.bf16.msra.mxu0 %v4213
    %4703 = vmatprep.subr.bf16.mxu0 %v4210
    %4704 = vmatpush2.bf16.msra.mxu0 %v4209
    %4705 = vmatprep.subr.bf16.mxu0 %v4206
    %4706 = vmatpush2.bf16.msra.mxu0 %v4205
    %4707 = vmatprep.mubr.bf16.mxu0 %v2270
    %4708 = vmatmul.mubr.bf16.gmra.mxu0 %v2269
    %v4709 = vpop.f32.mrf.mxu0
    %v4710 = vadd.f32 %v4639, %v4709
    %v4711 = vpop.f32.mrf.mxu0
    %v4712 = vadd.f32 %v4641, %v4711
    %v4713 = vpop.f32.mrf.mxu0
    %v4714 = vadd.f32 %v4643, %v4713
    %v4715 = vpop.f32.mrf.mxu0
    %v4716 = vadd.f32 %v4645, %v4715
    %4717 = vmatprep.mubr.bf16.mxu0 %v2275
    %4718 = vmatmul.mubr.bf16.gmra.mxu0 %v2274
    %v4719 = vpop.f32.mrf.mxu0
    %v4720 = vadd.f32 %v4649, %v4719
    %v4721 = vpop.f32.mrf.mxu0
    %v4722 = vadd.f32 %v4651, %v4721
    %v4723 = vpop.f32.mrf.mxu0
    %v4724 = vadd.f32 %v4653, %v4723
    %v4725 = vpop.f32.mrf.mxu0
    %v4726 = vadd.f32 %v4655, %v4725
    %4727 = vmatprep.mubr.bf16.mxu0 %v2280
    %4728 = vmatmul.mubr.bf16.gmra.mxu0 %v2279
    %v4729 = vpop.f32.mrf.mxu0
    %v4730 = vadd.f32 %v4659, %v4729
    %v4731 = vpop.f32.mrf.mxu0
    %v4732 = vadd.f32 %v4661, %v4731
    %v4733 = vpop.f32.mrf.mxu0
    %v4734 = vadd.f32 %v4663, %v4733
    %v4735 = vpop.f32.mrf.mxu0
    %v4736 = vadd.f32 %v4665, %v4735
    %4737 = vmatprep.mubr.bf16.mxu0 %v2285
    %4738 = vmatmul.mubr.bf16.gmra.mxu0 %v2284
    %v4739 = vpop.f32.mrf.mxu0
    %v4740 = vadd.f32 %v4669, %v4739
    %v4741 = vpop.f32.mrf.mxu0
    %v4742 = vadd.f32 %v4671, %v4741
    %v4743 = vpop.f32.mrf.mxu0
    %v4744 = vpop.f32.mrf.mxu0
    %4745 = vdwg.mxu0
    %4746 = vmatprep.subr.bf16.mxu0 0
    %4747 = vmatpush1.bf16.msra.mxu0 0
    %4748 = vmatprep.subr.bf16.mxu0 0
    %4749 = vmatpush1.bf16.msra.mxu0 0
    %4750 = vmatprep.subr.bf16.mxu0 0
    %4751 = vmatpush1.bf16.msra.mxu0 0
    %4752 = vmatprep.subr.bf16.mxu0 0
    %4753 = vmatpush1.bf16.msra.mxu0 0
    %4754 = vmatprep.subr.bf16.mxu0 0
    %4755 = vmatpush1.bf16.msra.mxu0 0
    %4756 = vmatprep.subr.bf16.mxu0 0
    %4757 = vmatpush1.bf16.msra.mxu0 0
    %4758 = vmatprep.subr.bf16.mxu0 %v4242
    %4759 = vmatpush1.bf16.msra.mxu0 %v4241
    %4760 = vmatprep.subr.bf16.mxu0 %v4238
    %4761 = vmatpush1.bf16.msra.mxu0 %v4237
    %4762 = vmatprep.subr.bf16.mxu0 0
    %4763 = vmatpush2.bf16.msra.mxu0 0
    %4764 = vmatprep.subr.bf16.mxu0 0
    %4765 = vmatpush2.bf16.msra.mxu0 0
    %4766 = vmatprep.subr.bf16.mxu0 0
    %4767 = vmatpush2.bf16.msra.mxu0 0
    %4768 = vmatprep.subr.bf16.mxu0 0
    %4769 = vmatpush2.bf16.msra.mxu0 0
    %4770 = vmatprep.subr.bf16.mxu0 0
    %4771 = vmatpush2.bf16.msra.mxu0 0
    %4772 = vmatprep.subr.bf16.mxu0 0
    %4773 = vmatpush2.bf16.msra.mxu0 0
    %4774 = vmatprep.subr.bf16.mxu0 0
    %4775 = vmatpush2.bf16.msra.mxu0 0
    %4776 = vmatprep.subr.bf16.mxu0 0
    %4777 = vmatpush2.bf16.msra.mxu0 0
    %4778 = vmatprep.mubr.bf16.mxu0 0
    %4779 = vmatmul.mubr.bf16.gmra.mxu0 %v4380
    %v4780 = vpop.f32.mrf.mxu0
    %v4781 = vadd.f32 %v4710, %v4780
    %v4782 = vpop.f32.mrf.mxu0
    %v4783 = vadd.f32 %v4712, %v4782
    %v4784 = vpop.f32.mrf.mxu0
    %v4785 = vadd.f32 %v4714, %v4784
    %v4786 = vpop.f32.mrf.mxu0
    %v4787 = vadd.f32 %v4716, %v4786
    %4788 = vmatprep.mubr.bf16.mxu0 0
    %4789 = vmatmul.mubr.bf16.gmra.mxu0 %v4383
    %v4790 = vpop.f32.mrf.mxu0
    %v4791 = vadd.f32 %v4720, %v4790
    %v4792 = vpop.f32.mrf.mxu0
    %v4793 = vadd.f32 %v4722, %v4792
    %v4794 = vpop.f32.mrf.mxu0
    %v4795 = vadd.f32 %v4724, %v4794
    %v4796 = vpop.f32.mrf.mxu0
    %v4797 = vadd.f32 %v4726, %v4796
    %4798 = vmatprep.mubr.bf16.mxu0 0
    %4799 = vmatmul.mubr.bf16.gmra.mxu0 %v4386
    %v4800 = vpop.f32.mrf.mxu0
    %v4801 = vadd.f32 %v4730, %v4800
    %v4802 = vpop.f32.mrf.mxu0
    %v4803 = vadd.f32 %v4732, %v4802
    %v4804 = vpop.f32.mrf.mxu0
    %v4805 = vadd.f32 %v4734, %v4804
    %v4806 = vpop.f32.mrf.mxu0
    %v4807 = vadd.f32 %v4736, %v4806
    %4808 = vmatprep.mubr.bf16.mxu0 0
    %4809 = vmatmul.mubr.bf16.gmra.mxu0 %v4389
    %v4810 = vpop.f32.mrf.mxu0
    %v4811 = vadd.f32 %v4740, %v4810
    %v4812 = vpop.f32.mrf.mxu0
    %v4813 = vadd.f32 %v4742, %v4812
    %v4814 = vpop.f32.mrf.mxu0
    %v4815 = vpop.f32.mrf.mxu0
    %4816 = vdwg.mxu0
    %v4817 = vpack.c.bf16 %v2202, %v2192
    %v4818 = vpack.c.bf16 %v2203, %v2193
    %v4819 = vpack.c.bf16 %v2204, %v2194
    %v4820 = vpack.c.bf16 %v2205, %v2195
    %v4821 = vpack.c.bf16 %v2206, %v2196
    %v4822 = vpack.c.bf16 %v2222, %v2212
    %v4823 = vpack.c.bf16 %v2223, %v2213
    %v4824 = vpack.c.bf16 %v2224, %v2214
    %v4825 = vpack.c.bf16 %v2225, %v2215
    %v4826 = vpack.c.bf16 %v2226, %v2216
    %v4827 = vpack.c.bf16 %v2242, %v2232
    %v4828 = vpack.c.bf16 %v2243, %v2233
    %v4829 = vpack.c.bf16 %v2244, %v2234
    %v4830 = vpack.c.bf16 %v2245, %v2235
    %v4831 = vpack.c.bf16 %v2246, %v2236
    %v4832 = vpack.c.bf16 %v2262, %v2252
    %v4833 = vpack.c.bf16 %v2263, %v2253
    %v4834 = vpack.c.bf16 %v2264, %v2254
    %v4835 = vpack.c.bf16 %v2265, %v2255
    %v4836 = vpack.c.bf16 %v2266, %v2256
    %s4837 = scalar_lea.vmem [#allocation4], 2176
    %v4838 = vld [vmem:[%s4837] sm:$0xff]
    %v4839 = vld [vmem:[%s4837 + $0x8] sm:$0xff]
    %v4840 = vld [vmem:[%s4837 + $0x10] sm:$0xff]
    %v4841 = vld [vmem:[%s4837 + $0x18] sm:$0xff]
    %v4842 = vld [vmem:[%s4837 + $0x20] sm:$0xff]
    %v4843 = vld [vmem:[%s4837 + $0x28] sm:$0xff]
    %v4844 = vld [vmem:[%s4837 + $0x30] sm:$0xff]
    %v4845 = vld [vmem:[%s4837 + $0x38] sm:$0xff]
    %v4846 = vld [vmem:[%s4837 + $0x40] sm:$0xff]
    %v4847 = vld [vmem:[%s4837 + $0x48] sm:$0xff]
    %v4848 = vld [vmem:[%s4837 + $0x50] sm:$0xff]
    %v4849 = vld [vmem:[%s4837 + $0x58] sm:$0xff]
    %v4850 = vld [vmem:[%s4837 + $0x60] sm:$0xff]
    %v4851 = vld [vmem:[%s4837 + $0x68] sm:$0xff]
    %v4852 = vld [vmem:[%s4837 + $0x70] sm:$0xff]
    %v4853 = vld [vmem:[%s4837 + $0x78] sm:$0xff]
    %v4854 = vld [vmem:[%s4837 + $0x80] sm:$0xff]
    %v4855 = vld [vmem:[%s4837 + $0x88] sm:$0xff]
    %v4856 = vld [vmem:[%s4837 + $0x90] sm:$0xff]
    %v4857 = vld [vmem:[%s4837 + $0x98] sm:$0xff]
    %v4858 = vld [vmem:[%s4837 + $0xa0] sm:$0xff]
    %v4859 = vld [vmem:[%s4837 + $0xa8] sm:$0xff]
    %v4860 = vld [vmem:[%s4837 + $0xb0] sm:$0xff]
    %v4861 = vld [vmem:[%s4837 + $0xb8] sm:$0xff]
    %v4862 = vld [vmem:[%s4837 + $0xc0] sm:$0xff]
    %v4863 = vld [vmem:[%s4837 + $0xc8] sm:$0xff]
    %v4864 = vld [vmem:[%s4837 + $0xd0] sm:$0xff]
    %v4865 = vld [vmem:[%s4837 + $0xd8] sm:$0xff]
    %v4866 = vld [vmem:[%s4837 + $0xe0] sm:$0xff]
    %v4867 = vld [vmem:[%s4837 + $0xe8] sm:$0xff]
    %v4868 = vld [vmem:[%s4837 + $0xf0] sm:$0xff]
    %v4869 = vld [vmem:[%s4837 + $0xf8] sm:$0xff]
    %v4870 = vld [vmem:[%s4837 + $0x100] sm:$0xff]
    %v4871 = vld [vmem:[%s4837 + $0x108] sm:$0xff]
    %v4872 = vld [vmem:[%s4837 + $0x110] sm:$0xff]
    %v4873 = vld [vmem:[%s4837 + $0x118] sm:$0xff]
    %v4874 = vld [vmem:[%s4837 + $0x120] sm:$0xff]
    %v4875 = vld [vmem:[%s4837 + $0x128] sm:$0xff]
    %v4876 = vld [vmem:[%s4837 + $0x130] sm:$0xff]
    %v4877 = vld [vmem:[%s4837 + $0x138] sm:$0xff]
    %v4878 = vld [vmem:[%s4837 + $0x140] sm:$0xff]
    %v4879 = vld [vmem:[%s4837 + $0x148] sm:$0xff]
    %v4880 = vld [vmem:[%s4837 + $0x150] sm:$0xff]
    %v4881 = vld [vmem:[%s4837 + $0x158] sm:$0xff]
    %v4882 = vld [vmem:[%s4837 + $0x160] sm:$0xff]
    %v4883 = vld [vmem:[%s4837 + $0x168] sm:$0xff]
    %v4884 = vld [vmem:[%s4837 + $0x170] sm:$0xff]
    %v4885 = vld [vmem:[%s4837 + $0x178] sm:$0xff]
    %v4886 = vld [vmem:[%s4837 + $0x180] sm:$0xff]
    %v4887 = vld [vmem:[%s4837 + $0x188] sm:$0xff]
    %v4888 = vld [vmem:[%s4837 + $0x190] sm:$0xff]
    %v4889 = vld [vmem:[%s4837 + $0x198] sm:$0xff]
    %v4890 = vld [vmem:[%s4837 + $0x1a0] sm:$0xff]
    %v4891 = vld [vmem:[%s4837 + $0x1a8] sm:$0xff]
    %v4892 = vld [vmem:[%s4837 + $0x1b0] sm:$0xff]
    %v4893 = vld [vmem:[%s4837 + $0x1b8] sm:$0xff]
    %v4894 = vld [vmem:[%s4837 + $0x1c0] sm:$0xff]
    %v4895 = vld [vmem:[%s4837 + $0x1c8] sm:$0xff]
    %v4896 = vld [vmem:[%s4837 + $0x1d0] sm:$0xff]
    %v4897 = vld [vmem:[%s4837 + $0x1d8] sm:$0xff]
    %v4898 = vld [vmem:[%s4837 + $0x1e0] sm:$0xff]
    %v4899 = vld [vmem:[%s4837 + $0x1e8] sm:$0xff]
    %v4900 = vld [vmem:[%s4837 + $0x1f0] sm:$0xff]
    %v4901 = vld [vmem:[%s4837 + $0x1f8] sm:$0xff]
    %v4902 = vld [vmem:[%s4837 + $0x200] sm:$0xff]
    %v4903 = vld [vmem:[%s4837 + $0x208] sm:$0xff]
    %v4904 = vld [vmem:[%s4837 + $0x210] sm:$0xff]
    %v4905 = vld [vmem:[%s4837 + $0x218] sm:$0xff]
    %v4906 = vld [vmem:[%s4837 + $0x220] sm:$0xff]
    %v4907 = vld [vmem:[%s4837 + $0x228] sm:$0xff]
    %v4908 = vld [vmem:[%s4837 + $0x230] sm:$0xff]
    %v4909 = vld [vmem:[%s4837 + $0x238] sm:$0xff]
    %v4910 = vld [vmem:[%s4837 + $0x240] sm:$0xff]
    %v4911 = vld [vmem:[%s4837 + $0x248] sm:$0xff]
    %v4912 = vld [vmem:[%s4837 + $0x250] sm:$0xff]
    %v4913 = vld [vmem:[%s4837 + $0x258] sm:$0xff]
    %v4914 = vld [vmem:[%s4837 + $0x260] sm:$0xff]
    %v4915 = vld [vmem:[%s4837 + $0x268] sm:$0xff]
    %v4916 = vld [vmem:[%s4837 + $0x270] sm:$0xff]
    %v4917 = vld [vmem:[%s4837 + $0x278] sm:$0xff]
    %v4918 = vld [vmem:[%s4837 + $0x280] sm:$0xff]
    %v4919 = vld [vmem:[%s4837 + $0x288] sm:$0xff]
    %v4920 = vld [vmem:[%s4837 + $0x290] sm:$0xff]
    %v4921 = vld [vmem:[%s4837 + $0x298] sm:$0xff]
    %v4922 = vld [vmem:[%s4837 + $0x2a0] sm:$0xff]
    %v4923 = vld [vmem:[%s4837 + $0x2a8] sm:$0xff]
    %v4924 = vld [vmem:[%s4837 + $0x2b0] sm:$0xff]
    %v4925 = vld [vmem:[%s4837 + $0x2b8] sm:$0xff]
    %v4926 = vld [vmem:[%s4837 + $0x2c0] sm:$0xff]
    %v4927 = vld [vmem:[%s4837 + $0x2c8] sm:$0xff]
    %v4928 = vld [vmem:[%s4837 + $0x2d0] sm:$0xff]
    %v4929 = vld [vmem:[%s4837 + $0x2d8] sm:$0xff]
    %v4930 = vld [vmem:[%s4837 + $0x2e0] sm:$0xff]
    %v4931 = vld [vmem:[%s4837 + $0x2e8] sm:$0xff]
    %v4932 = vld [vmem:[%s4837 + $0x2f0] sm:$0xff]
    %v4933 = vld [vmem:[%s4837 + $0x2f8] sm:$0xff]
    %v4934 = vld [vmem:[%s4837 + $0x300] sm:$0xff]
    %v4935 = vld [vmem:[%s4837 + $0x308] sm:$0xff]
    %v4936 = vld [vmem:[%s4837 + $0x310] sm:$0xff]
    %v4937 = vld [vmem:[%s4837 + $0x318] sm:$0xff]
    %v4938 = vld [vmem:[%s4837 + $0x320] sm:$0xff]
    %v4939 = vld [vmem:[%s4837 + $0x328] sm:$0xff]
    %v4940 = vld [vmem:[%s4837 + $0x330] sm:$0xff]
    %v4941 = vld [vmem:[%s4837 + $0x338] sm:$0xff]
    %v4942 = vld [vmem:[%s4837 + $0x340] sm:$0xff]
    %v4943 = vld [vmem:[%s4837 + $0x348] sm:$0xff]
    %v4944 = vld [vmem:[%s4837 + $0x350] sm:$0xff]
    %v4945 = vld [vmem:[%s4837 + $0x358] sm:$0xff]
    %v4946 = vld [vmem:[%s4837 + $0x360] sm:$0xff]
    %v4947 = vld [vmem:[%s4837 + $0x368] sm:$0xff]
    %v4948 = vld [vmem:[%s4837 + $0x370] sm:$0xff]
    %v4949 = vld [vmem:[%s4837 + $0x378] sm:$0xff]
    %v4950 = vld [vmem:[%s4837 + $0x380] sm:$0xff]
    %v4951 = vld [vmem:[%s4837 + $0x388] sm:$0xff]
    %v4952 = vld [vmem:[%s4837 + $0x390] sm:$0xff]
    %v4953 = vld [vmem:[%s4837 + $0x398] sm:$0xff]
    %v4954 = vld [vmem:[%s4837 + $0x3a0] sm:$0xff]
    %v4955 = vld [vmem:[%s4837 + $0x3a8] sm:$0xff]
    %v4956 = vld [vmem:[%s4837 + $0x3b0] sm:$0xff]
    %v4957 = vld [vmem:[%s4837 + $0x3b8] sm:$0xff]
    %v4958 = vld [vmem:[%s4837 + $0x3c0] sm:$0xff]
    %v4959 = vld [vmem:[%s4837 + $0x3c8] sm:$0xff]
    %v4960 = vld [vmem:[%s4837 + $0x3d0] sm:$0xff]
    %v4961 = vld [vmem:[%s4837 + $0x3d8] sm:$0xff]
    %v4962 = vld [vmem:[%s4837 + $0x3e0] sm:$0xff]
    %v4963 = vld [vmem:[%s4837 + $0x3e8] sm:$0xff]
    %v4964 = vld [vmem:[%s4837 + $0x3f0] sm:$0xff]
    %v4965 = vld [vmem:[%s4837 + $0x3f8] sm:$0xff]
    %v4966 = vld [vmem:[%s4837 + $0x400] sm:$0xff]
    %v4967 = vld [vmem:[%s4837 + $0x408] sm:$0xff]
    %v4968 = vld [vmem:[%s4837 + $0x410] sm:$0xff]
    %v4969 = vld [vmem:[%s4837 + $0x418] sm:$0xff]
    %v4970 = vld [vmem:[%s4837 + $0x420] sm:$0xff]
    %v4971 = vld [vmem:[%s4837 + $0x428] sm:$0xff]
    %v4972 = vld [vmem:[%s4837 + $0x430] sm:$0xff]
    %v4973 = vld [vmem:[%s4837 + $0x438] sm:$0xff]
    %v5110 = vunpack.c.l.b16 %v4838
    %v5111 = vunpack.c.h.b16 %v4838
    %v5112 = vunpack.c.l.b16 %v4839
    %v5113 = vunpack.c.h.b16 %v4839
    %v5114 = vunpack.c.l.b16 %v4840
    %v5115 = vunpack.c.h.b16 %v4840
    %v5116 = vunpack.c.l.b16 %v4841
    %v5117 = vunpack.c.h.b16 %v4841
    %v5118 = vunpack.c.l.b16 %v4842
    %v5119 = vunpack.c.h.b16 %v4842
    %v5120 = vunpack.c.l.b16 %v4843
    %v5121 = vunpack.c.h.b16 %v4843
    %v5122 = vunpack.c.l.b16 %v4844
    %v5123 = vunpack.c.h.b16 %v4844
    %v5124 = vunpack.c.l.b16 %v4845
    %v5125 = vunpack.c.h.b16 %v4845
    %v5126 = vunpack.c.l.b16 %v4846
    %v5127 = vunpack.c.h.b16 %v4846
    %v5128 = vunpack.c.l.b16 %v4847
    %v5129 = vunpack.c.h.b16 %v4847
    %v5130 = vunpack.c.l.b16 %v4848
    %v5131 = vunpack.c.h.b16 %v4848
    %v5132 = vunpack.c.l.b16 %v4849
    %v5133 = vunpack.c.h.b16 %v4849
    %v5134 = vunpack.c.l.b16 %v4850
    %v5135 = vunpack.c.h.b16 %v4850
    %v5136 = vunpack.c.l.b16 %v4851
    %v5137 = vunpack.c.h.b16 %v4851
    %v5138 = vunpack.c.l.b16 %v4852
    %v5139 = vunpack.c.h.b16 %v4852
    %v5140 = vunpack.c.l.b16 %v4853
    %v5141 = vunpack.c.h.b16 %v4853
    %v5142 = vunpack.c.l.b16 %v4854
    %v5143 = vunpack.c.h.b16 %v4854
    %v5144 = vunpack.c.l.b16 %v4855
    %v5145 = vunpack.c.h.b16 %v4855
    %v5146 = vunpack.c.l.b16 %v4856
    %v5147 = vunpack.c.h.b16 %v4856
    %v5148 = vunpack.c.l.b16 %v4857
    %v5149 = vunpack.c.h.b16 %v4857
    %v5150 = vunpack.c.l.b16 %v4858
    %v5151 = vunpack.c.h.b16 %v4858
    %v5152 = vunpack.c.l.b16 %v4859
    %v5153 = vunpack.c.h.b16 %v4859
    %v5154 = vunpack.c.l.b16 %v4860
    %v5155 = vunpack.c.h.b16 %v4860
    %v5156 = vunpack.c.l.b16 %v4861
    %v5157 = vunpack.c.h.b16 %v4861
    %v5158 = vunpack.c.l.b16 %v4862
    %v5159 = vunpack.c.h.b16 %v4862
    %v5160 = vunpack.c.l.b16 %v4863
    %v5161 = vunpack.c.h.b16 %v4863
    %v5162 = vunpack.c.l.b16 %v4864
    %v5163 = vunpack.c.h.b16 %v4864
    %v5164 = vunpack.c.l.b16 %v4865
    %v5165 = vunpack.c.h.b16 %v4865
    %v5166 = vunpack.c.l.b16 %v4866
    %v5167 = vunpack.c.h.b16 %v4866
    %v5168 = vunpack.c.l.b16 %v4867
    %v5169 = vunpack.c.h.b16 %v4867
    %v5170 = vunpack.c.l.b16 %v4868
    %v5171 = vunpack.c.h.b16 %v4868
    %v5172 = vunpack.c.l.b16 %v4869
    %v5173 = vunpack.c.h.b16 %v4869
    %v5174 = vunpack.c.l.b16 %v4870
    %v5175 = vunpack.c.h.b16 %v4870
    %v5176 = vunpack.c.l.b16 %v4871
    %v5177 = vunpack.c.h.b16 %v4871
    %v5178 = vunpack.c.l.b16 %v4872
    %v5179 = vunpack.c.h.b16 %v4872
    %v5180 = vunpack.c.l.b16 %v4873
    %v5181 = vunpack.c.h.b16 %v4873
    %v5182 = vunpack.c.l.b16 %v4874
    %v5183 = vunpack.c.h.b16 %v4874
    %v5184 = vunpack.c.l.b16 %v4875
    %v5185 = vunpack.c.h.b16 %v4875
    %v5186 = vunpack.c.l.b16 %v4876
    %v5187 = vunpack.c.h.b16 %v4876
    %v5188 = vunpack.c.l.b16 %v4877
    %v5189 = vunpack.c.h.b16 %v4877
    %v5190 = vunpack.c.l.b16 %v4878
    %v5191 = vunpack.c.h.b16 %v4878
    %v5192 = vunpack.c.l.b16 %v4879
    %v5193 = vunpack.c.h.b16 %v4879
    %v5194 = vunpack.c.l.b16 %v4880
    %v5195 = vunpack.c.h.b16 %v4880
    %v5196 = vunpack.c.l.b16 %v4881
    %v5197 = vunpack.c.h.b16 %v4881
    %v5198 = vunpack.c.l.b16 %v4882
    %v5199 = vunpack.c.h.b16 %v4882
    %v5200 = vunpack.c.l.b16 %v4883
    %v5201 = vunpack.c.h.b16 %v4883
    %v5202 = vunpack.c.l.b16 %v4884
    %v5203 = vunpack.c.h.b16 %v4884
    %v5204 = vunpack.c.l.b16 %v4885
    %v5205 = vunpack.c.h.b16 %v4885
    %v5206 = vunpack.c.l.b16 %v4886
    %v5207 = vunpack.c.h.b16 %v4886
    %v5208 = vunpack.c.l.b16 %v4887
    %v5209 = vunpack.c.h.b16 %v4887
    %v5210 = vunpack.c.l.b16 %v4888
    %v5211 = vunpack.c.h.b16 %v4888
    %v5212 = vunpack.c.l.b16 %v4889
    %v5213 = vunpack.c.h.b16 %v4889
    %v5214 = vunpack.c.l.b16 %v4890
    %v5215 = vunpack.c.h.b16 %v4890
    %v5216 = vunpack.c.l.b16 %v4891
    %v5217 = vunpack.c.h.b16 %v4891
    %v5218 = vunpack.c.l.b16 %v4892
    %v5219 = vunpack.c.h.b16 %v4892
    %v5220 = vunpack.c.l.b16 %v4893
    %v5221 = vunpack.c.h.b16 %v4893
    %v5222 = vunpack.c.l.b16 %v4894
    %v5223 = vunpack.c.h.b16 %v4894
    %v5224 = vunpack.c.l.b16 %v4895
    %v5225 = vunpack.c.h.b16 %v4895
    %v5226 = vunpack.c.l.b16 %v4896
    %v5227 = vunpack.c.h.b16 %v4896
    %v5228 = vunpack.c.l.b16 %v4897
    %v5229 = vunpack.c.h.b16 %v4897
    %v5230 = vunpack.c.l.b16 %v4898
    %v5231 = vunpack.c.h.b16 %v4898
    %v5232 = vunpack.c.l.b16 %v4899
    %v5233 = vunpack.c.h.b16 %v4899
    %v5234 = vunpack.c.l.b16 %v4900
    %v5235 = vunpack.c.h.b16 %v4900
    %v5236 = vunpack.c.l.b16 %v4901
    %v5237 = vunpack.c.h.b16 %v4901
    %v5238 = vunpack.c.l.b16 %v4902
    %v5239 = vunpack.c.h.b16 %v4902
    %v5240 = vunpack.c.l.b16 %v4903
    %v5241 = vunpack.c.h.b16 %v4903
    %v5242 = vunpack.c.l.b16 %v4904
    %v5243 = vunpack.c.h.b16 %v4904
    %v5244 = vunpack.c.l.b16 %v4905
    %v5245 = vunpack.c.h.b16 %v4905
    %v5246 = vunpack.c.l.b16 %v4906
    %v5247 = vunpack.c.h.b16 %v4906
    %v5248 = vunpack.c.l.b16 %v4907
    %v5249 = vunpack.c.h.b16 %v4907
    %v5250 = vunpack.c.l.b16 %v4908
    %v5251 = vunpack.c.h.b16 %v4908
    %v5252 = vunpack.c.l.b16 %v4909
    %v5253 = vunpack.c.h.b16 %v4909
    %v5254 = vunpack.c.l.b16 %v4910
    %v5255 = vunpack.c.h.b16 %v4910
    %v5256 = vunpack.c.l.b16 %v4911
    %v5257 = vunpack.c.h.b16 %v4911
    %v5258 = vunpack.c.l.b16 %v4912
    %v5259 = vunpack.c.h.b16 %v4912
    %v5260 = vunpack.c.l.b16 %v4913
    %v5261 = vunpack.c.h.b16 %v4913
    %v5262 = vunpack.c.l.b16 %v4914
    %v5263 = vunpack.c.h.b16 %v4914
    %v5264 = vunpack.c.l.b16 %v4915
    %v5265 = vunpack.c.h.b16 %v4915
    %v5266 = vunpack.c.l.b16 %v4916
    %v5267 = vunpack.c.h.b16 %v4916
    %v5268 = vunpack.c.l.b16 %v4917
    %v5269 = vunpack.c.h.b16 %v4917
    %v5270 = vunpack.c.l.b16 %v4918
    %v5271 = vunpack.c.h.b16 %v4918
    %v5272 = vunpack.c.l.b16 %v4919
    %v5273 = vunpack.c.h.b16 %v4919
    %v5274 = vunpack.c.l.b16 %v4920
    %v5275 = vunpack.c.h.b16 %v4920
    %v5276 = vunpack.c.l.b16 %v4921
    %v5277 = vunpack.c.h.b16 %v4921
    %v5278 = vunpack.c.l.b16 %v4922
    %v5279 = vunpack.c.h.b16 %v4922
    %v5280 = vunpack.c.l.b16 %v4923
    %v5281 = vunpack.c.h.b16 %v4923
    %v5282 = vunpack.c.l.b16 %v4924
    %v5283 = vunpack.c.h.b16 %v4924
    %v5284 = vunpack.c.l.b16 %v4925
    %v5285 = vunpack.c.h.b16 %v4925
    %v5286 = vunpack.c.l.b16 %v4926
    %v5287 = vunpack.c.h.b16 %v4926
    %v5288 = vunpack.c.l.b16 %v4927
    %v5289 = vunpack.c.h.b16 %v4927
    %v5290 = vunpack.c.l.b16 %v4928
    %v5291 = vunpack.c.h.b16 %v4928
    %v5292 = vunpack.c.l.b16 %v4929
    %v5293 = vunpack.c.h.b16 %v4929
    %v5294 = vunpack.c.l.b16 %v4930
    %v5295 = vunpack.c.h.b16 %v4930
    %v5296 = vunpack.c.l.b16 %v4931
    %v5297 = vunpack.c.h.b16 %v4931
    %v5298 = vunpack.c.l.b16 %v4932
    %v5299 = vunpack.c.h.b16 %v4932
    %v5300 = vunpack.c.l.b16 %v4933
    %v5301 = vunpack.c.h.b16 %v4933
    %v5302 = vunpack.c.l.b16 %v4934
    %v5303 = vunpack.c.h.b16 %v4934
    %v5304 = vunpack.c.l.b16 %v4935
    %v5305 = vunpack.c.h.b16 %v4935
    %v5306 = vunpack.c.l.b16 %v4936
    %v5307 = vunpack.c.h.b16 %v4936
    %v5308 = vunpack.c.l.b16 %v4937
    %v5309 = vunpack.c.h.b16 %v4937
    %v5310 = vunpack.c.l.b16 %v4938
    %v5311 = vunpack.c.h.b16 %v4938
    %v5312 = vunpack.c.l.b16 %v4939
    %v5313 = vunpack.c.h.b16 %v4939
    %v5314 = vunpack.c.l.b16 %v4940
    %v5315 = vunpack.c.h.b16 %v4940
    %v5316 = vunpack.c.l.b16 %v4941
    %v5317 = vunpack.c.h.b16 %v4941
    %v5318 = vunpack.c.l.b16 %v4942
    %v5319 = vunpack.c.h.b16 %v4942
    %v5320 = vunpack.c.l.b16 %v4943
    %v5321 = vunpack.c.h.b16 %v4943
    %v5322 = vunpack.c.l.b16 %v4944
    %v5323 = vunpack.c.h.b16 %v4944
    %v5324 = vunpack.c.l.b16 %v4945
    %v5325 = vunpack.c.h.b16 %v4945
    %v5326 = vunpack.c.l.b16 %v4946
    %v5327 = vunpack.c.h.b16 %v4946
    %v5328 = vunpack.c.l.b16 %v4947
    %v5329 = vunpack.c.h.b16 %v4947
    %v5330 = vunpack.c.l.b16 %v4948
    %v5331 = vunpack.c.h.b16 %v4948
    %v5332 = vunpack.c.l.b16 %v4949
    %v5333 = vunpack.c.h.b16 %v4949
    %v5334 = vunpack.c.l.b16 %v4950
    %v5335 = vunpack.c.h.b16 %v4950
    %v5336 = vunpack.c.l.b16 %v4951
    %v5337 = vunpack.c.h.b16 %v4951
    %v5338 = vunpack.c.l.b16 %v4952
    %v5339 = vunpack.c.h.b16 %v4952
    %v5340 = vunpack.c.l.b16 %v4953
    %v5341 = vunpack.c.h.b16 %v4953
    %v5342 = vunpack.c.l.b16 %v4954
    %v5343 = vunpack.c.h.b16 %v4954
    %v5344 = vunpack.c.l.b16 %v4955
    %v5345 = vunpack.c.h.b16 %v4955
    %v5346 = vunpack.c.l.b16 %v4956
    %v5347 = vunpack.c.h.b16 %v4956
    %v5348 = vunpack.c.l.b16 %v4957
    %v5349 = vunpack.c.h.b16 %v4957
    %v5350 = vunpack.c.l.b16 %v4958
    %v5351 = vunpack.c.h.b16 %v4958
    %v5352 = vunpack.c.l.b16 %v4959
    %v5353 = vunpack.c.h.b16 %v4959
    %v5354 = vunpack.c.l.b16 %v4960
    %v5355 = vunpack.c.h.b16 %v4960
    %v5356 = vunpack.c.l.b16 %v4961
    %v5357 = vunpack.c.h.b16 %v4961
    %v5358 = vunpack.c.l.b16 %v4962
    %v5359 = vunpack.c.h.b16 %v4962
    %v5360 = vunpack.c.l.b16 %v4963
    %v5361 = vunpack.c.h.b16 %v4963
    %v5362 = vunpack.c.l.b16 %v4964
    %v5363 = vunpack.c.h.b16 %v4964
    %v5364 = vunpack.c.l.b16 %v4965
    %v5365 = vunpack.c.h.b16 %v4965
    %v5366 = vunpack.c.l.b16 %v4966
    %v5367 = vunpack.c.h.b16 %v4966
    %v5368 = vunpack.c.l.b16 %v4967
    %v5369 = vunpack.c.h.b16 %v4967
    %v5370 = vunpack.c.l.b16 %v4968
    %v5371 = vunpack.c.h.b16 %v4968
    %v5372 = vunpack.c.l.b16 %v4969
    %v5373 = vunpack.c.h.b16 %v4969
    %v5374 = vunpack.c.l.b16 %v4970
    %v5375 = vunpack.c.h.b16 %v4970
    %v5376 = vunpack.c.l.b16 %v4971
    %v5377 = vunpack.c.h.b16 %v4971
    %v5378 = vunpack.c.l.b16 %v4972
    %v5379 = vunpack.c.h.b16 %v4972
    %v5380 = vunpack.c.l.b16 %v4973
    %v5381 = vunpack.c.h.b16 %v4973
    %v5382 = vpack.c.b16 %v5114, %v5110
    %v5383 = vpack.c.b16 %v5115, %v5111
    %v5384 = vpack.c.b16 %v5116, %v5112
    %v5385 = vpack.c.b16 %v5117, %v5113
    %v5386 = vpack.c.b16 %v5122, %v5118
    %v5387 = vpack.c.b16 %v5123, %v5119
    %v5388 = vpack.c.b16 %v5124, %v5120
    %v5389 = vpack.c.b16 %v5125, %v5121
    %v5390 = vpack.c.b16 %v5130, %v5126
    %v5391 = vpack.c.b16 %v5131, %v5127
    %v5392 = vpack.c.b16 %v5132, %v5128
    %v5393 = vpack.c.b16 %v5133, %v5129
    %v5394 = vpack.c.b16 %v5138, %v5134
    %v5395 = vpack.c.b16 %v5139, %v5135
    %v5396 = vpack.c.b16 %v5140, %v5136
    %v5397 = vpack.c.b16 %v5141, %v5137
    %v5398 = vpack.c.b16 %v5146, %v5142
    %v5399 = vpack.c.b16 %v5147, %v5143
    %v5400 = vpack.c.b16 %v5148, %v5144
    %v5401 = vpack.c.b16 %v5149, %v5145
    %v5402 = vpack.c.b16 %v5154, %v5150
    %v5403 = vpack.c.b16 %v5155, %v5151
    %v5404 = vpack.c.b16 %v5156, %v5152
    %v5405 = vpack.c.b16 %v5157, %v5153
    %v5406 = vpack.c.b16 %v5162, %v5158
    %v5407 = vpack.c.b16 %v5163, %v5159
    %v5408 = vpack.c.b16 %v5164, %v5160
    %v5409 = vpack.c.b16 %v5165, %v5161
    %v5410 = vpack.c.b16 %v5170, %v5166
    %v5411 = vpack.c.b16 %v5171, %v5167
    %v5412 = vpack.c.b16 %v5172, %v5168
    %v5413 = vpack.c.b16 %v5173, %v5169
    %v5414 = vpack.c.b16 %v5178, %v5174
    %v5415 = vpack.c.b16 %v5179, %v5175
    %v5416 = vpack.c.b16 %v5180, %v5176
    %v5417 = vpack.c.b16 %v5181, %v5177
    %v5418 = vpack.c.b16 %v5186, %v5182
    %v5419 = vpack.c.b16 %v5187, %v5183
    %v5420 = vpack.c.b16 %v5188, %v5184
    %v5421 = vpack.c.b16 %v5189, %v5185
    %v5422 = vpack.c.b16 %v5194, %v5190
    %v5423 = vpack.c.b16 %v5195, %v5191
    %v5424 = vpack.c.b16 %v5196, %v5192
    %v5425 = vpack.c.b16 %v5197, %v5193
    %v5426 = vpack.c.b16 %v5202, %v5198
    %v5427 = vpack.c.b16 %v5203, %v5199
    %v5428 = vpack.c.b16 %v5204, %v5200
    %v5429 = vpack.c.b16 %v5205, %v5201
    %v5430 = vpack.c.b16 %v5210, %v5206
    %v5431 = vpack.c.b16 %v5211, %v5207
    %v5432 = vpack.c.b16 %v5212, %v5208
    %v5433 = vpack.c.b16 %v5213, %v5209
    %v5434 = vpack.c.b16 %v5218, %v5214
    %v5435 = vpack.c.b16 %v5219, %v5215
    %v5436 = vpack.c.b16 %v5220, %v5216
    %v5437 = vpack.c.b16 %v5221, %v5217
    %v5438 = vpack.c.b16 %v5226, %v5222
    %v5439 = vpack.c.b16 %v5227, %v5223
    %v5440 = vpack.c.b16 %v5228, %v5224
    %v5441 = vpack.c.b16 %v5229, %v5225
    %v5442 = vpack.c.b16 %v5234, %v5230
    %v5443 = vpack.c.b16 %v5235, %v5231
    %v5444 = vpack.c.b16 %v5236, %v5232
    %v5445 = vpack.c.b16 %v5237, %v5233
    %v5446 = vpack.c.b16 %v5242, %v5238
    %v5447 = vpack.c.b16 %v5243, %v5239
    %v5448 = vpack.c.b16 %v5244, %v5240
    %v5449 = vpack.c.b16 %v5245, %v5241
    %v5450 = vpack.c.b16 %v5250, %v5246
    %v5451 = vpack.c.b16 %v5251, %v5247
    %v5452 = vpack.c.b16 %v5252, %v5248
    %v5453 = vpack.c.b16 %v5253, %v5249
    %v5454 = vpack.c.b16 %v5258, %v5254
    %v5455 = vpack.c.b16 %v5259, %v5255
    %v5456 = vpack.c.b16 %v5260, %v5256
    %v5457 = vpack.c.b16 %v5261, %v5257
    %v5458 = vpack.c.b16 %v5266, %v5262
    %v5459 = vpack.c.b16 %v5267, %v5263
    %v5460 = vpack.c.b16 %v5268, %v5264
    %v5461 = vpack.c.b16 %v5269, %v5265
    %v5462 = vpack.c.b16 %v5274, %v5270
    %v5463 = vpack.c.b16 %v5275, %v5271
    %v5464 = vpack.c.b16 %v5276, %v5272
    %v5465 = vpack.c.b16 %v5277, %v5273
    %v5466 = vpack.c.b16 %v5282, %v5278
    %v5467 = vpack.c.b16 %v5283, %v5279
    %v5468 = vpack.c.b16 %v5284, %v5280
    %v5469 = vpack.c.b16 %v5285, %v5281
    %v5470 = vpack.c.b16 %v5290, %v5286
    %v5471 = vpack.c.b16 %v5291, %v5287
    %v5472 = vpack.c.b16 %v5292, %v5288
    %v5473 = vpack.c.b16 %v5293, %v5289
    %v5474 = vpack.c.b16 %v5298, %v5294
    %v5475 = vpack.c.b16 %v5299, %v5295
    %v5476 = vpack.c.b16 %v5300, %v5296
    %v5477 = vpack.c.b16 %v5301, %v5297
    %v5478 = vpack.c.b16 %v5306, %v5302
    %v5479 = vpack.c.b16 %v5307, %v5303
    %v5480 = vpack.c.b16 %v5308, %v5304
    %v5481 = vpack.c.b16 %v5309, %v5305
    %v5482 = vpack.c.b16 %v5314, %v5310
    %v5483 = vpack.c.b16 %v5315, %v5311
    %v5484 = vpack.c.b16 %v5316, %v5312
    %v5485 = vpack.c.b16 %v5317, %v5313
    %v5486 = vpack.c.b16 %v5322, %v5318
    %v5487 = vpack.c.b16 %v5323, %v5319
    %v5488 = vpack.c.b16 %v5324, %v5320
    %v5489 = vpack.c.b16 %v5325, %v5321
    %v5490 = vpack.c.b16 %v5330, %v5326
    %v5491 = vpack.c.b16 %v5331, %v5327
    %v5492 = vpack.c.b16 %v5332, %v5328
    %v5493 = vpack.c.b16 %v5333, %v5329
    %v5494 = vpack.c.b16 %v5338, %v5334
    %v5495 = vpack.c.b16 %v5339, %v5335
    %v5496 = vpack.c.b16 %v5340, %v5336
    %v5497 = vpack.c.b16 %v5341, %v5337
    %v5498 = vpack.c.b16 %v5346, %v5342
    %v5499 = vpack.c.b16 %v5347, %v5343
    %v5500 = vpack.c.b16 %v5348, %v5344
    %v5501 = vpack.c.b16 %v5349, %v5345
    %v5502 = vpack.c.b16 %v5354, %v5350
    %v5503 = vpack.c.b16 %v5355, %v5351
    %v5504 = vpack.c.b16 %v5356, %v5352
    %v5505 = vpack.c.b16 %v5357, %v5353
    %v5506 = vpack.c.b16 %v5362, %v5358
    %v5507 = vpack.c.b16 %v5363, %v5359
    %v5508 = vpack.c.b16 %v5364, %v5360
    %v5509 = vpack.c.b16 %v5365, %v5361
    %v5510 = vpack.c.b16 %v5370, %v5366
    %v5511 = vpack.c.b16 %v5371, %v5367
    %v5512 = vpack.c.b16 %v5372, %v5368
    %v5513 = vpack.c.b16 %v5373, %v5369
    %v5514 = vpack.c.b16 %v5378, %v5374
    %v5515 = vpack.c.b16 %v5379, %v5375
    %v5516 = vpack.c.b16 %v5380, %v5376
    %v5517 = vpack.c.b16 %v5381, %v5377
    %v5655 = vsel %vm3260, %v4821, 0
    %v5658 = vsel %vm3260, %v4826, 0
    %v5661 = vsel %vm3260, %v4831, 0
    %v5664 = vsel %vm3260, %v4836, 0
    %5666 = vmatprep.subr.bf16.mxu0 %v5411
    %5667 = vmatpush1.bf16.msra.mxu0 %v5410
    %5668 = vmatprep.subr.bf16.mxu0 %v5407
    %5669 = vmatpush1.bf16.msra.mxu0 %v5406
    %5670 = vmatprep.subr.bf16.mxu0 %v5403
    %5671 = vmatpush1.bf16.msra.mxu0 %v5402
    %5672 = vmatprep.subr.bf16.mxu0 %v5399
    %5673 = vmatpush1.bf16.msra.mxu0 %v5398
    %5674 = vmatprep.subr.bf16.mxu0 %v5395
    %5675 = vmatpush1.bf16.msra.mxu0 %v5394
    %5676 = vmatprep.subr.bf16.mxu0 %v5391
    %5677 = vmatpush1.bf16.msra.mxu0 %v5390
    %5678 = vmatprep.subr.bf16.mxu0 %v5387
    %5679 = vmatpush1.bf16.msra.mxu0 %v5386
    %5680 = vmatprep.subr.bf16.mxu0 %v5383
    %5681 = vmatpush1.bf16.msra.mxu0 %v5382
    %5682 = vmatprep.subr.bf16.mxu0 %v5443
    %5683 = vmatpush2.bf16.msra.mxu0 %v5442
    %5684 = vmatprep.subr.bf16.mxu0 %v5439
    %5685 = vmatpush2.bf16.msra.mxu0 %v5438
    %5686 = vmatprep.subr.bf16.mxu0 %v5435
    %5687 = vmatpush2.bf16.msra.mxu0 %v5434
    %5688 = vmatprep.subr.bf16.mxu0 %v5431
    %5689 = vmatpush2.bf16.msra.mxu0 %v5430
    %5690 = vmatprep.subr.bf16.mxu0 %v5427
    %5691 = vmatpush2.bf16.msra.mxu0 %v5426
    %5692 = vmatprep.subr.bf16.mxu0 %v5423
    %5693 = vmatpush2.bf16.msra.mxu0 %v5422
    %5694 = vmatprep.subr.bf16.mxu0 %v5419
    %5695 = vmatpush2.bf16.msra.mxu0 %v5418
    %5696 = vmatprep.subr.bf16.mxu0 %v5415
    %5697 = vmatpush2.bf16.msra.mxu0 %v5414
    %5698 = vmatprep.mubr.bf16.mxu0 %v4818
    %5699 = vmatmul.mubr.bf16.gmra.mxu0 %v4817
    %v5700 = vpop.f32.mrf.mxu0
    %v5701 = vadd.f32 0.0, %v5700
    %v5702 = vpop.f32.mrf.mxu0
    %v5703 = vadd.f32 0.0, %v5702
    %v5704 = vpop.f32.mrf.mxu0
    %v5705 = vadd.f32 0.0, %v5704
    %v5706 = vpop.f32.mrf.mxu0
    %v5707 = vadd.f32 0.0, %v5706
    %5708 = vmatprep.mubr.bf16.mxu0 %v4823
    %5709 = vmatmul.mubr.bf16.gmra.mxu0 %v4822
    %v5710 = vpop.f32.mrf.mxu0
    %v5711 = vadd.f32 0.0, %v5710
    %v5712 = vpop.f32.mrf.mxu0
    %v5713 = vadd.f32 0.0, %v5712
    %v5714 = vpop.f32.mrf.mxu0
    %v5715 = vadd.f32 0.0, %v5714
    %v5716 = vpop.f32.mrf.mxu0
    %v5717 = vadd.f32 0.0, %v5716
    %5718 = vmatprep.mubr.bf16.mxu0 %v4828
    %5719 = vmatmul.mubr.bf16.gmra.mxu0 %v4827
    %v5720 = vpop.f32.mrf.mxu0
    %v5721 = vadd.f32 0.0, %v5720
    %v5722 = vpop.f32.mrf.mxu0
    %v5723 = vadd.f32 0.0, %v5722
    %v5724 = vpop.f32.mrf.mxu0
    %v5725 = vadd.f32 0.0, %v5724
    %v5726 = vpop.f32.mrf.mxu0
    %v5727 = vadd.f32 0.0, %v5726
    %5728 = vmatprep.mubr.bf16.mxu0 %v4833
    %5729 = vmatmul.mubr.bf16.gmra.mxu0 %v4832
    %v5730 = vpop.f32.mrf.mxu0
    %v5731 = vadd.f32 0.0, %v5730
    %v5732 = vpop.f32.mrf.mxu0
    %v5733 = vadd.f32 0.0, %v5732
    %v5734 = vpop.f32.mrf.mxu0
    %v5735 = vpop.f32.mrf.mxu0
    %5736 = vdwg.mxu0
    %5737 = vmatprep.subr.bf16.mxu0 %v5475
    %5738 = vmatpush1.bf16.msra.mxu0 %v5474
    %5739 = vmatprep.subr.bf16.mxu0 %v5471
    %5740 = vmatpush1.bf16.msra.mxu0 %v5470
    %5741 = vmatprep.subr.bf16.mxu0 %v5467
    %5742 = vmatpush1.bf16.msra.mxu0 %v5466
    %5743 = vmatprep.subr.bf16.mxu0 %v5463
    %5744 = vmatpush1.bf16.msra.mxu0 %v5462
    %5745 = vmatprep.subr.bf16.mxu0 %v5459
    %5746 = vmatpush1.bf16.msra.mxu0 %v5458
    %5747 = vmatprep.subr.bf16.mxu0 %v5455
    %5748 = vmatpush1.bf16.msra.mxu0 %v5454
    %5749 = vmatprep.subr.bf16.mxu0 %v5451
    %5750 = vmatpush1.bf16.msra.mxu0 %v5450
    %5751 = vmatprep.subr.bf16.mxu0 %v5447
    %5752 = vmatpush1.bf16.msra.mxu0 %v5446
    %5753 = vmatprep.subr.bf16.mxu0 %v5507
    %5754 = vmatpush2.bf16.msra.mxu0 %v5506
    %5755 = vmatprep.subr.bf16.mxu0 %v5503
    %5756 = vmatpush2.bf16.msra.mxu0 %v5502
    %5757 = vmatprep.subr.bf16.mxu0 %v5499
    %5758 = vmatpush2.bf16.msra.mxu0 %v5498
    %5759 = vmatprep.subr.bf16.mxu0 %v5495
    %5760 = vmatpush2.bf16.msra.mxu0 %v5494
    %5761 = vmatprep.subr.bf16.mxu0 %v5491
    %5762 = vmatpush2.bf16.msra.mxu0 %v5490
    %5763 = vmatprep.subr.bf16.mxu0 %v5487
    %5764 = vmatpush2.bf16.msra.mxu0 %v5486
    %5765 = vmatprep.subr.bf16.mxu0 %v5483
    %5766 = vmatpush2.bf16.msra.mxu0 %v5482
    %5767 = vmatprep.subr.bf16.mxu0 %v5479
    %5768 = vmatpush2.bf16.msra.mxu0 %v5478
    %5769 = vmatprep.mubr.bf16.mxu0 %v4820
    %5770 = vmatmul.mubr.bf16.gmra.mxu0 %v4819
    %v5771 = vpop.f32.mrf.mxu0
    %v5772 = vadd.f32 %v5701, %v5771
    %v5773 = vpop.f32.mrf.mxu0
    %v5774 = vadd.f32 %v5703, %v5773
    %v5775 = vpop.f32.mrf.mxu0
    %v5776 = vadd.f32 %v5705, %v5775
    %v5777 = vpop.f32.mrf.mxu0
    %v5778 = vadd.f32 %v5707, %v5777
    %5779 = vmatprep.mubr.bf16.mxu0 %v4825
    %5780 = vmatmul.mubr.bf16.gmra.mxu0 %v4824
    %v5781 = vpop.f32.mrf.mxu0
    %v5782 = vadd.f32 %v5711, %v5781
    %v5783 = vpop.f32.mrf.mxu0
    %v5784 = vadd.f32 %v5713, %v5783
    %v5785 = vpop.f32.mrf.mxu0
    %v5786 = vadd.f32 %v5715, %v5785
    %v5787 = vpop.f32.mrf.mxu0
    %v5788 = vadd.f32 %v5717, %v5787
    %5789 = vmatprep.mubr.bf16.mxu0 %v4830
    %5790 = vmatmul.mubr.bf16.gmra.mxu0 %v4829
    %v5791 = vpop.f32.mrf.mxu0
    %v5792 = vadd.f32 %v5721, %v5791
    %v5793 = vpop.f32.mrf.mxu0
    %v5794 = vadd.f32 %v5723, %v5793
    %v5795 = vpop.f32.mrf.mxu0
    %v5796 = vadd.f32 %v5725, %v5795
    %v5797 = vpop.f32.mrf.mxu0
    %v5798 = vadd.f32 %v5727, %v5797
    %5799 = vmatprep.mubr.bf16.mxu0 %v4835
    %5800 = vmatmul.mubr.bf16.gmra.mxu0 %v4834
    %v5801 = vpop.f32.mrf.mxu0
    %v5802 = vadd.f32 %v5731, %v5801
    %v5803 = vpop.f32.mrf.mxu0
    %v5804 = vadd.f32 %v5733, %v5803
    %v5805 = vpop.f32.mrf.mxu0
    %v5806 = vpop.f32.mrf.mxu0
    %5807 = vdwg.mxu0
    %5808 = vmatprep.subr.bf16.mxu0 0
    %5809 = vmatpush1.bf16.msra.mxu0 0
    %5810 = vmatprep.subr.bf16.mxu0 0
    %5811 = vmatpush1.bf16.msra.mxu0 0
    %5812 = vmatprep.subr.bf16.mxu0 0
    %5813 = vmatpush1.bf16.msra.mxu0 0
    %5814 = vmatprep.subr.bf16.mxu0 0
    %5815 = vmatpush1.bf16.msra.mxu0 0
    %5816 = vmatprep.subr.bf16.mxu0 0
    %5817 = vmatpush1.bf16.msra.mxu0 0
    %5818 = vmatprep.subr.bf16.mxu0 0
    %5819 = vmatpush1.bf16.msra.mxu0 0
    %5820 = vmatprep.subr.bf16.mxu0 %v5515
    %5821 = vmatpush1.bf16.msra.mxu0 %v5514
    %5822 = vmatprep.subr.bf16.mxu0 %v5511
    %5823 = vmatpush1.bf16.msra.mxu0 %v5510
    %5824 = vmatprep.subr.bf16.mxu0 0
    %5825 = vmatpush2.bf16.msra.mxu0 0
    %5826 = vmatprep.subr.bf16.mxu0 0
    %5827 = vmatpush2.bf16.msra.mxu0 0
    %5828 = vmatprep.subr.bf16.mxu0 0
    %5829 = vmatpush2.bf16.msra.mxu0 0
    %5830 = vmatprep.subr.bf16.mxu0 0
    %5831 = vmatpush2.bf16.msra.mxu0 0
    %5832 = vmatprep.subr.bf16.mxu0 0
    %5833 = vmatpush2.bf16.msra.mxu0 0
    %5834 = vmatprep.subr.bf16.mxu0 0
    %5835 = vmatpush2.bf16.msra.mxu0 0
    %5836 = vmatprep.subr.bf16.mxu0 0
    %5837 = vmatpush2.bf16.msra.mxu0 0
    %5838 = vmatprep.subr.bf16.mxu0 0
    %5839 = vmatpush2.bf16.msra.mxu0 0
    %5840 = vmatprep.mubr.bf16.mxu0 0
    %5841 = vmatmul.mubr.bf16.gmra.mxu0 %v5655
    %v5842 = vpop.f32.mrf.mxu0
    %v5843 = vadd.f32 %v5772, %v5842
    %v5844 = vpop.f32.mrf.mxu0
    %v5845 = vadd.f32 %v5774, %v5844
    %v5846 = vpop.f32.mrf.mxu0
    %v5847 = vadd.f32 %v5776, %v5846
    %v5848 = vpop.f32.mrf.mxu0
    %v5849 = vadd.f32 %v5778, %v5848
    %5850 = vmatprep.mubr.bf16.mxu0 0
    %5851 = vmatmul.mubr.bf16.gmra.mxu0 %v5658
    %v5852 = vpop.f32.mrf.mxu0
    %v5853 = vadd.f32 %v5782, %v5852
    %v5854 = vpop.f32.mrf.mxu0
    %v5855 = vadd.f32 %v5784, %v5854
    %v5856 = vpop.f32.mrf.mxu0
    %v5857 = vadd.f32 %v5786, %v5856
    %v5858 = vpop.f32.mrf.mxu0
    %v5859 = vadd.f32 %v5788, %v5858
    %5860 = vmatprep.mubr.bf16.mxu0 0
    %5861 = vmatmul.mubr.bf16.gmra.mxu0 %v5661
    %v5862 = vpop.f32.mrf.mxu0
    %v5863 = vadd.f32 %v5792, %v5862
    %v5864 = vpop.f32.mrf.mxu0
    %v5865 = vadd.f32 %v5794, %v5864
    %v5866 = vpop.f32.mrf.mxu0
    %v5867 = vadd.f32 %v5796, %v5866
    %v5868 = vpop.f32.mrf.mxu0
    %v5869 = vadd.f32 %v5798, %v5868
    %5870 = vmatprep.mubr.bf16.mxu0 0
    %5871 = vmatmul.mubr.bf16.gmra.mxu0 %v5664
    %v5872 = vpop.f32.mrf.mxu0
    %v5873 = vadd.f32 %v5802, %v5872
    %v5874 = vpop.f32.mrf.mxu0
    %v5875 = vadd.f32 %v5804, %v5874
    %v5876 = vpop.f32.mrf.mxu0
    %v5877 = vpop.f32.mrf.mxu0
    %5878 = vdwg.mxu0
    %5879 = vmatprep.subr.bf16.mxu0 %v5413
    %5880 = vmatpush1.bf16.msra.mxu0 %v5412
    %5881 = vmatprep.subr.bf16.mxu0 %v5409
    %5882 = vmatpush1.bf16.msra.mxu0 %v5408
    %5883 = vmatprep.subr.bf16.mxu0 %v5405
    %5884 = vmatpush1.bf16.msra.mxu0 %v5404
    %5885 = vmatprep.subr.bf16.mxu0 %v5401
    %5886 = vmatpush1.bf16.msra.mxu0 %v5400
    %5887 = vmatprep.subr.bf16.mxu0 %v5397
    %5888 = vmatpush1.bf16.msra.mxu0 %v5396
    %5889 = vmatprep.subr.bf16.mxu0 %v5393
    %5890 = vmatpush1.bf16.msra.mxu0 %v5392
    %5891 = vmatprep.subr.bf16.mxu0 %v5389
    %5892 = vmatpush1.bf16.msra.mxu0 %v5388
    %5893 = vmatprep.subr.bf16.mxu0 %v5385
    %5894 = vmatpush1.bf16.msra.mxu0 %v5384
    %5895 = vmatprep.subr.bf16.mxu0 %v5445
    %5896 = vmatpush2.bf16.msra.mxu0 %v5444
    %5897 = vmatprep.subr.bf16.mxu0 %v5441
    %5898 = vmatpush2.bf16.msra.mxu0 %v5440
    %5899 = vmatprep.subr.bf16.mxu0 %v5437
    %5900 = vmatpush2.bf16.msra.mxu0 %v5436
    %5901 = vmatprep.subr.bf16.mxu0 %v5433
    %5902 = vmatpush2.bf16.msra.mxu0 %v5432
    %5903 = vmatprep.subr.bf16.mxu0 %v5429
    %5904 = vmatpush2.bf16.msra.mxu0 %v5428
    %5905 = vmatprep.subr.bf16.mxu0 %v5425
    %5906 = vmatpush2.bf16.msra.mxu0 %v5424
    %5907 = vmatprep.subr.bf16.mxu0 %v5421
    %5908 = vmatpush2.bf16.msra.mxu0 %v5420
    %5909 = vmatprep.subr.bf16.mxu0 %v5417
    %5910 = vmatpush2.bf16.msra.mxu0 %v5416
    %5911 = vmatprep.mubr.bf16.mxu0 %v4818
    %5912 = vmatmul.mubr.bf16.gmra.mxu0 %v4817
    %v5913 = vpop.f32.mrf.mxu0
    %v5914 = vadd.f32 0.0, %v5913
    %v5915 = vpop.f32.mrf.mxu0
    %v5916 = vadd.f32 0.0, %v5915
    %v5917 = vpop.f32.mrf.mxu0
    %v5918 = vadd.f32 0.0, %v5917
    %v5919 = vpop.f32.mrf.mxu0
    %v5920 = vadd.f32 0.0, %v5919
    %5921 = vmatprep.mubr.bf16.mxu0 %v4823
    %5922 = vmatmul.mubr.bf16.gmra.mxu0 %v4822
    %v5923 = vpop.f32.mrf.mxu0
    %v5924 = vadd.f32 0.0, %v5923
    %v5925 = vpop.f32.mrf.mxu0
    %v5926 = vadd.f32 0.0, %v5925
    %v5927 = vpop.f32.mrf.mxu0
    %v5928 = vadd.f32 0.0, %v5927
    %v5929 = vpop.f32.mrf.mxu0
    %v5930 = vadd.f32 0.0, %v5929
    %5931 = vmatprep.mubr.bf16.mxu0 %v4828
    %5932 = vmatmul.mubr.bf16.gmra.mxu0 %v4827
    %v5933 = vpop.f32.mrf.mxu0
    %v5934 = vadd.f32 0.0, %v5933
    %v5935 = vpop.f32.mrf.mxu0
    %v5936 = vadd.f32 0.0, %v5935
    %v5937 = vpop.f32.mrf.mxu0
    %v5938 = vadd.f32 0.0, %v5937
    %v5939 = vpop.f32.mrf.mxu0
    %v5940 = vadd.f32 0.0, %v5939
    %5941 = vmatprep.mubr.bf16.mxu0 %v4833
    %5942 = vmatmul.mubr.bf16.gmra.mxu0 %v4832
    %v5943 = vpop.f32.mrf.mxu0
    %v5944 = vadd.f32 0.0, %v5943
    %v5945 = vpop.f32.mrf.mxu0
    %v5946 = vadd.f32 0.0, %v5945
    %v5947 = vpop.f32.mrf.mxu0
    %v5948 = vpop.f32.mrf.mxu0
    %5949 = vdwg.mxu0
    %5950 = vmatprep.subr.bf16.mxu0 %v5477
    %5951 = vmatpush1.bf16.msra.mxu0 %v5476
    %5952 = vmatprep.subr.bf16.mxu0 %v5473
    %5953 = vmatpush1.bf16.msra.mxu0 %v5472
    %5954 = vmatprep.subr.bf16.mxu0 %v5469
    %5955 = vmatpush1.bf16.msra.mxu0 %v5468
    %5956 = vmatprep.subr.bf16.mxu0 %v5465
    %5957 = vmatpush1.bf16.msra.mxu0 %v5464
    %5958 = vmatprep.subr.bf16.mxu0 %v5461
    %5959 = vmatpush1.bf16.msra.mxu0 %v5460
    %5960 = vmatprep.subr.bf16.mxu0 %v5457
    %5961 = vmatpush1.bf16.msra.mxu0 %v5456
    %5962 = vmatprep.subr.bf16.mxu0 %v5453
    %5963 = vmatpush1.bf16.msra.mxu0 %v5452
    %5964 = vmatprep.subr.bf16.mxu0 %v5449
    %5965 = vmatpush1.bf16.msra.mxu0 %v5448
    %5966 = vmatprep.subr.bf16.mxu0 %v5509
    %5967 = vmatpush2.bf16.msra.mxu0 %v5508
    %5968 = vmatprep.subr.bf16.mxu0 %v5505
    %5969 = vmatpush2.bf16.msra.mxu0 %v5504
    %5970 = vmatprep.subr.bf16.mxu0 %v5501
    %5971 = vmatpush2.bf16.msra.mxu0 %v5500
    %5972 = vmatprep.subr.bf16.mxu0 %v5497
    %5973 = vmatpush2.bf16.msra.mxu0 %v5496
    %5974 = vmatprep.subr.bf16.mxu0 %v5493
    %5975 = vmatpush2.bf16.msra.mxu0 %v5492
    %5976 = vmatprep.subr.bf16.mxu0 %v5489
    %5977 = vmatpush2.bf16.msra.mxu0 %v5488
    %5978 = vmatprep.subr.bf16.mxu0 %v5485
    %5979 = vmatpush2.bf16.msra.mxu0 %v5484
    %5980 = vmatprep.subr.bf16.mxu0 %v5481
    %5981 = vmatpush2.bf16.msra.mxu0 %v5480
    %5982 = vmatprep.mubr.bf16.mxu0 %v4820
    %5983 = vmatmul.mubr.bf16.gmra.mxu0 %v4819
    %v5984 = vpop.f32.mrf.mxu0
    %v5985 = vadd.f32 %v5914, %v5984
    %v5986 = vpop.f32.mrf.mxu0
    %v5987 = vadd.f32 %v5916, %v5986
    %v5988 = vpop.f32.mrf.mxu0
    %v5989 = vadd.f32 %v5918, %v5988
    %v5990 = vpop.f32.mrf.mxu0
    %v5991 = vadd.f32 %v5920, %v5990
    %5992 = vmatprep.mubr.bf16.mxu0 %v4825
    %5993 = vmatmul.mubr.bf16.gmra.mxu0 %v4824
    %v5994 = vpop.f32.mrf.mxu0
    %v5995 = vadd.f32 %v5924, %v5994
    %v5996 = vpop.f32.mrf.mxu0
    %v5997 = vadd.f32 %v5926, %v5996
    %v5998 = vpop.f32.mrf.mxu0
    %v5999 = vadd.f32 %v5928, %v5998
    %v6000 = vpop.f32.mrf.mxu0
    %v6001 = vadd.f32 %v5930, %v6000
    %6002 = vmatprep.mubr.bf16.mxu0 %v4830
    %6003 = vmatmul.mubr.bf16.gmra.mxu0 %v4829
    %v6004 = vpop.f32.mrf.mxu0
    %v6005 = vadd.f32 %v5934, %v6004
    %v6006 = vpop.f32.mrf.mxu0
    %v6007 = vadd.f32 %v5936, %v6006
    %v6008 = vpop.f32.mrf.mxu0
    %v6009 = vadd.f32 %v5938, %v6008
    %v6010 = vpop.f32.mrf.mxu0
    %v6011 = vadd.f32 %v5940, %v6010
    %6012 = vmatprep.mubr.bf16.mxu0 %v4835
    %6013 = vmatmul.mubr.bf16.gmra.mxu0 %v4834
    %v6014 = vpop.f32.mrf.mxu0
    %v6015 = vadd.f32 %v5944, %v6014
    %v6016 = vpop.f32.mrf.mxu0
    %v6017 = vadd.f32 %v5946, %v6016
    %v6018 = vpop.f32.mrf.mxu0
    %v6019 = vpop.f32.mrf.mxu0
    %6020 = vdwg.mxu0
    %6021 = vmatprep.subr.bf16.mxu0 0
    %6022 = vmatpush1.bf16.msra.mxu0 0
    %6023 = vmatprep.subr.bf16.mxu0 0
    %6024 = vmatpush1.bf16.msra.mxu0 0
    %6025 = vmatprep.subr.bf16.mxu0 0
    %6026 = vmatpush1.bf16.msra.mxu0 0
    %6027 = vmatprep.subr.bf16.mxu0 0
    %6028 = vmatpush1.bf16.msra.mxu0 0
    %6029 = vmatprep.subr.bf16.mxu0 0
    %6030 = vmatpush1.bf16.msra.mxu0 0
    %6031 = vmatprep.subr.bf16.mxu0 0
    %6032 = vmatpush1.bf16.msra.mxu0 0
    %6033 = vmatprep.subr.bf16.mxu0 %v5517
    %6034 = vmatpush1.bf16.msra.mxu0 %v5516
    %6035 = vmatprep.subr.bf16.mxu0 %v5513
    %6036 = vmatpush1.bf16.msra.mxu0 %v5512
    %6037 = vmatprep.subr.bf16.mxu0 0
    %6038 = vmatpush2.bf16.msra.mxu0 0
    %6039 = vmatprep.subr.bf16.mxu0 0
    %6040 = vmatpush2.bf16.msra.mxu0 0
    %6041 = vmatprep.subr.bf16.mxu0 0
    %6042 = vmatpush2.bf16.msra.mxu0 0
    %6043 = vmatprep.subr.bf16.mxu0 0
    %6044 = vmatpush2.bf16.msra.mxu0 0
    %6045 = vmatprep.subr.bf16.mxu0 0
    %6046 = vmatpush2.bf16.msra.mxu0 0
    %6047 = vmatprep.subr.bf16.mxu0 0
    %6048 = vmatpush2.bf16.msra.mxu0 0
    %6049 = vmatprep.subr.bf16.mxu0 0
    %6050 = vmatpush2.bf16.msra.mxu0 0
    %6051 = vmatprep.subr.bf16.mxu0 0
    %6052 = vmatpush2.bf16.msra.mxu0 0
    %6053 = vmatprep.mubr.bf16.mxu0 0
    %6054 = vmatmul.mubr.bf16.gmra.mxu0 %v5655
    %v6055 = vpop.f32.mrf.mxu0
    %v6056 = vadd.f32 %v5985, %v6055
    %v6057 = vpop.f32.mrf.mxu0
    %v6058 = vadd.f32 %v5987, %v6057
    %v6059 = vpop.f32.mrf.mxu0
    %v6060 = vadd.f32 %v5989, %v6059
    %v6061 = vpop.f32.mrf.mxu0
    %v6062 = vadd.f32 %v5991, %v6061
    %6063 = vmatprep.mubr.bf16.mxu0 0
    %6064 = vmatmul.mubr.bf16.gmra.mxu0 %v5658
    %v6065 = vpop.f32.mrf.mxu0
    %v6066 = vadd.f32 %v5995, %v6065
    %v6067 = vpop.f32.mrf.mxu0
    %v6068 = vadd.f32 %v5997, %v6067
    %v6069 = vpop.f32.mrf.mxu0
    %v6070 = vadd.f32 %v5999, %v6069
    %v6071 = vpop.f32.mrf.mxu0
    %v6072 = vadd.f32 %v6001, %v6071
    %6073 = vmatprep.mubr.bf16.mxu0 0
    %6074 = vmatmul.mubr.bf16.gmra.mxu0 %v5661
    %v6075 = vpop.f32.mrf.mxu0
    %v6076 = vadd.f32 %v6005, %v6075
    %v6077 = vpop.f32.mrf.mxu0
    %v6078 = vadd.f32 %v6007, %v6077
    %v6079 = vpop.f32.mrf.mxu0
    %v6080 = vadd.f32 %v6009, %v6079
    %v6081 = vpop.f32.mrf.mxu0
    %v6082 = vadd.f32 %v6011, %v6081
    %6083 = vmatprep.mubr.bf16.mxu0 0
    %6084 = vmatmul.mubr.bf16.gmra.mxu0 %v5664
    %v6085 = vpop.f32.mrf.mxu0
    %v6086 = vadd.f32 %v6015, %v6085
    %v6087 = vpop.f32.mrf.mxu0
    %v6088 = vadd.f32 %v6017, %v6087
    %v6089 = vpop.f32.mrf.mxu0
    %v6090 = vpop.f32.mrf.mxu0
    %6091 = vdwg.mxu0
    %v6092 = vadd.f32 %v4568, %v5843
    %v6093 = vadd.f32 %v4570, %v5845
    %v6094 = vadd.f32 %v4781, %v6056
    %v6095 = vadd.f32 %v4783, %v6058
    %v6096 = vadd.f32 %v4572, %v5847
    %v6097 = vadd.f32 %v4574, %v5849
    %v6098 = vadd.f32 %v4785, %v6060
    %v6099 = vadd.f32 %v4787, %v6062
    %v6100 = vadd.f32 %v4578, %v5853
    %v6101 = vadd.f32 %v4580, %v5855
    %v6102 = vadd.f32 %v4791, %v6066
    %v6103 = vadd.f32 %v4793, %v6068
    %v6104 = vadd.f32 %v4582, %v5857
    %v6105 = vadd.f32 %v4584, %v5859
    %v6106 = vadd.f32 %v4795, %v6070
    %v6107 = vadd.f32 %v4797, %v6072
    %v6108 = vadd.f32 %v4588, %v5863
    %v6109 = vadd.f32 %v4590, %v5865
    %v6110 = vadd.f32 %v4801, %v6076
    %v6111 = vadd.f32 %v4803, %v6078
    %v6112 = vadd.f32 %v4592, %v5867
    %v6113 = vadd.f32 %v4594, %v5869
    %v6114 = vadd.f32 %v4805, %v6080
    %v6115 = vadd.f32 %v4807, %v6082
    %v6116 = vadd.f32 %v4598, %v5873
    %v6117 = vadd.f32 %v4600, %v5875
    %v6118 = vadd.f32 %v4811, %v6086
    %v6119 = vadd.f32 %v4813, %v6088
    %v6120 = vld [vmem:[#allocation6] sm:$0xf]
    %v6122 = vlaneseq
    %v6123 = vshrl.u32 %v6122, 7
    %v6124 = vsub.s32 0, %v6123
    %v6125 = vrot.slane %v6120, %v6124
    %v6126 = vlaneseq
    %v6127 = vshrl.u32 %v6126, 7
    %v6128 = vsub.s32 1, %v6127
    %v6129 = vrot.slane %v6120, %v6128
    %v6130 = vlaneseq
    %v6131 = vshrl.u32 %v6130, 7
    %v6132 = vsub.s32 2, %v6131
    %v6133 = vrot.slane %v6120, %v6132
    %v6134 = vlaneseq
    %v6135 = vshrl.u32 %v6134, 7
    %v6136 = vsub.s32 3, %v6135
    %v6137 = vrot.slane %v6120, %v6136
    %v6142 = vadd.f32 %v6092, %v6125
    %v6143 = vadd.f32 %v6093, %v6129
    %v6144 = vadd.f32 %v6094, %v6133
    %v6145 = vadd.f32 %v6095, %v6137
    %v6146 = vadd.f32 %v6096, %v6125
    %v6147 = vadd.f32 %v6097, %v6129
    %v6148 = vadd.f32 %v6098, %v6133
    %v6149 = vadd.f32 %v6099, %v6137
    %v6150 = vadd.f32 %v6100, %v6125
    %v6151 = vadd.f32 %v6101, %v6129
    %v6152 = vadd.f32 %v6102, %v6133
    %v6153 = vadd.f32 %v6103, %v6137
    %v6154 = vadd.f32 %v6104, %v6125
    %v6155 = vadd.f32 %v6105, %v6129
    %v6156 = vadd.f32 %v6106, %v6133
    %v6157 = vadd.f32 %v6107, %v6137
    %v6158 = vadd.f32 %v6108, %v6125
    %v6159 = vadd.f32 %v6109, %v6129
    %v6160 = vadd.f32 %v6110, %v6133
    %v6161 = vadd.f32 %v6111, %v6137
    %v6162 = vadd.f32 %v6112, %v6125
    %v6163 = vadd.f32 %v6113, %v6129
    %v6164 = vadd.f32 %v6114, %v6133
    %v6165 = vadd.f32 %v6115, %v6137
    %v6166 = vadd.f32 %v6116, %v6125
    %v6167 = vadd.f32 %v6117, %v6129
    %v6168 = vadd.f32 %v6118, %v6133
    %v6169 = vadd.f32 %v6119, %v6137
    %v6170 = vmax.f32 %v6142, 0.0
    %v6171 = vmax.f32 %v6143, 0.0
    %v6172 = vmax.f32 %v6144, 0.0
    %v6173 = vmax.f32 %v6145, 0.0
    %v6174 = vmax.f32 %v6146, 0.0
    %v6175 = vmax.f32 %v6147, 0.0
    %v6176 = vmax.f32 %v6148, 0.0
    %v6177 = vmax.f32 %v6149, 0.0
    %v6178 = vmax.f32 %v6150, 0.0
    %v6179 = vmax.f32 %v6151, 0.0
    %v6180 = vmax.f32 %v6152, 0.0
    %v6181 = vmax.f32 %v6153, 0.0
    %v6182 = vmax.f32 %v6154, 0.0
    %v6183 = vmax.f32 %v6155, 0.0
    %v6184 = vmax.f32 %v6156, 0.0
    %v6185 = vmax.f32 %v6157, 0.0
    %v6186 = vmax.f32 %v6158, 0.0
    %v6187 = vmax.f32 %v6159, 0.0
    %v6188 = vmax.f32 %v6160, 0.0
    %v6189 = vmax.f32 %v6161, 0.0
    %v6190 = vmax.f32 %v6162, 0.0
    %v6191 = vmax.f32 %v6163, 0.0
    %v6192 = vmax.f32 %v6164, 0.0
    %v6193 = vmax.f32 %v6165, 0.0
    %v6194 = vmax.f32 %v6166, 0.0
    %v6195 = vmax.f32 %v6167, 0.0
    %v6196 = vmax.f32 %v6168, 0.0
    %v6197 = vmax.f32 %v6169, 0.0
    %v6198 = vpack.c.bf16 %v6178, %v6170
    %v6199 = vpack.c.bf16 %v6179, %v6171
    %v6200 = vpack.c.bf16 %v6180, %v6172
    %v6201 = vpack.c.bf16 %v6181, %v6173
    %v6202 = vpack.c.bf16 %v6186, %v6186
    %v6203 = vpack.c.bf16 %v6187, %v6187
    %v6204 = vpack.c.bf16 %v6188, %v6188
    %v6205 = vpack.c.bf16 %v6189, %v6189
    %v6206 = vld [vmem:[%s5] sm:$0xff]
    %v6207 = vld [vmem:[%s5 + $0x8] sm:$0xf]
    %v6208 = vld [vmem:[%s5 + $0xc] sm:$0xff]
    %v6209 = vld [vmem:[%s5 + $0x14] sm:$0xf]
    %v6210 = vld [vmem:[%s5 + $0x18] sm:$0xff]
    %v6211 = vld [vmem:[%s5 + $0x20] sm:$0xf]
    %v6212 = vld [vmem:[%s5 + $0x24] sm:$0xff]
    %v6213 = vld [vmem:[%s5 + $0x2c] sm:$0xf]
    %v6214 = vld [vmem:[%s5 + $0x30] sm:$0xff]
    %v6215 = vld [vmem:[%s5 + $0x38] sm:$0xf]
    %v6216 = vld [vmem:[%s5 + $0x3c] sm:$0xff]
    %v6217 = vld [vmem:[%s5 + $0x44] sm:$0xf]
    %v6218 = vld [vmem:[%s5 + $0x48] sm:$0xff]
    %v6219 = vld [vmem:[%s5 + $0x50] sm:$0xf]
    %v6220 = vld [vmem:[%s5 + $0x54] sm:$0xff]
    %v6221 = vld [vmem:[%s5 + $0x5c] sm:$0xf]
    %v6222 = vld [vmem:[%s5 + $0x60] sm:$0xff]
    %v6223 = vld [vmem:[%s5 + $0x68] sm:$0xf]
    %v6224 = vld [vmem:[%s5 + $0x6c] sm:$0xff]
    %v6225 = vld [vmem:[%s5 + $0x74] sm:$0xf]
    %v6226 = vld [vmem:[%s5 + $0x78] sm:$0xff]
    %v6227 = vld [vmem:[%s5 + $0x80] sm:$0xf]
    %v6228 = vld [vmem:[%s5 + $0x84] sm:$0xff]
    %v6229 = vld [vmem:[%s5 + $0x8c] sm:$0xf]
    %v6230 = vld [vmem:[%s5 + $0x90] sm:$0xff]
    %v6231 = vld [vmem:[%s5 + $0x98] sm:$0xf]
    %v6232 = vld [vmem:[%s5 + $0x9c] sm:$0xff]
    %v6233 = vld [vmem:[%s5 + $0xa4] sm:$0xf]
    %v6234 = vld [vmem:[%s5 + $0xa8] sm:$0xff]
    %v6235 = vld [vmem:[%s5 + $0xb0] sm:$0xf]
    %v6236 = vld [vmem:[%s5 + $0xb4] sm:$0xff]
    %v6237 = vld [vmem:[%s5 + $0xbc] sm:$0xf]
    %v6238 = vld [vmem:[%s5 + $0xc0] sm:$0xff]
    %v6239 = vld [vmem:[%s5 + $0xc8] sm:$0xf]
    %v6240 = vld [vmem:[%s5 + $0xcc] sm:$0xff]
    %v6241 = vld [vmem:[%s5 + $0xd4] sm:$0xf]
    %v6242 = vld [vmem:[%s5 + $0xd8] sm:$0xff]
    %v6243 = vld [vmem:[%s5 + $0xe0] sm:$0xf]
    %v6244 = vld [vmem:[%s5 + $0xe4] sm:$0xff]
    %v6245 = vld [vmem:[%s5 + $0xec] sm:$0xf]
    %v6246 = vld [vmem:[%s5 + $0xf0] sm:$0xff]
    %v6247 = vld [vmem:[%s5 + $0xf8] sm:$0xf]
    %v6248 = vld [vmem:[%s5 + $0xfc] sm:$0xff]
    %v6249 = vld [vmem:[%s5 + $0x104] sm:$0xf]
    %v6250 = vld [vmem:[%s5 + $0x108] sm:$0xff]
    %v6251 = vld [vmem:[%s5 + $0x110] sm:$0xf]
    %v6252 = vld [vmem:[%s5 + $0x114] sm:$0xff]
    %v6253 = vld [vmem:[%s5 + $0x11c] sm:$0xf]
    %v6254 = vld [vmem:[%s5 + $0x120] sm:$0xff]
    %v6255 = vld [vmem:[%s5 + $0x128] sm:$0xf]
    %v6256 = vld [vmem:[%s5 + $0x12c] sm:$0xff]
    %v6257 = vld [vmem:[%s5 + $0x134] sm:$0xf]
    %v6258 = vld [vmem:[%s5 + $0x138] sm:$0xff]
    %v6259 = vld [vmem:[%s5 + $0x140] sm:$0xf]
    %v6260 = vld [vmem:[%s5 + $0x144] sm:$0xff]
    %v6261 = vld [vmem:[%s5 + $0x14c] sm:$0xf]
    %v6262 = vld [vmem:[%s5 + $0x150] sm:$0xff]
    %v6263 = vld [vmem:[%s5 + $0x158] sm:$0xf]
    %v6264 = vld [vmem:[%s5 + $0x15c] sm:$0xff]
    %v6265 = vld [vmem:[%s5 + $0x164] sm:$0xf]
    %v6266 = vld [vmem:[%s5 + $0x168] sm:$0xff]
    %v6267 = vld [vmem:[%s5 + $0x170] sm:$0xf]
    %v6268 = vld [vmem:[%s5 + $0x174] sm:$0xff]
    %v6269 = vld [vmem:[%s5 + $0x17c] sm:$0xf]
    %v6270 = vld [vmem:[%s5 + $0x180] sm:$0xff]
    %v6271 = vld [vmem:[%s5 + $0x188] sm:$0xf]
    %v6272 = vld [vmem:[%s5 + $0x18c] sm:$0xff]
    %v6273 = vld [vmem:[%s5 + $0x194] sm:$0xf]
    %v6274 = vld [vmem:[%s5 + $0x198] sm:$0xff]
    %v6275 = vld [vmem:[%s5 + $0x1a0] sm:$0xf]
    %v6276 = vld [vmem:[%s5 + $0x1a4] sm:$0xff]
    %v6277 = vld [vmem:[%s5 + $0x1ac] sm:$0xf]
    %v6278 = vld [vmem:[%s5 + $0x1b0] sm:$0xff]
    %v6279 = vld [vmem:[%s5 + $0x1b8] sm:$0xf]
    %v6280 = vld [vmem:[%s5 + $0x1bc] sm:$0xff]
    %v6281 = vld [vmem:[%s5 + $0x1c4] sm:$0xf]
    %v6282 = vld [vmem:[%s5 + $0x1c8] sm:$0xff]
    %v6283 = vld [vmem:[%s5 + $0x1d0] sm:$0xf]
    %v6284 = vld [vmem:[%s5 + $0x1d4] sm:$0xff]
    %v6285 = vld [vmem:[%s5 + $0x1dc] sm:$0xf]
    %v6286 = vld [vmem:[%s5 + $0x1e0] sm:$0xff]
    %v6287 = vld [vmem:[%s5 + $0x1e8] sm:$0xf]
    %v6288 = vld [vmem:[%s5 + $0x1ec] sm:$0xff]
    %v6289 = vld [vmem:[%s5 + $0x1f4] sm:$0xf]
    %v6290 = vld [vmem:[%s5 + $0x1f8] sm:$0xff]
    %v6291 = vld [vmem:[%s5 + $0x200] sm:$0xf]
    %v6292 = vld [vmem:[%s5 + $0x204] sm:$0xff]
    %v6293 = vld [vmem:[%s5 + $0x20c] sm:$0xf]
    %v6294 = vld [vmem:[%s5 + $0x210] sm:$0xff]
    %v6295 = vld [vmem:[%s5 + $0x218] sm:$0xf]
    %v6296 = vld [vmem:[%s5 + $0x21c] sm:$0xff]
    %v6297 = vld [vmem:[%s5 + $0x224] sm:$0xf]
    %v6298 = vld [vmem:[%s5 + $0x228] sm:$0xff]
    %v6299 = vld [vmem:[%s5 + $0x230] sm:$0xf]
    %v6300 = vld [vmem:[%s5 + $0x234] sm:$0xff]
    %v6301 = vld [vmem:[%s5 + $0x23c] sm:$0xf]
    %v6302 = vld [vmem:[%s5 + $0x240] sm:$0xff]
    %v6303 = vld [vmem:[%s5 + $0x248] sm:$0xf]
    %v6304 = vld [vmem:[%s5 + $0x24c] sm:$0xff]
    %v6305 = vld [vmem:[%s5 + $0x254] sm:$0xf]
    %v6306 = vld [vmem:[%s5 + $0x258] sm:$0xff]
    %v6307 = vld [vmem:[%s5 + $0x260] sm:$0xf]
    %v6308 = vld [vmem:[%s5 + $0x264] sm:$0xff]
    %v6309 = vld [vmem:[%s5 + $0x26c] sm:$0xf]
    %v6310 = vld [vmem:[%s5 + $0x270] sm:$0xff]
    %v6311 = vld [vmem:[%s5 + $0x278] sm:$0xf]
    %v6312 = vld [vmem:[%s5 + $0x27c] sm:$0xff]
    %v6313 = vld [vmem:[%s5 + $0x284] sm:$0xf]
    %v6314 = vld [vmem:[%s5 + $0x288] sm:$0xff]
    %v6315 = vld [vmem:[%s5 + $0x290] sm:$0xf]
    %v6316 = vld [vmem:[%s5 + $0x294] sm:$0xff]
    %v6317 = vld [vmem:[%s5 + $0x29c] sm:$0xf]
    %v6318 = vld [vmem:[%s5 + $0x2a0] sm:$0xff]
    %v6319 = vld [vmem:[%s5 + $0x2a8] sm:$0xf]
    %v6320 = vld [vmem:[%s5 + $0x2ac] sm:$0xff]
    %v6321 = vld [vmem:[%s5 + $0x2b4] sm:$0xf]
    %v6322 = vld [vmem:[%s5 + $0x2b8] sm:$0xff]
    %v6323 = vld [vmem:[%s5 + $0x2c0] sm:$0xf]
    %v6324 = vld [vmem:[%s5 + $0x2c4] sm:$0xff]
    %v6325 = vld [vmem:[%s5 + $0x2cc] sm:$0xf]
    %v6326 = vld [vmem:[%s5 + $0x2d0] sm:$0xff]
    %v6327 = vld [vmem:[%s5 + $0x2d8] sm:$0xf]
    %v6328 = vld [vmem:[%s5 + $0x2dc] sm:$0xff]
    %v6329 = vld [vmem:[%s5 + $0x2e4] sm:$0xf]
    %v6330 = vld [vmem:[%s5 + $0x2e8] sm:$0xff]
    %v6331 = vld [vmem:[%s5 + $0x2f0] sm:$0xf]
    %v6332 = vld [vmem:[%s5 + $0x2f4] sm:$0xff]
    %v6333 = vld [vmem:[%s5 + $0x2fc] sm:$0xf]
    %v6334 = vpack.c.bf16 %v6182, %v6174
    %v6335 = vpack.c.bf16 %v6183, %v6175
    %v6336 = vpack.c.bf16 %v6184, %v6176
    %v6337 = vpack.c.bf16 %v6185, %v6177
    %v6338 = vpack.c.bf16 %v6190, %v6190
    %v6339 = vpack.c.bf16 %v6191, %v6191
    %v6340 = vpack.c.bf16 %v6192, %v6192
    %v6341 = vpack.c.bf16 %v6193, %v6193
    %s6342 = scalar_lea.vmem %s5, 768
    %v6343 = vld [vmem:[%s6342] sm:$0xff]
    %v6344 = vld [vmem:[%s6342 + $0x8] sm:$0xf]
    %v6345 = vld [vmem:[%s6342 + $0xc] sm:$0xff]
    %v6346 = vld [vmem:[%s6342 + $0x14] sm:$0xf]
    %v6347 = vld [vmem:[%s6342 + $0x18] sm:$0xff]
    %v6348 = vld [vmem:[%s6342 + $0x20] sm:$0xf]
    %v6349 = vld [vmem:[%s6342 + $0x24] sm:$0xff]
    %v6350 = vld [vmem:[%s6342 + $0x2c] sm:$0xf]
    %v6351 = vld [vmem:[%s6342 + $0x30] sm:$0xff]
    %v6352 = vld [vmem:[%s6342 + $0x38] sm:$0xf]
    %v6353 = vld [vmem:[%s6342 + $0x3c] sm:$0xff]
    %v6354 = vld [vmem:[%s6342 + $0x44] sm:$0xf]
    %v6355 = vld [vmem:[%s6342 + $0x48] sm:$0xff]
    %v6356 = vld [vmem:[%s6342 + $0x50] sm:$0xf]
    %v6357 = vld [vmem:[%s6342 + $0x54] sm:$0xff]
    %v6358 = vld [vmem:[%s6342 + $0x5c] sm:$0xf]
    %v6359 = vld [vmem:[%s6342 + $0x60] sm:$0xff]
    %v6360 = vld [vmem:[%s6342 + $0x68] sm:$0xf]
    %v6361 = vld [vmem:[%s6342 + $0x6c] sm:$0xff]
    %v6362 = vld [vmem:[%s6342 + $0x74] sm:$0xf]
    %v6363 = vld [vmem:[%s6342 + $0x78] sm:$0xff]
    %v6364 = vld [vmem:[%s6342 + $0x80] sm:$0xf]
    %v6365 = vld [vmem:[%s6342 + $0x84] sm:$0xff]
    %v6366 = vld [vmem:[%s6342 + $0x8c] sm:$0xf]
    %v6367 = vld [vmem:[%s6342 + $0x90] sm:$0xff]
    %v6368 = vld [vmem:[%s6342 + $0x98] sm:$0xf]
    %v6369 = vld [vmem:[%s6342 + $0x9c] sm:$0xff]
    %v6370 = vld [vmem:[%s6342 + $0xa4] sm:$0xf]
    %v6371 = vld [vmem:[%s6342 + $0xa8] sm:$0xff]
    %v6372 = vld [vmem:[%s6342 + $0xb0] sm:$0xf]
    %v6373 = vld [vmem:[%s6342 + $0xb4] sm:$0xff]
    %v6374 = vld [vmem:[%s6342 + $0xbc] sm:$0xf]
    %v6375 = vld [vmem:[%s6342 + $0xc0] sm:$0xff]
    %v6376 = vld [vmem:[%s6342 + $0xc8] sm:$0xf]
    %v6377 = vld [vmem:[%s6342 + $0xcc] sm:$0xff]
    %v6378 = vld [vmem:[%s6342 + $0xd4] sm:$0xf]
    %v6379 = vld [vmem:[%s6342 + $0xd8] sm:$0xff]
    %v6380 = vld [vmem:[%s6342 + $0xe0] sm:$0xf]
    %v6381 = vld [vmem:[%s6342 + $0xe4] sm:$0xff]
    %v6382 = vld [vmem:[%s6342 + $0xec] sm:$0xf]
    %v6383 = vld [vmem:[%s6342 + $0xf0] sm:$0xff]
    %v6384 = vld [vmem:[%s6342 + $0xf8] sm:$0xf]
    %v6385 = vld [vmem:[%s6342 + $0xfc] sm:$0xff]
    %v6386 = vld [vmem:[%s6342 + $0x104] sm:$0xf]
    %v6387 = vld [vmem:[%s6342 + $0x108] sm:$0xff]
    %v6388 = vld [vmem:[%s6342 + $0x110] sm:$0xf]
    %v6389 = vld [vmem:[%s6342 + $0x114] sm:$0xff]
    %v6390 = vld [vmem:[%s6342 + $0x11c] sm:$0xf]
    %v6391 = vld [vmem:[%s6342 + $0x120] sm:$0xff]
    %v6392 = vld [vmem:[%s6342 + $0x128] sm:$0xf]
    %v6393 = vld [vmem:[%s6342 + $0x12c] sm:$0xff]
    %v6394 = vld [vmem:[%s6342 + $0x134] sm:$0xf]
    %v6395 = vld [vmem:[%s6342 + $0x138] sm:$0xff]
    %v6396 = vld [vmem:[%s6342 + $0x140] sm:$0xf]
    %v6397 = vld [vmem:[%s6342 + $0x144] sm:$0xff]
    %v6398 = vld [vmem:[%s6342 + $0x14c] sm:$0xf]
    %v6399 = vld [vmem:[%s6342 + $0x150] sm:$0xff]
    %v6400 = vld [vmem:[%s6342 + $0x158] sm:$0xf]
    %v6401 = vld [vmem:[%s6342 + $0x15c] sm:$0xff]
    %v6402 = vld [vmem:[%s6342 + $0x164] sm:$0xf]
    %v6403 = vld [vmem:[%s6342 + $0x168] sm:$0xff]
    %v6404 = vld [vmem:[%s6342 + $0x170] sm:$0xf]
    %v6405 = vld [vmem:[%s6342 + $0x174] sm:$0xff]
    %v6406 = vld [vmem:[%s6342 + $0x17c] sm:$0xf]
    %v6407 = vld [vmem:[%s6342 + $0x180] sm:$0xff]
    %v6408 = vld [vmem:[%s6342 + $0x188] sm:$0xf]
    %v6409 = vld [vmem:[%s6342 + $0x18c] sm:$0xff]
    %v6410 = vld [vmem:[%s6342 + $0x194] sm:$0xf]
    %v6411 = vld [vmem:[%s6342 + $0x198] sm:$0xff]
    %v6412 = vld [vmem:[%s6342 + $0x1a0] sm:$0xf]
    %v6413 = vld [vmem:[%s6342 + $0x1a4] sm:$0xff]
    %v6414 = vld [vmem:[%s6342 + $0x1ac] sm:$0xf]
    %v6415 = vld [vmem:[%s6342 + $0x1b0] sm:$0xff]
    %v6416 = vld [vmem:[%s6342 + $0x1b8] sm:$0xf]
    %v6417 = vld [vmem:[%s6342 + $0x1bc] sm:$0xff]
    %v6418 = vld [vmem:[%s6342 + $0x1c4] sm:$0xf]
    %v6419 = vld [vmem:[%s6342 + $0x1c8] sm:$0xff]
    %v6420 = vld [vmem:[%s6342 + $0x1d0] sm:$0xf]
    %v6421 = vld [vmem:[%s6342 + $0x1d4] sm:$0xff]
    %v6422 = vld [vmem:[%s6342 + $0x1dc] sm:$0xf]
    %v6423 = vld [vmem:[%s6342 + $0x1e0] sm:$0xff]
    %v6424 = vld [vmem:[%s6342 + $0x1e8] sm:$0xf]
    %v6425 = vld [vmem:[%s6342 + $0x1ec] sm:$0xff]
    %v6426 = vld [vmem:[%s6342 + $0x1f4] sm:$0xf]
    %v6427 = vld [vmem:[%s6342 + $0x1f8] sm:$0xff]
    %v6428 = vld [vmem:[%s6342 + $0x200] sm:$0xf]
    %v6429 = vld [vmem:[%s6342 + $0x204] sm:$0xff]
    %v6430 = vld [vmem:[%s6342 + $0x20c] sm:$0xf]
    %v6431 = vld [vmem:[%s6342 + $0x210] sm:$0xff]
    %v6432 = vld [vmem:[%s6342 + $0x218] sm:$0xf]
    %v6433 = vld [vmem:[%s6342 + $0x21c] sm:$0xff]
    %v6434 = vld [vmem:[%s6342 + $0x224] sm:$0xf]
    %v6435 = vld [vmem:[%s6342 + $0x228] sm:$0xff]
    %v6436 = vld [vmem:[%s6342 + $0x230] sm:$0xf]
    %v6437 = vld [vmem:[%s6342 + $0x234] sm:$0xff]
    %v6438 = vld [vmem:[%s6342 + $0x23c] sm:$0xf]
    %v6439 = vld [vmem:[%s6342 + $0x240] sm:$0xff]
    %v6440 = vld [vmem:[%s6342 + $0x248] sm:$0xf]
    %v6441 = vld [vmem:[%s6342 + $0x24c] sm:$0xff]
    %v6442 = vld [vmem:[%s6342 + $0x254] sm:$0xf]
    %v6443 = vld [vmem:[%s6342 + $0x258] sm:$0xff]
    %v6444 = vld [vmem:[%s6342 + $0x260] sm:$0xf]
    %v6445 = vld [vmem:[%s6342 + $0x264] sm:$0xff]
    %v6446 = vld [vmem:[%s6342 + $0x26c] sm:$0xf]
    %v6447 = vld [vmem:[%s6342 + $0x270] sm:$0xff]
    %v6448 = vld [vmem:[%s6342 + $0x278] sm:$0xf]
    %v6449 = vld [vmem:[%s6342 + $0x27c] sm:$0xff]
    %v6450 = vld [vmem:[%s6342 + $0x284] sm:$0xf]
    %v6451 = vld [vmem:[%s6342 + $0x288] sm:$0xff]
    %v6452 = vld [vmem:[%s6342 + $0x290] sm:$0xf]
    %v6453 = vld [vmem:[%s6342 + $0x294] sm:$0xff]
    %v6454 = vld [vmem:[%s6342 + $0x29c] sm:$0xf]
    %v6455 = vld [vmem:[%s6342 + $0x2a0] sm:$0xff]
    %v6456 = vld [vmem:[%s6342 + $0x2a8] sm:$0xf]
    %v6457 = vld [vmem:[%s6342 + $0x2ac] sm:$0xff]
    %v6458 = vld [vmem:[%s6342 + $0x2b4] sm:$0xf]
    %v6459 = vld [vmem:[%s6342 + $0x2b8] sm:$0xff]
    %v6460 = vld [vmem:[%s6342 + $0x2c0] sm:$0xf]
    %v6461 = vld [vmem:[%s6342 + $0x2c4] sm:$0xff]
    %v6462 = vld [vmem:[%s6342 + $0x2cc] sm:$0xf]
    %v6463 = vld [vmem:[%s6342 + $0x2d0] sm:$0xff]
    %v6464 = vld [vmem:[%s6342 + $0x2d8] sm:$0xf]
    %v6465 = vld [vmem:[%s6342 + $0x2dc] sm:$0xff]
    %v6466 = vld [vmem:[%s6342 + $0x2e4] sm:$0xf]
    %v6467 = vld [vmem:[%s6342 + $0x2e8] sm:$0xff]
    %v6468 = vld [vmem:[%s6342 + $0x2f0] sm:$0xf]
    %v6469 = vld [vmem:[%s6342 + $0x2f4] sm:$0xff]
    %v6470 = vld [vmem:[%s6342 + $0x2fc] sm:$0xf]
    %v6599 = vunpack.c.l.b16 %v6343
    %v6600 = vunpack.c.h.b16 %v6343
    %v6601 = vunpack.c.l.b16 %v6344
    %v6602 = vunpack.c.l.b16 %v6345
    %v6603 = vunpack.c.h.b16 %v6345
    %v6604 = vunpack.c.l.b16 %v6346
    %v6605 = vunpack.c.l.b16 %v6347
    %v6606 = vunpack.c.h.b16 %v6347
    %v6607 = vunpack.c.l.b16 %v6348
    %v6608 = vunpack.c.l.b16 %v6349
    %v6609 = vunpack.c.h.b16 %v6349
    %v6610 = vunpack.c.l.b16 %v6350
    %v6611 = vunpack.c.l.b16 %v6351
    %v6612 = vunpack.c.h.b16 %v6351
    %v6613 = vunpack.c.l.b16 %v6352
    %v6614 = vunpack.c.l.b16 %v6353
    %v6615 = vunpack.c.h.b16 %v6353
    %v6616 = vunpack.c.l.b16 %v6354
    %v6617 = vunpack.c.l.b16 %v6355
    %v6618 = vunpack.c.h.b16 %v6355
    %v6619 = vunpack.c.l.b16 %v6356
    %v6620 = vunpack.c.l.b16 %v6357
    %v6621 = vunpack.c.h.b16 %v6357
    %v6622 = vunpack.c.l.b16 %v6358
    %v6623 = vunpack.c.l.b16 %v6359
    %v6624 = vunpack.c.h.b16 %v6359
    %v6625 = vunpack.c.l.b16 %v6360
    %v6626 = vunpack.c.l.b16 %v6361
    %v6627 = vunpack.c.h.b16 %v6361
    %v6628 = vunpack.c.l.b16 %v6362
    %v6629 = vunpack.c.l.b16 %v6363
    %v6630 = vunpack.c.h.b16 %v6363
    %v6631 = vunpack.c.l.b16 %v6364
    %v6632 = vunpack.c.l.b16 %v6365
    %v6633 = vunpack.c.h.b16 %v6365
    %v6634 = vunpack.c.l.b16 %v6366
    %v6635 = vunpack.c.l.b16 %v6367
    %v6636 = vunpack.c.h.b16 %v6367
    %v6637 = vunpack.c.l.b16 %v6368
    %v6638 = vunpack.c.l.b16 %v6369
    %v6639 = vunpack.c.h.b16 %v6369
    %v6640 = vunpack.c.l.b16 %v6370
    %v6641 = vunpack.c.l.b16 %v6371
    %v6642 = vunpack.c.h.b16 %v6371
    %v6643 = vunpack.c.l.b16 %v6372
    %v6644 = vunpack.c.l.b16 %v6373
    %v6645 = vunpack.c.h.b16 %v6373
    %v6646 = vunpack.c.l.b16 %v6374
    %v6647 = vunpack.c.l.b16 %v6375
    %v6648 = vunpack.c.h.b16 %v6375
    %v6649 = vunpack.c.l.b16 %v6376
    %v6650 = vunpack.c.l.b16 %v6377
    %v6651 = vunpack.c.h.b16 %v6377
    %v6652 = vunpack.c.l.b16 %v6378
    %v6653 = vunpack.c.l.b16 %v6379
    %v6654 = vunpack.c.h.b16 %v6379
    %v6655 = vunpack.c.l.b16 %v6380
    %v6656 = vunpack.c.l.b16 %v6381
    %v6657 = vunpack.c.h.b16 %v6381
    %v6658 = vunpack.c.l.b16 %v6382
    %v6659 = vunpack.c.l.b16 %v6383
    %v6660 = vunpack.c.h.b16 %v6383
    %v6661 = vunpack.c.l.b16 %v6384
    %v6662 = vunpack.c.l.b16 %v6385
    %v6663 = vunpack.c.h.b16 %v6385
    %v6664 = vunpack.c.l.b16 %v6386
    %v6665 = vunpack.c.l.b16 %v6387
    %v6666 = vunpack.c.h.b16 %v6387
    %v6667 = vunpack.c.l.b16 %v6388
    %v6668 = vunpack.c.l.b16 %v6389
    %v6669 = vunpack.c.h.b16 %v6389
    %v6670 = vunpack.c.l.b16 %v6390
    %v6671 = vunpack.c.l.b16 %v6391
    %v6672 = vunpack.c.h.b16 %v6391
    %v6673 = vunpack.c.l.b16 %v6392
    %v6674 = vunpack.c.l.b16 %v6393
    %v6675 = vunpack.c.h.b16 %v6393
    %v6676 = vunpack.c.l.b16 %v6394
    %v6677 = vunpack.c.l.b16 %v6395
    %v6678 = vunpack.c.h.b16 %v6395
    %v6679 = vunpack.c.l.b16 %v6396
    %v6680 = vunpack.c.l.b16 %v6397
    %v6681 = vunpack.c.h.b16 %v6397
    %v6682 = vunpack.c.l.b16 %v6398
    %v6683 = vunpack.c.l.b16 %v6399
    %v6684 = vunpack.c.h.b16 %v6399
    %v6685 = vunpack.c.l.b16 %v6400
    %v6686 = vunpack.c.l.b16 %v6401
    %v6687 = vunpack.c.h.b16 %v6401
    %v6688 = vunpack.c.l.b16 %v6402
    %v6689 = vunpack.c.l.b16 %v6403
    %v6690 = vunpack.c.h.b16 %v6403
    %v6691 = vunpack.c.l.b16 %v6404
    %v6692 = vunpack.c.l.b16 %v6405
    %v6693 = vunpack.c.h.b16 %v6405
    %v6694 = vunpack.c.l.b16 %v6406
    %v6695 = vunpack.c.l.b16 %v6407
    %v6696 = vunpack.c.h.b16 %v6407
    %v6697 = vunpack.c.l.b16 %v6408
    %v6698 = vunpack.c.l.b16 %v6409
    %v6699 = vunpack.c.h.b16 %v6409
    %v6700 = vunpack.c.l.b16 %v6410
    %v6701 = vunpack.c.l.b16 %v6411
    %v6702 = vunpack.c.h.b16 %v6411
    %v6703 = vunpack.c.l.b16 %v6412
    %v6704 = vunpack.c.l.b16 %v6413
    %v6705 = vunpack.c.h.b16 %v6413
    %v6706 = vunpack.c.l.b16 %v6414
    %v6707 = vunpack.c.l.b16 %v6415
    %v6708 = vunpack.c.h.b16 %v6415
    %v6709 = vunpack.c.l.b16 %v6416
    %v6710 = vunpack.c.l.b16 %v6417
    %v6711 = vunpack.c.h.b16 %v6417
    %v6712 = vunpack.c.l.b16 %v6418
    %v6713 = vunpack.c.l.b16 %v6419
    %v6714 = vunpack.c.h.b16 %v6419
    %v6715 = vunpack.c.l.b16 %v6420
    %v6716 = vunpack.c.l.b16 %v6421
    %v6717 = vunpack.c.h.b16 %v6421
    %v6718 = vunpack.c.l.b16 %v6422
    %v6719 = vunpack.c.l.b16 %v6423
    %v6720 = vunpack.c.h.b16 %v6423
    %v6721 = vunpack.c.l.b16 %v6424
    %v6722 = vunpack.c.l.b16 %v6425
    %v6723 = vunpack.c.h.b16 %v6425
    %v6724 = vunpack.c.l.b16 %v6426
    %v6725 = vunpack.c.l.b16 %v6427
    %v6726 = vunpack.c.h.b16 %v6427
    %v6727 = vunpack.c.l.b16 %v6428
    %v6728 = vunpack.c.l.b16 %v6429
    %v6729 = vunpack.c.h.b16 %v6429
    %v6730 = vunpack.c.l.b16 %v6430
    %v6731 = vunpack.c.l.b16 %v6431
    %v6732 = vunpack.c.h.b16 %v6431
    %v6733 = vunpack.c.l.b16 %v6432
    %v6734 = vunpack.c.l.b16 %v6433
    %v6735 = vunpack.c.h.b16 %v6433
    %v6736 = vunpack.c.l.b16 %v6434
    %v6737 = vunpack.c.l.b16 %v6435
    %v6738 = vunpack.c.h.b16 %v6435
    %v6739 = vunpack.c.l.b16 %v6436
    %v6740 = vunpack.c.l.b16 %v6437
    %v6741 = vunpack.c.h.b16 %v6437
    %v6742 = vunpack.c.l.b16 %v6438
    %v6743 = vunpack.c.l.b16 %v6439
    %v6744 = vunpack.c.h.b16 %v6439
    %v6745 = vunpack.c.l.b16 %v6440
    %v6746 = vunpack.c.l.b16 %v6441
    %v6747 = vunpack.c.h.b16 %v6441
    %v6748 = vunpack.c.l.b16 %v6442
    %v6749 = vunpack.c.l.b16 %v6443
    %v6750 = vunpack.c.h.b16 %v6443
    %v6751 = vunpack.c.l.b16 %v6444
    %v6752 = vunpack.c.l.b16 %v6445
    %v6753 = vunpack.c.h.b16 %v6445
    %v6754 = vunpack.c.l.b16 %v6446
    %v6755 = vunpack.c.l.b16 %v6447
    %v6756 = vunpack.c.h.b16 %v6447
    %v6757 = vunpack.c.l.b16 %v6448
    %v6758 = vunpack.c.l.b16 %v6449
    %v6759 = vunpack.c.h.b16 %v6449
    %v6760 = vunpack.c.l.b16 %v6450
    %v6761 = vunpack.c.l.b16 %v6451
    %v6762 = vunpack.c.h.b16 %v6451
    %v6763 = vunpack.c.l.b16 %v6452
    %v6764 = vunpack.c.l.b16 %v6453
    %v6765 = vunpack.c.h.b16 %v6453
    %v6766 = vunpack.c.l.b16 %v6454
    %v6767 = vunpack.c.l.b16 %v6455
    %v6768 = vunpack.c.h.b16 %v6455
    %v6769 = vunpack.c.l.b16 %v6456
    %v6770 = vunpack.c.l.b16 %v6457
    %v6771 = vunpack.c.h.b16 %v6457
    %v6772 = vunpack.c.l.b16 %v6458
    %v6773 = vunpack.c.l.b16 %v6459
    %v6774 = vunpack.c.h.b16 %v6459
    %v6775 = vunpack.c.l.b16 %v6460
    %v6776 = vunpack.c.l.b16 %v6461
    %v6777 = vunpack.c.h.b16 %v6461
    %v6778 = vunpack.c.l.b16 %v6462
    %v6779 = vunpack.c.l.b16 %v6463
    %v6780 = vunpack.c.h.b16 %v6463
    %v6781 = vunpack.c.l.b16 %v6464
    %v6782 = vunpack.c.l.b16 %v6465
    %v6783 = vunpack.c.h.b16 %v6465
    %v6784 = vunpack.c.l.b16 %v6466
    %v6785 = vunpack.c.l.b16 %v6467
    %v6786 = vunpack.c.h.b16 %v6467
    %v6787 = vunpack.c.l.b16 %v6468
    %v6788 = vunpack.c.l.b16 %v6469
    %v6789 = vunpack.c.h.b16 %v6469
    %v6790 = vunpack.c.l.b16 %v6470
    %v6791 = vpack.c.b16 %v6602, %v6599
    %v6792 = vpack.c.b16 %v6603, %v6600
    %v6793 = vpack.c.b16 %v6604, %v6601
    %v6794 = vpack.c.b16 %v6608, %v6605
    %v6795 = vpack.c.b16 %v6609, %v6606
    %v6796 = vpack.c.b16 %v6610, %v6607
    %v6797 = vpack.c.b16 %v6614, %v6611
    %v6798 = vpack.c.b16 %v6615, %v6612
    %v6799 = vpack.c.b16 %v6616, %v6613
    %v6800 = vpack.c.b16 %v6620, %v6617
    %v6801 = vpack.c.b16 %v6621, %v6618
    %v6802 = vpack.c.b16 %v6622, %v6619
    %v6803 = vpack.c.b16 %v6626, %v6623
    %v6804 = vpack.c.b16 %v6627, %v6624
    %v6805 = vpack.c.b16 %v6628, %v6625
    %v6806 = vpack.c.b16 %v6632, %v6629
    %v6807 = vpack.c.b16 %v6633, %v6630
    %v6808 = vpack.c.b16 %v6634, %v6631
    %v6809 = vpack.c.b16 %v6638, %v6635
    %v6810 = vpack.c.b16 %v6639, %v6636
    %v6811 = vpack.c.b16 %v6640, %v6637
    %v6812 = vpack.c.b16 %v6644, %v6641
    %v6813 = vpack.c.b16 %v6645, %v6642
    %v6814 = vpack.c.b16 %v6646, %v6643
    %v6815 = vpack.c.b16 %v6650, %v6647
    %v6816 = vpack.c.b16 %v6651, %v6648
    %v6817 = vpack.c.b16 %v6652, %v6649
    %v6818 = vpack.c.b16 %v6656, %v6653
    %v6819 = vpack.c.b16 %v6657, %v6654
    %v6820 = vpack.c.b16 %v6658, %v6655
    %v6821 = vpack.c.b16 %v6662, %v6659
    %v6822 = vpack.c.b16 %v6663, %v6660
    %v6823 = vpack.c.b16 %v6664, %v6661
    %v6824 = vpack.c.b16 %v6668, %v6665
    %v6825 = vpack.c.b16 %v6669, %v6666
    %v6826 = vpack.c.b16 %v6670, %v6667
    %v6827 = vpack.c.b16 %v6674, %v6671
    %v6828 = vpack.c.b16 %v6675, %v6672
    %v6829 = vpack.c.b16 %v6676, %v6673
    %v6830 = vpack.c.b16 %v6680, %v6677
    %v6831 = vpack.c.b16 %v6681, %v6678
    %v6832 = vpack.c.b16 %v6682, %v6679
    %v6833 = vpack.c.b16 %v6686, %v6683
    %v6834 = vpack.c.b16 %v6687, %v6684
    %v6835 = vpack.c.b16 %v6688, %v6685
    %v6836 = vpack.c.b16 %v6692, %v6689
    %v6837 = vpack.c.b16 %v6693, %v6690
    %v6838 = vpack.c.b16 %v6694, %v6691
    %v6839 = vpack.c.b16 %v6698, %v6695
    %v6840 = vpack.c.b16 %v6699, %v6696
    %v6841 = vpack.c.b16 %v6700, %v6697
    %v6842 = vpack.c.b16 %v6704, %v6701
    %v6843 = vpack.c.b16 %v6705, %v6702
    %v6844 = vpack.c.b16 %v6706, %v6703
    %v6845 = vpack.c.b16 %v6710, %v6707
    %v6846 = vpack.c.b16 %v6711, %v6708
    %v6847 = vpack.c.b16 %v6712, %v6709
    %v6848 = vpack.c.b16 %v6716, %v6713
    %v6849 = vpack.c.b16 %v6717, %v6714
    %v6850 = vpack.c.b16 %v6718, %v6715
    %v6851 = vpack.c.b16 %v6722, %v6719
    %v6852 = vpack.c.b16 %v6723, %v6720
    %v6853 = vpack.c.b16 %v6724, %v6721
    %v6854 = vpack.c.b16 %v6728, %v6725
    %v6855 = vpack.c.b16 %v6729, %v6726
    %v6856 = vpack.c.b16 %v6730, %v6727
    %v6857 = vpack.c.b16 %v6734, %v6731
    %v6858 = vpack.c.b16 %v6735, %v6732
    %v6859 = vpack.c.b16 %v6736, %v6733
    %v6860 = vpack.c.b16 %v6740, %v6737
    %v6861 = vpack.c.b16 %v6741, %v6738
    %v6862 = vpack.c.b16 %v6742, %v6739
    %v6863 = vpack.c.b16 %v6746, %v6743
    %v6864 = vpack.c.b16 %v6747, %v6744
    %v6865 = vpack.c.b16 %v6748, %v6745
    %v6866 = vpack.c.b16 %v6752, %v6749
    %v6867 = vpack.c.b16 %v6753, %v6750
    %v6868 = vpack.c.b16 %v6754, %v6751
    %v6869 = vpack.c.b16 %v6758, %v6755
    %v6870 = vpack.c.b16 %v6759, %v6756
    %v6871 = vpack.c.b16 %v6760, %v6757
    %v6872 = vpack.c.b16 %v6764, %v6761
    %v6873 = vpack.c.b16 %v6765, %v6762
    %v6874 = vpack.c.b16 %v6766, %v6763
    %v6875 = vpack.c.b16 %v6770, %v6767
    %v6876 = vpack.c.b16 %v6771, %v6768
    %v6877 = vpack.c.b16 %v6772, %v6769
    %v6878 = vpack.c.b16 %v6776, %v6773
    %v6879 = vpack.c.b16 %v6777, %v6774
    %v6880 = vpack.c.b16 %v6778, %v6775
    %v6881 = vpack.c.b16 %v6782, %v6779
    %v6882 = vpack.c.b16 %v6783, %v6780
    %v6883 = vpack.c.b16 %v6784, %v6781
    %v6884 = vpack.c.b16 %v6788, %v6785
    %v6885 = vpack.c.b16 %v6789, %v6786
    %v6886 = vpack.c.b16 %v6790, %v6787
    %6983 = vmatprep.subr.bf16.mxu0 %v6813
    %6984 = vmatpush1.bf16.msra.mxu0 %v6812
    %6985 = vmatprep.subr.bf16.mxu0 %v6810
    %6986 = vmatpush1.bf16.msra.mxu0 %v6809
    %6987 = vmatprep.subr.bf16.mxu0 %v6807
    %6988 = vmatpush1.bf16.msra.mxu0 %v6806
    %6989 = vmatprep.subr.bf16.mxu0 %v6804
    %6990 = vmatpush1.bf16.msra.mxu0 %v6803
    %6991 = vmatprep.subr.bf16.mxu0 %v6801
    %6992 = vmatpush1.bf16.msra.mxu0 %v6800
    %6993 = vmatprep.subr.bf16.mxu0 %v6798
    %6994 = vmatpush1.bf16.msra.mxu0 %v6797
    %6995 = vmatprep.subr.bf16.mxu0 %v6795
    %6996 = vmatpush1.bf16.msra.mxu0 %v6794
    %6997 = vmatprep.subr.bf16.mxu0 %v6792
    %6998 = vmatpush1.bf16.msra.mxu0 %v6791
    %6999 = vmatprep.subr.bf16.mxu0 %v6837
    %7000 = vmatpush2.bf16.msra.mxu0 %v6836
    %7001 = vmatprep.subr.bf16.mxu0 %v6834
    %7002 = vmatpush2.bf16.msra.mxu0 %v6833
    %7003 = vmatprep.subr.bf16.mxu0 %v6831
    %7004 = vmatpush2.bf16.msra.mxu0 %v6830
    %7005 = vmatprep.subr.bf16.mxu0 %v6828
    %7006 = vmatpush2.bf16.msra.mxu0 %v6827
    %7007 = vmatprep.subr.bf16.mxu0 %v6825
    %7008 = vmatpush2.bf16.msra.mxu0 %v6824
    %7009 = vmatprep.subr.bf16.mxu0 %v6822
    %7010 = vmatpush2.bf16.msra.mxu0 %v6821
    %7011 = vmatprep.subr.bf16.mxu0 %v6819
    %7012 = vmatpush2.bf16.msra.mxu0 %v6818
    %7013 = vmatprep.subr.bf16.mxu0 %v6816
    %7014 = vmatpush2.bf16.msra.mxu0 %v6815
    %7015 = vmatprep.mubr.bf16.mxu0 %v6335
    %7016 = vmatmul.mubr.bf16.gmra.mxu0 %v6334
    %v7017 = vpop.f32.mrf.mxu0
    %v7018 = vadd.f32 0.0, %v7017
    %v7019 = vpop.f32.mrf.mxu0
    %v7020 = vadd.f32 0.0, %v7019
    %v7021 = vpop.f32.mrf.mxu0
    %v7022 = vadd.f32 0.0, %v7021
    %v7023 = vpop.f32.mrf.mxu0
    %v7024 = vadd.f32 0.0, %v7023
    %7025 = vmatprep.mubr.bf16.mxu0 %v6339
    %7026 = vmatmul.mubr.bf16.gmra.mxu0 %v6338
    %v7027 = vpop.f32.mrf.mxu0
    %v7028 = vadd.f32 0.0, %v7027
    %v7029 = vpop.f32.mrf.mxu0
    %v7030 = vadd.f32 0.0, %v7029
    %v7031 = vpop.f32.mrf.mxu0
    %v7032 = vpop.f32.mrf.mxu0
    %7033 = vdwg.mxu0
    %7034 = vmatprep.subr.bf16.mxu0 %v6861
    %7035 = vmatpush1.bf16.msra.mxu0 %v6860
    %7036 = vmatprep.subr.bf16.mxu0 %v6858
    %7037 = vmatpush1.bf16.msra.mxu0 %v6857
    %7038 = vmatprep.subr.bf16.mxu0 %v6855
    %7039 = vmatpush1.bf16.msra.mxu0 %v6854
    %7040 = vmatprep.subr.bf16.mxu0 %v6852
    %7041 = vmatpush1.bf16.msra.mxu0 %v6851
    %7042 = vmatprep.subr.bf16.mxu0 %v6849
    %7043 = vmatpush1.bf16.msra.mxu0 %v6848
    %7044 = vmatprep.subr.bf16.mxu0 %v6846
    %7045 = vmatpush1.bf16.msra.mxu0 %v6845
    %7046 = vmatprep.subr.bf16.mxu0 %v6843
    %7047 = vmatpush1.bf16.msra.mxu0 %v6842
    %7048 = vmatprep.subr.bf16.mxu0 %v6840
    %7049 = vmatpush1.bf16.msra.mxu0 %v6839
    %7050 = vmatprep.subr.bf16.mxu0 %v6885
    %7051 = vmatpush2.bf16.msra.mxu0 %v6884
    %7052 = vmatprep.subr.bf16.mxu0 %v6882
    %7053 = vmatpush2.bf16.msra.mxu0 %v6881
    %7054 = vmatprep.subr.bf16.mxu0 %v6879
    %7055 = vmatpush2.bf16.msra.mxu0 %v6878
    %7056 = vmatprep.subr.bf16.mxu0 %v6876
    %7057 = vmatpush2.bf16.msra.mxu0 %v6875
    %7058 = vmatprep.subr.bf16.mxu0 %v6873
    %7059 = vmatpush2.bf16.msra.mxu0 %v6872
    %7060 = vmatprep.subr.bf16.mxu0 %v6870
    %7061 = vmatpush2.bf16.msra.mxu0 %v6869
    %7062 = vmatprep.subr.bf16.mxu0 %v6867
    %7063 = vmatpush2.bf16.msra.mxu0 %v6866
    %7064 = vmatprep.subr.bf16.mxu0 %v6864
    %7065 = vmatpush2.bf16.msra.mxu0 %v6863
    %7066 = vmatprep.mubr.bf16.mxu0 %v6337
    %7067 = vmatmul.mubr.bf16.gmra.mxu0 %v6336
    %v7068 = vpop.f32.mrf.mxu0
    %v7069 = vadd.f32 %v7018, %v7068
    %v7070 = vpop.f32.mrf.mxu0
    %v7071 = vadd.f32 %v7020, %v7070
    %v7072 = vpop.f32.mrf.mxu0
    %v7073 = vadd.f32 %v7022, %v7072
    %v7074 = vpop.f32.mrf.mxu0
    %v7075 = vadd.f32 %v7024, %v7074
    %7076 = vmatprep.mubr.bf16.mxu0 %v6341
    %7077 = vmatmul.mubr.bf16.gmra.mxu0 %v6340
    %v7078 = vpop.f32.mrf.mxu0
    %v7079 = vadd.f32 %v7028, %v7078
    %v7080 = vpop.f32.mrf.mxu0
    %v7081 = vadd.f32 %v7030, %v7080
    %v7082 = vpop.f32.mrf.mxu0
    %v7083 = vpop.f32.mrf.mxu0
    %7084 = vdwg.mxu0
    %7085 = vmatprep.subr.bf16.mxu0 0
    %7086 = vmatpush1.bf16.msra.mxu0 %v6814
    %7087 = vmatprep.subr.bf16.mxu0 0
    %7088 = vmatpush1.bf16.msra.mxu0 %v6811
    %7089 = vmatprep.subr.bf16.mxu0 0
    %7090 = vmatpush1.bf16.msra.mxu0 %v6808
    %7091 = vmatprep.subr.bf16.mxu0 0
    %7092 = vmatpush1.bf16.msra.mxu0 %v6805
    %7093 = vmatprep.subr.bf16.mxu0 0
    %7094 = vmatpush1.bf16.msra.mxu0 %v6802
    %7095 = vmatprep.subr.bf16.mxu0 0
    %7096 = vmatpush1.bf16.msra.mxu0 %v6799
    %7097 = vmatprep.subr.bf16.mxu0 0
    %7098 = vmatpush1.bf16.msra.mxu0 %v6796
    %7099 = vmatprep.subr.bf16.mxu0 0
    %7100 = vmatpush1.bf16.msra.mxu0 %v6793
    %7101 = vmatprep.subr.bf16.mxu0 0
    %7102 = vmatpush2.bf16.msra.mxu0 %v6838
    %7103 = vmatprep.subr.bf16.mxu0 0
    %7104 = vmatpush2.bf16.msra.mxu0 %v6835
    %7105 = vmatprep.subr.bf16.mxu0 0
    %7106 = vmatpush2.bf16.msra.mxu0 %v6832
    %7107 = vmatprep.subr.bf16.mxu0 0
    %7108 = vmatpush2.bf16.msra.mxu0 %v6829
    %7109 = vmatprep.subr.bf16.mxu0 0
    %7110 = vmatpush2.bf16.msra.mxu0 %v6826
    %7111 = vmatprep.subr.bf16.mxu0 0
    %7112 = vmatpush2.bf16.msra.mxu0 %v6823
    %7113 = vmatprep.subr.bf16.mxu0 0
    %7114 = vmatpush2.bf16.msra.mxu0 %v6820
    %7115 = vmatprep.subr.bf16.mxu0 0
    %7116 = vmatpush2.bf16.msra.mxu0 %v6817
    %7117 = vmatprep.mubr.bf16.mxu0 %v6335
    %7118 = vmatmul.mubr.bf16.gmra.mxu0 %v6334
    %v7119 = vpop.f32.mrf.mxu0
    %v7120 = vadd.f32 0.0, %v7119
    %v7121 = vpop.f32.mrf.mxu0
    %v7122 = vpop.f32.mrf.mxu0
    %v7123 = vadd.f32 0.0, %v7122
    %v7124 = vpop.f32.mrf.mxu0
    %7125 = vmatprep.mubr.bf16.mxu0 %v6339
    %7126 = vmatmul.mubr.bf16.gmra.mxu0 %v6338
    %v7127 = vpop.f32.mrf.mxu0
    %v7128 = vadd.f32 0.0, %v7127
    %v7129 = vpop.f32.mrf.mxu0
    %v7130 = vpop.f32.mrf.mxu0
    %v7131 = vpop.f32.mrf.mxu0
    %7132 = vdwg.mxu0
    %7133 = vmatprep.subr.bf16.mxu0 0
    %7134 = vmatpush1.bf16.msra.mxu0 %v6862
    %7135 = vmatprep.subr.bf16.mxu0 0
    %7136 = vmatpush1.bf16.msra.mxu0 %v6859
    %7137 = vmatprep.subr.bf16.mxu0 0
    %7138 = vmatpush1.bf16.msra.mxu0 %v6856
    %7139 = vmatprep.subr.bf16.mxu0 0
    %7140 = vmatpush1.bf16.msra.mxu0 %v6853
    %7141 = vmatprep.subr.bf16.mxu0 0
    %7142 = vmatpush1.bf16.msra.mxu0 %v6850
    %7143 = vmatprep.subr.bf16.mxu0 0
    %7144 = vmatpush1.bf16.msra.mxu0 %v6847
    %7145 = vmatprep.subr.bf16.mxu0 0
    %7146 = vmatpush1.bf16.msra.mxu0 %v6844
    %7147 = vmatprep.subr.bf16.mxu0 0
    %7148 = vmatpush1.bf16.msra.mxu0 %v6841
    %7149 = vmatprep.subr.bf16.mxu0 0
    %7150 = vmatpush2.bf16.msra.mxu0 %v6886
    %7151 = vmatprep.subr.bf16.mxu0 0
    %7152 = vmatpush2.bf16.msra.mxu0 %v6883
    %7153 = vmatprep.subr.bf16.mxu0 0
    %7154 = vmatpush2.bf16.msra.mxu0 %v6880
    %7155 = vmatprep.subr.bf16.mxu0 0
    %7156 = vmatpush2.bf16.msra.mxu0 %v6877
    %7157 = vmatprep.subr.bf16.mxu0 0
    %7158 = vmatpush2.bf16.msra.mxu0 %v6874
    %7159 = vmatprep.subr.bf16.mxu0 0
    %7160 = vmatpush2.bf16.msra.mxu0 %v6871
    %7161 = vmatprep.subr.bf16.mxu0 0
    %7162 = vmatpush2.bf16.msra.mxu0 %v6868
    %7163 = vmatprep.subr.bf16.mxu0 0
    %7164 = vmatpush2.bf16.msra.mxu0 %v6865
    %7165 = vmatprep.mubr.bf16.mxu0 %v6337
    %7166 = vmatmul.mubr.bf16.gmra.mxu0 %v6336
    %v7167 = vpop.f32.mrf.mxu0
    %v7168 = vadd.f32 %v7120, %v7167
    %v7169 = vpop.f32.mrf.mxu0
    %v7170 = vpop.f32.mrf.mxu0
    %v7171 = vadd.f32 %v7123, %v7170
    %v7172 = vpop.f32.mrf.mxu0
    %7173 = vmatprep.mubr.bf16.mxu0 %v6341
    %7174 = vmatmul.mubr.bf16.gmra.mxu0 %v6340
    %v7175 = vpop.f32.mrf.mxu0
    %v7176 = vadd.f32 %v7128, %v7175
    %v7177 = vpop.f32.mrf.mxu0
    %v7178 = vpop.f32.mrf.mxu0
    %v7179 = vpop.f32.mrf.mxu0
    %7180 = vdwg.mxu0
    %v7309 = vunpack.c.l.b16 %v6206
    %v7310 = vunpack.c.h.b16 %v6206
    %v7311 = vunpack.c.l.b16 %v6207
    %v7312 = vunpack.c.l.b16 %v6208
    %v7313 = vunpack.c.h.b16 %v6208
    %v7314 = vunpack.c.l.b16 %v6209
    %v7315 = vunpack.c.l.b16 %v6210
    %v7316 = vunpack.c.h.b16 %v6210
    %v7317 = vunpack.c.l.b16 %v6211
    %v7318 = vunpack.c.l.b16 %v6212
    %v7319 = vunpack.c.h.b16 %v6212
    %v7320 = vunpack.c.l.b16 %v6213
    %v7321 = vunpack.c.l.b16 %v6214
    %v7322 = vunpack.c.h.b16 %v6214
    %v7323 = vunpack.c.l.b16 %v6215
    %v7324 = vunpack.c.l.b16 %v6216
    %v7325 = vunpack.c.h.b16 %v6216
    %v7326 = vunpack.c.l.b16 %v6217
    %v7327 = vunpack.c.l.b16 %v6218
    %v7328 = vunpack.c.h.b16 %v6218
    %v7329 = vunpack.c.l.b16 %v6219
    %v7330 = vunpack.c.l.b16 %v6220
    %v7331 = vunpack.c.h.b16 %v6220
    %v7332 = vunpack.c.l.b16 %v6221
    %v7333 = vunpack.c.l.b16 %v6222
    %v7334 = vunpack.c.h.b16 %v6222
    %v7335 = vunpack.c.l.b16 %v6223
    %v7336 = vunpack.c.l.b16 %v6224
    %v7337 = vunpack.c.h.b16 %v6224
    %v7338 = vunpack.c.l.b16 %v6225
    %v7339 = vunpack.c.l.b16 %v6226
    %v7340 = vunpack.c.h.b16 %v6226
    %v7341 = vunpack.c.l.b16 %v6227
    %v7342 = vunpack.c.l.b16 %v6228
    %v7343 = vunpack.c.h.b16 %v6228
    %v7344 = vunpack.c.l.b16 %v6229
    %v7345 = vunpack.c.l.b16 %v6230
    %v7346 = vunpack.c.h.b16 %v6230
    %v7347 = vunpack.c.l.b16 %v6231
    %v7348 = vunpack.c.l.b16 %v6232
    %v7349 = vunpack.c.h.b16 %v6232
    %v7350 = vunpack.c.l.b16 %v6233
    %v7351 = vunpack.c.l.b16 %v6234
    %v7352 = vunpack.c.h.b16 %v6234
    %v7353 = vunpack.c.l.b16 %v6235
    %v7354 = vunpack.c.l.b16 %v6236
    %v7355 = vunpack.c.h.b16 %v6236
    %v7356 = vunpack.c.l.b16 %v6237
    %v7357 = vunpack.c.l.b16 %v6238
    %v7358 = vunpack.c.h.b16 %v6238
    %v7359 = vunpack.c.l.b16 %v6239
    %v7360 = vunpack.c.l.b16 %v6240
    %v7361 = vunpack.c.h.b16 %v6240
    %v7362 = vunpack.c.l.b16 %v6241
    %v7363 = vunpack.c.l.b16 %v6242
    %v7364 = vunpack.c.h.b16 %v6242
    %v7365 = vunpack.c.l.b16 %v6243
    %v7366 = vunpack.c.l.b16 %v6244
    %v7367 = vunpack.c.h.b16 %v6244
    %v7368 = vunpack.c.l.b16 %v6245
    %v7369 = vunpack.c.l.b16 %v6246
    %v7370 = vunpack.c.h.b16 %v6246
    %v7371 = vunpack.c.l.b16 %v6247
    %v7372 = vunpack.c.l.b16 %v6248
    %v7373 = vunpack.c.h.b16 %v6248
    %v7374 = vunpack.c.l.b16 %v6249
    %v7375 = vunpack.c.l.b16 %v6250
    %v7376 = vunpack.c.h.b16 %v6250
    %v7377 = vunpack.c.l.b16 %v6251
    %v7378 = vunpack.c.l.b16 %v6252
    %v7379 = vunpack.c.h.b16 %v6252
    %v7380 = vunpack.c.l.b16 %v6253
    %v7381 = vunpack.c.l.b16 %v6254
    %v7382 = vunpack.c.h.b16 %v6254
    %v7383 = vunpack.c.l.b16 %v6255
    %v7384 = vunpack.c.l.b16 %v6256
    %v7385 = vunpack.c.h.b16 %v6256
    %v7386 = vunpack.c.l.b16 %v6257
    %v7387 = vunpack.c.l.b16 %v6258
    %v7388 = vunpack.c.h.b16 %v6258
    %v7389 = vunpack.c.l.b16 %v6259
    %v7390 = vunpack.c.l.b16 %v6260
    %v7391 = vunpack.c.h.b16 %v6260
    %v7392 = vunpack.c.l.b16 %v6261
    %v7393 = vunpack.c.l.b16 %v6262
    %v7394 = vunpack.c.h.b16 %v6262
    %v7395 = vunpack.c.l.b16 %v6263
    %v7396 = vunpack.c.l.b16 %v6264
    %v7397 = vunpack.c.h.b16 %v6264
    %v7398 = vunpack.c.l.b16 %v6265
    %v7399 = vunpack.c.l.b16 %v6266
    %v7400 = vunpack.c.h.b16 %v6266
    %v7401 = vunpack.c.l.b16 %v6267
    %v7402 = vunpack.c.l.b16 %v6268
    %v7403 = vunpack.c.h.b16 %v6268
    %v7404 = vunpack.c.l.b16 %v6269
    %v7405 = vunpack.c.l.b16 %v6270
    %v7406 = vunpack.c.h.b16 %v6270
    %v7407 = vunpack.c.l.b16 %v6271
    %v7408 = vunpack.c.l.b16 %v6272
    %v7409 = vunpack.c.h.b16 %v6272
    %v7410 = vunpack.c.l.b16 %v6273
    %v7411 = vunpack.c.l.b16 %v6274
    %v7412 = vunpack.c.h.b16 %v6274
    %v7413 = vunpack.c.l.b16 %v6275
    %v7414 = vunpack.c.l.b16 %v6276
    %v7415 = vunpack.c.h.b16 %v6276
    %v7416 = vunpack.c.l.b16 %v6277
    %v7417 = vunpack.c.l.b16 %v6278
    %v7418 = vunpack.c.h.b16 %v6278
    %v7419 = vunpack.c.l.b16 %v6279
    %v7420 = vunpack.c.l.b16 %v6280
    %v7421 = vunpack.c.h.b16 %v6280
    %v7422 = vunpack.c.l.b16 %v6281
    %v7423 = vunpack.c.l.b16 %v6282
    %v7424 = vunpack.c.h.b16 %v6282
    %v7425 = vunpack.c.l.b16 %v6283
    %v7426 = vunpack.c.l.b16 %v6284
    %v7427 = vunpack.c.h.b16 %v6284
    %v7428 = vunpack.c.l.b16 %v6285
    %v7429 = vunpack.c.l.b16 %v6286
    %v7430 = vunpack.c.h.b16 %v6286
    %v7431 = vunpack.c.l.b16 %v6287
    %v7432 = vunpack.c.l.b16 %v6288
    %v7433 = vunpack.c.h.b16 %v6288
    %v7434 = vunpack.c.l.b16 %v6289
    %v7435 = vunpack.c.l.b16 %v6290
    %v7436 = vunpack.c.h.b16 %v6290
    %v7437 = vunpack.c.l.b16 %v6291
    %v7438 = vunpack.c.l.b16 %v6292
    %v7439 = vunpack.c.h.b16 %v6292
    %v7440 = vunpack.c.l.b16 %v6293
    %v7441 = vunpack.c.l.b16 %v6294
    %v7442 = vunpack.c.h.b16 %v6294
    %v7443 = vunpack.c.l.b16 %v6295
    %v7444 = vunpack.c.l.b16 %v6296
    %v7445 = vunpack.c.h.b16 %v6296
    %v7446 = vunpack.c.l.b16 %v6297
    %v7447 = vunpack.c.l.b16 %v6298
    %v7448 = vunpack.c.h.b16 %v6298
    %v7449 = vunpack.c.l.b16 %v6299
    %v7450 = vunpack.c.l.b16 %v6300
    %v7451 = vunpack.c.h.b16 %v6300
    %v7452 = vunpack.c.l.b16 %v6301
    %v7453 = vunpack.c.l.b16 %v6302
    %v7454 = vunpack.c.h.b16 %v6302
    %v7455 = vunpack.c.l.b16 %v6303
    %v7456 = vunpack.c.l.b16 %v6304
    %v7457 = vunpack.c.h.b16 %v6304
    %v7458 = vunpack.c.l.b16 %v6305
    %v7459 = vunpack.c.l.b16 %v6306
    %v7460 = vunpack.c.h.b16 %v6306
    %v7461 = vunpack.c.l.b16 %v6307
    %v7462 = vunpack.c.l.b16 %v6308
    %v7463 = vunpack.c.h.b16 %v6308
    %v7464 = vunpack.c.l.b16 %v6309
    %v7465 = vunpack.c.l.b16 %v6310
    %v7466 = vunpack.c.h.b16 %v6310
    %v7467 = vunpack.c.l.b16 %v6311
    %v7468 = vunpack.c.l.b16 %v6312
    %v7469 = vunpack.c.h.b16 %v6312
    %v7470 = vunpack.c.l.b16 %v6313
    %v7471 = vunpack.c.l.b16 %v6314
    %v7472 = vunpack.c.h.b16 %v6314
    %v7473 = vunpack.c.l.b16 %v6315
    %v7474 = vunpack.c.l.b16 %v6316
    %v7475 = vunpack.c.h.b16 %v6316
    %v7476 = vunpack.c.l.b16 %v6317
    %v7477 = vunpack.c.l.b16 %v6318
    %v7478 = vunpack.c.h.b16 %v6318
    %v7479 = vunpack.c.l.b16 %v6319
    %v7480 = vunpack.c.l.b16 %v6320
    %v7481 = vunpack.c.h.b16 %v6320
    %v7482 = vunpack.c.l.b16 %v6321
    %v7483 = vunpack.c.l.b16 %v6322
    %v7484 = vunpack.c.h.b16 %v6322
    %v7485 = vunpack.c.l.b16 %v6323
    %v7486 = vunpack.c.l.b16 %v6324
    %v7487 = vunpack.c.h.b16 %v6324
    %v7488 = vunpack.c.l.b16 %v6325
    %v7489 = vunpack.c.l.b16 %v6326
    %v7490 = vunpack.c.h.b16 %v6326
    %v7491 = vunpack.c.l.b16 %v6327
    %v7492 = vunpack.c.l.b16 %v6328
    %v7493 = vunpack.c.h.b16 %v6328
    %v7494 = vunpack.c.l.b16 %v6329
    %v7495 = vunpack.c.l.b16 %v6330
    %v7496 = vunpack.c.h.b16 %v6330
    %v7497 = vunpack.c.l.b16 %v6331
    %v7498 = vunpack.c.l.b16 %v6332
    %v7499 = vunpack.c.h.b16 %v6332
    %v7500 = vunpack.c.l.b16 %v6333
    %v7501 = vpack.c.b16 %v7312, %v7309
    %v7502 = vpack.c.b16 %v7313, %v7310
    %v7503 = vpack.c.b16 %v7314, %v7311
    %v7504 = vpack.c.b16 %v7318, %v7315
    %v7505 = vpack.c.b16 %v7319, %v7316
    %v7506 = vpack.c.b16 %v7320, %v7317
    %v7507 = vpack.c.b16 %v7324, %v7321
    %v7508 = vpack.c.b16 %v7325, %v7322
    %v7509 = vpack.c.b16 %v7326, %v7323
    %v7510 = vpack.c.b16 %v7330, %v7327
    %v7511 = vpack.c.b16 %v7331, %v7328
    %v7512 = vpack.c.b16 %v7332, %v7329
    %v7513 = vpack.c.b16 %v7336, %v7333
    %v7514 = vpack.c.b16 %v7337, %v7334
    %v7515 = vpack.c.b16 %v7338, %v7335
    %v7516 = vpack.c.b16 %v7342, %v7339
    %v7517 = vpack.c.b16 %v7343, %v7340
    %v7518 = vpack.c.b16 %v7344, %v7341
    %v7519 = vpack.c.b16 %v7348, %v7345
    %v7520 = vpack.c.b16 %v7349, %v7346
    %v7521 = vpack.c.b16 %v7350, %v7347
    %v7522 = vpack.c.b16 %v7354, %v7351
    %v7523 = vpack.c.b16 %v7355, %v7352
    %v7524 = vpack.c.b16 %v7356, %v7353
    %v7525 = vpack.c.b16 %v7360, %v7357
    %v7526 = vpack.c.b16 %v7361, %v7358
    %v7527 = vpack.c.b16 %v7362, %v7359
    %v7528 = vpack.c.b16 %v7366, %v7363
    %v7529 = vpack.c.b16 %v7367, %v7364
    %v7530 = vpack.c.b16 %v7368, %v7365
    %v7531 = vpack.c.b16 %v7372, %v7369
    %v7532 = vpack.c.b16 %v7373, %v7370
    %v7533 = vpack.c.b16 %v7374, %v7371
    %v7534 = vpack.c.b16 %v7378, %v7375
    %v7535 = vpack.c.b16 %v7379, %v7376
    %v7536 = vpack.c.b16 %v7380, %v7377
    %v7537 = vpack.c.b16 %v7384, %v7381
    %v7538 = vpack.c.b16 %v7385, %v7382
    %v7539 = vpack.c.b16 %v7386, %v7383
    %v7540 = vpack.c.b16 %v7390, %v7387
    %v7541 = vpack.c.b16 %v7391, %v7388
    %v7542 = vpack.c.b16 %v7392, %v7389
    %v7543 = vpack.c.b16 %v7396, %v7393
    %v7544 = vpack.c.b16 %v7397, %v7394
    %v7545 = vpack.c.b16 %v7398, %v7395
    %v7546 = vpack.c.b16 %v7402, %v7399
    %v7547 = vpack.c.b16 %v7403, %v7400
    %v7548 = vpack.c.b16 %v7404, %v7401
    %v7549 = vpack.c.b16 %v7408, %v7405
    %v7550 = vpack.c.b16 %v7409, %v7406
    %v7551 = vpack.c.b16 %v7410, %v7407
    %v7552 = vpack.c.b16 %v7414, %v7411
    %v7553 = vpack.c.b16 %v7415, %v7412
    %v7554 = vpack.c.b16 %v7416, %v7413
    %v7555 = vpack.c.b16 %v7420, %v7417
    %v7556 = vpack.c.b16 %v7421, %v7418
    %v7557 = vpack.c.b16 %v7422, %v7419
    %v7558 = vpack.c.b16 %v7426, %v7423
    %v7559 = vpack.c.b16 %v7427, %v7424
    %v7560 = vpack.c.b16 %v7428, %v7425
    %v7561 = vpack.c.b16 %v7432, %v7429
    %v7562 = vpack.c.b16 %v7433, %v7430
    %v7563 = vpack.c.b16 %v7434, %v7431
    %v7564 = vpack.c.b16 %v7438, %v7435
    %v7565 = vpack.c.b16 %v7439, %v7436
    %v7566 = vpack.c.b16 %v7440, %v7437
    %v7567 = vpack.c.b16 %v7444, %v7441
    %v7568 = vpack.c.b16 %v7445, %v7442
    %v7569 = vpack.c.b16 %v7446, %v7443
    %v7570 = vpack.c.b16 %v7450, %v7447
    %v7571 = vpack.c.b16 %v7451, %v7448
    %v7572 = vpack.c.b16 %v7452, %v7449
    %v7573 = vpack.c.b16 %v7456, %v7453
    %v7574 = vpack.c.b16 %v7457, %v7454
    %v7575 = vpack.c.b16 %v7458, %v7455
    %v7576 = vpack.c.b16 %v7462, %v7459
    %v7577 = vpack.c.b16 %v7463, %v7460
    %v7578 = vpack.c.b16 %v7464, %v7461
    %v7579 = vpack.c.b16 %v7468, %v7465
    %v7580 = vpack.c.b16 %v7469, %v7466
    %v7581 = vpack.c.b16 %v7470, %v7467
    %v7582 = vpack.c.b16 %v7474, %v7471
    %v7583 = vpack.c.b16 %v7475, %v7472
    %v7584 = vpack.c.b16 %v7476, %v7473
    %v7585 = vpack.c.b16 %v7480, %v7477
    %v7586 = vpack.c.b16 %v7481, %v7478
    %v7587 = vpack.c.b16 %v7482, %v7479
    %v7588 = vpack.c.b16 %v7486, %v7483
    %v7589 = vpack.c.b16 %v7487, %v7484
    %v7590 = vpack.c.b16 %v7488, %v7485
    %v7591 = vpack.c.b16 %v7492, %v7489
    %v7592 = vpack.c.b16 %v7493, %v7490
    %v7593 = vpack.c.b16 %v7494, %v7491
    %v7594 = vpack.c.b16 %v7498, %v7495
    %v7595 = vpack.c.b16 %v7499, %v7496
    %v7596 = vpack.c.b16 %v7500, %v7497
    %7693 = vmatprep.subr.bf16.mxu0 %v7523
    %7694 = vmatpush1.bf16.msra.mxu0 %v7522
    %7695 = vmatprep.subr.bf16.mxu0 %v7520
    %7696 = vmatpush1.bf16.msra.mxu0 %v7519
    %7697 = vmatprep.subr.bf16.mxu0 %v7517
    %7698 = vmatpush1.bf16.msra.mxu0 %v7516
    %7699 = vmatprep.subr.bf16.mxu0 %v7514
    %7700 = vmatpush1.bf16.msra.mxu0 %v7513
    %7701 = vmatprep.subr.bf16.mxu0 %v7511
    %7702 = vmatpush1.bf16.msra.mxu0 %v7510
    %7703 = vmatprep.subr.bf16.mxu0 %v7508
    %7704 = vmatpush1.bf16.msra.mxu0 %v7507
    %7705 = vmatprep.subr.bf16.mxu0 %v7505
    %7706 = vmatpush1.bf16.msra.mxu0 %v7504
    %7707 = vmatprep.subr.bf16.mxu0 %v7502
    %7708 = vmatpush1.bf16.msra.mxu0 %v7501
    %7709 = vmatprep.subr.bf16.mxu0 %v7547
    %7710 = vmatpush2.bf16.msra.mxu0 %v7546
    %7711 = vmatprep.subr.bf16.mxu0 %v7544
    %7712 = vmatpush2.bf16.msra.mxu0 %v7543
    %7713 = vmatprep.subr.bf16.mxu0 %v7541
    %7714 = vmatpush2.bf16.msra.mxu0 %v7540
    %7715 = vmatprep.subr.bf16.mxu0 %v7538
    %7716 = vmatpush2.bf16.msra.mxu0 %v7537
    %7717 = vmatprep.subr.bf16.mxu0 %v7535
    %7718 = vmatpush2.bf16.msra.mxu0 %v7534
    %7719 = vmatprep.subr.bf16.mxu0 %v7532
    %7720 = vmatpush2.bf16.msra.mxu0 %v7531
    %7721 = vmatprep.subr.bf16.mxu0 %v7529
    %7722 = vmatpush2.bf16.msra.mxu0 %v7528
    %7723 = vmatprep.subr.bf16.mxu0 %v7526
    %7724 = vmatpush2.bf16.msra.mxu0 %v7525
    %7725 = vmatprep.mubr.bf16.mxu0 %v6199
    %7726 = vmatmul.mubr.bf16.gmra.mxu0 %v6198
    %v7727 = vpop.f32.mrf.mxu0
    %v7728 = vadd.f32 %v7069, %v7727
    %v7729 = vpop.f32.mrf.mxu0
    %v7730 = vadd.f32 %v7071, %v7729
    %v7731 = vpop.f32.mrf.mxu0
    %v7732 = vadd.f32 %v7073, %v7731
    %v7733 = vpop.f32.mrf.mxu0
    %v7734 = vadd.f32 %v7075, %v7733
    %7735 = vmatprep.mubr.bf16.mxu0 %v6203
    %7736 = vmatmul.mubr.bf16.gmra.mxu0 %v6202
    %v7737 = vpop.f32.mrf.mxu0
    %v7738 = vadd.f32 %v7079, %v7737
    %v7739 = vpop.f32.mrf.mxu0
    %v7740 = vadd.f32 %v7081, %v7739
    %v7741 = vpop.f32.mrf.mxu0
    %v7742 = vpop.f32.mrf.mxu0
    %7743 = vdwg.mxu0
    %7744 = vmatprep.subr.bf16.mxu0 %v7571
    %7745 = vmatpush1.bf16.msra.mxu0 %v7570
    %7746 = vmatprep.subr.bf16.mxu0 %v7568
    %7747 = vmatpush1.bf16.msra.mxu0 %v7567
    %7748 = vmatprep.subr.bf16.mxu0 %v7565
    %7749 = vmatpush1.bf16.msra.mxu0 %v7564
    %7750 = vmatprep.subr.bf16.mxu0 %v7562
    %7751 = vmatpush1.bf16.msra.mxu0 %v7561
    %7752 = vmatprep.subr.bf16.mxu0 %v7559
    %7753 = vmatpush1.bf16.msra.mxu0 %v7558
    %7754 = vmatprep.subr.bf16.mxu0 %v7556
    %7755 = vmatpush1.bf16.msra.mxu0 %v7555
    %7756 = vmatprep.subr.bf16.mxu0 %v7553
    %7757 = vmatpush1.bf16.msra.mxu0 %v7552
    %7758 = vmatprep.subr.bf16.mxu0 %v7550
    %7759 = vmatpush1.bf16.msra.mxu0 %v7549
    %7760 = vmatprep.subr.bf16.mxu0 %v7595
    %7761 = vmatpush2.bf16.msra.mxu0 %v7594
    %7762 = vmatprep.subr.bf16.mxu0 %v7592
    %7763 = vmatpush2.bf16.msra.mxu0 %v7591
    %7764 = vmatprep.subr.bf16.mxu0 %v7589
    %7765 = vmatpush2.bf16.msra.mxu0 %v7588
    %7766 = vmatprep.subr.bf16.mxu0 %v7586
    %7767 = vmatpush2.bf16.msra.mxu0 %v7585
    %7768 = vmatprep.subr.bf16.mxu0 %v7583
    %7769 = vmatpush2.bf16.msra.mxu0 %v7582
    %7770 = vmatprep.subr.bf16.mxu0 %v7580
    %7771 = vmatpush2.bf16.msra.mxu0 %v7579
    %7772 = vmatprep.subr.bf16.mxu0 %v7577
    %7773 = vmatpush2.bf16.msra.mxu0 %v7576
    %7774 = vmatprep.subr.bf16.mxu0 %v7574
    %7775 = vmatpush2.bf16.msra.mxu0 %v7573
    %7776 = vmatprep.mubr.bf16.mxu0 %v6201
    %7777 = vmatmul.mubr.bf16.gmra.mxu0 %v6200
    %v7778 = vpop.f32.mrf.mxu0
    %v7779 = vadd.f32 %v7728, %v7778
    %v7780 = vpop.f32.mrf.mxu0
    %v7781 = vadd.f32 %v7730, %v7780
    %v7782 = vpop.f32.mrf.mxu0
    %v7783 = vadd.f32 %v7732, %v7782
    %v7784 = vpop.f32.mrf.mxu0
    %v7785 = vadd.f32 %v7734, %v7784
    %7786 = vmatprep.mubr.bf16.mxu0 %v6205
    %7787 = vmatmul.mubr.bf16.gmra.mxu0 %v6204
    %v7788 = vpop.f32.mrf.mxu0
    %v7789 = vadd.f32 %v7738, %v7788
    %v7790 = vpop.f32.mrf.mxu0
    %v7791 = vadd.f32 %v7740, %v7790
    %v7792 = vpop.f32.mrf.mxu0
    %v7793 = vpop.f32.mrf.mxu0
    %7794 = vdwg.mxu0
    %7795 = vmatprep.subr.bf16.mxu0 0
    %7796 = vmatpush1.bf16.msra.mxu0 %v7524
    %7797 = vmatprep.subr.bf16.mxu0 0
    %7798 = vmatpush1.bf16.msra.mxu0 %v7521
    %7799 = vmatprep.subr.bf16.mxu0 0
    %7800 = vmatpush1.bf16.msra.mxu0 %v7518
    %7801 = vmatprep.subr.bf16.mxu0 0
    %7802 = vmatpush1.bf16.msra.mxu0 %v7515
    %7803 = vmatprep.subr.bf16.mxu0 0
    %7804 = vmatpush1.bf16.msra.mxu0 %v7512
    %7805 = vmatprep.subr.bf16.mxu0 0
    %7806 = vmatpush1.bf16.msra.mxu0 %v7509
    %7807 = vmatprep.subr.bf16.mxu0 0
    %7808 = vmatpush1.bf16.msra.mxu0 %v7506
    %7809 = vmatprep.subr.bf16.mxu0 0
    %7810 = vmatpush1.bf16.msra.mxu0 %v7503
    %7811 = vmatprep.subr.bf16.mxu0 0
    %7812 = vmatpush2.bf16.msra.mxu0 %v7548
    %7813 = vmatprep.subr.bf16.mxu0 0
    %7814 = vmatpush2.bf16.msra.mxu0 %v7545
    %7815 = vmatprep.subr.bf16.mxu0 0
    %7816 = vmatpush2.bf16.msra.mxu0 %v7542
    %7817 = vmatprep.subr.bf16.mxu0 0
    %7818 = vmatpush2.bf16.msra.mxu0 %v7539
    %7819 = vmatprep.subr.bf16.mxu0 0
    %7820 = vmatpush2.bf16.msra.mxu0 %v7536
    %7821 = vmatprep.subr.bf16.mxu0 0
    %7822 = vmatpush2.bf16.msra.mxu0 %v7533
    %7823 = vmatprep.subr.bf16.mxu0 0
    %7824 = vmatpush2.bf16.msra.mxu0 %v7530
    %7825 = vmatprep.subr.bf16.mxu0 0
    %7826 = vmatpush2.bf16.msra.mxu0 %v7527
    %7827 = vmatprep.mubr.bf16.mxu0 %v6199
    %7828 = vmatmul.mubr.bf16.gmra.mxu0 %v6198
    %v7829 = vpop.f32.mrf.mxu0
    %v7830 = vadd.f32 %v7168, %v7829
    %v7831 = vpop.f32.mrf.mxu0
    %v7832 = vpop.f32.mrf.mxu0
    %v7833 = vadd.f32 %v7171, %v7832
    %v7834 = vpop.f32.mrf.mxu0
    %7835 = vmatprep.mubr.bf16.mxu0 %v6203
    %7836 = vmatmul.mubr.bf16.gmra.mxu0 %v6202
    %v7837 = vpop.f32.mrf.mxu0
    %v7838 = vadd.f32 %v7176, %v7837
    %v7839 = vpop.f32.mrf.mxu0
    %v7840 = vpop.f32.mrf.mxu0
    %v7841 = vpop.f32.mrf.mxu0
    %7842 = vdwg.mxu0
    %7843 = vmatprep.subr.bf16.mxu0 0
    %7844 = vmatpush1.bf16.msra.mxu0 %v7572
    %7845 = vmatprep.subr.bf16.mxu0 0
    %7846 = vmatpush1.bf16.msra.mxu0 %v7569
    %7847 = vmatprep.subr.bf16.mxu0 0
    %7848 = vmatpush1.bf16.msra.mxu0 %v7566
    %7849 = vmatprep.subr.bf16.mxu0 0
    %7850 = vmatpush1.bf16.msra.mxu0 %v7563
    %7851 = vmatprep.subr.bf16.mxu0 0
    %7852 = vmatpush1.bf16.msra.mxu0 %v7560
    %7853 = vmatprep.subr.bf16.mxu0 0
    %7854 = vmatpush1.bf16.msra.mxu0 %v7557
    %7855 = vmatprep.subr.bf16.mxu0 0
    %7856 = vmatpush1.bf16.msra.mxu0 %v7554
    %7857 = vmatprep.subr.bf16.mxu0 0
    %7858 = vmatpush1.bf16.msra.mxu0 %v7551
    %7859 = vmatprep.subr.bf16.mxu0 0
    %7860 = vmatpush2.bf16.msra.mxu0 %v7596
    %7861 = vmatprep.subr.bf16.mxu0 0
    %7862 = vmatpush2.bf16.msra.mxu0 %v7593
    %7863 = vmatprep.subr.bf16.mxu0 0
    %7864 = vmatpush2.bf16.msra.mxu0 %v7590
    %7865 = vmatprep.subr.bf16.mxu0 0
    %7866 = vmatpush2.bf16.msra.mxu0 %v7587
    %7867 = vmatprep.subr.bf16.mxu0 0
    %7868 = vmatpush2.bf16.msra.mxu0 %v7584
    %7869 = vmatprep.subr.bf16.mxu0 0
    %7870 = vmatpush2.bf16.msra.mxu0 %v7581
    %7871 = vmatprep.subr.bf16.mxu0 0
    %7872 = vmatpush2.bf16.msra.mxu0 %v7578
    %7873 = vmatprep.subr.bf16.mxu0 0
    %7874 = vmatpush2.bf16.msra.mxu0 %v7575
    %7875 = vmatprep.mubr.bf16.mxu0 %v6201
    %7876 = vmatmul.mubr.bf16.gmra.mxu0 %v6200
    %v7877 = vpop.f32.mrf.mxu0
    %v7878 = vadd.f32 %v7830, %v7877
    %v7879 = vpop.f32.mrf.mxu0
    %v7880 = vpop.f32.mrf.mxu0
    %v7881 = vadd.f32 %v7833, %v7880
    %v7882 = vpop.f32.mrf.mxu0
    %7883 = vmatprep.mubr.bf16.mxu0 %v6205
    %7884 = vmatmul.mubr.bf16.gmra.mxu0 %v6204
    %v7885 = vpop.f32.mrf.mxu0
    %v7886 = vadd.f32 %v7838, %v7885
    %v7887 = vpop.f32.mrf.mxu0
    %v7888 = vpop.f32.mrf.mxu0
    %v7889 = vpop.f32.mrf.mxu0
    %7890 = vdwg.mxu0
    %v7891 = vpack.c.bf16 %v6186, %v6178
    %v7892 = vpack.c.bf16 %v6187, %v6179
    %v7893 = vpack.c.bf16 %v6188, %v6180
    %v7894 = vpack.c.bf16 %v6189, %v6181
    %v7895 = vpack.c.bf16 %v6194, %v6194
    %v7896 = vpack.c.bf16 %v6195, %v6195
    %v7897 = vpack.c.bf16 %v6196, %v6196
    %v7898 = vpack.c.bf16 %v6197, %v6197
    %s7899 = scalar_lea.vmem %s5, 1536
    %v7900 = vld [vmem:[%s7899] sm:$0xff]
    %v7901 = vld [vmem:[%s7899 + $0x8] sm:$0xf]
    %v7902 = vld [vmem:[%s7899 + $0xc] sm:$0xff]
    %v7903 = vld [vmem:[%s7899 + $0x14] sm:$0xf]
    %v7904 = vld [vmem:[%s7899 + $0x18] sm:$0xff]
    %v7905 = vld [vmem:[%s7899 + $0x20] sm:$0xf]
    %v7906 = vld [vmem:[%s7899 + $0x24] sm:$0xff]
    %v7907 = vld [vmem:[%s7899 + $0x2c] sm:$0xf]
    %v7908 = vld [vmem:[%s7899 + $0x30] sm:$0xff]
    %v7909 = vld [vmem:[%s7899 + $0x38] sm:$0xf]
    %v7910 = vld [vmem:[%s7899 + $0x3c] sm:$0xff]
    %v7911 = vld [vmem:[%s7899 + $0x44] sm:$0xf]
    %v7912 = vld [vmem:[%s7899 + $0x48] sm:$0xff]
    %v7913 = vld [vmem:[%s7899 + $0x50] sm:$0xf]
    %v7914 = vld [vmem:[%s7899 + $0x54] sm:$0xff]
    %v7915 = vld [vmem:[%s7899 + $0x5c] sm:$0xf]
    %v7916 = vld [vmem:[%s7899 + $0x60] sm:$0xff]
    %v7917 = vld [vmem:[%s7899 + $0x68] sm:$0xf]
    %v7918 = vld [vmem:[%s7899 + $0x6c] sm:$0xff]
    %v7919 = vld [vmem:[%s7899 + $0x74] sm:$0xf]
    %v7920 = vld [vmem:[%s7899 + $0x78] sm:$0xff]
    %v7921 = vld [vmem:[%s7899 + $0x80] sm:$0xf]
    %v7922 = vld [vmem:[%s7899 + $0x84] sm:$0xff]
    %v7923 = vld [vmem:[%s7899 + $0x8c] sm:$0xf]
    %v7924 = vld [vmem:[%s7899 + $0x90] sm:$0xff]
    %v7925 = vld [vmem:[%s7899 + $0x98] sm:$0xf]
    %v7926 = vld [vmem:[%s7899 + $0x9c] sm:$0xff]
    %v7927 = vld [vmem:[%s7899 + $0xa4] sm:$0xf]
    %v7928 = vld [vmem:[%s7899 + $0xa8] sm:$0xff]
    %v7929 = vld [vmem:[%s7899 + $0xb0] sm:$0xf]
    %v7930 = vld [vmem:[%s7899 + $0xb4] sm:$0xff]
    %v7931 = vld [vmem:[%s7899 + $0xbc] sm:$0xf]
    %v7932 = vld [vmem:[%s7899 + $0xc0] sm:$0xff]
    %v7933 = vld [vmem:[%s7899 + $0xc8] sm:$0xf]
    %v7934 = vld [vmem:[%s7899 + $0xcc] sm:$0xff]
    %v7935 = vld [vmem:[%s7899 + $0xd4] sm:$0xf]
    %v7936 = vld [vmem:[%s7899 + $0xd8] sm:$0xff]
    %v7937 = vld [vmem:[%s7899 + $0xe0] sm:$0xf]
    %v7938 = vld [vmem:[%s7899 + $0xe4] sm:$0xff]
    %v7939 = vld [vmem:[%s7899 + $0xec] sm:$0xf]
    %v7940 = vld [vmem:[%s7899 + $0xf0] sm:$0xff]
    %v7941 = vld [vmem:[%s7899 + $0xf8] sm:$0xf]
    %v7942 = vld [vmem:[%s7899 + $0xfc] sm:$0xff]
    %v7943 = vld [vmem:[%s7899 + $0x104] sm:$0xf]
    %v7944 = vld [vmem:[%s7899 + $0x108] sm:$0xff]
    %v7945 = vld [vmem:[%s7899 + $0x110] sm:$0xf]
    %v7946 = vld [vmem:[%s7899 + $0x114] sm:$0xff]
    %v7947 = vld [vmem:[%s7899 + $0x11c] sm:$0xf]
    %v7948 = vld [vmem:[%s7899 + $0x120] sm:$0xff]
    %v7949 = vld [vmem:[%s7899 + $0x128] sm:$0xf]
    %v7950 = vld [vmem:[%s7899 + $0x12c] sm:$0xff]
    %v7951 = vld [vmem:[%s7899 + $0x134] sm:$0xf]
    %v7952 = vld [vmem:[%s7899 + $0x138] sm:$0xff]
    %v7953 = vld [vmem:[%s7899 + $0x140] sm:$0xf]
    %v7954 = vld [vmem:[%s7899 + $0x144] sm:$0xff]
    %v7955 = vld [vmem:[%s7899 + $0x14c] sm:$0xf]
    %v7956 = vld [vmem:[%s7899 + $0x150] sm:$0xff]
    %v7957 = vld [vmem:[%s7899 + $0x158] sm:$0xf]
    %v7958 = vld [vmem:[%s7899 + $0x15c] sm:$0xff]
    %v7959 = vld [vmem:[%s7899 + $0x164] sm:$0xf]
    %v7960 = vld [vmem:[%s7899 + $0x168] sm:$0xff]
    %v7961 = vld [vmem:[%s7899 + $0x170] sm:$0xf]
    %v7962 = vld [vmem:[%s7899 + $0x174] sm:$0xff]
    %v7963 = vld [vmem:[%s7899 + $0x17c] sm:$0xf]
    %v7964 = vld [vmem:[%s7899 + $0x180] sm:$0xff]
    %v7965 = vld [vmem:[%s7899 + $0x188] sm:$0xf]
    %v7966 = vld [vmem:[%s7899 + $0x18c] sm:$0xff]
    %v7967 = vld [vmem:[%s7899 + $0x194] sm:$0xf]
    %v7968 = vld [vmem:[%s7899 + $0x198] sm:$0xff]
    %v7969 = vld [vmem:[%s7899 + $0x1a0] sm:$0xf]
    %v7970 = vld [vmem:[%s7899 + $0x1a4] sm:$0xff]
    %v7971 = vld [vmem:[%s7899 + $0x1ac] sm:$0xf]
    %v7972 = vld [vmem:[%s7899 + $0x1b0] sm:$0xff]
    %v7973 = vld [vmem:[%s7899 + $0x1b8] sm:$0xf]
    %v7974 = vld [vmem:[%s7899 + $0x1bc] sm:$0xff]
    %v7975 = vld [vmem:[%s7899 + $0x1c4] sm:$0xf]
    %v7976 = vld [vmem:[%s7899 + $0x1c8] sm:$0xff]
    %v7977 = vld [vmem:[%s7899 + $0x1d0] sm:$0xf]
    %v7978 = vld [vmem:[%s7899 + $0x1d4] sm:$0xff]
    %v7979 = vld [vmem:[%s7899 + $0x1dc] sm:$0xf]
    %v7980 = vld [vmem:[%s7899 + $0x1e0] sm:$0xff]
    %v7981 = vld [vmem:[%s7899 + $0x1e8] sm:$0xf]
    %v7982 = vld [vmem:[%s7899 + $0x1ec] sm:$0xff]
    %v7983 = vld [vmem:[%s7899 + $0x1f4] sm:$0xf]
    %v7984 = vld [vmem:[%s7899 + $0x1f8] sm:$0xff]
    %v7985 = vld [vmem:[%s7899 + $0x200] sm:$0xf]
    %v7986 = vld [vmem:[%s7899 + $0x204] sm:$0xff]
    %v7987 = vld [vmem:[%s7899 + $0x20c] sm:$0xf]
    %v7988 = vld [vmem:[%s7899 + $0x210] sm:$0xff]
    %v7989 = vld [vmem:[%s7899 + $0x218] sm:$0xf]
    %v7990 = vld [vmem:[%s7899 + $0x21c] sm:$0xff]
    %v7991 = vld [vmem:[%s7899 + $0x224] sm:$0xf]
    %v7992 = vld [vmem:[%s7899 + $0x228] sm:$0xff]
    %v7993 = vld [vmem:[%s7899 + $0x230] sm:$0xf]
    %v7994 = vld [vmem:[%s7899 + $0x234] sm:$0xff]
    %v7995 = vld [vmem:[%s7899 + $0x23c] sm:$0xf]
    %v7996 = vld [vmem:[%s7899 + $0x240] sm:$0xff]
    %v7997 = vld [vmem:[%s7899 + $0x248] sm:$0xf]
    %v7998 = vld [vmem:[%s7899 + $0x24c] sm:$0xff]
    %v7999 = vld [vmem:[%s7899 + $0x254] sm:$0xf]
    %v8000 = vld [vmem:[%s7899 + $0x258] sm:$0xff]
    %v8001 = vld [vmem:[%s7899 + $0x260] sm:$0xf]
    %v8002 = vld [vmem:[%s7899 + $0x264] sm:$0xff]
    %v8003 = vld [vmem:[%s7899 + $0x26c] sm:$0xf]
    %v8004 = vld [vmem:[%s7899 + $0x270] sm:$0xff]
    %v8005 = vld [vmem:[%s7899 + $0x278] sm:$0xf]
    %v8006 = vld [vmem:[%s7899 + $0x27c] sm:$0xff]
    %v8007 = vld [vmem:[%s7899 + $0x284] sm:$0xf]
    %v8008 = vld [vmem:[%s7899 + $0x288] sm:$0xff]
    %v8009 = vld [vmem:[%s7899 + $0x290] sm:$0xf]
    %v8010 = vld [vmem:[%s7899 + $0x294] sm:$0xff]
    %v8011 = vld [vmem:[%s7899 + $0x29c] sm:$0xf]
    %v8012 = vld [vmem:[%s7899 + $0x2a0] sm:$0xff]
    %v8013 = vld [vmem:[%s7899 + $0x2a8] sm:$0xf]
    %v8014 = vld [vmem:[%s7899 + $0x2ac] sm:$0xff]
    %v8015 = vld [vmem:[%s7899 + $0x2b4] sm:$0xf]
    %v8016 = vld [vmem:[%s7899 + $0x2b8] sm:$0xff]
    %v8017 = vld [vmem:[%s7899 + $0x2c0] sm:$0xf]
    %v8018 = vld [vmem:[%s7899 + $0x2c4] sm:$0xff]
    %v8019 = vld [vmem:[%s7899 + $0x2cc] sm:$0xf]
    %v8020 = vld [vmem:[%s7899 + $0x2d0] sm:$0xff]
    %v8021 = vld [vmem:[%s7899 + $0x2d8] sm:$0xf]
    %v8022 = vld [vmem:[%s7899 + $0x2dc] sm:$0xff]
    %v8023 = vld [vmem:[%s7899 + $0x2e4] sm:$0xf]
    %v8024 = vld [vmem:[%s7899 + $0x2e8] sm:$0xff]
    %v8025 = vld [vmem:[%s7899 + $0x2f0] sm:$0xf]
    %v8026 = vld [vmem:[%s7899 + $0x2f4] sm:$0xff]
    %v8027 = vld [vmem:[%s7899 + $0x2fc] sm:$0xf]
    %v8156 = vunpack.c.l.b16 %v7900
    %v8157 = vunpack.c.h.b16 %v7900
    %v8158 = vunpack.c.l.b16 %v7901
    %v8159 = vunpack.c.l.b16 %v7902
    %v8160 = vunpack.c.h.b16 %v7902
    %v8161 = vunpack.c.l.b16 %v7903
    %v8162 = vunpack.c.l.b16 %v7904
    %v8163 = vunpack.c.h.b16 %v7904
    %v8164 = vunpack.c.l.b16 %v7905
    %v8165 = vunpack.c.l.b16 %v7906
    %v8166 = vunpack.c.h.b16 %v7906
    %v8167 = vunpack.c.l.b16 %v7907
    %v8168 = vunpack.c.l.b16 %v7908
    %v8169 = vunpack.c.h.b16 %v7908
    %v8170 = vunpack.c.l.b16 %v7909
    %v8171 = vunpack.c.l.b16 %v7910
    %v8172 = vunpack.c.h.b16 %v7910
    %v8173 = vunpack.c.l.b16 %v7911
    %v8174 = vunpack.c.l.b16 %v7912
    %v8175 = vunpack.c.h.b16 %v7912
    %v8176 = vunpack.c.l.b16 %v7913
    %v8177 = vunpack.c.l.b16 %v7914
    %v8178 = vunpack.c.h.b16 %v7914
    %v8179 = vunpack.c.l.b16 %v7915
    %v8180 = vunpack.c.l.b16 %v7916
    %v8181 = vunpack.c.h.b16 %v7916
    %v8182 = vunpack.c.l.b16 %v7917
    %v8183 = vunpack.c.l.b16 %v7918
    %v8184 = vunpack.c.h.b16 %v7918
    %v8185 = vunpack.c.l.b16 %v7919
    %v8186 = vunpack.c.l.b16 %v7920
    %v8187 = vunpack.c.h.b16 %v7920
    %v8188 = vunpack.c.l.b16 %v7921
    %v8189 = vunpack.c.l.b16 %v7922
    %v8190 = vunpack.c.h.b16 %v7922
    %v8191 = vunpack.c.l.b16 %v7923
    %v8192 = vunpack.c.l.b16 %v7924
    %v8193 = vunpack.c.h.b16 %v7924
    %v8194 = vunpack.c.l.b16 %v7925
    %v8195 = vunpack.c.l.b16 %v7926
    %v8196 = vunpack.c.h.b16 %v7926
    %v8197 = vunpack.c.l.b16 %v7927
    %v8198 = vunpack.c.l.b16 %v7928
    %v8199 = vunpack.c.h.b16 %v7928
    %v8200 = vunpack.c.l.b16 %v7929
    %v8201 = vunpack.c.l.b16 %v7930
    %v8202 = vunpack.c.h.b16 %v7930
    %v8203 = vunpack.c.l.b16 %v7931
    %v8204 = vunpack.c.l.b16 %v7932
    %v8205 = vunpack.c.h.b16 %v7932
    %v8206 = vunpack.c.l.b16 %v7933
    %v8207 = vunpack.c.l.b16 %v7934
    %v8208 = vunpack.c.h.b16 %v7934
    %v8209 = vunpack.c.l.b16 %v7935
    %v8210 = vunpack.c.l.b16 %v7936
    %v8211 = vunpack.c.h.b16 %v7936
    %v8212 = vunpack.c.l.b16 %v7937
    %v8213 = vunpack.c.l.b16 %v7938
    %v8214 = vunpack.c.h.b16 %v7938
    %v8215 = vunpack.c.l.b16 %v7939
    %v8216 = vunpack.c.l.b16 %v7940
    %v8217 = vunpack.c.h.b16 %v7940
    %v8218 = vunpack.c.l.b16 %v7941
    %v8219 = vunpack.c.l.b16 %v7942
    %v8220 = vunpack.c.h.b16 %v7942
    %v8221 = vunpack.c.l.b16 %v7943
    %v8222 = vunpack.c.l.b16 %v7944
    %v8223 = vunpack.c.h.b16 %v7944
    %v8224 = vunpack.c.l.b16 %v7945
    %v8225 = vunpack.c.l.b16 %v7946
    %v8226 = vunpack.c.h.b16 %v7946
    %v8227 = vunpack.c.l.b16 %v7947
    %v8228 = vunpack.c.l.b16 %v7948
    %v8229 = vunpack.c.h.b16 %v7948
    %v8230 = vunpack.c.l.b16 %v7949
    %v8231 = vunpack.c.l.b16 %v7950
    %v8232 = vunpack.c.h.b16 %v7950
    %v8233 = vunpack.c.l.b16 %v7951
    %v8234 = vunpack.c.l.b16 %v7952
    %v8235 = vunpack.c.h.b16 %v7952
    %v8236 = vunpack.c.l.b16 %v7953
    %v8237 = vunpack.c.l.b16 %v7954
    %v8238 = vunpack.c.h.b16 %v7954
    %v8239 = vunpack.c.l.b16 %v7955
    %v8240 = vunpack.c.l.b16 %v7956
    %v8241 = vunpack.c.h.b16 %v7956
    %v8242 = vunpack.c.l.b16 %v7957
    %v8243 = vunpack.c.l.b16 %v7958
    %v8244 = vunpack.c.h.b16 %v7958
    %v8245 = vunpack.c.l.b16 %v7959
    %v8246 = vunpack.c.l.b16 %v7960
    %v8247 = vunpack.c.h.b16 %v7960
    %v8248 = vunpack.c.l.b16 %v7961
    %v8249 = vunpack.c.l.b16 %v7962
    %v8250 = vunpack.c.h.b16 %v7962
    %v8251 = vunpack.c.l.b16 %v7963
    %v8252 = vunpack.c.l.b16 %v7964
    %v8253 = vunpack.c.h.b16 %v7964
    %v8254 = vunpack.c.l.b16 %v7965
    %v8255 = vunpack.c.l.b16 %v7966
    %v8256 = vunpack.c.h.b16 %v7966
    %v8257 = vunpack.c.l.b16 %v7967
    %v8258 = vunpack.c.l.b16 %v7968
    %v8259 = vunpack.c.h.b16 %v7968
    %v8260 = vunpack.c.l.b16 %v7969
    %v8261 = vunpack.c.l.b16 %v7970
    %v8262 = vunpack.c.h.b16 %v7970
    %v8263 = vunpack.c.l.b16 %v7971
    %v8264 = vunpack.c.l.b16 %v7972
    %v8265 = vunpack.c.h.b16 %v7972
    %v8266 = vunpack.c.l.b16 %v7973
    %v8267 = vunpack.c.l.b16 %v7974
    %v8268 = vunpack.c.h.b16 %v7974
    %v8269 = vunpack.c.l.b16 %v7975
    %v8270 = vunpack.c.l.b16 %v7976
    %v8271 = vunpack.c.h.b16 %v7976
    %v8272 = vunpack.c.l.b16 %v7977
    %v8273 = vunpack.c.l.b16 %v7978
    %v8274 = vunpack.c.h.b16 %v7978
    %v8275 = vunpack.c.l.b16 %v7979
    %v8276 = vunpack.c.l.b16 %v7980
    %v8277 = vunpack.c.h.b16 %v7980
    %v8278 = vunpack.c.l.b16 %v7981
    %v8279 = vunpack.c.l.b16 %v7982
    %v8280 = vunpack.c.h.b16 %v7982
    %v8281 = vunpack.c.l.b16 %v7983
    %v8282 = vunpack.c.l.b16 %v7984
    %v8283 = vunpack.c.h.b16 %v7984
    %v8284 = vunpack.c.l.b16 %v7985
    %v8285 = vunpack.c.l.b16 %v7986
    %v8286 = vunpack.c.h.b16 %v7986
    %v8287 = vunpack.c.l.b16 %v7987
    %v8288 = vunpack.c.l.b16 %v7988
    %v8289 = vunpack.c.h.b16 %v7988
    %v8290 = vunpack.c.l.b16 %v7989
    %v8291 = vunpack.c.l.b16 %v7990
    %v8292 = vunpack.c.h.b16 %v7990
    %v8293 = vunpack.c.l.b16 %v7991
    %v8294 = vunpack.c.l.b16 %v7992
    %v8295 = vunpack.c.h.b16 %v7992
    %v8296 = vunpack.c.l.b16 %v7993
    %v8297 = vunpack.c.l.b16 %v7994
    %v8298 = vunpack.c.h.b16 %v7994
    %v8299 = vunpack.c.l.b16 %v7995
    %v8300 = vunpack.c.l.b16 %v7996
    %v8301 = vunpack.c.h.b16 %v7996
    %v8302 = vunpack.c.l.b16 %v7997
    %v8303 = vunpack.c.l.b16 %v7998
    %v8304 = vunpack.c.h.b16 %v7998
    %v8305 = vunpack.c.l.b16 %v7999
    %v8306 = vunpack.c.l.b16 %v8000
    %v8307 = vunpack.c.h.b16 %v8000
    %v8308 = vunpack.c.l.b16 %v8001
    %v8309 = vunpack.c.l.b16 %v8002
    %v8310 = vunpack.c.h.b16 %v8002
    %v8311 = vunpack.c.l.b16 %v8003
    %v8312 = vunpack.c.l.b16 %v8004
    %v8313 = vunpack.c.h.b16 %v8004
    %v8314 = vunpack.c.l.b16 %v8005
    %v8315 = vunpack.c.l.b16 %v8006
    %v8316 = vunpack.c.h.b16 %v8006
    %v8317 = vunpack.c.l.b16 %v8007
    %v8318 = vunpack.c.l.b16 %v8008
    %v8319 = vunpack.c.h.b16 %v8008
    %v8320 = vunpack.c.l.b16 %v8009
    %v8321 = vunpack.c.l.b16 %v8010
    %v8322 = vunpack.c.h.b16 %v8010
    %v8323 = vunpack.c.l.b16 %v8011
    %v8324 = vunpack.c.l.b16 %v8012
    %v8325 = vunpack.c.h.b16 %v8012
    %v8326 = vunpack.c.l.b16 %v8013
    %v8327 = vunpack.c.l.b16 %v8014
    %v8328 = vunpack.c.h.b16 %v8014
    %v8329 = vunpack.c.l.b16 %v8015
    %v8330 = vunpack.c.l.b16 %v8016
    %v8331 = vunpack.c.h.b16 %v8016
    %v8332 = vunpack.c.l.b16 %v8017
    %v8333 = vunpack.c.l.b16 %v8018
    %v8334 = vunpack.c.h.b16 %v8018
    %v8335 = vunpack.c.l.b16 %v8019
    %v8336 = vunpack.c.l.b16 %v8020
    %v8337 = vunpack.c.h.b16 %v8020
    %v8338 = vunpack.c.l.b16 %v8021
    %v8339 = vunpack.c.l.b16 %v8022
    %v8340 = vunpack.c.h.b16 %v8022
    %v8341 = vunpack.c.l.b16 %v8023
    %v8342 = vunpack.c.l.b16 %v8024
    %v8343 = vunpack.c.h.b16 %v8024
    %v8344 = vunpack.c.l.b16 %v8025
    %v8345 = vunpack.c.l.b16 %v8026
    %v8346 = vunpack.c.h.b16 %v8026
    %v8347 = vunpack.c.l.b16 %v8027
    %v8348 = vpack.c.b16 %v8159, %v8156
    %v8349 = vpack.c.b16 %v8160, %v8157
    %v8350 = vpack.c.b16 %v8161, %v8158
    %v8351 = vpack.c.b16 %v8165, %v8162
    %v8352 = vpack.c.b16 %v8166, %v8163
    %v8353 = vpack.c.b16 %v8167, %v8164
    %v8354 = vpack.c.b16 %v8171, %v8168
    %v8355 = vpack.c.b16 %v8172, %v8169
    %v8356 = vpack.c.b16 %v8173, %v8170
    %v8357 = vpack.c.b16 %v8177, %v8174
    %v8358 = vpack.c.b16 %v8178, %v8175
    %v8359 = vpack.c.b16 %v8179, %v8176
    %v8360 = vpack.c.b16 %v8183, %v8180
    %v8361 = vpack.c.b16 %v8184, %v8181
    %v8362 = vpack.c.b16 %v8185, %v8182
    %v8363 = vpack.c.b16 %v8189, %v8186
    %v8364 = vpack.c.b16 %v8190, %v8187
    %v8365 = vpack.c.b16 %v8191, %v8188
    %v8366 = vpack.c.b16 %v8195, %v8192
    %v8367 = vpack.c.b16 %v8196, %v8193
    %v8368 = vpack.c.b16 %v8197, %v8194
    %v8369 = vpack.c.b16 %v8201, %v8198
    %v8370 = vpack.c.b16 %v8202, %v8199
    %v8371 = vpack.c.b16 %v8203, %v8200
    %v8372 = vpack.c.b16 %v8207, %v8204
    %v8373 = vpack.c.b16 %v8208, %v8205
    %v8374 = vpack.c.b16 %v8209, %v8206
    %v8375 = vpack.c.b16 %v8213, %v8210
    %v8376 = vpack.c.b16 %v8214, %v8211
    %v8377 = vpack.c.b16 %v8215, %v8212
    %v8378 = vpack.c.b16 %v8219, %v8216
    %v8379 = vpack.c.b16 %v8220, %v8217
    %v8380 = vpack.c.b16 %v8221, %v8218
    %v8381 = vpack.c.b16 %v8225, %v8222
    %v8382 = vpack.c.b16 %v8226, %v8223
    %v8383 = vpack.c.b16 %v8227, %v8224
    %v8384 = vpack.c.b16 %v8231, %v8228
    %v8385 = vpack.c.b16 %v8232, %v8229
    %v8386 = vpack.c.b16 %v8233, %v8230
    %v8387 = vpack.c.b16 %v8237, %v8234
    %v8388 = vpack.c.b16 %v8238, %v8235
    %v8389 = vpack.c.b16 %v8239, %v8236
    %v8390 = vpack.c.b16 %v8243, %v8240
    %v8391 = vpack.c.b16 %v8244, %v8241
    %v8392 = vpack.c.b16 %v8245, %v8242
    %v8393 = vpack.c.b16 %v8249, %v8246
    %v8394 = vpack.c.b16 %v8250, %v8247
    %v8395 = vpack.c.b16 %v8251, %v8248
    %v8396 = vpack.c.b16 %v8255, %v8252
    %v8397 = vpack.c.b16 %v8256, %v8253
    %v8398 = vpack.c.b16 %v8257, %v8254
    %v8399 = vpack.c.b16 %v8261, %v8258
    %v8400 = vpack.c.b16 %v8262, %v8259
    %v8401 = vpack.c.b16 %v8263, %v8260
    %v8402 = vpack.c.b16 %v8267, %v8264
    %v8403 = vpack.c.b16 %v8268, %v8265
    %v8404 = vpack.c.b16 %v8269, %v8266
    %v8405 = vpack.c.b16 %v8273, %v8270
    %v8406 = vpack.c.b16 %v8274, %v8271
    %v8407 = vpack.c.b16 %v8275, %v8272
    %v8408 = vpack.c.b16 %v8279, %v8276
    %v8409 = vpack.c.b16 %v8280, %v8277
    %v8410 = vpack.c.b16 %v8281, %v8278
    %v8411 = vpack.c.b16 %v8285, %v8282
    %v8412 = vpack.c.b16 %v8286, %v8283
    %v8413 = vpack.c.b16 %v8287, %v8284
    %v8414 = vpack.c.b16 %v8291, %v8288
    %v8415 = vpack.c.b16 %v8292, %v8289
    %v8416 = vpack.c.b16 %v8293, %v8290
    %v8417 = vpack.c.b16 %v8297, %v8294
    %v8418 = vpack.c.b16 %v8298, %v8295
    %v8419 = vpack.c.b16 %v8299, %v8296
    %v8420 = vpack.c.b16 %v8303, %v8300
    %v8421 = vpack.c.b16 %v8304, %v8301
    %v8422 = vpack.c.b16 %v8305, %v8302
    %v8423 = vpack.c.b16 %v8309, %v8306
    %v8424 = vpack.c.b16 %v8310, %v8307
    %v8425 = vpack.c.b16 %v8311, %v8308
    %v8426 = vpack.c.b16 %v8315, %v8312
    %v8427 = vpack.c.b16 %v8316, %v8313
    %v8428 = vpack.c.b16 %v8317, %v8314
    %v8429 = vpack.c.b16 %v8321, %v8318
    %v8430 = vpack.c.b16 %v8322, %v8319
    %v8431 = vpack.c.b16 %v8323, %v8320
    %v8432 = vpack.c.b16 %v8327, %v8324
    %v8433 = vpack.c.b16 %v8328, %v8325
    %v8434 = vpack.c.b16 %v8329, %v8326
    %v8435 = vpack.c.b16 %v8333, %v8330
    %v8436 = vpack.c.b16 %v8334, %v8331
    %v8437 = vpack.c.b16 %v8335, %v8332
    %v8438 = vpack.c.b16 %v8339, %v8336
    %v8439 = vpack.c.b16 %v8340, %v8337
    %v8440 = vpack.c.b16 %v8341, %v8338
    %v8441 = vpack.c.b16 %v8345, %v8342
    %v8442 = vpack.c.b16 %v8346, %v8343
    %v8443 = vpack.c.b16 %v8347, %v8344
    %8540 = vmatprep.subr.bf16.mxu0 %v8370
    %8541 = vmatpush1.bf16.msra.mxu0 %v8369
    %8542 = vmatprep.subr.bf16.mxu0 %v8367
    %8543 = vmatpush1.bf16.msra.mxu0 %v8366
    %8544 = vmatprep.subr.bf16.mxu0 %v8364
    %8545 = vmatpush1.bf16.msra.mxu0 %v8363
    %8546 = vmatprep.subr.bf16.mxu0 %v8361
    %8547 = vmatpush1.bf16.msra.mxu0 %v8360
    %8548 = vmatprep.subr.bf16.mxu0 %v8358
    %8549 = vmatpush1.bf16.msra.mxu0 %v8357
    %8550 = vmatprep.subr.bf16.mxu0 %v8355
    %8551 = vmatpush1.bf16.msra.mxu0 %v8354
    %8552 = vmatprep.subr.bf16.mxu0 %v8352
    %8553 = vmatpush1.bf16.msra.mxu0 %v8351
    %8554 = vmatprep.subr.bf16.mxu0 %v8349
    %8555 = vmatpush1.bf16.msra.mxu0 %v8348
    %8556 = vmatprep.subr.bf16.mxu0 %v8394
    %8557 = vmatpush2.bf16.msra.mxu0 %v8393
    %8558 = vmatprep.subr.bf16.mxu0 %v8391
    %8559 = vmatpush2.bf16.msra.mxu0 %v8390
    %8560 = vmatprep.subr.bf16.mxu0 %v8388
    %8561 = vmatpush2.bf16.msra.mxu0 %v8387
    %8562 = vmatprep.subr.bf16.mxu0 %v8385
    %8563 = vmatpush2.bf16.msra.mxu0 %v8384
    %8564 = vmatprep.subr.bf16.mxu0 %v8382
    %8565 = vmatpush2.bf16.msra.mxu0 %v8381
    %8566 = vmatprep.subr.bf16.mxu0 %v8379
    %8567 = vmatpush2.bf16.msra.mxu0 %v8378
    %8568 = vmatprep.subr.bf16.mxu0 %v8376
    %8569 = vmatpush2.bf16.msra.mxu0 %v8375
    %8570 = vmatprep.subr.bf16.mxu0 %v8373
    %8571 = vmatpush2.bf16.msra.mxu0 %v8372
    %8572 = vmatprep.mubr.bf16.mxu0 %v7892
    %8573 = vmatmul.mubr.bf16.gmra.mxu0 %v7891
    %v8574 = vpop.f32.mrf.mxu0
    %v8575 = vadd.f32 0.0, %v8574
    %v8576 = vpop.f32.mrf.mxu0
    %v8577 = vadd.f32 0.0, %v8576
    %v8578 = vpop.f32.mrf.mxu0
    %v8579 = vadd.f32 0.0, %v8578
    %v8580 = vpop.f32.mrf.mxu0
    %v8581 = vadd.f32 0.0, %v8580
    %8582 = vmatprep.mubr.bf16.mxu0 %v7896
    %8583 = vmatmul.mubr.bf16.gmra.mxu0 %v7895
    %v8584 = vpop.f32.mrf.mxu0
    %v8585 = vadd.f32 0.0, %v8584
    %v8586 = vpop.f32.mrf.mxu0
    %v8587 = vadd.f32 0.0, %v8586
    %v8588 = vpop.f32.mrf.mxu0
    %v8589 = vpop.f32.mrf.mxu0
    %8590 = vdwg.mxu0
    %8591 = vmatprep.subr.bf16.mxu0 %v8418
    %8592 = vmatpush1.bf16.msra.mxu0 %v8417
    %8593 = vmatprep.subr.bf16.mxu0 %v8415
    %8594 = vmatpush1.bf16.msra.mxu0 %v8414
    %8595 = vmatprep.subr.bf16.mxu0 %v8412
    %8596 = vmatpush1.bf16.msra.mxu0 %v8411
    %8597 = vmatprep.subr.bf16.mxu0 %v8409
    %8598 = vmatpush1.bf16.msra.mxu0 %v8408
    %8599 = vmatprep.subr.bf16.mxu0 %v8406
    %8600 = vmatpush1.bf16.msra.mxu0 %v8405
    %8601 = vmatprep.subr.bf16.mxu0 %v8403
    %8602 = vmatpush1.bf16.msra.mxu0 %v8402
    %8603 = vmatprep.subr.bf16.mxu0 %v8400
    %8604 = vmatpush1.bf16.msra.mxu0 %v8399
    %8605 = vmatprep.subr.bf16.mxu0 %v8397
    %8606 = vmatpush1.bf16.msra.mxu0 %v8396
    %8607 = vmatprep.subr.bf16.mxu0 %v8442
    %8608 = vmatpush2.bf16.msra.mxu0 %v8441
    %8609 = vmatprep.subr.bf16.mxu0 %v8439
    %8610 = vmatpush2.bf16.msra.mxu0 %v8438
    %8611 = vmatprep.subr.bf16.mxu0 %v8436
    %8612 = vmatpush2.bf16.msra.mxu0 %v8435
    %8613 = vmatprep.subr.bf16.mxu0 %v8433
    %8614 = vmatpush2.bf16.msra.mxu0 %v8432
    %8615 = vmatprep.subr.bf16.mxu0 %v8430
    %8616 = vmatpush2.bf16.msra.mxu0 %v8429
    %8617 = vmatprep.subr.bf16.mxu0 %v8427
    %8618 = vmatpush2.bf16.msra.mxu0 %v8426
    %8619 = vmatprep.subr.bf16.mxu0 %v8424
    %8620 = vmatpush2.bf16.msra.mxu0 %v8423
    %8621 = vmatprep.subr.bf16.mxu0 %v8421
    %8622 = vmatpush2.bf16.msra.mxu0 %v8420
    %8623 = vmatprep.mubr.bf16.mxu0 %v7894
    %8624 = vmatmul.mubr.bf16.gmra.mxu0 %v7893
    %v8625 = vpop.f32.mrf.mxu0
    %v8626 = vadd.f32 %v8575, %v8625
    %v8627 = vpop.f32.mrf.mxu0
    %v8628 = vadd.f32 %v8577, %v8627
    %v8629 = vpop.f32.mrf.mxu0
    %v8630 = vadd.f32 %v8579, %v8629
    %v8631 = vpop.f32.mrf.mxu0
    %v8632 = vadd.f32 %v8581, %v8631
    %8633 = vmatprep.mubr.bf16.mxu0 %v7898
    %8634 = vmatmul.mubr.bf16.gmra.mxu0 %v7897
    %v8635 = vpop.f32.mrf.mxu0
    %v8636 = vadd.f32 %v8585, %v8635
    %v8637 = vpop.f32.mrf.mxu0
    %v8638 = vadd.f32 %v8587, %v8637
    %v8639 = vpop.f32.mrf.mxu0
    %v8640 = vpop.f32.mrf.mxu0
    %8641 = vdwg.mxu0
    %8642 = vmatprep.subr.bf16.mxu0 0
    %8643 = vmatpush1.bf16.msra.mxu0 %v8371
    %8644 = vmatprep.subr.bf16.mxu0 0
    %8645 = vmatpush1.bf16.msra.mxu0 %v8368
    %8646 = vmatprep.subr.bf16.mxu0 0
    %8647 = vmatpush1.bf16.msra.mxu0 %v8365
    %8648 = vmatprep.subr.bf16.mxu0 0
    %8649 = vmatpush1.bf16.msra.mxu0 %v8362
    %8650 = vmatprep.subr.bf16.mxu0 0
    %8651 = vmatpush1.bf16.msra.mxu0 %v8359
    %8652 = vmatprep.subr.bf16.mxu0 0
    %8653 = vmatpush1.bf16.msra.mxu0 %v8356
    %8654 = vmatprep.subr.bf16.mxu0 0
    %8655 = vmatpush1.bf16.msra.mxu0 %v8353
    %8656 = vmatprep.subr.bf16.mxu0 0
    %8657 = vmatpush1.bf16.msra.mxu0 %v8350
    %8658 = vmatprep.subr.bf16.mxu0 0
    %8659 = vmatpush2.bf16.msra.mxu0 %v8395
    %8660 = vmatprep.subr.bf16.mxu0 0
    %8661 = vmatpush2.bf16.msra.mxu0 %v8392
    %8662 = vmatprep.subr.bf16.mxu0 0
    %8663 = vmatpush2.bf16.msra.mxu0 %v8389
    %8664 = vmatprep.subr.bf16.mxu0 0
    %8665 = vmatpush2.bf16.msra.mxu0 %v8386
    %8666 = vmatprep.subr.bf16.mxu0 0
    %8667 = vmatpush2.bf16.msra.mxu0 %v8383
    %8668 = vmatprep.subr.bf16.mxu0 0
    %8669 = vmatpush2.bf16.msra.mxu0 %v8380
    %8670 = vmatprep.subr.bf16.mxu0 0
    %8671 = vmatpush2.bf16.msra.mxu0 %v8377
    %8672 = vmatprep.subr.bf16.mxu0 0
    %8673 = vmatpush2.bf16.msra.mxu0 %v8374
    %8674 = vmatprep.mubr.bf16.mxu0 %v7892
    %8675 = vmatmul.mubr.bf16.gmra.mxu0 %v7891
    %v8676 = vpop.f32.mrf.mxu0
    %v8677 = vadd.f32 0.0, %v8676
    %v8678 = vpop.f32.mrf.mxu0
    %v8679 = vpop.f32.mrf.mxu0
    %v8680 = vadd.f32 0.0, %v8679
    %v8681 = vpop.f32.mrf.mxu0
    %8682 = vmatprep.mubr.bf16.mxu0 %v7896
    %8683 = vmatmul.mubr.bf16.gmra.mxu0 %v7895
    %v8684 = vpop.f32.mrf.mxu0
    %v8685 = vadd.f32 0.0, %v8684
    %v8686 = vpop.f32.mrf.mxu0
    %v8687 = vpop.f32.mrf.mxu0
    %v8688 = vpop.f32.mrf.mxu0
    %8689 = vdwg.mxu0
    %8690 = vmatprep.subr.bf16.mxu0 0
    %8691 = vmatpush1.bf16.msra.mxu0 %v8419
    %8692 = vmatprep.subr.bf16.mxu0 0
    %8693 = vmatpush1.bf16.msra.mxu0 %v8416
    %8694 = vmatprep.subr.bf16.mxu0 0
    %8695 = vmatpush1.bf16.msra.mxu0 %v8413
    %8696 = vmatprep.subr.bf16.mxu0 0
    %8697 = vmatpush1.bf16.msra.mxu0 %v8410
    %8698 = vmatprep.subr.bf16.mxu0 0
    %8699 = vmatpush1.bf16.msra.mxu0 %v8407
    %8700 = vmatprep.subr.bf16.mxu0 0
    %8701 = vmatpush1.bf16.msra.mxu0 %v8404
    %8702 = vmatprep.subr.bf16.mxu0 0
    %8703 = vmatpush1.bf16.msra.mxu0 %v8401
    %8704 = vmatprep.subr.bf16.mxu0 0
    %8705 = vmatpush1.bf16.msra.mxu0 %v8398
    %8706 = vmatprep.subr.bf16.mxu0 0
    %8707 = vmatpush2.bf16.msra.mxu0 %v8443
    %8708 = vmatprep.subr.bf16.mxu0 0
    %8709 = vmatpush2.bf16.msra.mxu0 %v8440
    %8710 = vmatprep.subr.bf16.mxu0 0
    %8711 = vmatpush2.bf16.msra.mxu0 %v8437
    %8712 = vmatprep.subr.bf16.mxu0 0
    %8713 = vmatpush2.bf16.msra.mxu0 %v8434
    %8714 = vmatprep.subr.bf16.mxu0 0
    %8715 = vmatpush2.bf16.msra.mxu0 %v8431
    %8716 = vmatprep.subr.bf16.mxu0 0
    %8717 = vmatpush2.bf16.msra.mxu0 %v8428
    %8718 = vmatprep.subr.bf16.mxu0 0
    %8719 = vmatpush2.bf16.msra.mxu0 %v8425
    %8720 = vmatprep.subr.bf16.mxu0 0
    %8721 = vmatpush2.bf16.msra.mxu0 %v8422
    %8722 = vmatprep.mubr.bf16.mxu0 %v7894
    %8723 = vmatmul.mubr.bf16.gmra.mxu0 %v7893
    %v8724 = vpop.f32.mrf.mxu0
    %v8725 = vadd.f32 %v8677, %v8724
    %v8726 = vpop.f32.mrf.mxu0
    %v8727 = vpop.f32.mrf.mxu0
    %v8728 = vadd.f32 %v8680, %v8727
    %v8729 = vpop.f32.mrf.mxu0
    %8730 = vmatprep.mubr.bf16.mxu0 %v7898
    %8731 = vmatmul.mubr.bf16.gmra.mxu0 %v7897
    %v8732 = vpop.f32.mrf.mxu0
    %v8733 = vadd.f32 %v8685, %v8732
    %v8734 = vpop.f32.mrf.mxu0
    %v8735 = vpop.f32.mrf.mxu0
    %v8736 = vpop.f32.mrf.mxu0
    %8737 = vdwg.mxu0
    %v8738 = vadd.f32 %v7779, %v8626
    %v8739 = vadd.f32 %v7781, %v8628
    %v8740 = vadd.f32 %v7878, %v8725
    %v8741 = vadd.f32 %v7783, %v8630
    %v8742 = vadd.f32 %v7785, %v8632
    %v8743 = vadd.f32 %v7881, %v8728
    %v8744 = vadd.f32 %v7789, %v8636
    %v8745 = vadd.f32 %v7791, %v8638
    %v8746 = vadd.f32 %v7886, %v8733
    %v8747 = vld [vmem:[#allocation7] sm:$0x7]
    %v8749 = vlaneseq
    %v8750 = vshrl.u32 %v8749, 7
    %v8751 = vsub.s32 0, %v8750
    %v8752 = vrot.slane %v8747, %v8751
    %v8753 = vlaneseq
    %v8754 = vshrl.u32 %v8753, 7
    %v8755 = vsub.s32 1, %v8754
    %v8756 = vrot.slane %v8747, %v8755
    %v8757 = vlaneseq
    %v8758 = vshrl.u32 %v8757, 7
    %v8759 = vsub.s32 2, %v8758
    %v8760 = vrot.slane %v8747, %v8759
    %v8764 = vadd.f32 %v8738, %v8752
    %v8765 = vadd.f32 %v8739, %v8756
    %v8766 = vadd.f32 %v8740, %v8760
    %v8767 = vadd.f32 %v8741, %v8752
    %v8768 = vadd.f32 %v8742, %v8756
    %v8769 = vadd.f32 %v8743, %v8760
    %v8770 = vadd.f32 %v8744, %v8752
    %v8771 = vadd.f32 %v8745, %v8756
    %v8772 = vadd.f32 %v8746, %v8760
    %v8773 = vmax.f32 %v8764, 0.0
    %v8774 = vmax.f32 %v8765, 0.0
    %v8775 = vmax.f32 %v8766, 0.0
    %v8776 = vmax.f32 %v8767, 0.0
    %v8777 = vmax.f32 %v8768, 0.0
    %v8778 = vmax.f32 %v8769, 0.0
    %v8779 = vmax.f32 %v8770, 0.0
    %v8780 = vmax.f32 %v8771, 0.0
    %v8781 = vmax.f32 %v8772, 0.0
    %v8782 = vadd.f32 %v8773, %v8776
    %v8783 = vadd.f32 %v8782, %v8779
    %v8784 = vadd.f32 %v8774, %v8777
    %v8785 = vadd.f32 %v8784, %v8780
    %v8786 = vadd.f32 %v8775, %v8778
    %v8787 = vadd.f32 %v8786, %v8781
    %v8788 = vpack.c.bf16 %v8783, %v8783
    %v8789 = vpack.c.bf16 %v8785, %v8785
    %v8790 = vpack.c.bf16 %v8787, %v8787
    %v8791 = vld [vmem:[%s7] sm:$0xf]
    %v8792 = vld [vmem:[%s7 + $0x4] sm:$0xf]
    %v8793 = vld [vmem:[%s7 + $0x8] sm:$0xf]
    %v8794 = vld [vmem:[%s7 + $0xc] sm:$0xf]
    %v8795 = vld [vmem:[%s7 + $0x10] sm:$0xf]
    %v8796 = vld [vmem:[%s7 + $0x14] sm:$0xf]
    %v8797 = vld [vmem:[%s7 + $0x18] sm:$0xf]
    %v8798 = vld [vmem:[%s7 + $0x1c] sm:$0xf]
    %v8799 = vld [vmem:[%s7 + $0x20] sm:$0xf]
    %v8800 = vld [vmem:[%s7 + $0x24] sm:$0xf]
    %v8801 = vld [vmem:[%s7 + $0x28] sm:$0xf]
    %v8802 = vld [vmem:[%s7 + $0x2c] sm:$0xf]
    %v8803 = vld [vmem:[%s7 + $0x30] sm:$0xf]
    %v8804 = vld [vmem:[%s7 + $0x34] sm:$0xf]
    %v8805 = vld [vmem:[%s7 + $0x38] sm:$0xf]
    %v8806 = vld [vmem:[%s7 + $0x3c] sm:$0xf]
    %v8807 = vld [vmem:[%s7 + $0x40] sm:$0xf]
    %v8808 = vld [vmem:[%s7 + $0x44] sm:$0xf]
    %v8809 = vld [vmem:[%s7 + $0x48] sm:$0xf]
    %v8810 = vld [vmem:[%s7 + $0x4c] sm:$0xf]
    %v8811 = vld [vmem:[%s7 + $0x50] sm:$0xf]
    %v8812 = vld [vmem:[%s7 + $0x54] sm:$0xf]
    %v8813 = vld [vmem:[%s7 + $0x58] sm:$0xf]
    %v8814 = vld [vmem:[%s7 + $0x5c] sm:$0xf]
    %v8815 = vld [vmem:[%s7 + $0x60] sm:$0xf]
    %v8816 = vld [vmem:[%s7 + $0x64] sm:$0xf]
    %v8817 = vld [vmem:[%s7 + $0x68] sm:$0xf]
    %v8818 = vld [vmem:[%s7 + $0x6c] sm:$0xf]
    %v8819 = vld [vmem:[%s7 + $0x70] sm:$0xf]
    %v8820 = vld [vmem:[%s7 + $0x74] sm:$0xf]
    %v8821 = vld [vmem:[%s7 + $0x78] sm:$0xf]
    %v8822 = vld [vmem:[%s7 + $0x7c] sm:$0xf]
    %v8823 = vld [vmem:[%s7 + $0x80] sm:$0xf]
    %v8824 = vld [vmem:[%s7 + $0x84] sm:$0xf]
    %v8825 = vld [vmem:[%s7 + $0x88] sm:$0xf]
    %v8826 = vld [vmem:[%s7 + $0x8c] sm:$0xf]
    %v8827 = vld [vmem:[%s7 + $0x90] sm:$0xf]
    %v8828 = vld [vmem:[%s7 + $0x94] sm:$0xf]
    %v8829 = vld [vmem:[%s7 + $0x98] sm:$0xf]
    %v8830 = vld [vmem:[%s7 + $0x9c] sm:$0xf]
    %v8831 = vld [vmem:[%s7 + $0xa0] sm:$0xf]
    %v8832 = vld [vmem:[%s7 + $0xa4] sm:$0xf]
    %v8833 = vld [vmem:[%s7 + $0xa8] sm:$0xf]
    %v8834 = vld [vmem:[%s7 + $0xac] sm:$0xf]
    %v8835 = vld [vmem:[%s7 + $0xb0] sm:$0xf]
    %v8836 = vld [vmem:[%s7 + $0xb4] sm:$0xf]
    %v8837 = vld [vmem:[%s7 + $0xb8] sm:$0xf]
    %v8838 = vld [vmem:[%s7 + $0xbc] sm:$0xf]
    %v8839 = vld [vmem:[#allocation9] sm:$0x1]
    %v8841 = vlaneseq
    %v8842 = vshrl.u32 %v8841, 7
    %v8843 = vsub.s32 0, %v8842
    %v8844 = vrot.slane %v8839, %v8843
    %v8894 = vunpack.c.l.b16 %v8791
    %v8895 = vunpack.c.l.b16 %v8792
    %v8896 = vunpack.c.l.b16 %v8793
    %v8897 = vunpack.c.l.b16 %v8794
    %v8898 = vunpack.c.l.b16 %v8795
    %v8899 = vunpack.c.l.b16 %v8796
    %v8900 = vunpack.c.l.b16 %v8797
    %v8901 = vunpack.c.l.b16 %v8798
    %v8902 = vunpack.c.l.b16 %v8799
    %v8903 = vunpack.c.l.b16 %v8800
    %v8904 = vunpack.c.l.b16 %v8801
    %v8905 = vunpack.c.l.b16 %v8802
    %v8906 = vunpack.c.l.b16 %v8803
    %v8907 = vunpack.c.l.b16 %v8804
    %v8908 = vunpack.c.l.b16 %v8805
    %v8909 = vunpack.c.l.b16 %v8806
    %v8910 = vunpack.c.l.b16 %v8807
    %v8911 = vunpack.c.l.b16 %v8808
    %v8912 = vunpack.c.l.b16 %v8809
    %v8913 = vunpack.c.l.b16 %v8810
    %v8914 = vunpack.c.l.b16 %v8811
    %v8915 = vunpack.c.l.b16 %v8812
    %v8916 = vunpack.c.l.b16 %v8813
    %v8917 = vunpack.c.l.b16 %v8814
    %v8918 = vunpack.c.l.b16 %v8815
    %v8919 = vunpack.c.l.b16 %v8816
    %v8920 = vunpack.c.l.b16 %v8817
    %v8921 = vunpack.c.l.b16 %v8818
    %v8922 = vunpack.c.l.b16 %v8819
    %v8923 = vunpack.c.l.b16 %v8820
    %v8924 = vunpack.c.l.b16 %v8821
    %v8925 = vunpack.c.l.b16 %v8822
    %v8926 = vunpack.c.l.b16 %v8823
    %v8927 = vunpack.c.l.b16 %v8824
    %v8928 = vunpack.c.l.b16 %v8825
    %v8929 = vunpack.c.l.b16 %v8826
    %v8930 = vunpack.c.l.b16 %v8827
    %v8931 = vunpack.c.l.b16 %v8828
    %v8932 = vunpack.c.l.b16 %v8829
    %v8933 = vunpack.c.l.b16 %v8830
    %v8934 = vunpack.c.l.b16 %v8831
    %v8935 = vunpack.c.l.b16 %v8832
    %v8936 = vunpack.c.l.b16 %v8833
    %v8937 = vunpack.c.l.b16 %v8834
    %v8938 = vunpack.c.l.b16 %v8835
    %v8939 = vunpack.c.l.b16 %v8836
    %v8940 = vunpack.c.l.b16 %v8837
    %v8941 = vunpack.c.l.b16 %v8838
    %v8942 = vpack.c.b16 %v8895, %v8894
    %v8943 = vpack.c.b16 %v8897, %v8896
    %v8944 = vpack.c.b16 %v8899, %v8898
    %v8945 = vpack.c.b16 %v8901, %v8900
    %v8946 = vpack.c.b16 %v8903, %v8902
    %v8947 = vpack.c.b16 %v8905, %v8904
    %v8948 = vpack.c.b16 %v8907, %v8906
    %v8949 = vpack.c.b16 %v8909, %v8908
    %v8950 = vpack.c.b16 %v8911, %v8910
    %v8951 = vpack.c.b16 %v8913, %v8912
    %v8952 = vpack.c.b16 %v8915, %v8914
    %v8953 = vpack.c.b16 %v8917, %v8916
    %v8954 = vpack.c.b16 %v8919, %v8918
    %v8955 = vpack.c.b16 %v8921, %v8920
    %v8956 = vpack.c.b16 %v8923, %v8922
    %v8957 = vpack.c.b16 %v8925, %v8924
    %v8958 = vpack.c.b16 %v8927, %v8926
    %v8959 = vpack.c.b16 %v8929, %v8928
    %v8960 = vpack.c.b16 %v8931, %v8930
    %v8961 = vpack.c.b16 %v8933, %v8932
    %v8962 = vpack.c.b16 %v8935, %v8934
    %v8963 = vpack.c.b16 %v8937, %v8936
    %v8964 = vpack.c.b16 %v8939, %v8938
    %v8965 = vpack.c.b16 %v8941, %v8940
    %8990 = vmatprep.subr.bf16.mxu0 0
    %8991 = vmatpush1.bf16.msra.mxu0 %v8949
    %8992 = vmatprep.subr.bf16.mxu0 0
    %8993 = vmatpush1.bf16.msra.mxu0 %v8948
    %8994 = vmatprep.subr.bf16.mxu0 0
    %8995 = vmatpush1.bf16.msra.mxu0 %v8947
    %8996 = vmatprep.subr.bf16.mxu0 0
    %8997 = vmatpush1.bf16.msra.mxu0 %v8946
    %8998 = vmatprep.subr.bf16.mxu0 0
    %8999 = vmatpush1.bf16.msra.mxu0 %v8945
    %9000 = vmatprep.subr.bf16.mxu0 0
    %9001 = vmatpush1.bf16.msra.mxu0 %v8944
    %9002 = vmatprep.subr.bf16.mxu0 0
    %9003 = vmatpush1.bf16.msra.mxu0 %v8943
    %9004 = vmatprep.subr.bf16.mxu0 0
    %9005 = vmatpush1.bf16.msra.mxu0 %v8942
    %9006 = vmatprep.subr.bf16.mxu0 0
    %9007 = vmatpush2.bf16.msra.mxu0 %v8957
    %9008 = vmatprep.subr.bf16.mxu0 0
    %9009 = vmatpush2.bf16.msra.mxu0 %v8956
    %9010 = vmatprep.subr.bf16.mxu0 0
    %9011 = vmatpush2.bf16.msra.mxu0 %v8955
    %9012 = vmatprep.subr.bf16.mxu0 0
    %9013 = vmatpush2.bf16.msra.mxu0 %v8954
    %9014 = vmatprep.subr.bf16.mxu0 0
    %9015 = vmatpush2.bf16.msra.mxu0 %v8953
    %9016 = vmatprep.subr.bf16.mxu0 0
    %9017 = vmatpush2.bf16.msra.mxu0 %v8952
    %9018 = vmatprep.subr.bf16.mxu0 0
    %9019 = vmatpush2.bf16.msra.mxu0 %v8951
    %9020 = vmatprep.subr.bf16.mxu0 0
    %9021 = vmatpush2.bf16.msra.mxu0 %v8950
    %9022 = vmatprep.mubr.bf16.mxu0 %v8789
    %9023 = vmatmul.mubr.bf16.gmra.mxu0 %v8788
    %v9024 = vpop.f32.mrf.mxu0
    %v9025 = vadd.f32 %v8844, %v9024
    %v9026 = vpop.f32.mrf.mxu0
    %v9027 = vpop.f32.mrf.mxu0
    %v9028 = vpop.f32.mrf.mxu0
    %9029 = vdwg.mxu0
    %9030 = vmatprep.subr.bf16.mxu0 0
    %9031 = vmatpush1.bf16.msra.mxu0 %v8965
    %9032 = vmatprep.subr.bf16.mxu0 0
    %9033 = vmatpush1.bf16.msra.mxu0 %v8964
    %9034 = vmatprep.subr.bf16.mxu0 0
    %9035 = vmatpush1.bf16.msra.mxu0 %v8963
    %9036 = vmatprep.subr.bf16.mxu0 0
    %9037 = vmatpush1.bf16.msra.mxu0 %v8962
    %9038 = vmatprep.subr.bf16.mxu0 0
    %9039 = vmatpush1.bf16.msra.mxu0 %v8961
    %9040 = vmatprep.subr.bf16.mxu0 0
    %9041 = vmatpush1.bf16.msra.mxu0 %v8960
    %9042 = vmatprep.subr.bf16.mxu0 0
    %9043 = vmatpush1.bf16.msra.mxu0 %v8959
    %9044 = vmatprep.subr.bf16.mxu0 0
    %9045 = vmatpush1.bf16.msra.mxu0 %v8958
    %9046 = vmatprep.subr.bf16.mxu0 0
    %9047 = vmatpush2.bf16.msra.mxu0 0
    %9048 = vmatprep.subr.bf16.mxu0 0
    %9049 = vmatpush2.bf16.msra.mxu0 0
    %9050 = vmatprep.subr.bf16.mxu0 0
    %9051 = vmatpush2.bf16.msra.mxu0 0
    %9052 = vmatprep.subr.bf16.mxu0 0
    %9053 = vmatpush2.bf16.msra.mxu0 0
    %9054 = vmatprep.subr.bf16.mxu0 0
    %9055 = vmatpush2.bf16.msra.mxu0 0
    %9056 = vmatprep.subr.bf16.mxu0 0
    %9057 = vmatpush2.bf16.msra.mxu0 0
    %9058 = vmatprep.subr.bf16.mxu0 0
    %9059 = vmatpush2.bf16.msra.mxu0 0
    %9060 = vmatprep.subr.bf16.mxu0 0
    %9061 = vmatpush2.bf16.msra.mxu0 0
    %9062 = vmatprep.mubr.bf16.mxu0 0
    %9063 = vmatmul.mubr.bf16.gmra.mxu0 %v8790
    %v9064 = vpop.f32.mrf.mxu0
    %v9065 = vadd.f32 %v9025, %v9064
    %v9066 = vpop.f32.mrf.mxu0
    %v9067 = vpop.f32.mrf.mxu0
    %v9068 = vpop.f32.mrf.mxu0
    %9069 = vdwg.mxu0
    %vm9070 = vcmask 64512
    %9071 = vst.msk [vmem:[%s9] sm:$0xff] %vm9070, %v9065
    // Predicated region
    $region58: #{mynet_forward.1} parent=1 // pred_check
      _
    $region59: #{mynet_forward.1} parent=1 // pred_check_branch
      %9073 = sbr.rel (0) target = $region61
    $region60: #{mynet_forward.1} parent=1 // pred_region
      _
    $region61: #{mynet_forward.1} parent=1 // pred_fallthru
      _
    // Predicated region
    $region62: #{mynet_forward.1} parent=1 // pred_check
      _
    $region63: #{mynet_forward.1} parent=1 // pred_check_branch
      %9075 = sbr.rel (0) target = $region65
    $region64: #{mynet_forward.1} parent=1 // pred_region
      _
    $region65: #{mynet_forward.1} parent=1 // pred_fallthru
      _
    %9076 = vsyncpa [#allocation3], 1
    %9077 = vsyncpa [#allocation5], 1
    %9078 = vsyncpa [#allocation8], 1

</llo_original>
